<compile_context>
chip_gen: v6e
topology: v6e:2x2x1
jax: 0.10.0
libtpu: 0.0.40
codegen_flags: <defaults>
</compile_context>

<pallas_src>
import jax
import jax.numpy as jnp
from jax.experimental import pallas as pl
from jax.experimental.pallas import tpu as pltpu

EPS = 1e-5  # nn.InstanceNorm2d default


def _instance_norm(y):
    # y: (L, C) f32. Normalize over spatial rows per channel (biased var).
    mean = jnp.mean(y, axis=0, keepdims=True)
    var = jnp.mean((y - mean) ** 2, axis=0, keepdims=True)
    return (y - mean) * jax.lax.rsqrt(var + EPS)


def _conv3x3_from_padded(pad_ref, w_ref, H, W):
    # pad_ref: (H+2, W+2, Cin) f32 VMEM scratch holding the zero-padded input.
    # w_ref:   (3, 3, Cin, Cout) bf16 weights (kh, kw, cin, cout).
    # Returns (H*W, Cout) f32: nine accumulated shifted-window MXU matmuls
    # (= 3x3 conv, stride 1, padding 1) without any HBM im2col.
    Cin = pad_ref.shape[-1]
    Cout = w_ref.shape[-1]
    acc = jnp.zeros((H * W, Cout), jnp.float32)
    for kh in range(3):
        for kw in range(3):
            win = pad_ref[kh:kh + H, kw:kw + W, :]            # (H, W, Cin) f32
            win = win.reshape(H * W, Cin).astype(jnp.bfloat16)
            acc = acc + jnp.dot(win, w_ref[kh, kw],
                                preferred_element_type=jnp.float32)
    return acc


def _dense_block_kernel(x_ref, w1_ref, w2_ref, out_ref, xp_ref, hp_ref):
    _, H, W, Cin = x_ref.shape
    G = w1_ref.shape[-1]
    x = x_ref[0]                                              # (H, W, Cin) f32

    # conv1 (3x3, pad 1) -> InstanceNorm -> ReLU.  (Conv bias is cancelled by
    # the parameterless InstanceNorm, so it is not computed.)
    xp_ref[...] = jnp.zeros_like(xp_ref)
    xp_ref[1:H + 1, 1:W + 1, :] = x
    h = jnp.maximum(
        _instance_norm(_conv3x3_from_padded(xp_ref, w1_ref, H, W)), 0.0)

    # conv2 (3x3, pad 1) -> InstanceNorm.  h stays resident in VMEM.
    hp_ref[...] = jnp.zeros_like(hp_ref)
    hp_ref[1:H + 1, 1:W + 1, :] = h.reshape(H, W, G)
    y = _instance_norm(_conv3x3_from_padded(hp_ref, w2_ref, H, W))

    # Fused concat: out[..., :Cin] = x, out[..., Cin:] = block(x).
    out_ref[0, :, :, :Cin] = x
    out_ref[0, :, :, Cin:] = y.reshape(H, W, G).astype(out_ref.dtype)


def dense_block(x_nchw, w1_oihw, w2_oihw):
    """DenseBlock.forward: x (N,C,H,W) f32, weights in PyTorch OIHW layout."""
    N, Cin, H, W = x_nchw.shape
    G = w1_oihw.shape[0]
    x = jnp.transpose(x_nchw, (0, 2, 3, 1)).astype(jnp.float32)      # NHWC
    # Pre-pack weights to (kh, kw, Cin, Cout) and bf16 for the MXU.
    w1 = jnp.transpose(w1_oihw, (2, 3, 1, 0)).astype(jnp.bfloat16)
    w2 = jnp.transpose(w2_oihw, (2, 3, 1, 0)).astype(jnp.bfloat16)

    out = pl.pallas_call(
        _dense_block_kernel,
        out_shape=jax.ShapeDtypeStruct((N, H, W, Cin + G), jnp.float32),
        grid=(N,),
        in_specs=[
            pl.BlockSpec((1, H, W, Cin), lambda n: (n, 0, 0, 0)),
            pl.BlockSpec((3, 3, Cin, G), lambda n: (0, 0, 0, 0)),
            pl.BlockSpec((3, 3, G, G), lambda n: (0, 0, 0, 0)),
        ],
        out_specs=pl.BlockSpec((1, H, W, Cin + G), lambda n: (n, 0, 0, 0)),
        scratch_shapes=[
            pltpu.VMEM((H + 2, W + 2, Cin), jnp.float32),   # zero-padded x
            pltpu.VMEM((H + 2, W + 2, G), jnp.float32),     # zero-padded h
        ],
        compiler_params=pltpu.CompilerParams(
            dimension_semantics=("parallel",)),
    )(x, w1, w2)
    return jnp.transpose(out, (0, 3, 1, 2))                  # back to NCHW


# --------------------------- pure-JAX reference ----------------------------
def _dense_block_reference(x, w1, w2):
    def conv3x3(z, w):
        return jax.lax.conv_general_dilated(
            z, w, window_strides=(1, 1), padding=((1, 1), (1, 1)),
            dimension_numbers=("NCHW", "OIHW", "NCHW"))

    def inorm(z):
        mean = jnp.mean(z, axis=(2, 3), keepdims=True)
        var = jnp.mean((z - mean) ** 2, axis=(2, 3), keepdims=True)
        return (z - mean) * jax.lax.rsqrt(var + EPS)

    h = jnp.maximum(inorm(conv3x3(x, w1)), 0.0)
    h = inorm(conv3x3(h, w2))
    return jnp.concatenate([x, h], axis=1)


if __name__ == "__main__":
    key = jax.random.PRNGKey(0)
    kx, k1, k2 = jax.random.split(key, 3)
    # Small, lane-aligned shapes consistent with the module (growth_rate=256).
    N, Cin, H, W, G = 2, 128, 16, 16, 256
    x = jax.random.normal(kx, (N, Cin, H, W), jnp.float32)
    w1 = jax.random.normal(k1, (G, Cin, 3, 3), jnp.float32) * 0.05
    w2 = jax.random.normal(k2, (G, G, 3, 3), jnp.float32) * 0.05

    out = jax.block_until_ready(jax.jit(dense_block)(x, w1, w2))
    assert out.shape == (N, Cin + G, H, W), out.shape
    assert bool(jnp.all(jnp.isfinite(out)))

    ref = _dense_block_reference(x, w1, w2)
    err = float(jnp.max(jnp.abs(out - ref)))
    assert err < 0.2, f"max abs error vs reference: {err}"   # bf16-MXU tolerance
    print("KERNEL_OK")
</pallas_src>

<mosaic_0001>
module attributes {stable_mosaic.version = 11 : i64} {
  func.func @_dense_block_kernel(%arg0: i32, %arg1: memref<1x16x16x128xf32, #tpu.memory_space<vmem>>, %arg2: memref<3x3x128x256xbf16, #tpu.memory_space<vmem>>, %arg3: memref<3x3x256x256xbf16, #tpu.memory_space<vmem>>, %arg4: memref<1x16x16x384xf32, #tpu.memory_space<vmem>>, %arg5: memref<18x18x128xf32, #tpu.memory_space<vmem>>, %arg6: memref<18x18x256xf32, #tpu.memory_space<vmem>>) attributes {dimension_semantics = [#tpu.dimension_semantics<parallel>], iteration_bounds = array<i64: 2>, scalar_prefetch = 0 : i64, scratch_operands = 2 : i64, tpu.core_type = #tpu.core_type<tc>, window_params = [{transform_indices = @transform_0, window_bounds = array<i64: 1, 16, 16, 128>}, {pipeline_mode = #tpu.pipeline_mode<synchronous>, transform_indices = @transform_1, window_bounds = array<i64: 3, 3, 128, 256>}, {pipeline_mode = #tpu.pipeline_mode<synchronous>, transform_indices = @transform_2, window_bounds = array<i64: 3, 3, 256, 256>}, {transform_indices = @transform_3, window_bounds = array<i64: 1, 16, 16, 384>}]} {
    %c0 = arith.constant 0 : index
    %c0_0 = arith.constant 0 : index
    %c0_1 = arith.constant 0 : index
    %c0_2 = arith.constant 0 : index
    %0 = vector.load %arg1[%c0, %c0_0, %c0_1, %c0_2] : memref<1x16x16x128xf32, #tpu.memory_space<vmem>>, vector<1x16x16x128xf32>
    %1 = vector.shape_cast %0 : vector<1x16x16x128xf32> to vector<16x16x128xf32>
    %cst = arith.constant 0.000000e+00 : f32
    %2 = vector.broadcast %cst : f32 to vector<18x18x128xf32>
    %c0_3 = arith.constant 0 : index
    %c0_4 = arith.constant 0 : index
    %c0_5 = arith.constant 0 : index
    %3 = vector.load %arg5[%c0_3, %c0_4, %c0_5] : memref<18x18x128xf32, #tpu.memory_space<vmem>>, vector<18x18x128xf32>
    tpu.vector_store %arg5[%c0_3, %c0_4, %c0_5], %2 {strides = array<i32>} : memref<18x18x128xf32, #tpu.memory_space<vmem>>, vector<18x18x128xf32>,
    %c1 = arith.constant 1 : index
    %c1_6 = arith.constant 1 : index
    %c0_7 = arith.constant 0 : index
    %4 = vector.load %arg5[%c1, %c1_6, %c0_7] : memref<18x18x128xf32, #tpu.memory_space<vmem>>, vector<16x16x128xf32>
    tpu.vector_store %arg5[%c1, %c1_6, %c0_7], %1 {strides = array<i32>} : memref<18x18x128xf32, #tpu.memory_space<vmem>>, vector<16x16x128xf32>,
    %cst_8 = arith.constant 0.000000e+00 : f32
    %5 = vector.broadcast %cst_8 : f32 to vector<256x256xf32>
    %c0_9 = arith.constant 0 : index
    %c0_10 = arith.constant 0 : index
    %c0_11 = arith.constant 0 : index
    %6 = vector.load %arg5[%c0_9, %c0_10, %c0_11] : memref<18x18x128xf32, #tpu.memory_space<vmem>>, vector<16x16x128xf32>
    %7 = vector.shape_cast %6 : vector<16x16x128xf32> to vector<256x128xf32>
    %8 = arith.truncf %7 : vector<256x128xf32> to vector<256x128xbf16>
    %c0_12 = arith.constant 0 : index
    %c0_13 = arith.constant 0 : index
    %c0_14 = arith.constant 0 : index
    %c0_15 = arith.constant 0 : index
    %9 = vector.load %arg2[%c0_12, %c0_13, %c0_14, %c0_15] : memref<3x3x128x256xbf16, #tpu.memory_space<vmem>>, vector<1x1x128x256xbf16>
    %10 = vector.shape_cast %9 : vector<1x1x128x256xbf16> to vector<128x256xbf16>
    %cst_16 = arith.constant dense<0.000000e+00> : vector<256x256xf32>
    %11 = tpu.matmul %8, %10, %cst_16 {dimension_numbers = #tpu.dot_dimension_numbers<[1], [0], [0], [1], [0, 0, 1, 1], [], []>} : vector<256x128xbf16>, vector<128x256xbf16>, vector<256x256xf32> -> vector<256x256xf32>
    %12 = arith.addf %5, %11 : vector<256x256xf32>
    %c0_17 = arith.constant 0 : index
    %c1_18 = arith.constant 1 : index
    %c0_19 = arith.constant 0 : index
    %13 = vector.load %arg5[%c0_17, %c1_18, %c0_19] : memref<18x18x128xf32, #tpu.memory_space<vmem>>, vector<16x16x128xf32>
    %14 = vector.shape_cast %13 : vector<16x16x128xf32> to vector<256x128xf32>
    %15 = arith.truncf %14 : vector<256x128xf32> to vector<256x128xbf16>
    %c0_20 = arith.constant 0 : index
    %c1_21 = arith.constant 1 : index
    %c0_22 = arith.constant 0 : index
    %c0_23 = arith.constant 0 : index
    %16 = vector.load %arg2[%c0_20, %c1_21, %c0_22, %c0_23] : memref<3x3x128x256xbf16, #tpu.memory_space<vmem>>, vector<1x1x128x256xbf16>
    %17 = vector.shape_cast %16 : vector<1x1x128x256xbf16> to vector<128x256xbf16>
    %cst_24 = arith.constant dense<0.000000e+00> : vector<256x256xf32>
    %18 = tpu.matmul %15, %17, %cst_24 {dimension_numbers = #tpu.dot_dimension_numbers<[1], [0], [0], [1], [0, 0, 1, 1], [], []>} : vector<256x128xbf16>, vector<128x256xbf16>, vector<256x256xf32> -> vector<256x256xf32>
    %19 = arith.addf %12, %18 : vector<256x256xf32>
    %c0_25 = arith.constant 0 : index
    %c2 = arith.constant 2 : index
    %c0_26 = arith.constant 0 : index
    %20 = vector.load %arg5[%c0_25, %c2, %c0_26] : memref<18x18x128xf32, #tpu.memory_space<vmem>>, vector<16x16x128xf32>
    %21 = vector.shape_cast %20 : vector<16x16x128xf32> to vector<256x128xf32>
    %22 = arith.truncf %21 : vector<256x128xf32> to vector<256x128xbf16>
    %c0_27 = arith.constant 0 : index
    %c2_28 = arith.constant 2 : index
    %c0_29 = arith.constant 0 : index
    %c0_30 = arith.constant 0 : index
    %23 = vector.load %arg2[%c0_27, %c2_28, %c0_29, %c0_30] : memref<3x3x128x256xbf16, #tpu.memory_space<vmem>>, vector<1x1x128x256xbf16>
    %24 = vector.shape_cast %23 : vector<1x1x128x256xbf16> to vector<128x256xbf16>
    %cst_31 = arith.constant dense<0.000000e+00> : vector<256x256xf32>
    %25 = tpu.matmul %22, %24, %cst_31 {dimension_numbers = #tpu.dot_dimension_numbers<[1], [0], [0], [1], [0, 0, 1, 1], [], []>} : vector<256x128xbf16>, vector<128x256xbf16>, vector<256x256xf32> -> vector<256x256xf32>
    %26 = arith.addf %19, %25 : vector<256x256xf32>
    %c1_32 = arith.constant 1 : index
    %c0_33 = arith.constant 0 : index
    %c0_34 = arith.constant 0 : index
    %27 = vector.load %arg5[%c1_32, %c0_33, %c0_34] : memref<18x18x128xf32, #tpu.memory_space<vmem>>, vector<16x16x128xf32>
    %28 = vector.shape_cast %27 : vector<16x16x128xf32> to vector<256x128xf32>
    %29 = arith.truncf %28 : vector<256x128xf32> to vector<256x128xbf16>
    %c1_35 = arith.constant 1 : index
    %c0_36 = arith.constant 0 : index
    %c0_37 = arith.constant 0 : index
    %c0_38 = arith.constant 0 : index
    %30 = vector.load %arg2[%c1_35, %c0_36, %c0_37, %c0_38] : memref<3x3x128x256xbf16, #tpu.memory_space<vmem>>, vector<1x1x128x256xbf16>
    %31 = vector.shape_cast %30 : vector<1x1x128x256xbf16> to vector<128x256xbf16>
    %cst_39 = arith.constant dense<0.000000e+00> : vector<256x256xf32>
    %32 = tpu.matmul %29, %31, %cst_39 {dimension_numbers = #tpu.dot_dimension_numbers<[1], [0], [0], [1], [0, 0, 1, 1], [], []>} : vector<256x128xbf16>, vector<128x256xbf16>, vector<256x256xf32> -> vector<256x256xf32>
    %33 = arith.addf %26, %32 : vector<256x256xf32>
    %c1_40 = arith.constant 1 : index
    %c1_41 = arith.constant 1 : index
    %c0_42 = arith.constant 0 : index
    %34 = vector.load %arg5[%c1_40, %c1_41, %c0_42] : memref<18x18x128xf32, #tpu.memory_space<vmem>>, vector<16x16x128xf32>
    %35 = vector.shape_cast %34 : vector<16x16x128xf32> to vector<256x128xf32>
    %36 = arith.truncf %35 : vector<256x128xf32> to vector<256x128xbf16>
    %c1_43 = arith.constant 1 : index
    %c1_44 = arith.constant 1 : index
    %c0_45 = arith.constant 0 : index
    %c0_46 = arith.constant 0 : index
    %37 = vector.load %arg2[%c1_43, %c1_44, %c0_45, %c0_46] : memref<3x3x128x256xbf16, #tpu.memory_space<vmem>>, vector<1x1x128x256xbf16>
    %38 = vector.shape_cast %37 : vector<1x1x128x256xbf16> to vector<128x256xbf16>
    %cst_47 = arith.constant dense<0.000000e+00> : vector<256x256xf32>
    %39 = tpu.matmul %36, %38, %cst_47 {dimension_numbers = #tpu.dot_dimension_numbers<[1], [0], [0], [1], [0, 0, 1, 1], [], []>} : vector<256x128xbf16>, vector<128x256xbf16>, vector<256x256xf32> -> vector<256x256xf32>
    %40 = arith.addf %33, %39 : vector<256x256xf32>
    %c1_48 = arith.constant 1 : index
    %c2_49 = arith.constant 2 : index
    %c0_50 = arith.constant 0 : index
    %41 = vector.load %arg5[%c1_48, %c2_49, %c0_50] : memref<18x18x128xf32, #tpu.memory_space<vmem>>, vector<16x16x128xf32>
    %42 = vector.shape_cast %41 : vector<16x16x128xf32> to vector<256x128xf32>
    %43 = arith.truncf %42 : vector<256x128xf32> to vector<256x128xbf16>
    %c1_51 = arith.constant 1 : index
    %c2_52 = arith.constant 2 : index
    %c0_53 = arith.constant 0 : index
    %c0_54 = arith.constant 0 : index
    %44 = vector.load %arg2[%c1_51, %c2_52, %c0_53, %c0_54] : memref<3x3x128x256xbf16, #tpu.memory_space<vmem>>, vector<1x1x128x256xbf16>
    %45 = vector.shape_cast %44 : vector<1x1x128x256xbf16> to vector<128x256xbf16>
    %cst_55 = arith.constant dense<0.000000e+00> : vector<256x256xf32>
    %46 = tpu.matmul %43, %45, %cst_55 {dimension_numbers = #tpu.dot_dimension_numbers<[1], [0], [0], [1], [0, 0, 1, 1], [], []>} : vector<256x128xbf16>, vector<128x256xbf16>, vector<256x256xf32> -> vector<256x256xf32>
    %47 = arith.addf %40, %46 : vector<256x256xf32>
    %c2_56 = arith.constant 2 : index
    %c0_57 = arith.constant 0 : index
    %c0_58 = arith.constant 0 : index
    %48 = vector.load %arg5[%c2_56, %c0_57, %c0_58] : memref<18x18x128xf32, #tpu.memory_space<vmem>>, vector<16x16x128xf32>
    %49 = vector.shape_cast %48 : vector<16x16x128xf32> to vector<256x128xf32>
    %50 = arith.truncf %49 : vector<256x128xf32> to vector<256x128xbf16>
    %c2_59 = arith.constant 2 : index
    %c0_60 = arith.constant 0 : index
    %c0_61 = arith.constant 0 : index
    %c0_62 = arith.constant 0 : index
    %51 = vector.load %arg2[%c2_59, %c0_60, %c0_61, %c0_62] : memref<3x3x128x256xbf16, #tpu.memory_space<vmem>>, vector<1x1x128x256xbf16>
    %52 = vector.shape_cast %51 : vector<1x1x128x256xbf16> to vector<128x256xbf16>
    %cst_63 = arith.constant dense<0.000000e+00> : vector<256x256xf32>
    %53 = tpu.matmul %50, %52, %cst_63 {dimension_numbers = #tpu.dot_dimension_numbers<[1], [0], [0], [1], [0, 0, 1, 1], [], []>} : vector<256x128xbf16>, vector<128x256xbf16>, vector<256x256xf32> -> vector<256x256xf32>
    %54 = arith.addf %47, %53 : vector<256x256xf32>
    %c2_64 = arith.constant 2 : index
    %c1_65 = arith.constant 1 : index
    %c0_66 = arith.constant 0 : index
    %55 = vector.load %arg5[%c2_64, %c1_65, %c0_66] : memref<18x18x128xf32, #tpu.memory_space<vmem>>, vector<16x16x128xf32>
    %56 = vector.shape_cast %55 : vector<16x16x128xf32> to vector<256x128xf32>
    %57 = arith.truncf %56 : vector<256x128xf32> to vector<256x128xbf16>
    %c2_67 = arith.constant 2 : index
    %c1_68 = arith.constant 1 : index
    %c0_69 = arith.constant 0 : index
    %c0_70 = arith.constant 0 : index
    %58 = vector.load %arg2[%c2_67, %c1_68, %c0_69, %c0_70] : memref<3x3x128x256xbf16, #tpu.memory_space<vmem>>, vector<1x1x128x256xbf16>
    %59 = vector.shape_cast %58 : vector<1x1x128x256xbf16> to vector<128x256xbf16>
    %cst_71 = arith.constant dense<0.000000e+00> : vector<256x256xf32>
    %60 = tpu.matmul %57, %59, %cst_71 {dimension_numbers = #tpu.dot_dimension_numbers<[1], [0], [0], [1], [0, 0, 1, 1], [], []>} : vector<256x128xbf16>, vector<128x256xbf16>, vector<256x256xf32> -> vector<256x256xf32>
    %61 = arith.addf %54, %60 : vector<256x256xf32>
    %c2_72 = arith.constant 2 : index
    %c2_73 = arith.constant 2 : index
    %c0_74 = arith.constant 0 : index
    %62 = vector.load %arg5[%c2_72, %c2_73, %c0_74] : memref<18x18x128xf32, #tpu.memory_space<vmem>>, vector<16x16x128xf32>
    %63 = vector.shape_cast %62 : vector<16x16x128xf32> to vector<256x128xf32>
    %64 = arith.truncf %63 : vector<256x128xf32> to vector<256x128xbf16>
    %c2_75 = arith.constant 2 : index
    %c2_76 = arith.constant 2 : index
    %c0_77 = arith.constant 0 : index
    %c0_78 = arith.constant 0 : index
    %65 = vector.load %arg2[%c2_75, %c2_76, %c0_77, %c0_78] : memref<3x3x128x256xbf16, #tpu.memory_space<vmem>>, vector<1x1x128x256xbf16>
    %66 = vector.shape_cast %65 : vector<1x1x128x256xbf16> to vector<128x256xbf16>
    %cst_79 = arith.constant dense<0.000000e+00> : vector<256x256xf32>
    %67 = tpu.matmul %64, %66, %cst_79 {dimension_numbers = #tpu.dot_dimension_numbers<[1], [0], [0], [1], [0, 0, 1, 1], [], []>} : vector<256x128xbf16>, vector<128x256xbf16>, vector<256x256xf32> -> vector<256x256xf32>
    %68 = arith.addf %61, %67 : vector<256x256xf32>
    %cst_80 = arith.constant dense<0.000000e+00> : vector<256xf32>
    %69 = vector.multi_reduction <add>, %68, %cst_80 [0] : vector<256x256xf32> to vector<256xf32>
    %70 = vector.shape_cast %69 : vector<256xf32> to vector<1x256xf32>
    %cst_81 = arith.constant 2.560000e+02 : f32
    %71 = vector.broadcast %cst_81 : f32 to vector<1x256xf32>
    %72 = arith.divf %70, %71 : vector<1x256xf32>
    %73 = vector.broadcast %72 : vector<1x256xf32> to vector<256x256xf32>
    %74 = arith.subf %68, %73 : vector<256x256xf32>
    %75 = arith.mulf %74, %74 : vector<256x256xf32>
    %cst_82 = arith.constant dense<0.000000e+00> : vector<256xf32>
    %76 = vector.multi_reduction <add>, %75, %cst_82 [0] : vector<256x256xf32> to vector<256xf32>
    %77 = vector.shape_cast %76 : vector<256xf32> to vector<1x256xf32>
    %cst_83 = arith.constant 2.560000e+02 : f32
    %78 = vector.broadcast %cst_83 : f32 to vector<1x256xf32>
    %79 = arith.divf %77, %78 : vector<1x256xf32>
    %80 = vector.broadcast %72 : vector<1x256xf32> to vector<256x256xf32>
    %81 = arith.subf %68, %80 : vector<256x256xf32>
    %cst_84 = arith.constant 9.99999974E-6 : f32
    %82 = vector.broadcast %cst_84 : f32 to vector<1x256xf32>
    %83 = arith.addf %79, %82 : vector<1x256xf32>
    %84 = math.rsqrt %83 : vector<1x256xf32>
    %85 = vector.broadcast %84 : vector<1x256xf32> to vector<256x256xf32>
    %86 = arith.mulf %81, %85 : vector<256x256xf32>
    %cst_85 = arith.constant 0.000000e+00 : f32
    %87 = vector.broadcast %cst_85 : f32 to vector<256x256xf32>
    %88 = arith.maximumf %86, %87 : vector<256x256xf32>
    %cst_86 = arith.constant 0.000000e+00 : f32
    %89 = vector.broadcast %cst_86 : f32 to vector<18x18x256xf32>
    %c0_87 = arith.constant 0 : index
    %c0_88 = arith.constant 0 : index
    %c0_89 = arith.constant 0 : index
    %90 = vector.load %arg6[%c0_87, %c0_88, %c0_89] : memref<18x18x256xf32, #tpu.memory_space<vmem>>, vector<18x18x256xf32>
    tpu.vector_store %arg6[%c0_87, %c0_88, %c0_89], %89 {strides = array<i32>} : memref<18x18x256xf32, #tpu.memory_space<vmem>>, vector<18x18x256xf32>,
    %91 = vector.shape_cast %88 : vector<256x256xf32> to vector<16x16x256xf32>
    %c1_90 = arith.constant 1 : index
    %c1_91 = arith.constant 1 : index
    %c0_92 = arith.constant 0 : index
    %92 = vector.load %arg6[%c1_90, %c1_91, %c0_92] : memref<18x18x256xf32, #tpu.memory_space<vmem>>, vector<16x16x256xf32>
    tpu.vector_store %arg6[%c1_90, %c1_91, %c0_92], %91 {strides = array<i32>} : memref<18x18x256xf32, #tpu.memory_space<vmem>>, vector<16x16x256xf32>,
    %cst_93 = arith.constant 0.000000e+00 : f32
    %93 = vector.broadcast %cst_93 : f32 to vector<256x256xf32>
    %c0_94 = arith.constant 0 : index
    %c0_95 = arith.constant 0 : index
    %c0_96 = arith.constant 0 : index
    %94 = vector.load %arg6[%c0_94, %c0_95, %c0_96] : memref<18x18x256xf32, #tpu.memory_space<vmem>>, vector<16x16x256xf32>
    %95 = vector.shape_cast %94 : vector<16x16x256xf32> to vector<256x256xf32>
    %96 = arith.truncf %95 : vector<256x256xf32> to vector<256x256xbf16>
    %c0_97 = arith.constant 0 : index
    %c0_98 = arith.constant 0 : index
    %c0_99 = arith.constant 0 : index
    %c0_100 = arith.constant 0 : index
    %97 = vector.load %arg3[%c0_97, %c0_98, %c0_99, %c0_100] : memref<3x3x256x256xbf16, #tpu.memory_space<vmem>>, vector<1x1x256x256xbf16>
    %98 = vector.shape_cast %97 : vector<1x1x256x256xbf16> to vector<256x256xbf16>
    %cst_101 = arith.constant dense<0.000000e+00> : vector<256x256xf32>
    %99 = tpu.matmul %96, %98, %cst_101 {dimension_numbers = #tpu.dot_dimension_numbers<[1], [0], [0], [1], [0, 0, 1, 1], [], []>} : vector<256x256xbf16>, vector<256x256xbf16>, vector<256x256xf32> -> vector<256x256xf32>
    %100 = arith.addf %93, %99 : vector<256x256xf32>
    %c0_102 = arith.constant 0 : index
    %c1_103 = arith.constant 1 : index
    %c0_104 = arith.constant 0 : index
    %101 = vector.load %arg6[%c0_102, %c1_103, %c0_104] : memref<18x18x256xf32, #tpu.memory_space<vmem>>, vector<16x16x256xf32>
    %102 = vector.shape_cast %101 : vector<16x16x256xf32> to vector<256x256xf32>
    %103 = arith.truncf %102 : vector<256x256xf32> to vector<256x256xbf16>
    %c0_105 = arith.constant 0 : index
    %c1_106 = arith.constant 1 : index
    %c0_107 = arith.constant 0 : index
    %c0_108 = arith.constant 0 : index
    %104 = vector.load %arg3[%c0_105, %c1_106, %c0_107, %c0_108] : memref<3x3x256x256xbf16, #tpu.memory_space<vmem>>, vector<1x1x256x256xbf16>
    %105 = vector.shape_cast %104 : vector<1x1x256x256xbf16> to vector<256x256xbf16>
    %cst_109 = arith.constant dense<0.000000e+00> : vector<256x256xf32>
    %106 = tpu.matmul %103, %105, %cst_109 {dimension_numbers = #tpu.dot_dimension_numbers<[1], [0], [0], [1], [0, 0, 1, 1], [], []>} : vector<256x256xbf16>, vector<256x256xbf16>, vector<256x256xf32> -> vector<256x256xf32>
    %107 = arith.addf %100, %106 : vector<256x256xf32>
    %c0_110 = arith.constant 0 : index
    %c2_111 = arith.constant 2 : index
    %c0_112 = arith.constant 0 : index
    %108 = vector.load %arg6[%c0_110, %c2_111, %c0_112] : memref<18x18x256xf32, #tpu.memory_space<vmem>>, vector<16x16x256xf32>
    %109 = vector.shape_cast %108 : vector<16x16x256xf32> to vector<256x256xf32>
    %110 = arith.truncf %109 : vector<256x256xf32> to vector<256x256xbf16>
    %c0_113 = arith.constant 0 : index
    %c2_114 = arith.constant 2 : index
    %c0_115 = arith.constant 0 : index
    %c0_116 = arith.constant 0 : index
    %111 = vector.load %arg3[%c0_113, %c2_114, %c0_115, %c0_116] : memref<3x3x256x256xbf16, #tpu.memory_space<vmem>>, vector<1x1x256x256xbf16>
    %112 = vector.shape_cast %111 : vector<1x1x256x256xbf16> to vector<256x256xbf16>
    %cst_117 = arith.constant dense<0.000000e+00> : vector<256x256xf32>
    %113 = tpu.matmul %110, %112, %cst_117 {dimension_numbers = #tpu.dot_dimension_numbers<[1], [0], [0], [1], [0, 0, 1, 1], [], []>} : vector<256x256xbf16>, vector<256x256xbf16>, vector<256x256xf32> -> vector<256x256xf32>
    %114 = arith.addf %107, %113 : vector<256x256xf32>
    %c1_118 = arith.constant 1 : index
    %c0_119 = arith.constant 0 : index
    %c0_120 = arith.constant 0 : index
    %115 = vector.load %arg6[%c1_118, %c0_119, %c0_120] : memref<18x18x256xf32, #tpu.memory_space<vmem>>, vector<16x16x256xf32>
    %116 = vector.shape_cast %115 : vector<16x16x256xf32> to vector<256x256xf32>
    %117 = arith.truncf %116 : vector<256x256xf32> to vector<256x256xbf16>
    %c1_121 = arith.constant 1 : index
    %c0_122 = arith.constant 0 : index
    %c0_123 = arith.constant 0 : index
    %c0_124 = arith.constant 0 : index
    %118 = vector.load %arg3[%c1_121, %c0_122, %c0_123, %c0_124] : memref<3x3x256x256xbf16, #tpu.memory_space<vmem>>, vector<1x1x256x256xbf16>
    %119 = vector.shape_cast %118 : vector<1x1x256x256xbf16> to vector<256x256xbf16>
    %cst_125 = arith.constant dense<0.000000e+00> : vector<256x256xf32>
    %120 = tpu.matmul %117, %119, %cst_125 {dimension_numbers = #tpu.dot_dimension_numbers<[1], [0], [0], [1], [0, 0, 1, 1], [], []>} : vector<256x256xbf16>, vector<256x256xbf16>, vector<256x256xf32> -> vector<256x256xf32>
    %121 = arith.addf %114, %120 : vector<256x256xf32>
    %c1_126 = arith.constant 1 : index
    %c1_127 = arith.constant 1 : index
    %c0_128 = arith.constant 0 : index
    %122 = vector.load %arg6[%c1_126, %c1_127, %c0_128] : memref<18x18x256xf32, #tpu.memory_space<vmem>>, vector<16x16x256xf32>
    %123 = vector.shape_cast %122 : vector<16x16x256xf32> to vector<256x256xf32>
    %124 = arith.truncf %123 : vector<256x256xf32> to vector<256x256xbf16>
    %c1_129 = arith.constant 1 : index
    %c1_130 = arith.constant 1 : index
    %c0_131 = arith.constant 0 : index
    %c0_132 = arith.constant 0 : index
    %125 = vector.load %arg3[%c1_129, %c1_130, %c0_131, %c0_132] : memref<3x3x256x256xbf16, #tpu.memory_space<vmem>>, vector<1x1x256x256xbf16>
    %126 = vector.shape_cast %125 : vector<1x1x256x256xbf16> to vector<256x256xbf16>
    %cst_133 = arith.constant dense<0.000000e+00> : vector<256x256xf32>
    %127 = tpu.matmul %124, %126, %cst_133 {dimension_numbers = #tpu.dot_dimension_numbers<[1], [0], [0], [1], [0, 0, 1, 1], [], []>} : vector<256x256xbf16>, vector<256x256xbf16>, vector<256x256xf32> -> vector<256x256xf32>
    %128 = arith.addf %121, %127 : vector<256x256xf32>
    %c1_134 = arith.constant 1 : index
    %c2_135 = arith.constant 2 : index
    %c0_136 = arith.constant 0 : index
    %129 = vector.load %arg6[%c1_134, %c2_135, %c0_136] : memref<18x18x256xf32, #tpu.memory_space<vmem>>, vector<16x16x256xf32>
    %130 = vector.shape_cast %129 : vector<16x16x256xf32> to vector<256x256xf32>
    %131 = arith.truncf %130 : vector<256x256xf32> to vector<256x256xbf16>
    %c1_137 = arith.constant 1 : index
    %c2_138 = arith.constant 2 : index
    %c0_139 = arith.constant 0 : index
    %c0_140 = arith.constant 0 : index
    %132 = vector.load %arg3[%c1_137, %c2_138, %c0_139, %c0_140] : memref<3x3x256x256xbf16, #tpu.memory_space<vmem>>, vector<1x1x256x256xbf16>
    %133 = vector.shape_cast %132 : vector<1x1x256x256xbf16> to vector<256x256xbf16>
    %cst_141 = arith.constant dense<0.000000e+00> : vector<256x256xf32>
    %134 = tpu.matmul %131, %133, %cst_141 {dimension_numbers = #tpu.dot_dimension_numbers<[1], [0], [0], [1], [0, 0, 1, 1], [], []>} : vector<256x256xbf16>, vector<256x256xbf16>, vector<256x256xf32> -> vector<256x256xf32>
    %135 = arith.addf %128, %134 : vector<256x256xf32>
    %c2_142 = arith.constant 2 : index
    %c0_143 = arith.constant 0 : index
    %c0_144 = arith.constant 0 : index
    %136 = vector.load %arg6[%c2_142, %c0_143, %c0_144] : memref<18x18x256xf32, #tpu.memory_space<vmem>>, vector<16x16x256xf32>
    %137 = vector.shape_cast %136 : vector<16x16x256xf32> to vector<256x256xf32>
    %138 = arith.truncf %137 : vector<256x256xf32> to vector<256x256xbf16>
    %c2_145 = arith.constant 2 : index
    %c0_146 = arith.constant 0 : index
    %c0_147 = arith.constant 0 : index
    %c0_148 = arith.constant 0 : index
    %139 = vector.load %arg3[%c2_145, %c0_146, %c0_147, %c0_148] : memref<3x3x256x256xbf16, #tpu.memory_space<vmem>>, vector<1x1x256x256xbf16>
    %140 = vector.shape_cast %139 : vector<1x1x256x256xbf16> to vector<256x256xbf16>
    %cst_149 = arith.constant dense<0.000000e+00> : vector<256x256xf32>
    %141 = tpu.matmul %138, %140, %cst_149 {dimension_numbers = #tpu.dot_dimension_numbers<[1], [0], [0], [1], [0, 0, 1, 1], [], []>} : vector<256x256xbf16>, vector<256x256xbf16>, vector<256x256xf32> -> vector<256x256xf32>
    %142 = arith.addf %135, %141 : vector<256x256xf32>
    %c2_150 = arith.constant 2 : index
    %c1_151 = arith.constant 1 : index
    %c0_152 = arith.constant 0 : index
    %143 = vector.load %arg6[%c2_150, %c1_151, %c0_152] : memref<18x18x256xf32, #tpu.memory_space<vmem>>, vector<16x16x256xf32>
    %144 = vector.shape_cast %143 : vector<16x16x256xf32> to vector<256x256xf32>
    %145 = arith.truncf %144 : vector<256x256xf32> to vector<256x256xbf16>
    %c2_153 = arith.constant 2 : index
    %c1_154 = arith.constant 1 : index
    %c0_155 = arith.constant 0 : index
    %c0_156 = arith.constant 0 : index
    %146 = vector.load %arg3[%c2_153, %c1_154, %c0_155, %c0_156] : memref<3x3x256x256xbf16, #tpu.memory_space<vmem>>, vector<1x1x256x256xbf16>
    %147 = vector.shape_cast %146 : vector<1x1x256x256xbf16> to vector<256x256xbf16>
    %cst_157 = arith.constant dense<0.000000e+00> : vector<256x256xf32>
    %148 = tpu.matmul %145, %147, %cst_157 {dimension_numbers = #tpu.dot_dimension_numbers<[1], [0], [0], [1], [0, 0, 1, 1], [], []>} : vector<256x256xbf16>, vector<256x256xbf16>, vector<256x256xf32> -> vector<256x256xf32>
    %149 = arith.addf %142, %148 : vector<256x256xf32>
    %c2_158 = arith.constant 2 : index
    %c2_159 = arith.constant 2 : index
    %c0_160 = arith.constant 0 : index
    %150 = vector.load %arg6[%c2_158, %c2_159, %c0_160] : memref<18x18x256xf32, #tpu.memory_space<vmem>>, vector<16x16x256xf32>
    %151 = vector.shape_cast %150 : vector<16x16x256xf32> to vector<256x256xf32>
    %152 = arith.truncf %151 : vector<256x256xf32> to vector<256x256xbf16>
    %c2_161 = arith.constant 2 : index
    %c2_162 = arith.constant 2 : index
    %c0_163 = arith.constant 0 : index
    %c0_164 = arith.constant 0 : index
    %153 = vector.load %arg3[%c2_161, %c2_162, %c0_163, %c0_164] : memref<3x3x256x256xbf16, #tpu.memory_space<vmem>>, vector<1x1x256x256xbf16>
    %154 = vector.shape_cast %153 : vector<1x1x256x256xbf16> to vector<256x256xbf16>
    %cst_165 = arith.constant dense<0.000000e+00> : vector<256x256xf32>
    %155 = tpu.matmul %152, %154, %cst_165 {dimension_numbers = #tpu.dot_dimension_numbers<[1], [0], [0], [1], [0, 0, 1, 1], [], []>} : vector<256x256xbf16>, vector<256x256xbf16>, vector<256x256xf32> -> vector<256x256xf32>
    %156 = arith.addf %149, %155 : vector<256x256xf32>
    %cst_166 = arith.constant dense<0.000000e+00> : vector<256xf32>
    %157 = vector.multi_reduction <add>, %156, %cst_166 [0] : vector<256x256xf32> to vector<256xf32>
    %158 = vector.shape_cast %157 : vector<256xf32> to vector<1x256xf32>
    %cst_167 = arith.constant 2.560000e+02 : f32
    %159 = vector.broadcast %cst_167 : f32 to vector<1x256xf32>
    %160 = arith.divf %158, %159 : vector<1x256xf32>
    %161 = vector.broadcast %160 : vector<1x256xf32> to vector<256x256xf32>
    %162 = arith.subf %156, %161 : vector<256x256xf32>
    %163 = arith.mulf %162, %162 : vector<256x256xf32>
    %cst_168 = arith.constant dense<0.000000e+00> : vector<256xf32>
    %164 = vector.multi_reduction <add>, %163, %cst_168 [0] : vector<256x256xf32> to vector<256xf32>
    %165 = vector.shape_cast %164 : vector<256xf32> to vector<1x256xf32>
    %cst_169 = arith.constant 2.560000e+02 : f32
    %166 = vector.broadcast %cst_169 : f32 to vector<1x256xf32>
    %167 = arith.divf %165, %166 : vector<1x256xf32>
    %168 = vector.broadcast %160 : vector<1x256xf32> to vector<256x256xf32>
    %169 = arith.subf %156, %168 : vector<256x256xf32>
    %cst_170 = arith.constant 9.99999974E-6 : f32
    %170 = vector.broadcast %cst_170 : f32 to vector<1x256xf32>
    %171 = arith.addf %167, %170 : vector<1x256xf32>
    %172 = math.rsqrt %171 : vector<1x256xf32>
    %173 = vector.broadcast %172 : vector<1x256xf32> to vector<256x256xf32>
    %174 = arith.mulf %169, %173 : vector<256x256xf32>
    %c0_171 = arith.constant 0 : index
    %c0_172 = arith.constant 0 : index
    %c0_173 = arith.constant 0 : index
    %c0_174 = arith.constant 0 : index
    %175 = vector.load %arg4[%c0_171, %c0_172, %c0_173, %c0_174] : memref<1x16x16x384xf32, #tpu.memory_space<vmem>>, vector<1x16x16x128xf32>
    %176 = vector.shape_cast %175 : vector<1x16x16x128xf32> to vector<16x16x128xf32>
    %177 = vector.shape_cast %1 : vector<16x16x128xf32> to vector<1x16x16x128xf32>
    tpu.vector_store %arg4[%c0_171, %c0_172, %c0_173, %c0_174], %177 {strides = array<i32>} : memref<1x16x16x384xf32, #tpu.memory_space<vmem>>, vector<1x16x16x128xf32>,
    %178 = vector.shape_cast %174 : vector<256x256xf32> to vector<16x16x256xf32>
    %c0_175 = arith.constant 0 : index
    %c0_176 = arith.constant 0 : index
    %c0_177 = arith.constant 0 : index
    %c128 = arith.constant 128 : index
    %179 = vector.load %arg4[%c0_175, %c0_176, %c0_177, %c128] : memref<1x16x16x384xf32, #tpu.memory_space<vmem>>, vector<1x16x16x256xf32>
    %180 = vector.shape_cast %179 : vector<1x16x16x256xf32> to vector<16x16x256xf32>
    %181 = vector.shape_cast %178 : vector<16x16x256xf32> to vector<1x16x16x256xf32>
    tpu.vector_store %arg4[%c0_175, %c0_176, %c0_177, %c128], %181 {strides = array<i32>} : memref<1x16x16x384xf32, #tpu.memory_space<vmem>>, vector<1x16x16x256xf32>,
    return
  }
  func.func @transform_0(%arg0: i32) -> (i32, i32, i32, i32) {
    %c0_i32 = arith.constant 0 : i32
    %c0_i32_0 = arith.constant 0 : i32
    %c0_i32_1 = arith.constant 0 : i32
    %c0_i32_2 = arith.constant 0 : i32
    return %arg0, %c0_i32, %c0_i32_0, %c0_i32_1 : i32, i32, i32, i32
  }
  func.func @transform_1(%arg0: i32) -> (i32, i32, i32, i32) {
    %c0_i32 = arith.constant 0 : i32
    %c0_i32_0 = arith.constant 0 : i32
    %c0_i32_1 = arith.constant 0 : i32
    %c0_i32_2 = arith.constant 0 : i32
    %c0_i32_3 = arith.constant 0 : i32
    return %c0_i32, %c0_i32_0, %c0_i32_1, %c0_i32_2 : i32, i32, i32, i32
  }
  func.func @transform_2(%arg0: i32) -> (i32, i32, i32, i32) {
    %c0_i32 = arith.constant 0 : i32
    %c0_i32_0 = arith.constant 0 : i32
    %c0_i32_1 = arith.constant 0 : i32
    %c0_i32_2 = arith.constant 0 : i32
    %c0_i32_3 = arith.constant 0 : i32
    return %c0_i32, %c0_i32_0, %c0_i32_1, %c0_i32_2 : i32, i32, i32, i32
  }
  func.func @transform_3(%arg0: i32) -> (i32, i32, i32, i32) {
    %c0_i32 = arith.constant 0 : i32
    %c0_i32_0 = arith.constant 0 : i32
    %c0_i32_1 = arith.constant 0 : i32
    %c0_i32_2 = arith.constant 0 : i32
    return %arg0, %c0_i32, %c0_i32_0, %c0_i32_1 : i32, i32, i32, i32
  }
}

</mosaic_0001>

<llo_original>
// kernel: dense_block.1
$region0: #{dense_block.1}
  #allocation0 [shape = 'u32[]', space=smem, size = 0x4, offset = 0x4, fixed_abs, tag = 'smem constant byte address 0x4 - core index']
  #allocation1 [shape = 'u32[144,128]{1,0:T(1,128)}', space=vmem, size = 0x12000, scoped, tag = 'internal scratch']
  #allocation2 [shape = 'f32[18,18,128]{2,1,0:T(8,128)}', space=vmem, size = 0x36000, scoped, tag = 'scratch operand']
  #allocation3 [shape = 'f32[18,18,256]{2,1,0:T(8,128)}', space=vmem, size = 0x6c000, scoped, tag = 'scratch operand']
  %s0 = inlined_call_operand.vmem [shape: f32[2,16,16,128], index: 0, kind: input, shape index: {}]
  %s1 = inlined_call_operand.vmem [shape: bf16[3,3,128,256], index: 1, kind: input, shape index: {}]
  %s2 = inlined_call_operand.vmem [shape: bf16[3,3,256,256], index: 2, kind: input, shape index: {}]
  %s3 = inlined_call_operand.hbm [shape: f32[2,16,16,384], index: 3, kind: output, shape index: {}]
  %s4 = sld [smem:[#allocation0]]
  $region45: #{dense_block.1} parent=0
    _
  %s6 = ssub.s32 1, %s4
  %s7 = scalar_select 0, %s6, %s4
  $region1: #{dense_block.1} parent=0
    #allocation4 [shape = 'u8[786432]{0}', space=vmem, size = 0xc0000, scoped, tag = 'output window, operand 0']
    #allocation5 [shape = 's32[2]{0}', space=sflag, size = 0x8, scoped, tag = 'scoped memory for dense_block.1']
    %8 = vsyncpa [#allocation5], 0
    %s9 = scalar_lea.sflag [#allocation5], 1
    %10 = vsyncpa %s9, 0
    loop: start=0, step=1, limit=4
    $region2: #{dense_block.1} parent=1 // loop_pre_header
      _
    $region3: #{dense_block.1} parent=1 // loop_header
      %s12 = sphi 0, %s16
      %p13 = scmp.ge.s32.totalorder %s12, 4
      %s22 = sphi 0, %s24
      %s25 = sphi 0, %s22
      %s26 = sphi 0, %s25
      %s42 = sphi 0, %s26
      %s46 = sphi 0, %s46
      %s48 = sphi 0, %s46
      %s49 = sphi 0, %s48
      %s63 = sphi 0, %s49
      %s67 = sphi 0, %s67
      %s69 = sphi 0, %s67
      %s70 = sphi 0, %s69
      %s84 = sphi 0, %s70
      %s90 = sphi 0, %s92
      %s93 = sphi 0, %s90
      %s94 = sphi 0, %s93
      %s110 = sphi 0, %s94
    $region4: #{dense_block.1} parent=1 // loop_header_branch
      %15 = sbr.rel (%p13) target = $region8
    $region5: #{dense_block.1} parent=1 // loop_body
      %s17 = ssub.s32 %s12, 1
      %s18 = ssub.s32 %s12, 2
      %s19 = sadd.s32 %s12, 1
      %s20 = ssub.s32 %s12, %s19
      %p21 = scmp.eq.s32.totalorder %s20, 0
      %s23 = sadd.s32 %s22, 1
      %s24 = scalar_select %p21, %s22, %s23
      %p27 = pneg %p21
      %p28 = scmp.eq.s32.totalorder %s12, 1
      %p29 = por %p27, %p28
      %p30 = scmp.ne.s32.totalorder %s22, %s25
      %p31 = scmp.eq.s32.totalorder %s12, 0
      %p32 = por %p30, %p31
      %p33 = scmp.ne.s32.totalorder %s22, %s25
      %p34 = scmp.eq.s32.totalorder %s17, 1
      %p35 = por %p33, %p34
      %p36 = scmp.ne.s32.totalorder %s25, %s26
      %p37 = scmp.eq.s32.totalorder %s17, 0
      %p38 = por %p36, %p37
      %p39 = scmp.ne.s32.totalorder %s25, %s26
      %p40 = scmp.eq.s32.totalorder %s18, 1
      %p41 = por %p39, %p40
      %p43 = scmp.ne.s32.totalorder %s26, %s42
      %p44 = scmp.eq.s32.totalorder %s18, 0
      %p45 = por %p43, %p44
      %s47 = sadd.s32 %s46, 1
      %p50 = scmp.eq.s32.totalorder %s12, 1
      %p51 = scmp.ne.s32.totalorder %s46, %s48
      %p52 = scmp.eq.s32.totalorder %s12, 0
      %p53 = por %p51, %p52
      %p54 = scmp.ne.s32.totalorder %s46, %s48
      %p55 = scmp.eq.s32.totalorder %s17, 1
      %p56 = por %p54, %p55
      %p57 = scmp.ne.s32.totalorder %s48, %s49
      %p58 = scmp.eq.s32.totalorder %s17, 0
      %p59 = por %p57, %p58
      %p60 = scmp.ne.s32.totalorder %s48, %s49
      %p61 = scmp.eq.s32.totalorder %s18, 1
      %p62 = por %p60, %p61
      %p64 = scmp.ne.s32.totalorder %s49, %s63
      %p65 = scmp.eq.s32.totalorder %s18, 0
      %p66 = por %p64, %p65
      %s68 = sadd.s32 %s67, 1
      %p71 = scmp.eq.s32.totalorder %s12, 1
      %p72 = scmp.ne.s32.totalorder %s67, %s69
      %p73 = scmp.eq.s32.totalorder %s12, 0
      %p74 = por %p72, %p73
      %p75 = scmp.ne.s32.totalorder %s67, %s69
      %p76 = scmp.eq.s32.totalorder %s17, 1
      %p77 = por %p75, %p76
      %p78 = scmp.ne.s32.totalorder %s69, %s70
      %p79 = scmp.eq.s32.totalorder %s17, 0
      %p80 = por %p78, %p79
      %p81 = scmp.ne.s32.totalorder %s69, %s70
      %p82 = scmp.eq.s32.totalorder %s18, 1
      %p83 = por %p81, %p82
      %p85 = scmp.ne.s32.totalorder %s70, %s84
      %p86 = scmp.eq.s32.totalorder %s18, 0
      %p87 = por %p85, %p86
      %s88 = ssub.s32 %s12, %s19
      %p89 = scmp.eq.s32.totalorder %s88, 0
      %s91 = sadd.s32 %s90, 1
      %s92 = scalar_select %p89, %s90, %s91
      %p95 = pneg %p89
      %p96 = scmp.eq.s32.totalorder %s12, 1
      %p97 = por %p95, %p96
      %p98 = scmp.ne.s32.totalorder %s90, %s93
      %p99 = scmp.eq.s32.totalorder %s12, 0
      %p100 = por %p98, %p99
      %p101 = scmp.ne.s32.totalorder %s90, %s93
      %p102 = scmp.eq.s32.totalorder %s17, 1
      %p103 = por %p101, %p102
      %p104 = scmp.ne.s32.totalorder %s93, %s94
      %p105 = scmp.eq.s32.totalorder %s17, 0
      %p106 = por %p104, %p105
      %p107 = scmp.ne.s32.totalorder %s93, %s94
      %p108 = scmp.eq.s32.totalorder %s18, 1
      %p109 = por %p107, %p108
      %p111 = scmp.ne.s32.totalorder %s94, %s110
      %p112 = scmp.eq.s32.totalorder %s18, 0
      %p113 = por %p111, %p112
      %p114 = scmp.le.s32.totalorder 1, %s12
      %p115 = scmp.lt.s32.totalorder %s12, 3
      %p116 = pnand %p114, %p115
      %p117 = pneg %p116
      // Predicated region
      $region9: #{dense_block.1} parent=5 // pred_check
        _
      $region10: #{dense_block.1} parent=5 // pred_check_branch
        %119 = sbr.rel (%p116) target = $region12
      $region11: #{dense_block.1} parent=5 // pred_region
        %s120 = ssub.s32 %s12, 1
        // Predicated region
        $region13: #{dense_block.1} parent=11 // pred_check
          %p121 = pneg %p59
        $region14: #{dense_block.1} parent=11 // pred_check_branch
          %123 = sbr.rel (%p121) target = $region16
        $region15: #{dense_block.1} parent=11 // pred_region
          _
        $region16: #{dense_block.1} parent=11 // pred_fallthru
          _
        // Predicated region
        $region17: #{dense_block.1} parent=11 // pred_check
          %p124 = pneg %p80
        $region18: #{dense_block.1} parent=11 // pred_check_branch
          %126 = sbr.rel (%p124) target = $region20
        $region19: #{dense_block.1} parent=11 // pred_region
          _
        $region20: #{dense_block.1} parent=11 // pred_fallthru
          _
      $region12: #{dense_block.1} parent=5 // pred_fallthru
        _
      %p127 = scmp.lt.s32.totalorder %s12, 2
      // Predicated region
      $region21: #{dense_block.1} parent=5 // pred_check
        %p128 = pneg %p127
      $region22: #{dense_block.1} parent=5 // pred_check_branch
        %130 = sbr.rel (%p128) target = $region24
      $region23: #{dense_block.1} parent=5 // pred_region
        // Predicated region
        $region25: #{dense_block.1} parent=23 // pred_check
          %p131 = pneg %p32
        $region26: #{dense_block.1} parent=23 // pred_check_branch
          %133 = sbr.rel (%p131) target = $region28
        $region27: #{dense_block.1} parent=23 // pred_region
          %p134 = scmp.lt.s32.totalorder %s12, 1
          %s135 = scalar_select %p134, %s12, 1
          %s136 = smul.addr %s135, 32
          %s137 = smul.addr %s136, 8
          %s138 = scalar_lea.vmem %s0, %s137
        $region28: #{dense_block.1} parent=23 // pred_fallthru
          _
      $region24: #{dense_block.1} parent=5 // pred_fallthru
        _
      %p139 = scmp.le.s32.totalorder 1, %s12
      %p140 = scmp.lt.s32.totalorder %s12, 3
      %p141 = pnand %p139, %p140
      %p142 = pneg %p141
      // Predicated region
      $region29: #{dense_block.1} parent=5 // pred_check
        _
      $region30: #{dense_block.1} parent=5 // pred_check_branch
        %144 = sbr.rel (%p141) target = $region32
      $region31: #{dense_block.1} parent=5 // pred_region
        %s145 = ssub.s32 %s12, 1
        %p146 = scmp.lt.s32.totalorder %s17, 1
        %s147 = scalar_select %p146, %s17, 1
        %s148 = smul.addr %s147, 32
        %s149 = smul.addr %s148, 8
        %s150 = scalar_lea.vmem %s0, %s149
        %p151 = pneg %p38
        %p152 = pneg %p35
        %p153 = pneg %p59
        %p154 = pneg %p56
        %p155 = pneg %p80
        %p156 = pneg %p77
        %p157 = pneg %p106
        %p158 = pneg %p103
        %s159 = sand.u32 %s93, 1
        %s160 = scalar_lea.sflag [#allocation5], %s159
        %s161 = sand.u32 %s93, 1
        %s162 = smul.addr %s161, 768
        %s163 = scalar_lea.vmem [#allocation4], %s162
        %p164 = scmp.lt.s32.totalorder %s17, 1
        %s165 = scalar_select %p164, %s17, 1
        %s166 = smul.addr %s165, 32
        %s167 = smul.addr %s166, 8
        %s168 = scalar_lea.vmem %s0, %s167
        %v170 = vld [vmem:[%s168] sm:$0xff]
        %v171 = vld [vmem:[%s168 + $0x8] sm:$0xff]
        %v172 = vld [vmem:[%s168 + $0x10] sm:$0xff]
        %v173 = vld [vmem:[%s168 + $0x18] sm:$0xff]
        %v174 = vld [vmem:[%s168 + $0x20] sm:$0xff]
        %v175 = vld [vmem:[%s168 + $0x28] sm:$0xff]
        %v176 = vld [vmem:[%s168 + $0x30] sm:$0xff]
        %v177 = vld [vmem:[%s168 + $0x38] sm:$0xff]
        %v178 = vld [vmem:[%s168 + $0x40] sm:$0xff]
        %v179 = vld [vmem:[%s168 + $0x48] sm:$0xff]
        %v180 = vld [vmem:[%s168 + $0x50] sm:$0xff]
        %v181 = vld [vmem:[%s168 + $0x58] sm:$0xff]
        %v182 = vld [vmem:[%s168 + $0x60] sm:$0xff]
        %v183 = vld [vmem:[%s168 + $0x68] sm:$0xff]
        %v184 = vld [vmem:[%s168 + $0x70] sm:$0xff]
        %v185 = vld [vmem:[%s168 + $0x78] sm:$0xff]
        %v186 = vld [vmem:[%s168 + $0x80] sm:$0xff]
        %v187 = vld [vmem:[%s168 + $0x88] sm:$0xff]
        %v188 = vld [vmem:[%s168 + $0x90] sm:$0xff]
        %v189 = vld [vmem:[%s168 + $0x98] sm:$0xff]
        %v190 = vld [vmem:[%s168 + $0xa0] sm:$0xff]
        %v191 = vld [vmem:[%s168 + $0xa8] sm:$0xff]
        %v192 = vld [vmem:[%s168 + $0xb0] sm:$0xff]
        %v193 = vld [vmem:[%s168 + $0xb8] sm:$0xff]
        %v194 = vld [vmem:[%s168 + $0xc0] sm:$0xff]
        %v195 = vld [vmem:[%s168 + $0xc8] sm:$0xff]
        %v196 = vld [vmem:[%s168 + $0xd0] sm:$0xff]
        %v197 = vld [vmem:[%s168 + $0xd8] sm:$0xff]
        %v198 = vld [vmem:[%s168 + $0xe0] sm:$0xff]
        %v199 = vld [vmem:[%s168 + $0xe8] sm:$0xff]
        %v200 = vld [vmem:[%s168 + $0xf0] sm:$0xff]
        %v201 = vld [vmem:[%s168 + $0xf8] sm:$0xff]
        %202 = vst [vmem:[#allocation2] sm:$0xff] 0.0
        %203 = vst [vmem:[#allocation2 + $0x8] sm:$0xff] 0.0
        %204 = vst [vmem:[#allocation2 + $0x10] sm:$0x3] 0.0
        %205 = vst [vmem:[#allocation2 + $0x18] sm:$0xff] 0.0
        %206 = vst [vmem:[#allocation2 + $0x20] sm:$0xff] 0.0
        %207 = vst [vmem:[#allocation2 + $0x28] sm:$0x3] 0.0
        %208 = vst [vmem:[#allocation2 + $0x30] sm:$0xff] 0.0
        %209 = vst [vmem:[#allocation2 + $0x38] sm:$0xff] 0.0
        %210 = vst [vmem:[#allocation2 + $0x40] sm:$0x3] 0.0
        %211 = vst [vmem:[#allocation2 + $0x48] sm:$0xff] 0.0
        %212 = vst [vmem:[#allocation2 + $0x50] sm:$0xff] 0.0
        %213 = vst [vmem:[#allocation2 + $0x58] sm:$0x3] 0.0
        %214 = vst [vmem:[#allocation2 + $0x60] sm:$0xff] 0.0
        %215 = vst [vmem:[#allocation2 + $0x68] sm:$0xff] 0.0
        %216 = vst [vmem:[#allocation2 + $0x70] sm:$0x3] 0.0
        %217 = vst [vmem:[#allocation2 + $0x78] sm:$0xff] 0.0
        %218 = vst [vmem:[#allocation2 + $0x80] sm:$0xff] 0.0
        %219 = vst [vmem:[#allocation2 + $0x88] sm:$0x3] 0.0
        %220 = vst [vmem:[#allocation2 + $0x90] sm:$0xff] 0.0
        %221 = vst [vmem:[#allocation2 + $0x98] sm:$0xff] 0.0
        %222 = vst [vmem:[#allocation2 + $0xa0] sm:$0x3] 0.0
        %223 = vst [vmem:[#allocation2 + $0xa8] sm:$0xff] 0.0
        %224 = vst [vmem:[#allocation2 + $0xb0] sm:$0xff] 0.0
        %225 = vst [vmem:[#allocation2 + $0xb8] sm:$0x3] 0.0
        %226 = vst [vmem:[#allocation2 + $0xc0] sm:$0xff] 0.0
        %227 = vst [vmem:[#allocation2 + $0xc8] sm:$0xff] 0.0
        %228 = vst [vmem:[#allocation2 + $0xd0] sm:$0x3] 0.0
        %229 = vst [vmem:[#allocation2 + $0xd8] sm:$0xff] 0.0
        %230 = vst [vmem:[#allocation2 + $0xe0] sm:$0xff] 0.0
        %231 = vst [vmem:[#allocation2 + $0xe8] sm:$0x3] 0.0
        %232 = vst [vmem:[#allocation2 + $0xf0] sm:$0xff] 0.0
        %233 = vst [vmem:[#allocation2 + $0xf8] sm:$0xff] 0.0
        %234 = vst [vmem:[#allocation2 + $0x100] sm:$0x3] 0.0
        %235 = vst [vmem:[#allocation2 + $0x108] sm:$0xff] 0.0
        %236 = vst [vmem:[#allocation2 + $0x110] sm:$0xff] 0.0
        %237 = vst [vmem:[#allocation2 + $0x118] sm:$0x3] 0.0
        %238 = vst [vmem:[#allocation2 + $0x120] sm:$0xff] 0.0
        %239 = vst [vmem:[#allocation2 + $0x128] sm:$0xff] 0.0
        %240 = vst [vmem:[#allocation2 + $0x130] sm:$0x3] 0.0
        %241 = vst [vmem:[#allocation2 + $0x138] sm:$0xff] 0.0
        %242 = vst [vmem:[#allocation2 + $0x140] sm:$0xff] 0.0
        %243 = vst [vmem:[#allocation2 + $0x148] sm:$0x3] 0.0
        %244 = vst [vmem:[#allocation2 + $0x150] sm:$0xff] 0.0
        %245 = vst [vmem:[#allocation2 + $0x158] sm:$0xff] 0.0
        %246 = vst [vmem:[#allocation2 + $0x160] sm:$0x3] 0.0
        %247 = vst [vmem:[#allocation2 + $0x168] sm:$0xff] 0.0
        %248 = vst [vmem:[#allocation2 + $0x170] sm:$0xff] 0.0
        %249 = vst [vmem:[#allocation2 + $0x178] sm:$0x3] 0.0
        %250 = vst [vmem:[#allocation2 + $0x180] sm:$0xff] 0.0
        %251 = vst [vmem:[#allocation2 + $0x188] sm:$0xff] 0.0
        %252 = vst [vmem:[#allocation2 + $0x190] sm:$0x3] 0.0
        %253 = vst [vmem:[#allocation2 + $0x198] sm:$0xff] 0.0
        %254 = vst [vmem:[#allocation2 + $0x1a0] sm:$0xff] 0.0
        %255 = vst [vmem:[#allocation2 + $0x1a8] sm:$0x3] 0.0
        %s256 = scalar_lea.vmem [#allocation2], 24
        %257 = vst [vmem:[%s256 + $0x1] sm:$0xff] %v170
        %258 = vst [vmem:[%s256 + $0x9] sm:$0xff] %v171
        %259 = vst [vmem:[%s256 + $0x19] sm:$0xff] %v172
        %260 = vst [vmem:[%s256 + $0x21] sm:$0xff] %v173
        %261 = vst [vmem:[%s256 + $0x31] sm:$0xff] %v174
        %262 = vst [vmem:[%s256 + $0x39] sm:$0xff] %v175
        %263 = vst [vmem:[%s256 + $0x49] sm:$0xff] %v176
        %264 = vst [vmem:[%s256 + $0x51] sm:$0xff] %v177
        %265 = vst [vmem:[%s256 + $0x61] sm:$0xff] %v178
        %266 = vst [vmem:[%s256 + $0x69] sm:$0xff] %v179
        %267 = vst [vmem:[%s256 + $0x79] sm:$0xff] %v180
        %268 = vst [vmem:[%s256 + $0x81] sm:$0xff] %v181
        %269 = vst [vmem:[%s256 + $0x91] sm:$0xff] %v182
        %270 = vst [vmem:[%s256 + $0x99] sm:$0xff] %v183
        %271 = vst [vmem:[%s256 + $0xa9] sm:$0xff] %v184
        %272 = vst [vmem:[%s256 + $0xb1] sm:$0xff] %v185
        %273 = vst [vmem:[%s256 + $0xc1] sm:$0xff] %v186
        %274 = vst [vmem:[%s256 + $0xc9] sm:$0xff] %v187
        %275 = vst [vmem:[%s256 + $0xd9] sm:$0xff] %v188
        %276 = vst [vmem:[%s256 + $0xe1] sm:$0xff] %v189
        %277 = vst [vmem:[%s256 + $0xf1] sm:$0xff] %v190
        %278 = vst [vmem:[%s256 + $0xf9] sm:$0xff] %v191
        %279 = vst [vmem:[%s256 + $0x109] sm:$0xff] %v192
        %280 = vst [vmem:[%s256 + $0x111] sm:$0xff] %v193
        %281 = vst [vmem:[%s256 + $0x121] sm:$0xff] %v194
        %282 = vst [vmem:[%s256 + $0x129] sm:$0xff] %v195
        %283 = vst [vmem:[%s256 + $0x139] sm:$0xff] %v196
        %284 = vst [vmem:[%s256 + $0x141] sm:$0xff] %v197
        %285 = vst [vmem:[%s256 + $0x151] sm:$0xff] %v198
        %286 = vst [vmem:[%s256 + $0x159] sm:$0xff] %v199
        %287 = vst [vmem:[%s256 + $0x169] sm:$0xff] %v200
        %288 = vst [vmem:[%s256 + $0x171] sm:$0xff] %v201
        %v289 = vld [vmem:[#allocation2] sm:$0xff]
        %v290 = vld [vmem:[#allocation2 + $0x8] sm:$0xff]
        %v291 = vld [vmem:[#allocation2 + $0x18] sm:$0xff]
        %v292 = vld [vmem:[#allocation2 + $0x20] sm:$0xff]
        %v293 = vld [vmem:[#allocation2 + $0x30] sm:$0xff]
        %v294 = vld [vmem:[#allocation2 + $0x38] sm:$0xff]
        %v295 = vld [vmem:[#allocation2 + $0x48] sm:$0xff]
        %v296 = vld [vmem:[#allocation2 + $0x50] sm:$0xff]
        %v297 = vld [vmem:[#allocation2 + $0x60] sm:$0xff]
        %v298 = vld [vmem:[#allocation2 + $0x68] sm:$0xff]
        %v299 = vld [vmem:[#allocation2 + $0x78] sm:$0xff]
        %v300 = vld [vmem:[#allocation2 + $0x80] sm:$0xff]
        %v301 = vld [vmem:[#allocation2 + $0x90] sm:$0xff]
        %v302 = vld [vmem:[#allocation2 + $0x98] sm:$0xff]
        %v303 = vld [vmem:[#allocation2 + $0xa8] sm:$0xff]
        %v304 = vld [vmem:[#allocation2 + $0xb0] sm:$0xff]
        %v305 = vld [vmem:[#allocation2 + $0xc0] sm:$0xff]
        %v306 = vld [vmem:[#allocation2 + $0xc8] sm:$0xff]
        %v307 = vld [vmem:[#allocation2 + $0xd8] sm:$0xff]
        %v308 = vld [vmem:[#allocation2 + $0xe0] sm:$0xff]
        %v309 = vld [vmem:[#allocation2 + $0xf0] sm:$0xff]
        %v310 = vld [vmem:[#allocation2 + $0xf8] sm:$0xff]
        %v311 = vld [vmem:[#allocation2 + $0x108] sm:$0xff]
        %v312 = vld [vmem:[#allocation2 + $0x110] sm:$0xff]
        %v313 = vld [vmem:[#allocation2 + $0x120] sm:$0xff]
        %v314 = vld [vmem:[#allocation2 + $0x128] sm:$0xff]
        %v315 = vld [vmem:[#allocation2 + $0x138] sm:$0xff]
        %v316 = vld [vmem:[#allocation2 + $0x140] sm:$0xff]
        %v317 = vld [vmem:[#allocation2 + $0x150] sm:$0xff]
        %v318 = vld [vmem:[#allocation2 + $0x158] sm:$0xff]
        %v319 = vld [vmem:[#allocation2 + $0x168] sm:$0xff]
        %v320 = vld [vmem:[#allocation2 + $0x170] sm:$0xff]
        %v321 = vpack.c.bf16 %v290, %v289
        %v322 = vpack.c.bf16 %v292, %v291
        %v323 = vpack.c.bf16 %v294, %v293
        %v324 = vpack.c.bf16 %v296, %v295
        %v325 = vpack.c.bf16 %v298, %v297
        %v326 = vpack.c.bf16 %v300, %v299
        %v327 = vpack.c.bf16 %v302, %v301
        %v328 = vpack.c.bf16 %v304, %v303
        %v329 = vpack.c.bf16 %v306, %v305
        %v330 = vpack.c.bf16 %v308, %v307
        %v331 = vpack.c.bf16 %v310, %v309
        %v332 = vpack.c.bf16 %v312, %v311
        %v333 = vpack.c.bf16 %v314, %v313
        %v334 = vpack.c.bf16 %v316, %v315
        %v335 = vpack.c.bf16 %v318, %v317
        %v336 = vpack.c.bf16 %v320, %v319
        %v337 = vld [vmem:[%s1] sm:$0xff]
        %v338 = vld [vmem:[%s1 + $0x8] sm:$0xff]
        %v339 = vld [vmem:[%s1 + $0x10] sm:$0xff]
        %v340 = vld [vmem:[%s1 + $0x18] sm:$0xff]
        %v341 = vld [vmem:[%s1 + $0x20] sm:$0xff]
        %v342 = vld [vmem:[%s1 + $0x28] sm:$0xff]
        %v343 = vld [vmem:[%s1 + $0x30] sm:$0xff]
        %v344 = vld [vmem:[%s1 + $0x38] sm:$0xff]
        %v345 = vld [vmem:[%s1 + $0x40] sm:$0xff]
        %v346 = vld [vmem:[%s1 + $0x48] sm:$0xff]
        %v347 = vld [vmem:[%s1 + $0x50] sm:$0xff]
        %v348 = vld [vmem:[%s1 + $0x58] sm:$0xff]
        %v349 = vld [vmem:[%s1 + $0x60] sm:$0xff]
        %v350 = vld [vmem:[%s1 + $0x68] sm:$0xff]
        %v351 = vld [vmem:[%s1 + $0x70] sm:$0xff]
        %v352 = vld [vmem:[%s1 + $0x78] sm:$0xff]
        %v353 = vld [vmem:[#allocation2 + $0x1] sm:$0xff]
        %v354 = vld [vmem:[#allocation2 + $0x9] sm:$0xff]
        %v355 = vld [vmem:[#allocation2 + $0x19] sm:$0xff]
        %v356 = vld [vmem:[#allocation2 + $0x21] sm:$0xff]
        %v357 = vld [vmem:[#allocation2 + $0x31] sm:$0xff]
        %v358 = vld [vmem:[#allocation2 + $0x39] sm:$0xff]
        %v359 = vld [vmem:[#allocation2 + $0x49] sm:$0xff]
        %v360 = vld [vmem:[#allocation2 + $0x51] sm:$0xff]
        %v361 = vld [vmem:[#allocation2 + $0x61] sm:$0xff]
        %v362 = vld [vmem:[#allocation2 + $0x69] sm:$0xff]
        %v363 = vld [vmem:[#allocation2 + $0x79] sm:$0xff]
        %v364 = vld [vmem:[#allocation2 + $0x81] sm:$0xff]
        %v365 = vld [vmem:[#allocation2 + $0x91] sm:$0xff]
        %v366 = vld [vmem:[#allocation2 + $0x99] sm:$0xff]
        %v367 = vld [vmem:[#allocation2 + $0xa9] sm:$0xff]
        %v368 = vld [vmem:[#allocation2 + $0xb1] sm:$0xff]
        %v369 = vld [vmem:[#allocation2 + $0xc1] sm:$0xff]
        %v370 = vld [vmem:[#allocation2 + $0xc9] sm:$0xff]
        %v371 = vld [vmem:[#allocation2 + $0xd9] sm:$0xff]
        %v372 = vld [vmem:[#allocation2 + $0xe1] sm:$0xff]
        %v373 = vld [vmem:[#allocation2 + $0xf1] sm:$0xff]
        %v374 = vld [vmem:[#allocation2 + $0xf9] sm:$0xff]
        %v375 = vld [vmem:[#allocation2 + $0x109] sm:$0xff]
        %v376 = vld [vmem:[#allocation2 + $0x111] sm:$0xff]
        %v377 = vld [vmem:[#allocation2 + $0x121] sm:$0xff]
        %v378 = vld [vmem:[#allocation2 + $0x129] sm:$0xff]
        %v379 = vld [vmem:[#allocation2 + $0x139] sm:$0xff]
        %v380 = vld [vmem:[#allocation2 + $0x141] sm:$0xff]
        %v381 = vld [vmem:[#allocation2 + $0x151] sm:$0xff]
        %v382 = vld [vmem:[#allocation2 + $0x159] sm:$0xff]
        %v383 = vld [vmem:[#allocation2 + $0x169] sm:$0xff]
        %v384 = vld [vmem:[#allocation2 + $0x171] sm:$0xff]
        %v385 = vpack.c.bf16 %v354, %v353
        %v386 = vpack.c.bf16 %v356, %v355
        %v387 = vpack.c.bf16 %v358, %v357
        %v388 = vpack.c.bf16 %v360, %v359
        %v389 = vpack.c.bf16 %v362, %v361
        %v390 = vpack.c.bf16 %v364, %v363
        %v391 = vpack.c.bf16 %v366, %v365
        %v392 = vpack.c.bf16 %v368, %v367
        %v393 = vpack.c.bf16 %v370, %v369
        %v394 = vpack.c.bf16 %v372, %v371
        %v395 = vpack.c.bf16 %v374, %v373
        %v396 = vpack.c.bf16 %v376, %v375
        %v397 = vpack.c.bf16 %v378, %v377
        %v398 = vpack.c.bf16 %v380, %v379
        %v399 = vpack.c.bf16 %v382, %v381
        %v400 = vpack.c.bf16 %v384, %v383
        %s401 = scalar_lea.vmem %s1, 128
        %v402 = vld [vmem:[%s401] sm:$0xff]
        %v403 = vld [vmem:[%s401 + $0x8] sm:$0xff]
        %v404 = vld [vmem:[%s401 + $0x10] sm:$0xff]
        %v405 = vld [vmem:[%s401 + $0x18] sm:$0xff]
        %v406 = vld [vmem:[%s401 + $0x20] sm:$0xff]
        %v407 = vld [vmem:[%s401 + $0x28] sm:$0xff]
        %v408 = vld [vmem:[%s401 + $0x30] sm:$0xff]
        %v409 = vld [vmem:[%s401 + $0x38] sm:$0xff]
        %v410 = vld [vmem:[%s401 + $0x40] sm:$0xff]
        %v411 = vld [vmem:[%s401 + $0x48] sm:$0xff]
        %v412 = vld [vmem:[%s401 + $0x50] sm:$0xff]
        %v413 = vld [vmem:[%s401 + $0x58] sm:$0xff]
        %v414 = vld [vmem:[%s401 + $0x60] sm:$0xff]
        %v415 = vld [vmem:[%s401 + $0x68] sm:$0xff]
        %v416 = vld [vmem:[%s401 + $0x70] sm:$0xff]
        %v417 = vld [vmem:[%s401 + $0x78] sm:$0xff]
        %v434 = vunpack.c.l.b16 %v402
        %v435 = vunpack.c.h.b16 %v402
        %v436 = vunpack.c.l.b16 %v403
        %v437 = vunpack.c.h.b16 %v403
        %v438 = vunpack.c.l.b16 %v404
        %v439 = vunpack.c.h.b16 %v404
        %v440 = vunpack.c.l.b16 %v405
        %v441 = vunpack.c.h.b16 %v405
        %v442 = vunpack.c.l.b16 %v406
        %v443 = vunpack.c.h.b16 %v406
        %v444 = vunpack.c.l.b16 %v407
        %v445 = vunpack.c.h.b16 %v407
        %v446 = vunpack.c.l.b16 %v408
        %v447 = vunpack.c.h.b16 %v408
        %v448 = vunpack.c.l.b16 %v409
        %v449 = vunpack.c.h.b16 %v409
        %v450 = vunpack.c.l.b16 %v410
        %v451 = vunpack.c.h.b16 %v410
        %v452 = vunpack.c.l.b16 %v411
        %v453 = vunpack.c.h.b16 %v411
        %v454 = vunpack.c.l.b16 %v412
        %v455 = vunpack.c.h.b16 %v412
        %v456 = vunpack.c.l.b16 %v413
        %v457 = vunpack.c.h.b16 %v413
        %v458 = vunpack.c.l.b16 %v414
        %v459 = vunpack.c.h.b16 %v414
        %v460 = vunpack.c.l.b16 %v415
        %v461 = vunpack.c.h.b16 %v415
        %v462 = vunpack.c.l.b16 %v416
        %v463 = vunpack.c.h.b16 %v416
        %v464 = vunpack.c.l.b16 %v417
        %v465 = vunpack.c.h.b16 %v417
        %v466 = vpack.c.b16 %v436, %v434
        %v467 = vpack.c.b16 %v437, %v435
        %v468 = vpack.c.b16 %v440, %v438
        %v469 = vpack.c.b16 %v441, %v439
        %v470 = vpack.c.b16 %v444, %v442
        %v471 = vpack.c.b16 %v445, %v443
        %v472 = vpack.c.b16 %v448, %v446
        %v473 = vpack.c.b16 %v449, %v447
        %v474 = vpack.c.b16 %v452, %v450
        %v475 = vpack.c.b16 %v453, %v451
        %v476 = vpack.c.b16 %v456, %v454
        %v477 = vpack.c.b16 %v457, %v455
        %v478 = vpack.c.b16 %v460, %v458
        %v479 = vpack.c.b16 %v461, %v459
        %v480 = vpack.c.b16 %v464, %v462
        %v481 = vpack.c.b16 %v465, %v463
        %498 = vmatprep.subr.bf16.mxu0 %v481
        %499 = vmatpush1.bf16.msra.mxu0 %v480
        %500 = vmatprep.subr.bf16.mxu0 %v479
        %501 = vmatpush1.bf16.msra.mxu0 %v478
        %502 = vmatprep.subr.bf16.mxu0 %v477
        %503 = vmatpush1.bf16.msra.mxu0 %v476
        %504 = vmatprep.subr.bf16.mxu0 %v475
        %505 = vmatpush1.bf16.msra.mxu0 %v474
        %506 = vmatprep.subr.bf16.mxu0 %v473
        %507 = vmatpush1.bf16.msra.mxu0 %v472
        %508 = vmatprep.subr.bf16.mxu0 %v471
        %509 = vmatpush1.bf16.msra.mxu0 %v470
        %510 = vmatprep.subr.bf16.mxu0 %v469
        %511 = vmatpush1.bf16.msra.mxu0 %v468
        %512 = vmatprep.subr.bf16.mxu0 %v467
        %513 = vmatpush1.bf16.msra.mxu0 %v466
        %514 = vmatprep.subr.bf16.mxu0 0
        %515 = vmatpush2.bf16.msra.mxu0 0
        %516 = vmatprep.subr.bf16.mxu0 0
        %517 = vmatpush2.bf16.msra.mxu0 0
        %518 = vmatprep.subr.bf16.mxu0 0
        %519 = vmatpush2.bf16.msra.mxu0 0
        %520 = vmatprep.subr.bf16.mxu0 0
        %521 = vmatpush2.bf16.msra.mxu0 0
        %522 = vmatprep.subr.bf16.mxu0 0
        %523 = vmatpush2.bf16.msra.mxu0 0
        %524 = vmatprep.subr.bf16.mxu0 0
        %525 = vmatpush2.bf16.msra.mxu0 0
        %526 = vmatprep.subr.bf16.mxu0 0
        %527 = vmatpush2.bf16.msra.mxu0 0
        %528 = vmatprep.subr.bf16.mxu0 0
        %529 = vmatpush2.bf16.msra.mxu0 0
        %530 = vmatprep.mubr.bf16.mxu0 0
        %531 = vmatmul.mubr.bf16.gmra.mxu0 %v385
        %v532 = vpop.f32.mrf.mxu0
        %v533 = vadd.f32 0.0, %v532
        %v534 = vpop.f32.mrf.mxu0
        %v535 = vadd.f32 0.0, %v534
        %v536 = vpop.f32.mrf.mxu0
        %v537 = vadd.f32 0.0, %v536
        %v538 = vpop.f32.mrf.mxu0
        %v539 = vadd.f32 0.0, %v538
        %540 = vmatprep.mubr.bf16.mxu0 0
        %541 = vmatmul.mubr.bf16.gmra.mxu0 %v386
        %v542 = vpop.f32.mrf.mxu0
        %v543 = vadd.f32 0.0, %v542
        %v544 = vpop.f32.mrf.mxu0
        %v545 = vadd.f32 0.0, %v544
        %v546 = vpop.f32.mrf.mxu0
        %v547 = vadd.f32 0.0, %v546
        %v548 = vpop.f32.mrf.mxu0
        %v549 = vadd.f32 0.0, %v548
        %550 = vmatprep.mubr.bf16.mxu0 0
        %551 = vmatmul.mubr.bf16.gmra.mxu0 %v387
        %v552 = vpop.f32.mrf.mxu0
        %v553 = vadd.f32 0.0, %v552
        %v554 = vpop.f32.mrf.mxu0
        %v555 = vadd.f32 0.0, %v554
        %v556 = vpop.f32.mrf.mxu0
        %v557 = vadd.f32 0.0, %v556
        %v558 = vpop.f32.mrf.mxu0
        %v559 = vadd.f32 0.0, %v558
        %560 = vmatprep.mubr.bf16.mxu0 0
        %561 = vmatmul.mubr.bf16.gmra.mxu0 %v388
        %v562 = vpop.f32.mrf.mxu0
        %v563 = vadd.f32 0.0, %v562
        %v564 = vpop.f32.mrf.mxu0
        %v565 = vadd.f32 0.0, %v564
        %v566 = vpop.f32.mrf.mxu0
        %v567 = vadd.f32 0.0, %v566
        %v568 = vpop.f32.mrf.mxu0
        %v569 = vadd.f32 0.0, %v568
        %570 = vmatprep.mubr.bf16.mxu0 0
        %571 = vmatmul.mubr.bf16.gmra.mxu0 %v389
        %v572 = vpop.f32.mrf.mxu0
        %v573 = vadd.f32 0.0, %v572
        %v574 = vpop.f32.mrf.mxu0
        %v575 = vadd.f32 0.0, %v574
        %v576 = vpop.f32.mrf.mxu0
        %v577 = vadd.f32 0.0, %v576
        %v578 = vpop.f32.mrf.mxu0
        %v579 = vadd.f32 0.0, %v578
        %580 = vmatprep.mubr.bf16.mxu0 0
        %581 = vmatmul.mubr.bf16.gmra.mxu0 %v390
        %v582 = vpop.f32.mrf.mxu0
        %v583 = vadd.f32 0.0, %v582
        %v584 = vpop.f32.mrf.mxu0
        %v585 = vadd.f32 0.0, %v584
        %v586 = vpop.f32.mrf.mxu0
        %v587 = vadd.f32 0.0, %v586
        %v588 = vpop.f32.mrf.mxu0
        %v589 = vadd.f32 0.0, %v588
        %590 = vmatprep.mubr.bf16.mxu0 0
        %591 = vmatmul.mubr.bf16.gmra.mxu0 %v391
        %v592 = vpop.f32.mrf.mxu0
        %v593 = vadd.f32 0.0, %v592
        %v594 = vpop.f32.mrf.mxu0
        %v595 = vadd.f32 0.0, %v594
        %v596 = vpop.f32.mrf.mxu0
        %v597 = vadd.f32 0.0, %v596
        %v598 = vpop.f32.mrf.mxu0
        %v599 = vadd.f32 0.0, %v598
        %600 = vmatprep.mubr.bf16.mxu0 0
        %601 = vmatmul.mubr.bf16.gmra.mxu0 %v392
        %v602 = vpop.f32.mrf.mxu0
        %v603 = vadd.f32 0.0, %v602
        %v604 = vpop.f32.mrf.mxu0
        %v605 = vadd.f32 0.0, %v604
        %v606 = vpop.f32.mrf.mxu0
        %v607 = vadd.f32 0.0, %v606
        %v608 = vpop.f32.mrf.mxu0
        %v609 = vadd.f32 0.0, %v608
        %610 = vmatprep.mubr.bf16.mxu0 0
        %611 = vmatmul.mubr.bf16.gmra.mxu0 %v393
        %v612 = vpop.f32.mrf.mxu0
        %v613 = vadd.f32 0.0, %v612
        %v614 = vpop.f32.mrf.mxu0
        %v615 = vadd.f32 0.0, %v614
        %v616 = vpop.f32.mrf.mxu0
        %v617 = vadd.f32 0.0, %v616
        %v618 = vpop.f32.mrf.mxu0
        %v619 = vadd.f32 0.0, %v618
        %620 = vmatprep.mubr.bf16.mxu0 0
        %621 = vmatmul.mubr.bf16.gmra.mxu0 %v394
        %v622 = vpop.f32.mrf.mxu0
        %v623 = vadd.f32 0.0, %v622
        %v624 = vpop.f32.mrf.mxu0
        %v625 = vadd.f32 0.0, %v624
        %v626 = vpop.f32.mrf.mxu0
        %v627 = vadd.f32 0.0, %v626
        %v628 = vpop.f32.mrf.mxu0
        %v629 = vadd.f32 0.0, %v628
        %630 = vmatprep.mubr.bf16.mxu0 0
        %631 = vmatmul.mubr.bf16.gmra.mxu0 %v395
        %v632 = vpop.f32.mrf.mxu0
        %v633 = vadd.f32 0.0, %v632
        %v634 = vpop.f32.mrf.mxu0
        %v635 = vadd.f32 0.0, %v634
        %v636 = vpop.f32.mrf.mxu0
        %v637 = vadd.f32 0.0, %v636
        %v638 = vpop.f32.mrf.mxu0
        %v639 = vadd.f32 0.0, %v638
        %640 = vmatprep.mubr.bf16.mxu0 0
        %641 = vmatmul.mubr.bf16.gmra.mxu0 %v396
        %v642 = vpop.f32.mrf.mxu0
        %v643 = vadd.f32 0.0, %v642
        %v644 = vpop.f32.mrf.mxu0
        %v645 = vadd.f32 0.0, %v644
        %v646 = vpop.f32.mrf.mxu0
        %v647 = vadd.f32 0.0, %v646
        %v648 = vpop.f32.mrf.mxu0
        %v649 = vadd.f32 0.0, %v648
        %650 = vmatprep.mubr.bf16.mxu0 0
        %651 = vmatmul.mubr.bf16.gmra.mxu0 %v397
        %v652 = vpop.f32.mrf.mxu0
        %v653 = vadd.f32 0.0, %v652
        %v654 = vpop.f32.mrf.mxu0
        %v655 = vadd.f32 0.0, %v654
        %v656 = vpop.f32.mrf.mxu0
        %v657 = vadd.f32 0.0, %v656
        %v658 = vpop.f32.mrf.mxu0
        %v659 = vadd.f32 0.0, %v658
        %660 = vmatprep.mubr.bf16.mxu0 0
        %661 = vmatmul.mubr.bf16.gmra.mxu0 %v398
        %v662 = vpop.f32.mrf.mxu0
        %v663 = vadd.f32 0.0, %v662
        %v664 = vpop.f32.mrf.mxu0
        %v665 = vadd.f32 0.0, %v664
        %v666 = vpop.f32.mrf.mxu0
        %v667 = vadd.f32 0.0, %v666
        %v668 = vpop.f32.mrf.mxu0
        %v669 = vadd.f32 0.0, %v668
        %670 = vmatprep.mubr.bf16.mxu0 0
        %671 = vmatmul.mubr.bf16.gmra.mxu0 %v399
        %v672 = vpop.f32.mrf.mxu0
        %v673 = vadd.f32 0.0, %v672
        %v674 = vpop.f32.mrf.mxu0
        %v675 = vadd.f32 0.0, %v674
        %v676 = vpop.f32.mrf.mxu0
        %v677 = vadd.f32 0.0, %v676
        %v678 = vpop.f32.mrf.mxu0
        %v679 = vadd.f32 0.0, %v678
        %680 = vmatprep.mubr.bf16.mxu0 0
        %681 = vmatmul.mubr.bf16.gmra.mxu0 %v400
        %v682 = vpop.f32.mrf.mxu0
        %v683 = vadd.f32 0.0, %v682
        %v684 = vpop.f32.mrf.mxu0
        %v685 = vadd.f32 0.0, %v684
        %v686 = vpop.f32.mrf.mxu0
        %v687 = vadd.f32 0.0, %v686
        %v688 = vpop.f32.mrf.mxu0
        %v689 = vadd.f32 0.0, %v688
        %690 = vdwg.mxu0
        %v707 = vunpack.c.l.b16 %v337
        %v708 = vunpack.c.h.b16 %v337
        %v709 = vunpack.c.l.b16 %v338
        %v710 = vunpack.c.h.b16 %v338
        %v711 = vunpack.c.l.b16 %v339
        %v712 = vunpack.c.h.b16 %v339
        %v713 = vunpack.c.l.b16 %v340
        %v714 = vunpack.c.h.b16 %v340
        %v715 = vunpack.c.l.b16 %v341
        %v716 = vunpack.c.h.b16 %v341
        %v717 = vunpack.c.l.b16 %v342
        %v718 = vunpack.c.h.b16 %v342
        %v719 = vunpack.c.l.b16 %v343
        %v720 = vunpack.c.h.b16 %v343
        %v721 = vunpack.c.l.b16 %v344
        %v722 = vunpack.c.h.b16 %v344
        %v723 = vunpack.c.l.b16 %v345
        %v724 = vunpack.c.h.b16 %v345
        %v725 = vunpack.c.l.b16 %v346
        %v726 = vunpack.c.h.b16 %v346
        %v727 = vunpack.c.l.b16 %v347
        %v728 = vunpack.c.h.b16 %v347
        %v729 = vunpack.c.l.b16 %v348
        %v730 = vunpack.c.h.b16 %v348
        %v731 = vunpack.c.l.b16 %v349
        %v732 = vunpack.c.h.b16 %v349
        %v733 = vunpack.c.l.b16 %v350
        %v734 = vunpack.c.h.b16 %v350
        %v735 = vunpack.c.l.b16 %v351
        %v736 = vunpack.c.h.b16 %v351
        %v737 = vunpack.c.l.b16 %v352
        %v738 = vunpack.c.h.b16 %v352
        %v739 = vpack.c.b16 %v709, %v707
        %v740 = vpack.c.b16 %v710, %v708
        %v741 = vpack.c.b16 %v713, %v711
        %v742 = vpack.c.b16 %v714, %v712
        %v743 = vpack.c.b16 %v717, %v715
        %v744 = vpack.c.b16 %v718, %v716
        %v745 = vpack.c.b16 %v721, %v719
        %v746 = vpack.c.b16 %v722, %v720
        %v747 = vpack.c.b16 %v725, %v723
        %v748 = vpack.c.b16 %v726, %v724
        %v749 = vpack.c.b16 %v729, %v727
        %v750 = vpack.c.b16 %v730, %v728
        %v751 = vpack.c.b16 %v733, %v731
        %v752 = vpack.c.b16 %v734, %v732
        %v753 = vpack.c.b16 %v737, %v735
        %v754 = vpack.c.b16 %v738, %v736
        %771 = vmatprep.subr.bf16.mxu0 %v754
        %772 = vmatpush1.bf16.msra.mxu0 %v753
        %773 = vmatprep.subr.bf16.mxu0 %v752
        %774 = vmatpush1.bf16.msra.mxu0 %v751
        %775 = vmatprep.subr.bf16.mxu0 %v750
        %776 = vmatpush1.bf16.msra.mxu0 %v749
        %777 = vmatprep.subr.bf16.mxu0 %v748
        %778 = vmatpush1.bf16.msra.mxu0 %v747
        %779 = vmatprep.subr.bf16.mxu0 %v746
        %780 = vmatpush1.bf16.msra.mxu0 %v745
        %781 = vmatprep.subr.bf16.mxu0 %v744
        %782 = vmatpush1.bf16.msra.mxu0 %v743
        %783 = vmatprep.subr.bf16.mxu0 %v742
        %784 = vmatpush1.bf16.msra.mxu0 %v741
        %785 = vmatprep.subr.bf16.mxu0 %v740
        %786 = vmatpush1.bf16.msra.mxu0 %v739
        %787 = vmatprep.subr.bf16.mxu0 0
        %788 = vmatpush2.bf16.msra.mxu0 0
        %789 = vmatprep.subr.bf16.mxu0 0
        %790 = vmatpush2.bf16.msra.mxu0 0
        %791 = vmatprep.subr.bf16.mxu0 0
        %792 = vmatpush2.bf16.msra.mxu0 0
        %793 = vmatprep.subr.bf16.mxu0 0
        %794 = vmatpush2.bf16.msra.mxu0 0
        %795 = vmatprep.subr.bf16.mxu0 0
        %796 = vmatpush2.bf16.msra.mxu0 0
        %797 = vmatprep.subr.bf16.mxu0 0
        %798 = vmatpush2.bf16.msra.mxu0 0
        %799 = vmatprep.subr.bf16.mxu0 0
        %800 = vmatpush2.bf16.msra.mxu0 0
        %801 = vmatprep.subr.bf16.mxu0 0
        %802 = vmatpush2.bf16.msra.mxu0 0
        %803 = vmatprep.mubr.bf16.mxu0 0
        %804 = vmatmul.mubr.bf16.gmra.mxu0 %v321
        %v805 = vpop.f32.mrf.mxu0
        %v806 = vadd.f32 %v533, %v805
        %v807 = vpop.f32.mrf.mxu0
        %v808 = vadd.f32 %v535, %v807
        %v809 = vpop.f32.mrf.mxu0
        %v810 = vadd.f32 %v537, %v809
        %v811 = vpop.f32.mrf.mxu0
        %v812 = vadd.f32 %v539, %v811
        %813 = vmatprep.mubr.bf16.mxu0 0
        %814 = vmatmul.mubr.bf16.gmra.mxu0 %v322
        %v815 = vpop.f32.mrf.mxu0
        %v816 = vadd.f32 %v543, %v815
        %v817 = vpop.f32.mrf.mxu0
        %v818 = vadd.f32 %v545, %v817
        %v819 = vpop.f32.mrf.mxu0
        %v820 = vadd.f32 %v547, %v819
        %v821 = vpop.f32.mrf.mxu0
        %v822 = vadd.f32 %v549, %v821
        %823 = vmatprep.mubr.bf16.mxu0 0
        %824 = vmatmul.mubr.bf16.gmra.mxu0 %v323
        %v825 = vpop.f32.mrf.mxu0
        %v826 = vadd.f32 %v553, %v825
        %v827 = vpop.f32.mrf.mxu0
        %v828 = vadd.f32 %v555, %v827
        %v829 = vpop.f32.mrf.mxu0
        %v830 = vadd.f32 %v557, %v829
        %v831 = vpop.f32.mrf.mxu0
        %v832 = vadd.f32 %v559, %v831
        %833 = vmatprep.mubr.bf16.mxu0 0
        %834 = vmatmul.mubr.bf16.gmra.mxu0 %v324
        %v835 = vpop.f32.mrf.mxu0
        %v836 = vadd.f32 %v563, %v835
        %v837 = vpop.f32.mrf.mxu0
        %v838 = vadd.f32 %v565, %v837
        %v839 = vpop.f32.mrf.mxu0
        %v840 = vadd.f32 %v567, %v839
        %v841 = vpop.f32.mrf.mxu0
        %v842 = vadd.f32 %v569, %v841
        %843 = vmatprep.mubr.bf16.mxu0 0
        %844 = vmatmul.mubr.bf16.gmra.mxu0 %v325
        %v845 = vpop.f32.mrf.mxu0
        %v846 = vadd.f32 %v573, %v845
        %v847 = vpop.f32.mrf.mxu0
        %v848 = vadd.f32 %v575, %v847
        %v849 = vpop.f32.mrf.mxu0
        %v850 = vadd.f32 %v577, %v849
        %v851 = vpop.f32.mrf.mxu0
        %v852 = vadd.f32 %v579, %v851
        %853 = vmatprep.mubr.bf16.mxu0 0
        %854 = vmatmul.mubr.bf16.gmra.mxu0 %v326
        %v855 = vpop.f32.mrf.mxu0
        %v856 = vadd.f32 %v583, %v855
        %v857 = vpop.f32.mrf.mxu0
        %v858 = vadd.f32 %v585, %v857
        %v859 = vpop.f32.mrf.mxu0
        %v860 = vadd.f32 %v587, %v859
        %v861 = vpop.f32.mrf.mxu0
        %v862 = vadd.f32 %v589, %v861
        %863 = vmatprep.mubr.bf16.mxu0 0
        %864 = vmatmul.mubr.bf16.gmra.mxu0 %v327
        %v865 = vpop.f32.mrf.mxu0
        %v866 = vadd.f32 %v593, %v865
        %v867 = vpop.f32.mrf.mxu0
        %v868 = vadd.f32 %v595, %v867
        %v869 = vpop.f32.mrf.mxu0
        %v870 = vadd.f32 %v597, %v869
        %v871 = vpop.f32.mrf.mxu0
        %v872 = vadd.f32 %v599, %v871
        %873 = vmatprep.mubr.bf16.mxu0 0
        %874 = vmatmul.mubr.bf16.gmra.mxu0 %v328
        %v875 = vpop.f32.mrf.mxu0
        %v876 = vadd.f32 %v603, %v875
        %v877 = vpop.f32.mrf.mxu0
        %v878 = vadd.f32 %v605, %v877
        %v879 = vpop.f32.mrf.mxu0
        %v880 = vadd.f32 %v607, %v879
        %v881 = vpop.f32.mrf.mxu0
        %v882 = vadd.f32 %v609, %v881
        %883 = vmatprep.mubr.bf16.mxu0 0
        %884 = vmatmul.mubr.bf16.gmra.mxu0 %v329
        %v885 = vpop.f32.mrf.mxu0
        %v886 = vadd.f32 %v613, %v885
        %v887 = vpop.f32.mrf.mxu0
        %v888 = vadd.f32 %v615, %v887
        %v889 = vpop.f32.mrf.mxu0
        %v890 = vadd.f32 %v617, %v889
        %v891 = vpop.f32.mrf.mxu0
        %v892 = vadd.f32 %v619, %v891
        %893 = vmatprep.mubr.bf16.mxu0 0
        %894 = vmatmul.mubr.bf16.gmra.mxu0 %v330
        %v895 = vpop.f32.mrf.mxu0
        %v896 = vadd.f32 %v623, %v895
        %v897 = vpop.f32.mrf.mxu0
        %v898 = vadd.f32 %v625, %v897
        %v899 = vpop.f32.mrf.mxu0
        %v900 = vadd.f32 %v627, %v899
        %v901 = vpop.f32.mrf.mxu0
        %v902 = vadd.f32 %v629, %v901
        %903 = vmatprep.mubr.bf16.mxu0 0
        %904 = vmatmul.mubr.bf16.gmra.mxu0 %v331
        %v905 = vpop.f32.mrf.mxu0
        %v906 = vadd.f32 %v633, %v905
        %v907 = vpop.f32.mrf.mxu0
        %v908 = vadd.f32 %v635, %v907
        %v909 = vpop.f32.mrf.mxu0
        %v910 = vadd.f32 %v637, %v909
        %v911 = vpop.f32.mrf.mxu0
        %v912 = vadd.f32 %v639, %v911
        %913 = vmatprep.mubr.bf16.mxu0 0
        %914 = vmatmul.mubr.bf16.gmra.mxu0 %v332
        %v915 = vpop.f32.mrf.mxu0
        %v916 = vadd.f32 %v643, %v915
        %v917 = vpop.f32.mrf.mxu0
        %v918 = vadd.f32 %v645, %v917
        %v919 = vpop.f32.mrf.mxu0
        %v920 = vadd.f32 %v647, %v919
        %v921 = vpop.f32.mrf.mxu0
        %v922 = vadd.f32 %v649, %v921
        %923 = vmatprep.mubr.bf16.mxu0 0
        %924 = vmatmul.mubr.bf16.gmra.mxu0 %v333
        %v925 = vpop.f32.mrf.mxu0
        %v926 = vadd.f32 %v653, %v925
        %v927 = vpop.f32.mrf.mxu0
        %v928 = vadd.f32 %v655, %v927
        %v929 = vpop.f32.mrf.mxu0
        %v930 = vadd.f32 %v657, %v929
        %v931 = vpop.f32.mrf.mxu0
        %v932 = vadd.f32 %v659, %v931
        %933 = vmatprep.mubr.bf16.mxu0 0
        %934 = vmatmul.mubr.bf16.gmra.mxu0 %v334
        %v935 = vpop.f32.mrf.mxu0
        %v936 = vadd.f32 %v663, %v935
        %v937 = vpop.f32.mrf.mxu0
        %v938 = vadd.f32 %v665, %v937
        %v939 = vpop.f32.mrf.mxu0
        %v940 = vadd.f32 %v667, %v939
        %v941 = vpop.f32.mrf.mxu0
        %v942 = vadd.f32 %v669, %v941
        %943 = vmatprep.mubr.bf16.mxu0 0
        %944 = vmatmul.mubr.bf16.gmra.mxu0 %v335
        %v945 = vpop.f32.mrf.mxu0
        %v946 = vadd.f32 %v673, %v945
        %v947 = vpop.f32.mrf.mxu0
        %v948 = vadd.f32 %v675, %v947
        %v949 = vpop.f32.mrf.mxu0
        %v950 = vadd.f32 %v677, %v949
        %v951 = vpop.f32.mrf.mxu0
        %v952 = vadd.f32 %v679, %v951
        %953 = vmatprep.mubr.bf16.mxu0 0
        %954 = vmatmul.mubr.bf16.gmra.mxu0 %v336
        %v955 = vpop.f32.mrf.mxu0
        %v956 = vadd.f32 %v683, %v955
        %v957 = vpop.f32.mrf.mxu0
        %v958 = vadd.f32 %v685, %v957
        %v959 = vpop.f32.mrf.mxu0
        %v960 = vadd.f32 %v687, %v959
        %v961 = vpop.f32.mrf.mxu0
        %v962 = vadd.f32 %v689, %v961
        %963 = vdwg.mxu0
        %v964 = vld [vmem:[#allocation2 + $0x2] sm:$0xff]
        %v965 = vld [vmem:[#allocation2 + $0xa] sm:$0xff]
        %v966 = vld [vmem:[#allocation2 + $0x1a] sm:$0xff]
        %v967 = vld [vmem:[#allocation2 + $0x22] sm:$0xff]
        %v968 = vld [vmem:[#allocation2 + $0x32] sm:$0xff]
        %v969 = vld [vmem:[#allocation2 + $0x3a] sm:$0xff]
        %v970 = vld [vmem:[#allocation2 + $0x4a] sm:$0xff]
        %v971 = vld [vmem:[#allocation2 + $0x52] sm:$0xff]
        %v972 = vld [vmem:[#allocation2 + $0x62] sm:$0xff]
        %v973 = vld [vmem:[#allocation2 + $0x6a] sm:$0xff]
        %v974 = vld [vmem:[#allocation2 + $0x7a] sm:$0xff]
        %v975 = vld [vmem:[#allocation2 + $0x82] sm:$0xff]
        %v976 = vld [vmem:[#allocation2 + $0x92] sm:$0xff]
        %v977 = vld [vmem:[#allocation2 + $0x9a] sm:$0xff]
        %v978 = vld [vmem:[#allocation2 + $0xaa] sm:$0xff]
        %v979 = vld [vmem:[#allocation2 + $0xb2] sm:$0xff]
        %v980 = vld [vmem:[#allocation2 + $0xc2] sm:$0xff]
        %v981 = vld [vmem:[#allocation2 + $0xca] sm:$0xff]
        %v982 = vld [vmem:[#allocation2 + $0xda] sm:$0xff]
        %v983 = vld [vmem:[#allocation2 + $0xe2] sm:$0xff]
        %v984 = vld [vmem:[#allocation2 + $0xf2] sm:$0xff]
        %v985 = vld [vmem:[#allocation2 + $0xfa] sm:$0xff]
        %v986 = vld [vmem:[#allocation2 + $0x10a] sm:$0xff]
        %v987 = vld [vmem:[#allocation2 + $0x112] sm:$0xff]
        %v988 = vld [vmem:[#allocation2 + $0x122] sm:$0xff]
        %v989 = vld [vmem:[#allocation2 + $0x12a] sm:$0xff]
        %v990 = vld [vmem:[#allocation2 + $0x13a] sm:$0xff]
        %v991 = vld [vmem:[#allocation2 + $0x142] sm:$0xff]
        %v992 = vld [vmem:[#allocation2 + $0x152] sm:$0xff]
        %v993 = vld [vmem:[#allocation2 + $0x15a] sm:$0xff]
        %v994 = vld [vmem:[#allocation2 + $0x16a] sm:$0xff]
        %v995 = vld [vmem:[#allocation2 + $0x172] sm:$0xff]
        %v996 = vpack.c.bf16 %v965, %v964
        %v997 = vpack.c.bf16 %v967, %v966
        %v998 = vpack.c.bf16 %v969, %v968
        %v999 = vpack.c.bf16 %v971, %v970
        %v1000 = vpack.c.bf16 %v973, %v972
        %v1001 = vpack.c.bf16 %v975, %v974
        %v1002 = vpack.c.bf16 %v977, %v976
        %v1003 = vpack.c.bf16 %v979, %v978
        %v1004 = vpack.c.bf16 %v981, %v980
        %v1005 = vpack.c.bf16 %v983, %v982
        %v1006 = vpack.c.bf16 %v985, %v984
        %v1007 = vpack.c.bf16 %v987, %v986
        %v1008 = vpack.c.bf16 %v989, %v988
        %v1009 = vpack.c.bf16 %v991, %v990
        %v1010 = vpack.c.bf16 %v993, %v992
        %v1011 = vpack.c.bf16 %v995, %v994
        %s1012 = scalar_lea.vmem %s1, 256
        %v1013 = vld [vmem:[%s1012] sm:$0xff]
        %v1014 = vld [vmem:[%s1012 + $0x8] sm:$0xff]
        %v1015 = vld [vmem:[%s1012 + $0x10] sm:$0xff]
        %v1016 = vld [vmem:[%s1012 + $0x18] sm:$0xff]
        %v1017 = vld [vmem:[%s1012 + $0x20] sm:$0xff]
        %v1018 = vld [vmem:[%s1012 + $0x28] sm:$0xff]
        %v1019 = vld [vmem:[%s1012 + $0x30] sm:$0xff]
        %v1020 = vld [vmem:[%s1012 + $0x38] sm:$0xff]
        %v1021 = vld [vmem:[%s1012 + $0x40] sm:$0xff]
        %v1022 = vld [vmem:[%s1012 + $0x48] sm:$0xff]
        %v1023 = vld [vmem:[%s1012 + $0x50] sm:$0xff]
        %v1024 = vld [vmem:[%s1012 + $0x58] sm:$0xff]
        %v1025 = vld [vmem:[%s1012 + $0x60] sm:$0xff]
        %v1026 = vld [vmem:[%s1012 + $0x68] sm:$0xff]
        %v1027 = vld [vmem:[%s1012 + $0x70] sm:$0xff]
        %v1028 = vld [vmem:[%s1012 + $0x78] sm:$0xff]
        %v1045 = vunpack.c.l.b16 %v1013
        %v1046 = vunpack.c.h.b16 %v1013
        %v1047 = vunpack.c.l.b16 %v1014
        %v1048 = vunpack.c.h.b16 %v1014
        %v1049 = vunpack.c.l.b16 %v1015
        %v1050 = vunpack.c.h.b16 %v1015
        %v1051 = vunpack.c.l.b16 %v1016
        %v1052 = vunpack.c.h.b16 %v1016
        %v1053 = vunpack.c.l.b16 %v1017
        %v1054 = vunpack.c.h.b16 %v1017
        %v1055 = vunpack.c.l.b16 %v1018
        %v1056 = vunpack.c.h.b16 %v1018
        %v1057 = vunpack.c.l.b16 %v1019
        %v1058 = vunpack.c.h.b16 %v1019
        %v1059 = vunpack.c.l.b16 %v1020
        %v1060 = vunpack.c.h.b16 %v1020
        %v1061 = vunpack.c.l.b16 %v1021
        %v1062 = vunpack.c.h.b16 %v1021
        %v1063 = vunpack.c.l.b16 %v1022
        %v1064 = vunpack.c.h.b16 %v1022
        %v1065 = vunpack.c.l.b16 %v1023
        %v1066 = vunpack.c.h.b16 %v1023
        %v1067 = vunpack.c.l.b16 %v1024
        %v1068 = vunpack.c.h.b16 %v1024
        %v1069 = vunpack.c.l.b16 %v1025
        %v1070 = vunpack.c.h.b16 %v1025
        %v1071 = vunpack.c.l.b16 %v1026
        %v1072 = vunpack.c.h.b16 %v1026
        %v1073 = vunpack.c.l.b16 %v1027
        %v1074 = vunpack.c.h.b16 %v1027
        %v1075 = vunpack.c.l.b16 %v1028
        %v1076 = vunpack.c.h.b16 %v1028
        %v1077 = vpack.c.b16 %v1047, %v1045
        %v1078 = vpack.c.b16 %v1048, %v1046
        %v1079 = vpack.c.b16 %v1051, %v1049
        %v1080 = vpack.c.b16 %v1052, %v1050
        %v1081 = vpack.c.b16 %v1055, %v1053
        %v1082 = vpack.c.b16 %v1056, %v1054
        %v1083 = vpack.c.b16 %v1059, %v1057
        %v1084 = vpack.c.b16 %v1060, %v1058
        %v1085 = vpack.c.b16 %v1063, %v1061
        %v1086 = vpack.c.b16 %v1064, %v1062
        %v1087 = vpack.c.b16 %v1067, %v1065
        %v1088 = vpack.c.b16 %v1068, %v1066
        %v1089 = vpack.c.b16 %v1071, %v1069
        %v1090 = vpack.c.b16 %v1072, %v1070
        %v1091 = vpack.c.b16 %v1075, %v1073
        %v1092 = vpack.c.b16 %v1076, %v1074
        %1109 = vmatprep.subr.bf16.mxu0 %v1092
        %1110 = vmatpush1.bf16.msra.mxu0 %v1091
        %1111 = vmatprep.subr.bf16.mxu0 %v1090
        %1112 = vmatpush1.bf16.msra.mxu0 %v1089
        %1113 = vmatprep.subr.bf16.mxu0 %v1088
        %1114 = vmatpush1.bf16.msra.mxu0 %v1087
        %1115 = vmatprep.subr.bf16.mxu0 %v1086
        %1116 = vmatpush1.bf16.msra.mxu0 %v1085
        %1117 = vmatprep.subr.bf16.mxu0 %v1084
        %1118 = vmatpush1.bf16.msra.mxu0 %v1083
        %1119 = vmatprep.subr.bf16.mxu0 %v1082
        %1120 = vmatpush1.bf16.msra.mxu0 %v1081
        %1121 = vmatprep.subr.bf16.mxu0 %v1080
        %1122 = vmatpush1.bf16.msra.mxu0 %v1079
        %1123 = vmatprep.subr.bf16.mxu0 %v1078
        %1124 = vmatpush1.bf16.msra.mxu0 %v1077
        %1125 = vmatprep.subr.bf16.mxu0 0
        %1126 = vmatpush2.bf16.msra.mxu0 0
        %1127 = vmatprep.subr.bf16.mxu0 0
        %1128 = vmatpush2.bf16.msra.mxu0 0
        %1129 = vmatprep.subr.bf16.mxu0 0
        %1130 = vmatpush2.bf16.msra.mxu0 0
        %1131 = vmatprep.subr.bf16.mxu0 0
        %1132 = vmatpush2.bf16.msra.mxu0 0
        %1133 = vmatprep.subr.bf16.mxu0 0
        %1134 = vmatpush2.bf16.msra.mxu0 0
        %1135 = vmatprep.subr.bf16.mxu0 0
        %1136 = vmatpush2.bf16.msra.mxu0 0
        %1137 = vmatprep.subr.bf16.mxu0 0
        %1138 = vmatpush2.bf16.msra.mxu0 0
        %1139 = vmatprep.subr.bf16.mxu0 0
        %1140 = vmatpush2.bf16.msra.mxu0 0
        %1141 = vmatprep.mubr.bf16.mxu0 0
        %1142 = vmatmul.mubr.bf16.gmra.mxu0 %v996
        %v1143 = vpop.f32.mrf.mxu0
        %v1144 = vadd.f32 0.0, %v1143
        %v1145 = vpop.f32.mrf.mxu0
        %v1146 = vadd.f32 0.0, %v1145
        %v1147 = vpop.f32.mrf.mxu0
        %v1148 = vadd.f32 0.0, %v1147
        %v1149 = vpop.f32.mrf.mxu0
        %v1150 = vadd.f32 0.0, %v1149
        %1151 = vmatprep.mubr.bf16.mxu0 0
        %1152 = vmatmul.mubr.bf16.gmra.mxu0 %v997
        %v1153 = vpop.f32.mrf.mxu0
        %v1154 = vadd.f32 0.0, %v1153
        %v1155 = vpop.f32.mrf.mxu0
        %v1156 = vadd.f32 0.0, %v1155
        %v1157 = vpop.f32.mrf.mxu0
        %v1158 = vadd.f32 0.0, %v1157
        %v1159 = vpop.f32.mrf.mxu0
        %v1160 = vadd.f32 0.0, %v1159
        %1161 = vmatprep.mubr.bf16.mxu0 0
        %1162 = vmatmul.mubr.bf16.gmra.mxu0 %v998
        %v1163 = vpop.f32.mrf.mxu0
        %v1164 = vadd.f32 0.0, %v1163
        %v1165 = vpop.f32.mrf.mxu0
        %v1166 = vadd.f32 0.0, %v1165
        %v1167 = vpop.f32.mrf.mxu0
        %v1168 = vadd.f32 0.0, %v1167
        %v1169 = vpop.f32.mrf.mxu0
        %v1170 = vadd.f32 0.0, %v1169
        %1171 = vmatprep.mubr.bf16.mxu0 0
        %1172 = vmatmul.mubr.bf16.gmra.mxu0 %v999
        %v1173 = vpop.f32.mrf.mxu0
        %v1174 = vadd.f32 0.0, %v1173
        %v1175 = vpop.f32.mrf.mxu0
        %v1176 = vadd.f32 0.0, %v1175
        %v1177 = vpop.f32.mrf.mxu0
        %v1178 = vadd.f32 0.0, %v1177
        %v1179 = vpop.f32.mrf.mxu0
        %v1180 = vadd.f32 0.0, %v1179
        %1181 = vmatprep.mubr.bf16.mxu0 0
        %1182 = vmatmul.mubr.bf16.gmra.mxu0 %v1000
        %v1183 = vpop.f32.mrf.mxu0
        %v1184 = vadd.f32 0.0, %v1183
        %v1185 = vpop.f32.mrf.mxu0
        %v1186 = vadd.f32 0.0, %v1185
        %v1187 = vpop.f32.mrf.mxu0
        %v1188 = vadd.f32 0.0, %v1187
        %v1189 = vpop.f32.mrf.mxu0
        %v1190 = vadd.f32 0.0, %v1189
        %1191 = vmatprep.mubr.bf16.mxu0 0
        %1192 = vmatmul.mubr.bf16.gmra.mxu0 %v1001
        %v1193 = vpop.f32.mrf.mxu0
        %v1194 = vadd.f32 0.0, %v1193
        %v1195 = vpop.f32.mrf.mxu0
        %v1196 = vadd.f32 0.0, %v1195
        %v1197 = vpop.f32.mrf.mxu0
        %v1198 = vadd.f32 0.0, %v1197
        %v1199 = vpop.f32.mrf.mxu0
        %v1200 = vadd.f32 0.0, %v1199
        %1201 = vmatprep.mubr.bf16.mxu0 0
        %1202 = vmatmul.mubr.bf16.gmra.mxu0 %v1002
        %v1203 = vpop.f32.mrf.mxu0
        %v1204 = vadd.f32 0.0, %v1203
        %v1205 = vpop.f32.mrf.mxu0
        %v1206 = vadd.f32 0.0, %v1205
        %v1207 = vpop.f32.mrf.mxu0
        %v1208 = vadd.f32 0.0, %v1207
        %v1209 = vpop.f32.mrf.mxu0
        %v1210 = vadd.f32 0.0, %v1209
        %1211 = vmatprep.mubr.bf16.mxu0 0
        %1212 = vmatmul.mubr.bf16.gmra.mxu0 %v1003
        %v1213 = vpop.f32.mrf.mxu0
        %v1214 = vadd.f32 0.0, %v1213
        %v1215 = vpop.f32.mrf.mxu0
        %v1216 = vadd.f32 0.0, %v1215
        %v1217 = vpop.f32.mrf.mxu0
        %v1218 = vadd.f32 0.0, %v1217
        %v1219 = vpop.f32.mrf.mxu0
        %v1220 = vadd.f32 0.0, %v1219
        %1221 = vmatprep.mubr.bf16.mxu0 0
        %1222 = vmatmul.mubr.bf16.gmra.mxu0 %v1004
        %v1223 = vpop.f32.mrf.mxu0
        %v1224 = vadd.f32 0.0, %v1223
        %v1225 = vpop.f32.mrf.mxu0
        %v1226 = vadd.f32 0.0, %v1225
        %v1227 = vpop.f32.mrf.mxu0
        %v1228 = vadd.f32 0.0, %v1227
        %v1229 = vpop.f32.mrf.mxu0
        %v1230 = vadd.f32 0.0, %v1229
        %1231 = vmatprep.mubr.bf16.mxu0 0
        %1232 = vmatmul.mubr.bf16.gmra.mxu0 %v1005
        %v1233 = vpop.f32.mrf.mxu0
        %v1234 = vadd.f32 0.0, %v1233
        %v1235 = vpop.f32.mrf.mxu0
        %v1236 = vadd.f32 0.0, %v1235
        %v1237 = vpop.f32.mrf.mxu0
        %v1238 = vadd.f32 0.0, %v1237
        %v1239 = vpop.f32.mrf.mxu0
        %v1240 = vadd.f32 0.0, %v1239
        %1241 = vmatprep.mubr.bf16.mxu0 0
        %1242 = vmatmul.mubr.bf16.gmra.mxu0 %v1006
        %v1243 = vpop.f32.mrf.mxu0
        %v1244 = vadd.f32 0.0, %v1243
        %v1245 = vpop.f32.mrf.mxu0
        %v1246 = vadd.f32 0.0, %v1245
        %v1247 = vpop.f32.mrf.mxu0
        %v1248 = vadd.f32 0.0, %v1247
        %v1249 = vpop.f32.mrf.mxu0
        %v1250 = vadd.f32 0.0, %v1249
        %1251 = vmatprep.mubr.bf16.mxu0 0
        %1252 = vmatmul.mubr.bf16.gmra.mxu0 %v1007
        %v1253 = vpop.f32.mrf.mxu0
        %v1254 = vadd.f32 0.0, %v1253
        %v1255 = vpop.f32.mrf.mxu0
        %v1256 = vadd.f32 0.0, %v1255
        %v1257 = vpop.f32.mrf.mxu0
        %v1258 = vadd.f32 0.0, %v1257
        %v1259 = vpop.f32.mrf.mxu0
        %v1260 = vadd.f32 0.0, %v1259
        %1261 = vmatprep.mubr.bf16.mxu0 0
        %1262 = vmatmul.mubr.bf16.gmra.mxu0 %v1008
        %v1263 = vpop.f32.mrf.mxu0
        %v1264 = vadd.f32 0.0, %v1263
        %v1265 = vpop.f32.mrf.mxu0
        %v1266 = vadd.f32 0.0, %v1265
        %v1267 = vpop.f32.mrf.mxu0
        %v1268 = vadd.f32 0.0, %v1267
        %v1269 = vpop.f32.mrf.mxu0
        %v1270 = vadd.f32 0.0, %v1269
        %1271 = vmatprep.mubr.bf16.mxu0 0
        %1272 = vmatmul.mubr.bf16.gmra.mxu0 %v1009
        %v1273 = vpop.f32.mrf.mxu0
        %v1274 = vadd.f32 0.0, %v1273
        %v1275 = vpop.f32.mrf.mxu0
        %v1276 = vadd.f32 0.0, %v1275
        %v1277 = vpop.f32.mrf.mxu0
        %v1278 = vadd.f32 0.0, %v1277
        %v1279 = vpop.f32.mrf.mxu0
        %v1280 = vadd.f32 0.0, %v1279
        %1281 = vmatprep.mubr.bf16.mxu0 0
        %1282 = vmatmul.mubr.bf16.gmra.mxu0 %v1010
        %v1283 = vpop.f32.mrf.mxu0
        %v1284 = vadd.f32 0.0, %v1283
        %v1285 = vpop.f32.mrf.mxu0
        %v1286 = vadd.f32 0.0, %v1285
        %v1287 = vpop.f32.mrf.mxu0
        %v1288 = vadd.f32 0.0, %v1287
        %v1289 = vpop.f32.mrf.mxu0
        %v1290 = vadd.f32 0.0, %v1289
        %1291 = vmatprep.mubr.bf16.mxu0 0
        %1292 = vmatmul.mubr.bf16.gmra.mxu0 %v1011
        %v1293 = vpop.f32.mrf.mxu0
        %v1294 = vadd.f32 0.0, %v1293
        %v1295 = vpop.f32.mrf.mxu0
        %v1296 = vadd.f32 0.0, %v1295
        %v1297 = vpop.f32.mrf.mxu0
        %v1298 = vadd.f32 0.0, %v1297
        %v1299 = vpop.f32.mrf.mxu0
        %v1300 = vadd.f32 0.0, %v1299
        %1301 = vdwg.mxu0
        %v1302 = vadd.f32 %v806, %v1144
        %v1303 = vadd.f32 %v808, %v1146
        %v1304 = vadd.f32 %v810, %v1148
        %v1305 = vadd.f32 %v812, %v1150
        %v1306 = vadd.f32 %v816, %v1154
        %v1307 = vadd.f32 %v818, %v1156
        %v1308 = vadd.f32 %v820, %v1158
        %v1309 = vadd.f32 %v822, %v1160
        %v1310 = vadd.f32 %v826, %v1164
        %v1311 = vadd.f32 %v828, %v1166
        %v1312 = vadd.f32 %v830, %v1168
        %v1313 = vadd.f32 %v832, %v1170
        %v1314 = vadd.f32 %v836, %v1174
        %v1315 = vadd.f32 %v838, %v1176
        %v1316 = vadd.f32 %v840, %v1178
        %v1317 = vadd.f32 %v842, %v1180
        %v1318 = vadd.f32 %v846, %v1184
        %v1319 = vadd.f32 %v848, %v1186
        %v1320 = vadd.f32 %v850, %v1188
        %v1321 = vadd.f32 %v852, %v1190
        %v1322 = vadd.f32 %v856, %v1194
        %v1323 = vadd.f32 %v858, %v1196
        %v1324 = vadd.f32 %v860, %v1198
        %v1325 = vadd.f32 %v862, %v1200
        %v1326 = vadd.f32 %v866, %v1204
        %v1327 = vadd.f32 %v868, %v1206
        %v1328 = vadd.f32 %v870, %v1208
        %v1329 = vadd.f32 %v872, %v1210
        %v1330 = vadd.f32 %v876, %v1214
        %v1331 = vadd.f32 %v878, %v1216
        %v1332 = vadd.f32 %v880, %v1218
        %v1333 = vadd.f32 %v882, %v1220
        %v1334 = vadd.f32 %v886, %v1224
        %v1335 = vadd.f32 %v888, %v1226
        %v1336 = vadd.f32 %v890, %v1228
        %v1337 = vadd.f32 %v892, %v1230
        %v1338 = vadd.f32 %v896, %v1234
        %v1339 = vadd.f32 %v898, %v1236
        %v1340 = vadd.f32 %v900, %v1238
        %v1341 = vadd.f32 %v902, %v1240
        %v1342 = vadd.f32 %v906, %v1244
        %v1343 = vadd.f32 %v908, %v1246
        %v1344 = vadd.f32 %v910, %v1248
        %v1345 = vadd.f32 %v912, %v1250
        %v1346 = vadd.f32 %v916, %v1254
        %v1347 = vadd.f32 %v918, %v1256
        %v1348 = vadd.f32 %v920, %v1258
        %v1349 = vadd.f32 %v922, %v1260
        %v1350 = vadd.f32 %v926, %v1264
        %v1351 = vadd.f32 %v928, %v1266
        %v1352 = vadd.f32 %v930, %v1268
        %v1353 = vadd.f32 %v932, %v1270
        %v1354 = vadd.f32 %v936, %v1274
        %v1355 = vadd.f32 %v938, %v1276
        %v1356 = vadd.f32 %v940, %v1278
        %v1357 = vadd.f32 %v942, %v1280
        %v1358 = vadd.f32 %v946, %v1284
        %v1359 = vadd.f32 %v948, %v1286
        %v1360 = vadd.f32 %v950, %v1288
        %v1361 = vadd.f32 %v952, %v1290
        %v1362 = vadd.f32 %v956, %v1294
        %v1363 = vadd.f32 %v958, %v1296
        %v1364 = vadd.f32 %v960, %v1298
        %v1365 = vadd.f32 %v962, %v1300
        %v1366 = vld [vmem:[%s256] sm:$0xff]
        %v1367 = vld [vmem:[%s256 + $0x8] sm:$0xff]
        %v1368 = vld [vmem:[%s256 + $0x18] sm:$0xff]
        %v1369 = vld [vmem:[%s256 + $0x20] sm:$0xff]
        %v1370 = vld [vmem:[%s256 + $0x30] sm:$0xff]
        %v1371 = vld [vmem:[%s256 + $0x38] sm:$0xff]
        %v1372 = vld [vmem:[%s256 + $0x48] sm:$0xff]
        %v1373 = vld [vmem:[%s256 + $0x50] sm:$0xff]
        %v1374 = vld [vmem:[%s256 + $0x60] sm:$0xff]
        %v1375 = vld [vmem:[%s256 + $0x68] sm:$0xff]
        %v1376 = vld [vmem:[%s256 + $0x78] sm:$0xff]
        %v1377 = vld [vmem:[%s256 + $0x80] sm:$0xff]
        %v1378 = vld [vmem:[%s256 + $0x90] sm:$0xff]
        %v1379 = vld [vmem:[%s256 + $0x98] sm:$0xff]
        %v1380 = vld [vmem:[%s256 + $0xa8] sm:$0xff]
        %v1381 = vld [vmem:[%s256 + $0xb0] sm:$0xff]
        %v1382 = vld [vmem:[%s256 + $0xc0] sm:$0xff]
        %v1383 = vld [vmem:[%s256 + $0xc8] sm:$0xff]
        %v1384 = vld [vmem:[%s256 + $0xd8] sm:$0xff]
        %v1385 = vld [vmem:[%s256 + $0xe0] sm:$0xff]
        %v1386 = vld [vmem:[%s256 + $0xf0] sm:$0xff]
        %v1387 = vld [vmem:[%s256 + $0xf8] sm:$0xff]
        %v1388 = vld [vmem:[%s256 + $0x108] sm:$0xff]
        %v1389 = vld [vmem:[%s256 + $0x110] sm:$0xff]
        %v1390 = vld [vmem:[%s256 + $0x120] sm:$0xff]
        %v1391 = vld [vmem:[%s256 + $0x128] sm:$0xff]
        %v1392 = vld [vmem:[%s256 + $0x138] sm:$0xff]
        %v1393 = vld [vmem:[%s256 + $0x140] sm:$0xff]
        %v1394 = vld [vmem:[%s256 + $0x150] sm:$0xff]
        %v1395 = vld [vmem:[%s256 + $0x158] sm:$0xff]
        %v1396 = vld [vmem:[%s256 + $0x168] sm:$0xff]
        %v1397 = vld [vmem:[%s256 + $0x170] sm:$0xff]
        %v1398 = vpack.c.bf16 %v1367, %v1366
        %v1399 = vpack.c.bf16 %v1369, %v1368
        %v1400 = vpack.c.bf16 %v1371, %v1370
        %v1401 = vpack.c.bf16 %v1373, %v1372
        %v1402 = vpack.c.bf16 %v1375, %v1374
        %v1403 = vpack.c.bf16 %v1377, %v1376
        %v1404 = vpack.c.bf16 %v1379, %v1378
        %v1405 = vpack.c.bf16 %v1381, %v1380
        %v1406 = vpack.c.bf16 %v1383, %v1382
        %v1407 = vpack.c.bf16 %v1385, %v1384
        %v1408 = vpack.c.bf16 %v1387, %v1386
        %v1409 = vpack.c.bf16 %v1389, %v1388
        %v1410 = vpack.c.bf16 %v1391, %v1390
        %v1411 = vpack.c.bf16 %v1393, %v1392
        %v1412 = vpack.c.bf16 %v1395, %v1394
        %v1413 = vpack.c.bf16 %v1397, %v1396
        %s1414 = scalar_lea.vmem %s1, 384
        %v1415 = vld [vmem:[%s1414] sm:$0xff]
        %v1416 = vld [vmem:[%s1414 + $0x8] sm:$0xff]
        %v1417 = vld [vmem:[%s1414 + $0x10] sm:$0xff]
        %v1418 = vld [vmem:[%s1414 + $0x18] sm:$0xff]
        %v1419 = vld [vmem:[%s1414 + $0x20] sm:$0xff]
        %v1420 = vld [vmem:[%s1414 + $0x28] sm:$0xff]
        %v1421 = vld [vmem:[%s1414 + $0x30] sm:$0xff]
        %v1422 = vld [vmem:[%s1414 + $0x38] sm:$0xff]
        %v1423 = vld [vmem:[%s1414 + $0x40] sm:$0xff]
        %v1424 = vld [vmem:[%s1414 + $0x48] sm:$0xff]
        %v1425 = vld [vmem:[%s1414 + $0x50] sm:$0xff]
        %v1426 = vld [vmem:[%s1414 + $0x58] sm:$0xff]
        %v1427 = vld [vmem:[%s1414 + $0x60] sm:$0xff]
        %v1428 = vld [vmem:[%s1414 + $0x68] sm:$0xff]
        %v1429 = vld [vmem:[%s1414 + $0x70] sm:$0xff]
        %v1430 = vld [vmem:[%s1414 + $0x78] sm:$0xff]
        %v1447 = vunpack.c.l.b16 %v1415
        %v1448 = vunpack.c.h.b16 %v1415
        %v1449 = vunpack.c.l.b16 %v1416
        %v1450 = vunpack.c.h.b16 %v1416
        %v1451 = vunpack.c.l.b16 %v1417
        %v1452 = vunpack.c.h.b16 %v1417
        %v1453 = vunpack.c.l.b16 %v1418
        %v1454 = vunpack.c.h.b16 %v1418
        %v1455 = vunpack.c.l.b16 %v1419
        %v1456 = vunpack.c.h.b16 %v1419
        %v1457 = vunpack.c.l.b16 %v1420
        %v1458 = vunpack.c.h.b16 %v1420
        %v1459 = vunpack.c.l.b16 %v1421
        %v1460 = vunpack.c.h.b16 %v1421
        %v1461 = vunpack.c.l.b16 %v1422
        %v1462 = vunpack.c.h.b16 %v1422
        %v1463 = vunpack.c.l.b16 %v1423
        %v1464 = vunpack.c.h.b16 %v1423
        %v1465 = vunpack.c.l.b16 %v1424
        %v1466 = vunpack.c.h.b16 %v1424
        %v1467 = vunpack.c.l.b16 %v1425
        %v1468 = vunpack.c.h.b16 %v1425
        %v1469 = vunpack.c.l.b16 %v1426
        %v1470 = vunpack.c.h.b16 %v1426
        %v1471 = vunpack.c.l.b16 %v1427
        %v1472 = vunpack.c.h.b16 %v1427
        %v1473 = vunpack.c.l.b16 %v1428
        %v1474 = vunpack.c.h.b16 %v1428
        %v1475 = vunpack.c.l.b16 %v1429
        %v1476 = vunpack.c.h.b16 %v1429
        %v1477 = vunpack.c.l.b16 %v1430
        %v1478 = vunpack.c.h.b16 %v1430
        %v1479 = vpack.c.b16 %v1449, %v1447
        %v1480 = vpack.c.b16 %v1450, %v1448
        %v1481 = vpack.c.b16 %v1453, %v1451
        %v1482 = vpack.c.b16 %v1454, %v1452
        %v1483 = vpack.c.b16 %v1457, %v1455
        %v1484 = vpack.c.b16 %v1458, %v1456
        %v1485 = vpack.c.b16 %v1461, %v1459
        %v1486 = vpack.c.b16 %v1462, %v1460
        %v1487 = vpack.c.b16 %v1465, %v1463
        %v1488 = vpack.c.b16 %v1466, %v1464
        %v1489 = vpack.c.b16 %v1469, %v1467
        %v1490 = vpack.c.b16 %v1470, %v1468
        %v1491 = vpack.c.b16 %v1473, %v1471
        %v1492 = vpack.c.b16 %v1474, %v1472
        %v1493 = vpack.c.b16 %v1477, %v1475
        %v1494 = vpack.c.b16 %v1478, %v1476
        %1511 = vmatprep.subr.bf16.mxu0 %v1494
        %1512 = vmatpush1.bf16.msra.mxu0 %v1493
        %1513 = vmatprep.subr.bf16.mxu0 %v1492
        %1514 = vmatpush1.bf16.msra.mxu0 %v1491
        %1515 = vmatprep.subr.bf16.mxu0 %v1490
        %1516 = vmatpush1.bf16.msra.mxu0 %v1489
        %1517 = vmatprep.subr.bf16.mxu0 %v1488
        %1518 = vmatpush1.bf16.msra.mxu0 %v1487
        %1519 = vmatprep.subr.bf16.mxu0 %v1486
        %1520 = vmatpush1.bf16.msra.mxu0 %v1485
        %1521 = vmatprep.subr.bf16.mxu0 %v1484
        %1522 = vmatpush1.bf16.msra.mxu0 %v1483
        %1523 = vmatprep.subr.bf16.mxu0 %v1482
        %1524 = vmatpush1.bf16.msra.mxu0 %v1481
        %1525 = vmatprep.subr.bf16.mxu0 %v1480
        %1526 = vmatpush1.bf16.msra.mxu0 %v1479
        %1527 = vmatprep.subr.bf16.mxu0 0
        %1528 = vmatpush2.bf16.msra.mxu0 0
        %1529 = vmatprep.subr.bf16.mxu0 0
        %1530 = vmatpush2.bf16.msra.mxu0 0
        %1531 = vmatprep.subr.bf16.mxu0 0
        %1532 = vmatpush2.bf16.msra.mxu0 0
        %1533 = vmatprep.subr.bf16.mxu0 0
        %1534 = vmatpush2.bf16.msra.mxu0 0
        %1535 = vmatprep.subr.bf16.mxu0 0
        %1536 = vmatpush2.bf16.msra.mxu0 0
        %1537 = vmatprep.subr.bf16.mxu0 0
        %1538 = vmatpush2.bf16.msra.mxu0 0
        %1539 = vmatprep.subr.bf16.mxu0 0
        %1540 = vmatpush2.bf16.msra.mxu0 0
        %1541 = vmatprep.subr.bf16.mxu0 0
        %1542 = vmatpush2.bf16.msra.mxu0 0
        %1543 = vmatprep.mubr.bf16.mxu0 0
        %1544 = vmatmul.mubr.bf16.gmra.mxu0 %v1398
        %v1545 = vpop.f32.mrf.mxu0
        %v1546 = vadd.f32 0.0, %v1545
        %v1547 = vpop.f32.mrf.mxu0
        %v1548 = vadd.f32 0.0, %v1547
        %v1549 = vpop.f32.mrf.mxu0
        %v1550 = vadd.f32 0.0, %v1549
        %v1551 = vpop.f32.mrf.mxu0
        %v1552 = vadd.f32 0.0, %v1551
        %1553 = vmatprep.mubr.bf16.mxu0 0
        %1554 = vmatmul.mubr.bf16.gmra.mxu0 %v1399
        %v1555 = vpop.f32.mrf.mxu0
        %v1556 = vadd.f32 0.0, %v1555
        %v1557 = vpop.f32.mrf.mxu0
        %v1558 = vadd.f32 0.0, %v1557
        %v1559 = vpop.f32.mrf.mxu0
        %v1560 = vadd.f32 0.0, %v1559
        %v1561 = vpop.f32.mrf.mxu0
        %v1562 = vadd.f32 0.0, %v1561
        %1563 = vmatprep.mubr.bf16.mxu0 0
        %1564 = vmatmul.mubr.bf16.gmra.mxu0 %v1400
        %v1565 = vpop.f32.mrf.mxu0
        %v1566 = vadd.f32 0.0, %v1565
        %v1567 = vpop.f32.mrf.mxu0
        %v1568 = vadd.f32 0.0, %v1567
        %v1569 = vpop.f32.mrf.mxu0
        %v1570 = vadd.f32 0.0, %v1569
        %v1571 = vpop.f32.mrf.mxu0
        %v1572 = vadd.f32 0.0, %v1571
        %1573 = vmatprep.mubr.bf16.mxu0 0
        %1574 = vmatmul.mubr.bf16.gmra.mxu0 %v1401
        %v1575 = vpop.f32.mrf.mxu0
        %v1576 = vadd.f32 0.0, %v1575
        %v1577 = vpop.f32.mrf.mxu0
        %v1578 = vadd.f32 0.0, %v1577
        %v1579 = vpop.f32.mrf.mxu0
        %v1580 = vadd.f32 0.0, %v1579
        %v1581 = vpop.f32.mrf.mxu0
        %v1582 = vadd.f32 0.0, %v1581
        %1583 = vmatprep.mubr.bf16.mxu0 0
        %1584 = vmatmul.mubr.bf16.gmra.mxu0 %v1402
        %v1585 = vpop.f32.mrf.mxu0
        %v1586 = vadd.f32 0.0, %v1585
        %v1587 = vpop.f32.mrf.mxu0
        %v1588 = vadd.f32 0.0, %v1587
        %v1589 = vpop.f32.mrf.mxu0
        %v1590 = vadd.f32 0.0, %v1589
        %v1591 = vpop.f32.mrf.mxu0
        %v1592 = vadd.f32 0.0, %v1591
        %1593 = vmatprep.mubr.bf16.mxu0 0
        %1594 = vmatmul.mubr.bf16.gmra.mxu0 %v1403
        %v1595 = vpop.f32.mrf.mxu0
        %v1596 = vadd.f32 0.0, %v1595
        %v1597 = vpop.f32.mrf.mxu0
        %v1598 = vadd.f32 0.0, %v1597
        %v1599 = vpop.f32.mrf.mxu0
        %v1600 = vadd.f32 0.0, %v1599
        %v1601 = vpop.f32.mrf.mxu0
        %v1602 = vadd.f32 0.0, %v1601
        %1603 = vmatprep.mubr.bf16.mxu0 0
        %1604 = vmatmul.mubr.bf16.gmra.mxu0 %v1404
        %v1605 = vpop.f32.mrf.mxu0
        %v1606 = vadd.f32 0.0, %v1605
        %v1607 = vpop.f32.mrf.mxu0
        %v1608 = vadd.f32 0.0, %v1607
        %v1609 = vpop.f32.mrf.mxu0
        %v1610 = vadd.f32 0.0, %v1609
        %v1611 = vpop.f32.mrf.mxu0
        %v1612 = vadd.f32 0.0, %v1611
        %1613 = vmatprep.mubr.bf16.mxu0 0
        %1614 = vmatmul.mubr.bf16.gmra.mxu0 %v1405
        %v1615 = vpop.f32.mrf.mxu0
        %v1616 = vadd.f32 0.0, %v1615
        %v1617 = vpop.f32.mrf.mxu0
        %v1618 = vadd.f32 0.0, %v1617
        %v1619 = vpop.f32.mrf.mxu0
        %v1620 = vadd.f32 0.0, %v1619
        %v1621 = vpop.f32.mrf.mxu0
        %v1622 = vadd.f32 0.0, %v1621
        %1623 = vmatprep.mubr.bf16.mxu0 0
        %1624 = vmatmul.mubr.bf16.gmra.mxu0 %v1406
        %v1625 = vpop.f32.mrf.mxu0
        %v1626 = vadd.f32 0.0, %v1625
        %v1627 = vpop.f32.mrf.mxu0
        %v1628 = vadd.f32 0.0, %v1627
        %v1629 = vpop.f32.mrf.mxu0
        %v1630 = vadd.f32 0.0, %v1629
        %v1631 = vpop.f32.mrf.mxu0
        %v1632 = vadd.f32 0.0, %v1631
        %1633 = vmatprep.mubr.bf16.mxu0 0
        %1634 = vmatmul.mubr.bf16.gmra.mxu0 %v1407
        %v1635 = vpop.f32.mrf.mxu0
        %v1636 = vadd.f32 0.0, %v1635
        %v1637 = vpop.f32.mrf.mxu0
        %v1638 = vadd.f32 0.0, %v1637
        %v1639 = vpop.f32.mrf.mxu0
        %v1640 = vadd.f32 0.0, %v1639
        %v1641 = vpop.f32.mrf.mxu0
        %v1642 = vadd.f32 0.0, %v1641
        %1643 = vmatprep.mubr.bf16.mxu0 0
        %1644 = vmatmul.mubr.bf16.gmra.mxu0 %v1408
        %v1645 = vpop.f32.mrf.mxu0
        %v1646 = vadd.f32 0.0, %v1645
        %v1647 = vpop.f32.mrf.mxu0
        %v1648 = vadd.f32 0.0, %v1647
        %v1649 = vpop.f32.mrf.mxu0
        %v1650 = vadd.f32 0.0, %v1649
        %v1651 = vpop.f32.mrf.mxu0
        %v1652 = vadd.f32 0.0, %v1651
        %1653 = vmatprep.mubr.bf16.mxu0 0
        %1654 = vmatmul.mubr.bf16.gmra.mxu0 %v1409
        %v1655 = vpop.f32.mrf.mxu0
        %v1656 = vadd.f32 0.0, %v1655
        %v1657 = vpop.f32.mrf.mxu0
        %v1658 = vadd.f32 0.0, %v1657
        %v1659 = vpop.f32.mrf.mxu0
        %v1660 = vadd.f32 0.0, %v1659
        %v1661 = vpop.f32.mrf.mxu0
        %v1662 = vadd.f32 0.0, %v1661
        %1663 = vmatprep.mubr.bf16.mxu0 0
        %1664 = vmatmul.mubr.bf16.gmra.mxu0 %v1410
        %v1665 = vpop.f32.mrf.mxu0
        %v1666 = vadd.f32 0.0, %v1665
        %v1667 = vpop.f32.mrf.mxu0
        %v1668 = vadd.f32 0.0, %v1667
        %v1669 = vpop.f32.mrf.mxu0
        %v1670 = vadd.f32 0.0, %v1669
        %v1671 = vpop.f32.mrf.mxu0
        %v1672 = vadd.f32 0.0, %v1671
        %1673 = vmatprep.mubr.bf16.mxu0 0
        %1674 = vmatmul.mubr.bf16.gmra.mxu0 %v1411
        %v1675 = vpop.f32.mrf.mxu0
        %v1676 = vadd.f32 0.0, %v1675
        %v1677 = vpop.f32.mrf.mxu0
        %v1678 = vadd.f32 0.0, %v1677
        %v1679 = vpop.f32.mrf.mxu0
        %v1680 = vadd.f32 0.0, %v1679
        %v1681 = vpop.f32.mrf.mxu0
        %v1682 = vadd.f32 0.0, %v1681
        %1683 = vmatprep.mubr.bf16.mxu0 0
        %1684 = vmatmul.mubr.bf16.gmra.mxu0 %v1412
        %v1685 = vpop.f32.mrf.mxu0
        %v1686 = vadd.f32 0.0, %v1685
        %v1687 = vpop.f32.mrf.mxu0
        %v1688 = vadd.f32 0.0, %v1687
        %v1689 = vpop.f32.mrf.mxu0
        %v1690 = vadd.f32 0.0, %v1689
        %v1691 = vpop.f32.mrf.mxu0
        %v1692 = vadd.f32 0.0, %v1691
        %1693 = vmatprep.mubr.bf16.mxu0 0
        %1694 = vmatmul.mubr.bf16.gmra.mxu0 %v1413
        %v1695 = vpop.f32.mrf.mxu0
        %v1696 = vadd.f32 0.0, %v1695
        %v1697 = vpop.f32.mrf.mxu0
        %v1698 = vadd.f32 0.0, %v1697
        %v1699 = vpop.f32.mrf.mxu0
        %v1700 = vadd.f32 0.0, %v1699
        %v1701 = vpop.f32.mrf.mxu0
        %v1702 = vadd.f32 0.0, %v1701
        %1703 = vdwg.mxu0
        %v1704 = vadd.f32 %v1302, %v1546
        %v1705 = vadd.f32 %v1303, %v1548
        %v1706 = vadd.f32 %v1304, %v1550
        %v1707 = vadd.f32 %v1305, %v1552
        %v1708 = vadd.f32 %v1306, %v1556
        %v1709 = vadd.f32 %v1307, %v1558
        %v1710 = vadd.f32 %v1308, %v1560
        %v1711 = vadd.f32 %v1309, %v1562
        %v1712 = vadd.f32 %v1310, %v1566
        %v1713 = vadd.f32 %v1311, %v1568
        %v1714 = vadd.f32 %v1312, %v1570
        %v1715 = vadd.f32 %v1313, %v1572
        %v1716 = vadd.f32 %v1314, %v1576
        %v1717 = vadd.f32 %v1315, %v1578
        %v1718 = vadd.f32 %v1316, %v1580
        %v1719 = vadd.f32 %v1317, %v1582
        %v1720 = vadd.f32 %v1318, %v1586
        %v1721 = vadd.f32 %v1319, %v1588
        %v1722 = vadd.f32 %v1320, %v1590
        %v1723 = vadd.f32 %v1321, %v1592
        %v1724 = vadd.f32 %v1322, %v1596
        %v1725 = vadd.f32 %v1323, %v1598
        %v1726 = vadd.f32 %v1324, %v1600
        %v1727 = vadd.f32 %v1325, %v1602
        %v1728 = vadd.f32 %v1326, %v1606
        %v1729 = vadd.f32 %v1327, %v1608
        %v1730 = vadd.f32 %v1328, %v1610
        %v1731 = vadd.f32 %v1329, %v1612
        %v1732 = vadd.f32 %v1330, %v1616
        %v1733 = vadd.f32 %v1331, %v1618
        %v1734 = vadd.f32 %v1332, %v1620
        %v1735 = vadd.f32 %v1333, %v1622
        %v1736 = vadd.f32 %v1334, %v1626
        %v1737 = vadd.f32 %v1335, %v1628
        %v1738 = vadd.f32 %v1336, %v1630
        %v1739 = vadd.f32 %v1337, %v1632
        %v1740 = vadd.f32 %v1338, %v1636
        %v1741 = vadd.f32 %v1339, %v1638
        %v1742 = vadd.f32 %v1340, %v1640
        %v1743 = vadd.f32 %v1341, %v1642
        %v1744 = vadd.f32 %v1342, %v1646
        %v1745 = vadd.f32 %v1343, %v1648
        %v1746 = vadd.f32 %v1344, %v1650
        %v1747 = vadd.f32 %v1345, %v1652
        %v1748 = vadd.f32 %v1346, %v1656
        %v1749 = vadd.f32 %v1347, %v1658
        %v1750 = vadd.f32 %v1348, %v1660
        %v1751 = vadd.f32 %v1349, %v1662
        %v1752 = vadd.f32 %v1350, %v1666
        %v1753 = vadd.f32 %v1351, %v1668
        %v1754 = vadd.f32 %v1352, %v1670
        %v1755 = vadd.f32 %v1353, %v1672
        %v1756 = vadd.f32 %v1354, %v1676
        %v1757 = vadd.f32 %v1355, %v1678
        %v1758 = vadd.f32 %v1356, %v1680
        %v1759 = vadd.f32 %v1357, %v1682
        %v1760 = vadd.f32 %v1358, %v1686
        %v1761 = vadd.f32 %v1359, %v1688
        %v1762 = vadd.f32 %v1360, %v1690
        %v1763 = vadd.f32 %v1361, %v1692
        %v1764 = vadd.f32 %v1362, %v1696
        %v1765 = vadd.f32 %v1363, %v1698
        %v1766 = vadd.f32 %v1364, %v1700
        %v1767 = vadd.f32 %v1365, %v1702
        %v1768 = vld [vmem:[%s256 + $0x1] sm:$0xff]
        %v1769 = vld [vmem:[%s256 + $0x9] sm:$0xff]
        %v1770 = vld [vmem:[%s256 + $0x19] sm:$0xff]
        %v1771 = vld [vmem:[%s256 + $0x21] sm:$0xff]
        %v1772 = vld [vmem:[%s256 + $0x31] sm:$0xff]
        %v1773 = vld [vmem:[%s256 + $0x39] sm:$0xff]
        %v1774 = vld [vmem:[%s256 + $0x49] sm:$0xff]
        %v1775 = vld [vmem:[%s256 + $0x51] sm:$0xff]
        %v1776 = vld [vmem:[%s256 + $0x61] sm:$0xff]
        %v1777 = vld [vmem:[%s256 + $0x69] sm:$0xff]
        %v1778 = vld [vmem:[%s256 + $0x79] sm:$0xff]
        %v1779 = vld [vmem:[%s256 + $0x81] sm:$0xff]
        %v1780 = vld [vmem:[%s256 + $0x91] sm:$0xff]
        %v1781 = vld [vmem:[%s256 + $0x99] sm:$0xff]
        %v1782 = vld [vmem:[%s256 + $0xa9] sm:$0xff]
        %v1783 = vld [vmem:[%s256 + $0xb1] sm:$0xff]
        %v1784 = vld [vmem:[%s256 + $0xc1] sm:$0xff]
        %v1785 = vld [vmem:[%s256 + $0xc9] sm:$0xff]
        %v1786 = vld [vmem:[%s256 + $0xd9] sm:$0xff]
        %v1787 = vld [vmem:[%s256 + $0xe1] sm:$0xff]
        %v1788 = vld [vmem:[%s256 + $0xf1] sm:$0xff]
        %v1789 = vld [vmem:[%s256 + $0xf9] sm:$0xff]
        %v1790 = vld [vmem:[%s256 + $0x109] sm:$0xff]
        %v1791 = vld [vmem:[%s256 + $0x111] sm:$0xff]
        %v1792 = vld [vmem:[%s256 + $0x121] sm:$0xff]
        %v1793 = vld [vmem:[%s256 + $0x129] sm:$0xff]
        %v1794 = vld [vmem:[%s256 + $0x139] sm:$0xff]
        %v1795 = vld [vmem:[%s256 + $0x141] sm:$0xff]
        %v1796 = vld [vmem:[%s256 + $0x151] sm:$0xff]
        %v1797 = vld [vmem:[%s256 + $0x159] sm:$0xff]
        %v1798 = vld [vmem:[%s256 + $0x169] sm:$0xff]
        %v1799 = vld [vmem:[%s256 + $0x171] sm:$0xff]
        %v1800 = vpack.c.bf16 %v1769, %v1768
        %v1801 = vpack.c.bf16 %v1771, %v1770
        %v1802 = vpack.c.bf16 %v1773, %v1772
        %v1803 = vpack.c.bf16 %v1775, %v1774
        %v1804 = vpack.c.bf16 %v1777, %v1776
        %v1805 = vpack.c.bf16 %v1779, %v1778
        %v1806 = vpack.c.bf16 %v1781, %v1780
        %v1807 = vpack.c.bf16 %v1783, %v1782
        %v1808 = vpack.c.bf16 %v1785, %v1784
        %v1809 = vpack.c.bf16 %v1787, %v1786
        %v1810 = vpack.c.bf16 %v1789, %v1788
        %v1811 = vpack.c.bf16 %v1791, %v1790
        %v1812 = vpack.c.bf16 %v1793, %v1792
        %v1813 = vpack.c.bf16 %v1795, %v1794
        %v1814 = vpack.c.bf16 %v1797, %v1796
        %v1815 = vpack.c.bf16 %v1799, %v1798
        %s1816 = scalar_lea.vmem %s1, 512
        %v1817 = vld [vmem:[%s1816] sm:$0xff]
        %v1818 = vld [vmem:[%s1816 + $0x8] sm:$0xff]
        %v1819 = vld [vmem:[%s1816 + $0x10] sm:$0xff]
        %v1820 = vld [vmem:[%s1816 + $0x18] sm:$0xff]
        %v1821 = vld [vmem:[%s1816 + $0x20] sm:$0xff]
        %v1822 = vld [vmem:[%s1816 + $0x28] sm:$0xff]
        %v1823 = vld [vmem:[%s1816 + $0x30] sm:$0xff]
        %v1824 = vld [vmem:[%s1816 + $0x38] sm:$0xff]
        %v1825 = vld [vmem:[%s1816 + $0x40] sm:$0xff]
        %v1826 = vld [vmem:[%s1816 + $0x48] sm:$0xff]
        %v1827 = vld [vmem:[%s1816 + $0x50] sm:$0xff]
        %v1828 = vld [vmem:[%s1816 + $0x58] sm:$0xff]
        %v1829 = vld [vmem:[%s1816 + $0x60] sm:$0xff]
        %v1830 = vld [vmem:[%s1816 + $0x68] sm:$0xff]
        %v1831 = vld [vmem:[%s1816 + $0x70] sm:$0xff]
        %v1832 = vld [vmem:[%s1816 + $0x78] sm:$0xff]
        %v1849 = vunpack.c.l.b16 %v1817
        %v1850 = vunpack.c.h.b16 %v1817
        %v1851 = vunpack.c.l.b16 %v1818
        %v1852 = vunpack.c.h.b16 %v1818
        %v1853 = vunpack.c.l.b16 %v1819
        %v1854 = vunpack.c.h.b16 %v1819
        %v1855 = vunpack.c.l.b16 %v1820
        %v1856 = vunpack.c.h.b16 %v1820
        %v1857 = vunpack.c.l.b16 %v1821
        %v1858 = vunpack.c.h.b16 %v1821
        %v1859 = vunpack.c.l.b16 %v1822
        %v1860 = vunpack.c.h.b16 %v1822
        %v1861 = vunpack.c.l.b16 %v1823
        %v1862 = vunpack.c.h.b16 %v1823
        %v1863 = vunpack.c.l.b16 %v1824
        %v1864 = vunpack.c.h.b16 %v1824
        %v1865 = vunpack.c.l.b16 %v1825
        %v1866 = vunpack.c.h.b16 %v1825
        %v1867 = vunpack.c.l.b16 %v1826
        %v1868 = vunpack.c.h.b16 %v1826
        %v1869 = vunpack.c.l.b16 %v1827
        %v1870 = vunpack.c.h.b16 %v1827
        %v1871 = vunpack.c.l.b16 %v1828
        %v1872 = vunpack.c.h.b16 %v1828
        %v1873 = vunpack.c.l.b16 %v1829
        %v1874 = vunpack.c.h.b16 %v1829
        %v1875 = vunpack.c.l.b16 %v1830
        %v1876 = vunpack.c.h.b16 %v1830
        %v1877 = vunpack.c.l.b16 %v1831
        %v1878 = vunpack.c.h.b16 %v1831
        %v1879 = vunpack.c.l.b16 %v1832
        %v1880 = vunpack.c.h.b16 %v1832
        %v1881 = vpack.c.b16 %v1851, %v1849
        %v1882 = vpack.c.b16 %v1852, %v1850
        %v1883 = vpack.c.b16 %v1855, %v1853
        %v1884 = vpack.c.b16 %v1856, %v1854
        %v1885 = vpack.c.b16 %v1859, %v1857
        %v1886 = vpack.c.b16 %v1860, %v1858
        %v1887 = vpack.c.b16 %v1863, %v1861
        %v1888 = vpack.c.b16 %v1864, %v1862
        %v1889 = vpack.c.b16 %v1867, %v1865
        %v1890 = vpack.c.b16 %v1868, %v1866
        %v1891 = vpack.c.b16 %v1871, %v1869
        %v1892 = vpack.c.b16 %v1872, %v1870
        %v1893 = vpack.c.b16 %v1875, %v1873
        %v1894 = vpack.c.b16 %v1876, %v1874
        %v1895 = vpack.c.b16 %v1879, %v1877
        %v1896 = vpack.c.b16 %v1880, %v1878
        %1913 = vmatprep.subr.bf16.mxu0 %v1896
        %1914 = vmatpush1.bf16.msra.mxu0 %v1895
        %1915 = vmatprep.subr.bf16.mxu0 %v1894
        %1916 = vmatpush1.bf16.msra.mxu0 %v1893
        %1917 = vmatprep.subr.bf16.mxu0 %v1892
        %1918 = vmatpush1.bf16.msra.mxu0 %v1891
        %1919 = vmatprep.subr.bf16.mxu0 %v1890
        %1920 = vmatpush1.bf16.msra.mxu0 %v1889
        %1921 = vmatprep.subr.bf16.mxu0 %v1888
        %1922 = vmatpush1.bf16.msra.mxu0 %v1887
        %1923 = vmatprep.subr.bf16.mxu0 %v1886
        %1924 = vmatpush1.bf16.msra.mxu0 %v1885
        %1925 = vmatprep.subr.bf16.mxu0 %v1884
        %1926 = vmatpush1.bf16.msra.mxu0 %v1883
        %1927 = vmatprep.subr.bf16.mxu0 %v1882
        %1928 = vmatpush1.bf16.msra.mxu0 %v1881
        %1929 = vmatprep.subr.bf16.mxu0 0
        %1930 = vmatpush2.bf16.msra.mxu0 0
        %1931 = vmatprep.subr.bf16.mxu0 0
        %1932 = vmatpush2.bf16.msra.mxu0 0
        %1933 = vmatprep.subr.bf16.mxu0 0
        %1934 = vmatpush2.bf16.msra.mxu0 0
        %1935 = vmatprep.subr.bf16.mxu0 0
        %1936 = vmatpush2.bf16.msra.mxu0 0
        %1937 = vmatprep.subr.bf16.mxu0 0
        %1938 = vmatpush2.bf16.msra.mxu0 0
        %1939 = vmatprep.subr.bf16.mxu0 0
        %1940 = vmatpush2.bf16.msra.mxu0 0
        %1941 = vmatprep.subr.bf16.mxu0 0
        %1942 = vmatpush2.bf16.msra.mxu0 0
        %1943 = vmatprep.subr.bf16.mxu0 0
        %1944 = vmatpush2.bf16.msra.mxu0 0
        %1945 = vmatprep.mubr.bf16.mxu0 0
        %1946 = vmatmul.mubr.bf16.gmra.mxu0 %v1800
        %v1947 = vpop.f32.mrf.mxu0
        %v1948 = vadd.f32 0.0, %v1947
        %v1949 = vpop.f32.mrf.mxu0
        %v1950 = vadd.f32 0.0, %v1949
        %v1951 = vpop.f32.mrf.mxu0
        %v1952 = vadd.f32 0.0, %v1951
        %v1953 = vpop.f32.mrf.mxu0
        %v1954 = vadd.f32 0.0, %v1953
        %1955 = vmatprep.mubr.bf16.mxu0 0
        %1956 = vmatmul.mubr.bf16.gmra.mxu0 %v1801
        %v1957 = vpop.f32.mrf.mxu0
        %v1958 = vadd.f32 0.0, %v1957
        %v1959 = vpop.f32.mrf.mxu0
        %v1960 = vadd.f32 0.0, %v1959
        %v1961 = vpop.f32.mrf.mxu0
        %v1962 = vadd.f32 0.0, %v1961
        %v1963 = vpop.f32.mrf.mxu0
        %v1964 = vadd.f32 0.0, %v1963
        %1965 = vmatprep.mubr.bf16.mxu0 0
        %1966 = vmatmul.mubr.bf16.gmra.mxu0 %v1802
        %v1967 = vpop.f32.mrf.mxu0
        %v1968 = vadd.f32 0.0, %v1967
        %v1969 = vpop.f32.mrf.mxu0
        %v1970 = vadd.f32 0.0, %v1969
        %v1971 = vpop.f32.mrf.mxu0
        %v1972 = vadd.f32 0.0, %v1971
        %v1973 = vpop.f32.mrf.mxu0
        %v1974 = vadd.f32 0.0, %v1973
        %1975 = vmatprep.mubr.bf16.mxu0 0
        %1976 = vmatmul.mubr.bf16.gmra.mxu0 %v1803
        %v1977 = vpop.f32.mrf.mxu0
        %v1978 = vadd.f32 0.0, %v1977
        %v1979 = vpop.f32.mrf.mxu0
        %v1980 = vadd.f32 0.0, %v1979
        %v1981 = vpop.f32.mrf.mxu0
        %v1982 = vadd.f32 0.0, %v1981
        %v1983 = vpop.f32.mrf.mxu0
        %v1984 = vadd.f32 0.0, %v1983
        %1985 = vmatprep.mubr.bf16.mxu0 0
        %1986 = vmatmul.mubr.bf16.gmra.mxu0 %v1804
        %v1987 = vpop.f32.mrf.mxu0
        %v1988 = vadd.f32 0.0, %v1987
        %v1989 = vpop.f32.mrf.mxu0
        %v1990 = vadd.f32 0.0, %v1989
        %v1991 = vpop.f32.mrf.mxu0
        %v1992 = vadd.f32 0.0, %v1991
        %v1993 = vpop.f32.mrf.mxu0
        %v1994 = vadd.f32 0.0, %v1993
        %1995 = vmatprep.mubr.bf16.mxu0 0
        %1996 = vmatmul.mubr.bf16.gmra.mxu0 %v1805
        %v1997 = vpop.f32.mrf.mxu0
        %v1998 = vadd.f32 0.0, %v1997
        %v1999 = vpop.f32.mrf.mxu0
        %v2000 = vadd.f32 0.0, %v1999
        %v2001 = vpop.f32.mrf.mxu0
        %v2002 = vadd.f32 0.0, %v2001
        %v2003 = vpop.f32.mrf.mxu0
        %v2004 = vadd.f32 0.0, %v2003
        %2005 = vmatprep.mubr.bf16.mxu0 0
        %2006 = vmatmul.mubr.bf16.gmra.mxu0 %v1806
        %v2007 = vpop.f32.mrf.mxu0
        %v2008 = vadd.f32 0.0, %v2007
        %v2009 = vpop.f32.mrf.mxu0
        %v2010 = vadd.f32 0.0, %v2009
        %v2011 = vpop.f32.mrf.mxu0
        %v2012 = vadd.f32 0.0, %v2011
        %v2013 = vpop.f32.mrf.mxu0
        %v2014 = vadd.f32 0.0, %v2013
        %2015 = vmatprep.mubr.bf16.mxu0 0
        %2016 = vmatmul.mubr.bf16.gmra.mxu0 %v1807
        %v2017 = vpop.f32.mrf.mxu0
        %v2018 = vadd.f32 0.0, %v2017
        %v2019 = vpop.f32.mrf.mxu0
        %v2020 = vadd.f32 0.0, %v2019
        %v2021 = vpop.f32.mrf.mxu0
        %v2022 = vadd.f32 0.0, %v2021
        %v2023 = vpop.f32.mrf.mxu0
        %v2024 = vadd.f32 0.0, %v2023
        %2025 = vmatprep.mubr.bf16.mxu0 0
        %2026 = vmatmul.mubr.bf16.gmra.mxu0 %v1808
        %v2027 = vpop.f32.mrf.mxu0
        %v2028 = vadd.f32 0.0, %v2027
        %v2029 = vpop.f32.mrf.mxu0
        %v2030 = vadd.f32 0.0, %v2029
        %v2031 = vpop.f32.mrf.mxu0
        %v2032 = vadd.f32 0.0, %v2031
        %v2033 = vpop.f32.mrf.mxu0
        %v2034 = vadd.f32 0.0, %v2033
        %2035 = vmatprep.mubr.bf16.mxu0 0
        %2036 = vmatmul.mubr.bf16.gmra.mxu0 %v1809
        %v2037 = vpop.f32.mrf.mxu0
        %v2038 = vadd.f32 0.0, %v2037
        %v2039 = vpop.f32.mrf.mxu0
        %v2040 = vadd.f32 0.0, %v2039
        %v2041 = vpop.f32.mrf.mxu0
        %v2042 = vadd.f32 0.0, %v2041
        %v2043 = vpop.f32.mrf.mxu0
        %v2044 = vadd.f32 0.0, %v2043
        %2045 = vmatprep.mubr.bf16.mxu0 0
        %2046 = vmatmul.mubr.bf16.gmra.mxu0 %v1810
        %v2047 = vpop.f32.mrf.mxu0
        %v2048 = vadd.f32 0.0, %v2047
        %v2049 = vpop.f32.mrf.mxu0
        %v2050 = vadd.f32 0.0, %v2049
        %v2051 = vpop.f32.mrf.mxu0
        %v2052 = vadd.f32 0.0, %v2051
        %v2053 = vpop.f32.mrf.mxu0
        %v2054 = vadd.f32 0.0, %v2053
        %2055 = vmatprep.mubr.bf16.mxu0 0
        %2056 = vmatmul.mubr.bf16.gmra.mxu0 %v1811
        %v2057 = vpop.f32.mrf.mxu0
        %v2058 = vadd.f32 0.0, %v2057
        %v2059 = vpop.f32.mrf.mxu0
        %v2060 = vadd.f32 0.0, %v2059
        %v2061 = vpop.f32.mrf.mxu0
        %v2062 = vadd.f32 0.0, %v2061
        %v2063 = vpop.f32.mrf.mxu0
        %v2064 = vadd.f32 0.0, %v2063
        %2065 = vmatprep.mubr.bf16.mxu0 0
        %2066 = vmatmul.mubr.bf16.gmra.mxu0 %v1812
        %v2067 = vpop.f32.mrf.mxu0
        %v2068 = vadd.f32 0.0, %v2067
        %v2069 = vpop.f32.mrf.mxu0
        %v2070 = vadd.f32 0.0, %v2069
        %v2071 = vpop.f32.mrf.mxu0
        %v2072 = vadd.f32 0.0, %v2071
        %v2073 = vpop.f32.mrf.mxu0
        %v2074 = vadd.f32 0.0, %v2073
        %2075 = vmatprep.mubr.bf16.mxu0 0
        %2076 = vmatmul.mubr.bf16.gmra.mxu0 %v1813
        %v2077 = vpop.f32.mrf.mxu0
        %v2078 = vadd.f32 0.0, %v2077
        %v2079 = vpop.f32.mrf.mxu0
        %v2080 = vadd.f32 0.0, %v2079
        %v2081 = vpop.f32.mrf.mxu0
        %v2082 = vadd.f32 0.0, %v2081
        %v2083 = vpop.f32.mrf.mxu0
        %v2084 = vadd.f32 0.0, %v2083
        %2085 = vmatprep.mubr.bf16.mxu0 0
        %2086 = vmatmul.mubr.bf16.gmra.mxu0 %v1814
        %v2087 = vpop.f32.mrf.mxu0
        %v2088 = vadd.f32 0.0, %v2087
        %v2089 = vpop.f32.mrf.mxu0
        %v2090 = vadd.f32 0.0, %v2089
        %v2091 = vpop.f32.mrf.mxu0
        %v2092 = vadd.f32 0.0, %v2091
        %v2093 = vpop.f32.mrf.mxu0
        %v2094 = vadd.f32 0.0, %v2093
        %2095 = vmatprep.mubr.bf16.mxu0 0
        %2096 = vmatmul.mubr.bf16.gmra.mxu0 %v1815
        %v2097 = vpop.f32.mrf.mxu0
        %v2098 = vadd.f32 0.0, %v2097
        %v2099 = vpop.f32.mrf.mxu0
        %v2100 = vadd.f32 0.0, %v2099
        %v2101 = vpop.f32.mrf.mxu0
        %v2102 = vadd.f32 0.0, %v2101
        %v2103 = vpop.f32.mrf.mxu0
        %v2104 = vadd.f32 0.0, %v2103
        %2105 = vdwg.mxu0
        %v2106 = vadd.f32 %v1704, %v1948
        %v2107 = vadd.f32 %v1705, %v1950
        %v2108 = vadd.f32 %v1706, %v1952
        %v2109 = vadd.f32 %v1707, %v1954
        %v2110 = vadd.f32 %v1708, %v1958
        %v2111 = vadd.f32 %v1709, %v1960
        %v2112 = vadd.f32 %v1710, %v1962
        %v2113 = vadd.f32 %v1711, %v1964
        %v2114 = vadd.f32 %v1712, %v1968
        %v2115 = vadd.f32 %v1713, %v1970
        %v2116 = vadd.f32 %v1714, %v1972
        %v2117 = vadd.f32 %v1715, %v1974
        %v2118 = vadd.f32 %v1716, %v1978
        %v2119 = vadd.f32 %v1717, %v1980
        %v2120 = vadd.f32 %v1718, %v1982
        %v2121 = vadd.f32 %v1719, %v1984
        %v2122 = vadd.f32 %v1720, %v1988
        %v2123 = vadd.f32 %v1721, %v1990
        %v2124 = vadd.f32 %v1722, %v1992
        %v2125 = vadd.f32 %v1723, %v1994
        %v2126 = vadd.f32 %v1724, %v1998
        %v2127 = vadd.f32 %v1725, %v2000
        %v2128 = vadd.f32 %v1726, %v2002
        %v2129 = vadd.f32 %v1727, %v2004
        %v2130 = vadd.f32 %v1728, %v2008
        %v2131 = vadd.f32 %v1729, %v2010
        %v2132 = vadd.f32 %v1730, %v2012
        %v2133 = vadd.f32 %v1731, %v2014
        %v2134 = vadd.f32 %v1732, %v2018
        %v2135 = vadd.f32 %v1733, %v2020
        %v2136 = vadd.f32 %v1734, %v2022
        %v2137 = vadd.f32 %v1735, %v2024
        %v2138 = vadd.f32 %v1736, %v2028
        %v2139 = vadd.f32 %v1737, %v2030
        %v2140 = vadd.f32 %v1738, %v2032
        %v2141 = vadd.f32 %v1739, %v2034
        %v2142 = vadd.f32 %v1740, %v2038
        %v2143 = vadd.f32 %v1741, %v2040
        %v2144 = vadd.f32 %v1742, %v2042
        %v2145 = vadd.f32 %v1743, %v2044
        %v2146 = vadd.f32 %v1744, %v2048
        %v2147 = vadd.f32 %v1745, %v2050
        %v2148 = vadd.f32 %v1746, %v2052
        %v2149 = vadd.f32 %v1747, %v2054
        %v2150 = vadd.f32 %v1748, %v2058
        %v2151 = vadd.f32 %v1749, %v2060
        %v2152 = vadd.f32 %v1750, %v2062
        %v2153 = vadd.f32 %v1751, %v2064
        %v2154 = vadd.f32 %v1752, %v2068
        %v2155 = vadd.f32 %v1753, %v2070
        %v2156 = vadd.f32 %v1754, %v2072
        %v2157 = vadd.f32 %v1755, %v2074
        %v2158 = vadd.f32 %v1756, %v2078
        %v2159 = vadd.f32 %v1757, %v2080
        %v2160 = vadd.f32 %v1758, %v2082
        %v2161 = vadd.f32 %v1759, %v2084
        %v2162 = vadd.f32 %v1760, %v2088
        %v2163 = vadd.f32 %v1761, %v2090
        %v2164 = vadd.f32 %v1762, %v2092
        %v2165 = vadd.f32 %v1763, %v2094
        %v2166 = vadd.f32 %v1764, %v2098
        %v2167 = vadd.f32 %v1765, %v2100
        %v2168 = vadd.f32 %v1766, %v2102
        %v2169 = vadd.f32 %v1767, %v2104
        %v2170 = vld [vmem:[%s256 + $0x2] sm:$0xff]
        %v2171 = vld [vmem:[%s256 + $0xa] sm:$0xff]
        %v2172 = vld [vmem:[%s256 + $0x1a] sm:$0xff]
        %v2173 = vld [vmem:[%s256 + $0x22] sm:$0xff]
        %v2174 = vld [vmem:[%s256 + $0x32] sm:$0xff]
        %v2175 = vld [vmem:[%s256 + $0x3a] sm:$0xff]
        %v2176 = vld [vmem:[%s256 + $0x4a] sm:$0xff]
        %v2177 = vld [vmem:[%s256 + $0x52] sm:$0xff]
        %v2178 = vld [vmem:[%s256 + $0x62] sm:$0xff]
        %v2179 = vld [vmem:[%s256 + $0x6a] sm:$0xff]
        %v2180 = vld [vmem:[%s256 + $0x7a] sm:$0xff]
        %v2181 = vld [vmem:[%s256 + $0x82] sm:$0xff]
        %v2182 = vld [vmem:[%s256 + $0x92] sm:$0xff]
        %v2183 = vld [vmem:[%s256 + $0x9a] sm:$0xff]
        %v2184 = vld [vmem:[%s256 + $0xaa] sm:$0xff]
        %v2185 = vld [vmem:[%s256 + $0xb2] sm:$0xff]
        %v2186 = vld [vmem:[%s256 + $0xc2] sm:$0xff]
        %v2187 = vld [vmem:[%s256 + $0xca] sm:$0xff]
        %v2188 = vld [vmem:[%s256 + $0xda] sm:$0xff]
        %v2189 = vld [vmem:[%s256 + $0xe2] sm:$0xff]
        %v2190 = vld [vmem:[%s256 + $0xf2] sm:$0xff]
        %v2191 = vld [vmem:[%s256 + $0xfa] sm:$0xff]
        %v2192 = vld [vmem:[%s256 + $0x10a] sm:$0xff]
        %v2193 = vld [vmem:[%s256 + $0x112] sm:$0xff]
        %v2194 = vld [vmem:[%s256 + $0x122] sm:$0xff]
        %v2195 = vld [vmem:[%s256 + $0x12a] sm:$0xff]
        %v2196 = vld [vmem:[%s256 + $0x13a] sm:$0xff]
        %v2197 = vld [vmem:[%s256 + $0x142] sm:$0xff]
        %v2198 = vld [vmem:[%s256 + $0x152] sm:$0xff]
        %v2199 = vld [vmem:[%s256 + $0x15a] sm:$0xff]
        %v2200 = vld [vmem:[%s256 + $0x16a] sm:$0xff]
        %v2201 = vld [vmem:[%s256 + $0x172] sm:$0xff]
        %v2202 = vpack.c.bf16 %v2171, %v2170
        %v2203 = vpack.c.bf16 %v2173, %v2172
        %v2204 = vpack.c.bf16 %v2175, %v2174
        %v2205 = vpack.c.bf16 %v2177, %v2176
        %v2206 = vpack.c.bf16 %v2179, %v2178
        %v2207 = vpack.c.bf16 %v2181, %v2180
        %v2208 = vpack.c.bf16 %v2183, %v2182
        %v2209 = vpack.c.bf16 %v2185, %v2184
        %v2210 = vpack.c.bf16 %v2187, %v2186
        %v2211 = vpack.c.bf16 %v2189, %v2188
        %v2212 = vpack.c.bf16 %v2191, %v2190
        %v2213 = vpack.c.bf16 %v2193, %v2192
        %v2214 = vpack.c.bf16 %v2195, %v2194
        %v2215 = vpack.c.bf16 %v2197, %v2196
        %v2216 = vpack.c.bf16 %v2199, %v2198
        %v2217 = vpack.c.bf16 %v2201, %v2200
        %s2218 = scalar_lea.vmem %s1, 640
        %v2219 = vld [vmem:[%s2218] sm:$0xff]
        %v2220 = vld [vmem:[%s2218 + $0x8] sm:$0xff]
        %v2221 = vld [vmem:[%s2218 + $0x10] sm:$0xff]
        %v2222 = vld [vmem:[%s2218 + $0x18] sm:$0xff]
        %v2223 = vld [vmem:[%s2218 + $0x20] sm:$0xff]
        %v2224 = vld [vmem:[%s2218 + $0x28] sm:$0xff]
        %v2225 = vld [vmem:[%s2218 + $0x30] sm:$0xff]
        %v2226 = vld [vmem:[%s2218 + $0x38] sm:$0xff]
        %v2227 = vld [vmem:[%s2218 + $0x40] sm:$0xff]
        %v2228 = vld [vmem:[%s2218 + $0x48] sm:$0xff]
        %v2229 = vld [vmem:[%s2218 + $0x50] sm:$0xff]
        %v2230 = vld [vmem:[%s2218 + $0x58] sm:$0xff]
        %v2231 = vld [vmem:[%s2218 + $0x60] sm:$0xff]
        %v2232 = vld [vmem:[%s2218 + $0x68] sm:$0xff]
        %v2233 = vld [vmem:[%s2218 + $0x70] sm:$0xff]
        %v2234 = vld [vmem:[%s2218 + $0x78] sm:$0xff]
        %v2251 = vunpack.c.l.b16 %v2219
        %v2252 = vunpack.c.h.b16 %v2219
        %v2253 = vunpack.c.l.b16 %v2220
        %v2254 = vunpack.c.h.b16 %v2220
        %v2255 = vunpack.c.l.b16 %v2221
        %v2256 = vunpack.c.h.b16 %v2221
        %v2257 = vunpack.c.l.b16 %v2222
        %v2258 = vunpack.c.h.b16 %v2222
        %v2259 = vunpack.c.l.b16 %v2223
        %v2260 = vunpack.c.h.b16 %v2223
        %v2261 = vunpack.c.l.b16 %v2224
        %v2262 = vunpack.c.h.b16 %v2224
        %v2263 = vunpack.c.l.b16 %v2225
        %v2264 = vunpack.c.h.b16 %v2225
        %v2265 = vunpack.c.l.b16 %v2226
        %v2266 = vunpack.c.h.b16 %v2226
        %v2267 = vunpack.c.l.b16 %v2227
        %v2268 = vunpack.c.h.b16 %v2227
        %v2269 = vunpack.c.l.b16 %v2228
        %v2270 = vunpack.c.h.b16 %v2228
        %v2271 = vunpack.c.l.b16 %v2229
        %v2272 = vunpack.c.h.b16 %v2229
        %v2273 = vunpack.c.l.b16 %v2230
        %v2274 = vunpack.c.h.b16 %v2230
        %v2275 = vunpack.c.l.b16 %v2231
        %v2276 = vunpack.c.h.b16 %v2231
        %v2277 = vunpack.c.l.b16 %v2232
        %v2278 = vunpack.c.h.b16 %v2232
        %v2279 = vunpack.c.l.b16 %v2233
        %v2280 = vunpack.c.h.b16 %v2233
        %v2281 = vunpack.c.l.b16 %v2234
        %v2282 = vunpack.c.h.b16 %v2234
        %v2283 = vpack.c.b16 %v2253, %v2251
        %v2284 = vpack.c.b16 %v2254, %v2252
        %v2285 = vpack.c.b16 %v2257, %v2255
        %v2286 = vpack.c.b16 %v2258, %v2256
        %v2287 = vpack.c.b16 %v2261, %v2259
        %v2288 = vpack.c.b16 %v2262, %v2260
        %v2289 = vpack.c.b16 %v2265, %v2263
        %v2290 = vpack.c.b16 %v2266, %v2264
        %v2291 = vpack.c.b16 %v2269, %v2267
        %v2292 = vpack.c.b16 %v2270, %v2268
        %v2293 = vpack.c.b16 %v2273, %v2271
        %v2294 = vpack.c.b16 %v2274, %v2272
        %v2295 = vpack.c.b16 %v2277, %v2275
        %v2296 = vpack.c.b16 %v2278, %v2276
        %v2297 = vpack.c.b16 %v2281, %v2279
        %v2298 = vpack.c.b16 %v2282, %v2280
        %2315 = vmatprep.subr.bf16.mxu0 %v2298
        %2316 = vmatpush1.bf16.msra.mxu0 %v2297
        %2317 = vmatprep.subr.bf16.mxu0 %v2296
        %2318 = vmatpush1.bf16.msra.mxu0 %v2295
        %2319 = vmatprep.subr.bf16.mxu0 %v2294
        %2320 = vmatpush1.bf16.msra.mxu0 %v2293
        %2321 = vmatprep.subr.bf16.mxu0 %v2292
        %2322 = vmatpush1.bf16.msra.mxu0 %v2291
        %2323 = vmatprep.subr.bf16.mxu0 %v2290
        %2324 = vmatpush1.bf16.msra.mxu0 %v2289
        %2325 = vmatprep.subr.bf16.mxu0 %v2288
        %2326 = vmatpush1.bf16.msra.mxu0 %v2287
        %2327 = vmatprep.subr.bf16.mxu0 %v2286
        %2328 = vmatpush1.bf16.msra.mxu0 %v2285
        %2329 = vmatprep.subr.bf16.mxu0 %v2284
        %2330 = vmatpush1.bf16.msra.mxu0 %v2283
        %2331 = vmatprep.subr.bf16.mxu0 0
        %2332 = vmatpush2.bf16.msra.mxu0 0
        %2333 = vmatprep.subr.bf16.mxu0 0
        %2334 = vmatpush2.bf16.msra.mxu0 0
        %2335 = vmatprep.subr.bf16.mxu0 0
        %2336 = vmatpush2.bf16.msra.mxu0 0
        %2337 = vmatprep.subr.bf16.mxu0 0
        %2338 = vmatpush2.bf16.msra.mxu0 0
        %2339 = vmatprep.subr.bf16.mxu0 0
        %2340 = vmatpush2.bf16.msra.mxu0 0
        %2341 = vmatprep.subr.bf16.mxu0 0
        %2342 = vmatpush2.bf16.msra.mxu0 0
        %2343 = vmatprep.subr.bf16.mxu0 0
        %2344 = vmatpush2.bf16.msra.mxu0 0
        %2345 = vmatprep.subr.bf16.mxu0 0
        %2346 = vmatpush2.bf16.msra.mxu0 0
        %2347 = vmatprep.mubr.bf16.mxu0 0
        %2348 = vmatmul.mubr.bf16.gmra.mxu0 %v2202
        %v2349 = vpop.f32.mrf.mxu0
        %v2350 = vadd.f32 0.0, %v2349
        %v2351 = vpop.f32.mrf.mxu0
        %v2352 = vadd.f32 0.0, %v2351
        %v2353 = vpop.f32.mrf.mxu0
        %v2354 = vadd.f32 0.0, %v2353
        %v2355 = vpop.f32.mrf.mxu0
        %v2356 = vadd.f32 0.0, %v2355
        %2357 = vmatprep.mubr.bf16.mxu0 0
        %2358 = vmatmul.mubr.bf16.gmra.mxu0 %v2203
        %v2359 = vpop.f32.mrf.mxu0
        %v2360 = vadd.f32 0.0, %v2359
        %v2361 = vpop.f32.mrf.mxu0
        %v2362 = vadd.f32 0.0, %v2361
        %v2363 = vpop.f32.mrf.mxu0
        %v2364 = vadd.f32 0.0, %v2363
        %v2365 = vpop.f32.mrf.mxu0
        %v2366 = vadd.f32 0.0, %v2365
        %2367 = vmatprep.mubr.bf16.mxu0 0
        %2368 = vmatmul.mubr.bf16.gmra.mxu0 %v2204
        %v2369 = vpop.f32.mrf.mxu0
        %v2370 = vadd.f32 0.0, %v2369
        %v2371 = vpop.f32.mrf.mxu0
        %v2372 = vadd.f32 0.0, %v2371
        %v2373 = vpop.f32.mrf.mxu0
        %v2374 = vadd.f32 0.0, %v2373
        %v2375 = vpop.f32.mrf.mxu0
        %v2376 = vadd.f32 0.0, %v2375
        %2377 = vmatprep.mubr.bf16.mxu0 0
        %2378 = vmatmul.mubr.bf16.gmra.mxu0 %v2205
        %v2379 = vpop.f32.mrf.mxu0
        %v2380 = vadd.f32 0.0, %v2379
        %v2381 = vpop.f32.mrf.mxu0
        %v2382 = vadd.f32 0.0, %v2381
        %v2383 = vpop.f32.mrf.mxu0
        %v2384 = vadd.f32 0.0, %v2383
        %v2385 = vpop.f32.mrf.mxu0
        %v2386 = vadd.f32 0.0, %v2385
        %2387 = vmatprep.mubr.bf16.mxu0 0
        %2388 = vmatmul.mubr.bf16.gmra.mxu0 %v2206
        %v2389 = vpop.f32.mrf.mxu0
        %v2390 = vadd.f32 0.0, %v2389
        %v2391 = vpop.f32.mrf.mxu0
        %v2392 = vadd.f32 0.0, %v2391
        %v2393 = vpop.f32.mrf.mxu0
        %v2394 = vadd.f32 0.0, %v2393
        %v2395 = vpop.f32.mrf.mxu0
        %v2396 = vadd.f32 0.0, %v2395
        %2397 = vmatprep.mubr.bf16.mxu0 0
        %2398 = vmatmul.mubr.bf16.gmra.mxu0 %v2207
        %v2399 = vpop.f32.mrf.mxu0
        %v2400 = vadd.f32 0.0, %v2399
        %v2401 = vpop.f32.mrf.mxu0
        %v2402 = vadd.f32 0.0, %v2401
        %v2403 = vpop.f32.mrf.mxu0
        %v2404 = vadd.f32 0.0, %v2403
        %v2405 = vpop.f32.mrf.mxu0
        %v2406 = vadd.f32 0.0, %v2405
        %2407 = vmatprep.mubr.bf16.mxu0 0
        %2408 = vmatmul.mubr.bf16.gmra.mxu0 %v2208
        %v2409 = vpop.f32.mrf.mxu0
        %v2410 = vadd.f32 0.0, %v2409
        %v2411 = vpop.f32.mrf.mxu0
        %v2412 = vadd.f32 0.0, %v2411
        %v2413 = vpop.f32.mrf.mxu0
        %v2414 = vadd.f32 0.0, %v2413
        %v2415 = vpop.f32.mrf.mxu0
        %v2416 = vadd.f32 0.0, %v2415
        %2417 = vmatprep.mubr.bf16.mxu0 0
        %2418 = vmatmul.mubr.bf16.gmra.mxu0 %v2209
        %v2419 = vpop.f32.mrf.mxu0
        %v2420 = vadd.f32 0.0, %v2419
        %v2421 = vpop.f32.mrf.mxu0
        %v2422 = vadd.f32 0.0, %v2421
        %v2423 = vpop.f32.mrf.mxu0
        %v2424 = vadd.f32 0.0, %v2423
        %v2425 = vpop.f32.mrf.mxu0
        %v2426 = vadd.f32 0.0, %v2425
        %2427 = vmatprep.mubr.bf16.mxu0 0
        %2428 = vmatmul.mubr.bf16.gmra.mxu0 %v2210
        %v2429 = vpop.f32.mrf.mxu0
        %v2430 = vadd.f32 0.0, %v2429
        %v2431 = vpop.f32.mrf.mxu0
        %v2432 = vadd.f32 0.0, %v2431
        %v2433 = vpop.f32.mrf.mxu0
        %v2434 = vadd.f32 0.0, %v2433
        %v2435 = vpop.f32.mrf.mxu0
        %v2436 = vadd.f32 0.0, %v2435
        %2437 = vmatprep.mubr.bf16.mxu0 0
        %2438 = vmatmul.mubr.bf16.gmra.mxu0 %v2211
        %v2439 = vpop.f32.mrf.mxu0
        %v2440 = vadd.f32 0.0, %v2439
        %v2441 = vpop.f32.mrf.mxu0
        %v2442 = vadd.f32 0.0, %v2441
        %v2443 = vpop.f32.mrf.mxu0
        %v2444 = vadd.f32 0.0, %v2443
        %v2445 = vpop.f32.mrf.mxu0
        %v2446 = vadd.f32 0.0, %v2445
        %2447 = vmatprep.mubr.bf16.mxu0 0
        %2448 = vmatmul.mubr.bf16.gmra.mxu0 %v2212
        %v2449 = vpop.f32.mrf.mxu0
        %v2450 = vadd.f32 0.0, %v2449
        %v2451 = vpop.f32.mrf.mxu0
        %v2452 = vadd.f32 0.0, %v2451
        %v2453 = vpop.f32.mrf.mxu0
        %v2454 = vadd.f32 0.0, %v2453
        %v2455 = vpop.f32.mrf.mxu0
        %v2456 = vadd.f32 0.0, %v2455
        %2457 = vmatprep.mubr.bf16.mxu0 0
        %2458 = vmatmul.mubr.bf16.gmra.mxu0 %v2213
        %v2459 = vpop.f32.mrf.mxu0
        %v2460 = vadd.f32 0.0, %v2459
        %v2461 = vpop.f32.mrf.mxu0
        %v2462 = vadd.f32 0.0, %v2461
        %v2463 = vpop.f32.mrf.mxu0
        %v2464 = vadd.f32 0.0, %v2463
        %v2465 = vpop.f32.mrf.mxu0
        %v2466 = vadd.f32 0.0, %v2465
        %2467 = vmatprep.mubr.bf16.mxu0 0
        %2468 = vmatmul.mubr.bf16.gmra.mxu0 %v2214
        %v2469 = vpop.f32.mrf.mxu0
        %v2470 = vadd.f32 0.0, %v2469
        %v2471 = vpop.f32.mrf.mxu0
        %v2472 = vadd.f32 0.0, %v2471
        %v2473 = vpop.f32.mrf.mxu0
        %v2474 = vadd.f32 0.0, %v2473
        %v2475 = vpop.f32.mrf.mxu0
        %v2476 = vadd.f32 0.0, %v2475
        %2477 = vmatprep.mubr.bf16.mxu0 0
        %2478 = vmatmul.mubr.bf16.gmra.mxu0 %v2215
        %v2479 = vpop.f32.mrf.mxu0
        %v2480 = vadd.f32 0.0, %v2479
        %v2481 = vpop.f32.mrf.mxu0
        %v2482 = vadd.f32 0.0, %v2481
        %v2483 = vpop.f32.mrf.mxu0
        %v2484 = vadd.f32 0.0, %v2483
        %v2485 = vpop.f32.mrf.mxu0
        %v2486 = vadd.f32 0.0, %v2485
        %2487 = vmatprep.mubr.bf16.mxu0 0
        %2488 = vmatmul.mubr.bf16.gmra.mxu0 %v2216
        %v2489 = vpop.f32.mrf.mxu0
        %v2490 = vadd.f32 0.0, %v2489
        %v2491 = vpop.f32.mrf.mxu0
        %v2492 = vadd.f32 0.0, %v2491
        %v2493 = vpop.f32.mrf.mxu0
        %v2494 = vadd.f32 0.0, %v2493
        %v2495 = vpop.f32.mrf.mxu0
        %v2496 = vadd.f32 0.0, %v2495
        %2497 = vmatprep.mubr.bf16.mxu0 0
        %2498 = vmatmul.mubr.bf16.gmra.mxu0 %v2217
        %v2499 = vpop.f32.mrf.mxu0
        %v2500 = vadd.f32 0.0, %v2499
        %v2501 = vpop.f32.mrf.mxu0
        %v2502 = vadd.f32 0.0, %v2501
        %v2503 = vpop.f32.mrf.mxu0
        %v2504 = vadd.f32 0.0, %v2503
        %v2505 = vpop.f32.mrf.mxu0
        %v2506 = vadd.f32 0.0, %v2505
        %2507 = vdwg.mxu0
        %v2508 = vadd.f32 %v2106, %v2350
        %v2509 = vadd.f32 %v2107, %v2352
        %v2510 = vadd.f32 %v2108, %v2354
        %v2511 = vadd.f32 %v2109, %v2356
        %v2512 = vadd.f32 %v2110, %v2360
        %v2513 = vadd.f32 %v2111, %v2362
        %v2514 = vadd.f32 %v2112, %v2364
        %v2515 = vadd.f32 %v2113, %v2366
        %v2516 = vadd.f32 %v2114, %v2370
        %v2517 = vadd.f32 %v2115, %v2372
        %v2518 = vadd.f32 %v2116, %v2374
        %v2519 = vadd.f32 %v2117, %v2376
        %v2520 = vadd.f32 %v2118, %v2380
        %v2521 = vadd.f32 %v2119, %v2382
        %v2522 = vadd.f32 %v2120, %v2384
        %v2523 = vadd.f32 %v2121, %v2386
        %v2524 = vadd.f32 %v2122, %v2390
        %v2525 = vadd.f32 %v2123, %v2392
        %v2526 = vadd.f32 %v2124, %v2394
        %v2527 = vadd.f32 %v2125, %v2396
        %v2528 = vadd.f32 %v2126, %v2400
        %v2529 = vadd.f32 %v2127, %v2402
        %v2530 = vadd.f32 %v2128, %v2404
        %v2531 = vadd.f32 %v2129, %v2406
        %v2532 = vadd.f32 %v2130, %v2410
        %v2533 = vadd.f32 %v2131, %v2412
        %v2534 = vadd.f32 %v2132, %v2414
        %v2535 = vadd.f32 %v2133, %v2416
        %v2536 = vadd.f32 %v2134, %v2420
        %v2537 = vadd.f32 %v2135, %v2422
        %v2538 = vadd.f32 %v2136, %v2424
        %v2539 = vadd.f32 %v2137, %v2426
        %v2540 = vadd.f32 %v2138, %v2430
        %v2541 = vadd.f32 %v2139, %v2432
        %v2542 = vadd.f32 %v2140, %v2434
        %v2543 = vadd.f32 %v2141, %v2436
        %v2544 = vadd.f32 %v2142, %v2440
        %v2545 = vadd.f32 %v2143, %v2442
        %v2546 = vadd.f32 %v2144, %v2444
        %v2547 = vadd.f32 %v2145, %v2446
        %v2548 = vadd.f32 %v2146, %v2450
        %v2549 = vadd.f32 %v2147, %v2452
        %v2550 = vadd.f32 %v2148, %v2454
        %v2551 = vadd.f32 %v2149, %v2456
        %v2552 = vadd.f32 %v2150, %v2460
        %v2553 = vadd.f32 %v2151, %v2462
        %v2554 = vadd.f32 %v2152, %v2464
        %v2555 = vadd.f32 %v2153, %v2466
        %v2556 = vadd.f32 %v2154, %v2470
        %v2557 = vadd.f32 %v2155, %v2472
        %v2558 = vadd.f32 %v2156, %v2474
        %v2559 = vadd.f32 %v2157, %v2476
        %v2560 = vadd.f32 %v2158, %v2480
        %v2561 = vadd.f32 %v2159, %v2482
        %v2562 = vadd.f32 %v2160, %v2484
        %v2563 = vadd.f32 %v2161, %v2486
        %v2564 = vadd.f32 %v2162, %v2490
        %v2565 = vadd.f32 %v2163, %v2492
        %v2566 = vadd.f32 %v2164, %v2494
        %v2567 = vadd.f32 %v2165, %v2496
        %v2568 = vadd.f32 %v2166, %v2500
        %v2569 = vadd.f32 %v2167, %v2502
        %v2570 = vadd.f32 %v2168, %v2504
        %v2571 = vadd.f32 %v2169, %v2506
        %s2572 = scalar_lea.vmem [#allocation2], 48
        %v2573 = vld [vmem:[%s2572] sm:$0xff]
        %v2574 = vld [vmem:[%s2572 + $0x8] sm:$0xff]
        %v2575 = vld [vmem:[%s2572 + $0x18] sm:$0xff]
        %v2576 = vld [vmem:[%s2572 + $0x20] sm:$0xff]
        %v2577 = vld [vmem:[%s2572 + $0x30] sm:$0xff]
        %v2578 = vld [vmem:[%s2572 + $0x38] sm:$0xff]
        %v2579 = vld [vmem:[%s2572 + $0x48] sm:$0xff]
        %v2580 = vld [vmem:[%s2572 + $0x50] sm:$0xff]
        %v2581 = vld [vmem:[%s2572 + $0x60] sm:$0xff]
        %v2582 = vld [vmem:[%s2572 + $0x68] sm:$0xff]
        %v2583 = vld [vmem:[%s2572 + $0x78] sm:$0xff]
        %v2584 = vld [vmem:[%s2572 + $0x80] sm:$0xff]
        %v2585 = vld [vmem:[%s2572 + $0x90] sm:$0xff]
        %v2586 = vld [vmem:[%s2572 + $0x98] sm:$0xff]
        %v2587 = vld [vmem:[%s2572 + $0xa8] sm:$0xff]
        %v2588 = vld [vmem:[%s2572 + $0xb0] sm:$0xff]
        %v2589 = vld [vmem:[%s2572 + $0xc0] sm:$0xff]
        %v2590 = vld [vmem:[%s2572 + $0xc8] sm:$0xff]
        %v2591 = vld [vmem:[%s2572 + $0xd8] sm:$0xff]
        %v2592 = vld [vmem:[%s2572 + $0xe0] sm:$0xff]
        %v2593 = vld [vmem:[%s2572 + $0xf0] sm:$0xff]
        %v2594 = vld [vmem:[%s2572 + $0xf8] sm:$0xff]
        %v2595 = vld [vmem:[%s2572 + $0x108] sm:$0xff]
        %v2596 = vld [vmem:[%s2572 + $0x110] sm:$0xff]
        %v2597 = vld [vmem:[%s2572 + $0x120] sm:$0xff]
        %v2598 = vld [vmem:[%s2572 + $0x128] sm:$0xff]
        %v2599 = vld [vmem:[%s2572 + $0x138] sm:$0xff]
        %v2600 = vld [vmem:[%s2572 + $0x140] sm:$0xff]
        %v2601 = vld [vmem:[%s2572 + $0x150] sm:$0xff]
        %v2602 = vld [vmem:[%s2572 + $0x158] sm:$0xff]
        %v2603 = vld [vmem:[%s2572 + $0x168] sm:$0xff]
        %v2604 = vld [vmem:[%s2572 + $0x170] sm:$0xff]
        %v2605 = vpack.c.bf16 %v2574, %v2573
        %v2606 = vpack.c.bf16 %v2576, %v2575
        %v2607 = vpack.c.bf16 %v2578, %v2577
        %v2608 = vpack.c.bf16 %v2580, %v2579
        %v2609 = vpack.c.bf16 %v2582, %v2581
        %v2610 = vpack.c.bf16 %v2584, %v2583
        %v2611 = vpack.c.bf16 %v2586, %v2585
        %v2612 = vpack.c.bf16 %v2588, %v2587
        %v2613 = vpack.c.bf16 %v2590, %v2589
        %v2614 = vpack.c.bf16 %v2592, %v2591
        %v2615 = vpack.c.bf16 %v2594, %v2593
        %v2616 = vpack.c.bf16 %v2596, %v2595
        %v2617 = vpack.c.bf16 %v2598, %v2597
        %v2618 = vpack.c.bf16 %v2600, %v2599
        %v2619 = vpack.c.bf16 %v2602, %v2601
        %v2620 = vpack.c.bf16 %v2604, %v2603
        %s2621 = scalar_lea.vmem %s1, 768
        %v2622 = vld [vmem:[%s2621] sm:$0xff]
        %v2623 = vld [vmem:[%s2621 + $0x8] sm:$0xff]
        %v2624 = vld [vmem:[%s2621 + $0x10] sm:$0xff]
        %v2625 = vld [vmem:[%s2621 + $0x18] sm:$0xff]
        %v2626 = vld [vmem:[%s2621 + $0x20] sm:$0xff]
        %v2627 = vld [vmem:[%s2621 + $0x28] sm:$0xff]
        %v2628 = vld [vmem:[%s2621 + $0x30] sm:$0xff]
        %v2629 = vld [vmem:[%s2621 + $0x38] sm:$0xff]
        %v2630 = vld [vmem:[%s2621 + $0x40] sm:$0xff]
        %v2631 = vld [vmem:[%s2621 + $0x48] sm:$0xff]
        %v2632 = vld [vmem:[%s2621 + $0x50] sm:$0xff]
        %v2633 = vld [vmem:[%s2621 + $0x58] sm:$0xff]
        %v2634 = vld [vmem:[%s2621 + $0x60] sm:$0xff]
        %v2635 = vld [vmem:[%s2621 + $0x68] sm:$0xff]
        %v2636 = vld [vmem:[%s2621 + $0x70] sm:$0xff]
        %v2637 = vld [vmem:[%s2621 + $0x78] sm:$0xff]
        %v2654 = vunpack.c.l.b16 %v2622
        %v2655 = vunpack.c.h.b16 %v2622
        %v2656 = vunpack.c.l.b16 %v2623
        %v2657 = vunpack.c.h.b16 %v2623
        %v2658 = vunpack.c.l.b16 %v2624
        %v2659 = vunpack.c.h.b16 %v2624
        %v2660 = vunpack.c.l.b16 %v2625
        %v2661 = vunpack.c.h.b16 %v2625
        %v2662 = vunpack.c.l.b16 %v2626
        %v2663 = vunpack.c.h.b16 %v2626
        %v2664 = vunpack.c.l.b16 %v2627
        %v2665 = vunpack.c.h.b16 %v2627
        %v2666 = vunpack.c.l.b16 %v2628
        %v2667 = vunpack.c.h.b16 %v2628
        %v2668 = vunpack.c.l.b16 %v2629
        %v2669 = vunpack.c.h.b16 %v2629
        %v2670 = vunpack.c.l.b16 %v2630
        %v2671 = vunpack.c.h.b16 %v2630
        %v2672 = vunpack.c.l.b16 %v2631
        %v2673 = vunpack.c.h.b16 %v2631
        %v2674 = vunpack.c.l.b16 %v2632
        %v2675 = vunpack.c.h.b16 %v2632
        %v2676 = vunpack.c.l.b16 %v2633
        %v2677 = vunpack.c.h.b16 %v2633
        %v2678 = vunpack.c.l.b16 %v2634
        %v2679 = vunpack.c.h.b16 %v2634
        %v2680 = vunpack.c.l.b16 %v2635
        %v2681 = vunpack.c.h.b16 %v2635
        %v2682 = vunpack.c.l.b16 %v2636
        %v2683 = vunpack.c.h.b16 %v2636
        %v2684 = vunpack.c.l.b16 %v2637
        %v2685 = vunpack.c.h.b16 %v2637
        %v2686 = vpack.c.b16 %v2656, %v2654
        %v2687 = vpack.c.b16 %v2657, %v2655
        %v2688 = vpack.c.b16 %v2660, %v2658
        %v2689 = vpack.c.b16 %v2661, %v2659
        %v2690 = vpack.c.b16 %v2664, %v2662
        %v2691 = vpack.c.b16 %v2665, %v2663
        %v2692 = vpack.c.b16 %v2668, %v2666
        %v2693 = vpack.c.b16 %v2669, %v2667
        %v2694 = vpack.c.b16 %v2672, %v2670
        %v2695 = vpack.c.b16 %v2673, %v2671
        %v2696 = vpack.c.b16 %v2676, %v2674
        %v2697 = vpack.c.b16 %v2677, %v2675
        %v2698 = vpack.c.b16 %v2680, %v2678
        %v2699 = vpack.c.b16 %v2681, %v2679
        %v2700 = vpack.c.b16 %v2684, %v2682
        %v2701 = vpack.c.b16 %v2685, %v2683
        %2718 = vmatprep.subr.bf16.mxu0 %v2701
        %2719 = vmatpush1.bf16.msra.mxu0 %v2700
        %2720 = vmatprep.subr.bf16.mxu0 %v2699
        %2721 = vmatpush1.bf16.msra.mxu0 %v2698
        %2722 = vmatprep.subr.bf16.mxu0 %v2697
        %2723 = vmatpush1.bf16.msra.mxu0 %v2696
        %2724 = vmatprep.subr.bf16.mxu0 %v2695
        %2725 = vmatpush1.bf16.msra.mxu0 %v2694
        %2726 = vmatprep.subr.bf16.mxu0 %v2693
        %2727 = vmatpush1.bf16.msra.mxu0 %v2692
        %2728 = vmatprep.subr.bf16.mxu0 %v2691
        %2729 = vmatpush1.bf16.msra.mxu0 %v2690
        %2730 = vmatprep.subr.bf16.mxu0 %v2689
        %2731 = vmatpush1.bf16.msra.mxu0 %v2688
        %2732 = vmatprep.subr.bf16.mxu0 %v2687
        %2733 = vmatpush1.bf16.msra.mxu0 %v2686
        %2734 = vmatprep.subr.bf16.mxu0 0
        %2735 = vmatpush2.bf16.msra.mxu0 0
        %2736 = vmatprep.subr.bf16.mxu0 0
        %2737 = vmatpush2.bf16.msra.mxu0 0
        %2738 = vmatprep.subr.bf16.mxu0 0
        %2739 = vmatpush2.bf16.msra.mxu0 0
        %2740 = vmatprep.subr.bf16.mxu0 0
        %2741 = vmatpush2.bf16.msra.mxu0 0
        %2742 = vmatprep.subr.bf16.mxu0 0
        %2743 = vmatpush2.bf16.msra.mxu0 0
        %2744 = vmatprep.subr.bf16.mxu0 0
        %2745 = vmatpush2.bf16.msra.mxu0 0
        %2746 = vmatprep.subr.bf16.mxu0 0
        %2747 = vmatpush2.bf16.msra.mxu0 0
        %2748 = vmatprep.subr.bf16.mxu0 0
        %2749 = vmatpush2.bf16.msra.mxu0 0
        %2750 = vmatprep.mubr.bf16.mxu0 0
        %2751 = vmatmul.mubr.bf16.gmra.mxu0 %v2605
        %v2752 = vpop.f32.mrf.mxu0
        %v2753 = vadd.f32 0.0, %v2752
        %v2754 = vpop.f32.mrf.mxu0
        %v2755 = vadd.f32 0.0, %v2754
        %v2756 = vpop.f32.mrf.mxu0
        %v2757 = vadd.f32 0.0, %v2756
        %v2758 = vpop.f32.mrf.mxu0
        %v2759 = vadd.f32 0.0, %v2758
        %2760 = vmatprep.mubr.bf16.mxu0 0
        %2761 = vmatmul.mubr.bf16.gmra.mxu0 %v2606
        %v2762 = vpop.f32.mrf.mxu0
        %v2763 = vadd.f32 0.0, %v2762
        %v2764 = vpop.f32.mrf.mxu0
        %v2765 = vadd.f32 0.0, %v2764
        %v2766 = vpop.f32.mrf.mxu0
        %v2767 = vadd.f32 0.0, %v2766
        %v2768 = vpop.f32.mrf.mxu0
        %v2769 = vadd.f32 0.0, %v2768
        %2770 = vmatprep.mubr.bf16.mxu0 0
        %2771 = vmatmul.mubr.bf16.gmra.mxu0 %v2607
        %v2772 = vpop.f32.mrf.mxu0
        %v2773 = vadd.f32 0.0, %v2772
        %v2774 = vpop.f32.mrf.mxu0
        %v2775 = vadd.f32 0.0, %v2774
        %v2776 = vpop.f32.mrf.mxu0
        %v2777 = vadd.f32 0.0, %v2776
        %v2778 = vpop.f32.mrf.mxu0
        %v2779 = vadd.f32 0.0, %v2778
        %2780 = vmatprep.mubr.bf16.mxu0 0
        %2781 = vmatmul.mubr.bf16.gmra.mxu0 %v2608
        %v2782 = vpop.f32.mrf.mxu0
        %v2783 = vadd.f32 0.0, %v2782
        %v2784 = vpop.f32.mrf.mxu0
        %v2785 = vadd.f32 0.0, %v2784
        %v2786 = vpop.f32.mrf.mxu0
        %v2787 = vadd.f32 0.0, %v2786
        %v2788 = vpop.f32.mrf.mxu0
        %v2789 = vadd.f32 0.0, %v2788
        %2790 = vmatprep.mubr.bf16.mxu0 0
        %2791 = vmatmul.mubr.bf16.gmra.mxu0 %v2609
        %v2792 = vpop.f32.mrf.mxu0
        %v2793 = vadd.f32 0.0, %v2792
        %v2794 = vpop.f32.mrf.mxu0
        %v2795 = vadd.f32 0.0, %v2794
        %v2796 = vpop.f32.mrf.mxu0
        %v2797 = vadd.f32 0.0, %v2796
        %v2798 = vpop.f32.mrf.mxu0
        %v2799 = vadd.f32 0.0, %v2798
        %2800 = vmatprep.mubr.bf16.mxu0 0
        %2801 = vmatmul.mubr.bf16.gmra.mxu0 %v2610
        %v2802 = vpop.f32.mrf.mxu0
        %v2803 = vadd.f32 0.0, %v2802
        %v2804 = vpop.f32.mrf.mxu0
        %v2805 = vadd.f32 0.0, %v2804
        %v2806 = vpop.f32.mrf.mxu0
        %v2807 = vadd.f32 0.0, %v2806
        %v2808 = vpop.f32.mrf.mxu0
        %v2809 = vadd.f32 0.0, %v2808
        %2810 = vmatprep.mubr.bf16.mxu0 0
        %2811 = vmatmul.mubr.bf16.gmra.mxu0 %v2611
        %v2812 = vpop.f32.mrf.mxu0
        %v2813 = vadd.f32 0.0, %v2812
        %v2814 = vpop.f32.mrf.mxu0
        %v2815 = vadd.f32 0.0, %v2814
        %v2816 = vpop.f32.mrf.mxu0
        %v2817 = vadd.f32 0.0, %v2816
        %v2818 = vpop.f32.mrf.mxu0
        %v2819 = vadd.f32 0.0, %v2818
        %2820 = vmatprep.mubr.bf16.mxu0 0
        %2821 = vmatmul.mubr.bf16.gmra.mxu0 %v2612
        %v2822 = vpop.f32.mrf.mxu0
        %v2823 = vadd.f32 0.0, %v2822
        %v2824 = vpop.f32.mrf.mxu0
        %v2825 = vadd.f32 0.0, %v2824
        %v2826 = vpop.f32.mrf.mxu0
        %v2827 = vadd.f32 0.0, %v2826
        %v2828 = vpop.f32.mrf.mxu0
        %v2829 = vadd.f32 0.0, %v2828
        %2830 = vmatprep.mubr.bf16.mxu0 0
        %2831 = vmatmul.mubr.bf16.gmra.mxu0 %v2613
        %v2832 = vpop.f32.mrf.mxu0
        %v2833 = vadd.f32 0.0, %v2832
        %v2834 = vpop.f32.mrf.mxu0
        %v2835 = vadd.f32 0.0, %v2834
        %v2836 = vpop.f32.mrf.mxu0
        %v2837 = vadd.f32 0.0, %v2836
        %v2838 = vpop.f32.mrf.mxu0
        %v2839 = vadd.f32 0.0, %v2838
        %2840 = vmatprep.mubr.bf16.mxu0 0
        %2841 = vmatmul.mubr.bf16.gmra.mxu0 %v2614
        %v2842 = vpop.f32.mrf.mxu0
        %v2843 = vadd.f32 0.0, %v2842
        %v2844 = vpop.f32.mrf.mxu0
        %v2845 = vadd.f32 0.0, %v2844
        %v2846 = vpop.f32.mrf.mxu0
        %v2847 = vadd.f32 0.0, %v2846
        %v2848 = vpop.f32.mrf.mxu0
        %v2849 = vadd.f32 0.0, %v2848
        %2850 = vmatprep.mubr.bf16.mxu0 0
        %2851 = vmatmul.mubr.bf16.gmra.mxu0 %v2615
        %v2852 = vpop.f32.mrf.mxu0
        %v2853 = vadd.f32 0.0, %v2852
        %v2854 = vpop.f32.mrf.mxu0
        %v2855 = vadd.f32 0.0, %v2854
        %v2856 = vpop.f32.mrf.mxu0
        %v2857 = vadd.f32 0.0, %v2856
        %v2858 = vpop.f32.mrf.mxu0
        %v2859 = vadd.f32 0.0, %v2858
        %2860 = vmatprep.mubr.bf16.mxu0 0
        %2861 = vmatmul.mubr.bf16.gmra.mxu0 %v2616
        %v2862 = vpop.f32.mrf.mxu0
        %v2863 = vadd.f32 0.0, %v2862
        %v2864 = vpop.f32.mrf.mxu0
        %v2865 = vadd.f32 0.0, %v2864
        %v2866 = vpop.f32.mrf.mxu0
        %v2867 = vadd.f32 0.0, %v2866
        %v2868 = vpop.f32.mrf.mxu0
        %v2869 = vadd.f32 0.0, %v2868
        %2870 = vmatprep.mubr.bf16.mxu0 0
        %2871 = vmatmul.mubr.bf16.gmra.mxu0 %v2617
        %v2872 = vpop.f32.mrf.mxu0
        %v2873 = vadd.f32 0.0, %v2872
        %v2874 = vpop.f32.mrf.mxu0
        %v2875 = vadd.f32 0.0, %v2874
        %v2876 = vpop.f32.mrf.mxu0
        %v2877 = vadd.f32 0.0, %v2876
        %v2878 = vpop.f32.mrf.mxu0
        %v2879 = vadd.f32 0.0, %v2878
        %2880 = vmatprep.mubr.bf16.mxu0 0
        %2881 = vmatmul.mubr.bf16.gmra.mxu0 %v2618
        %v2882 = vpop.f32.mrf.mxu0
        %v2883 = vadd.f32 0.0, %v2882
        %v2884 = vpop.f32.mrf.mxu0
        %v2885 = vadd.f32 0.0, %v2884
        %v2886 = vpop.f32.mrf.mxu0
        %v2887 = vadd.f32 0.0, %v2886
        %v2888 = vpop.f32.mrf.mxu0
        %v2889 = vadd.f32 0.0, %v2888
        %2890 = vmatprep.mubr.bf16.mxu0 0
        %2891 = vmatmul.mubr.bf16.gmra.mxu0 %v2619
        %v2892 = vpop.f32.mrf.mxu0
        %v2893 = vadd.f32 0.0, %v2892
        %v2894 = vpop.f32.mrf.mxu0
        %v2895 = vadd.f32 0.0, %v2894
        %v2896 = vpop.f32.mrf.mxu0
        %v2897 = vadd.f32 0.0, %v2896
        %v2898 = vpop.f32.mrf.mxu0
        %v2899 = vadd.f32 0.0, %v2898
        %2900 = vmatprep.mubr.bf16.mxu0 0
        %2901 = vmatmul.mubr.bf16.gmra.mxu0 %v2620
        %v2902 = vpop.f32.mrf.mxu0
        %v2903 = vadd.f32 0.0, %v2902
        %v2904 = vpop.f32.mrf.mxu0
        %v2905 = vadd.f32 0.0, %v2904
        %v2906 = vpop.f32.mrf.mxu0
        %v2907 = vadd.f32 0.0, %v2906
        %v2908 = vpop.f32.mrf.mxu0
        %v2909 = vadd.f32 0.0, %v2908
        %2910 = vdwg.mxu0
        %v2911 = vadd.f32 %v2508, %v2753
        %v2912 = vadd.f32 %v2509, %v2755
        %v2913 = vadd.f32 %v2510, %v2757
        %v2914 = vadd.f32 %v2511, %v2759
        %v2915 = vadd.f32 %v2512, %v2763
        %v2916 = vadd.f32 %v2513, %v2765
        %v2917 = vadd.f32 %v2514, %v2767
        %v2918 = vadd.f32 %v2515, %v2769
        %v2919 = vadd.f32 %v2516, %v2773
        %v2920 = vadd.f32 %v2517, %v2775
        %v2921 = vadd.f32 %v2518, %v2777
        %v2922 = vadd.f32 %v2519, %v2779
        %v2923 = vadd.f32 %v2520, %v2783
        %v2924 = vadd.f32 %v2521, %v2785
        %v2925 = vadd.f32 %v2522, %v2787
        %v2926 = vadd.f32 %v2523, %v2789
        %v2927 = vadd.f32 %v2524, %v2793
        %v2928 = vadd.f32 %v2525, %v2795
        %v2929 = vadd.f32 %v2526, %v2797
        %v2930 = vadd.f32 %v2527, %v2799
        %v2931 = vadd.f32 %v2528, %v2803
        %v2932 = vadd.f32 %v2529, %v2805
        %v2933 = vadd.f32 %v2530, %v2807
        %v2934 = vadd.f32 %v2531, %v2809
        %v2935 = vadd.f32 %v2532, %v2813
        %v2936 = vadd.f32 %v2533, %v2815
        %v2937 = vadd.f32 %v2534, %v2817
        %v2938 = vadd.f32 %v2535, %v2819
        %v2939 = vadd.f32 %v2536, %v2823
        %v2940 = vadd.f32 %v2537, %v2825
        %v2941 = vadd.f32 %v2538, %v2827
        %v2942 = vadd.f32 %v2539, %v2829
        %v2943 = vadd.f32 %v2540, %v2833
        %v2944 = vadd.f32 %v2541, %v2835
        %v2945 = vadd.f32 %v2542, %v2837
        %v2946 = vadd.f32 %v2543, %v2839
        %v2947 = vadd.f32 %v2544, %v2843
        %v2948 = vadd.f32 %v2545, %v2845
        %v2949 = vadd.f32 %v2546, %v2847
        %v2950 = vadd.f32 %v2547, %v2849
        %v2951 = vadd.f32 %v2548, %v2853
        %v2952 = vadd.f32 %v2549, %v2855
        %v2953 = vadd.f32 %v2550, %v2857
        %v2954 = vadd.f32 %v2551, %v2859
        %v2955 = vadd.f32 %v2552, %v2863
        %v2956 = vadd.f32 %v2553, %v2865
        %v2957 = vadd.f32 %v2554, %v2867
        %v2958 = vadd.f32 %v2555, %v2869
        %v2959 = vadd.f32 %v2556, %v2873
        %v2960 = vadd.f32 %v2557, %v2875
        %v2961 = vadd.f32 %v2558, %v2877
        %v2962 = vadd.f32 %v2559, %v2879
        %v2963 = vadd.f32 %v2560, %v2883
        %v2964 = vadd.f32 %v2561, %v2885
        %v2965 = vadd.f32 %v2562, %v2887
        %v2966 = vadd.f32 %v2563, %v2889
        %v2967 = vadd.f32 %v2564, %v2893
        %v2968 = vadd.f32 %v2565, %v2895
        %v2969 = vadd.f32 %v2566, %v2897
        %v2970 = vadd.f32 %v2567, %v2899
        %v2971 = vadd.f32 %v2568, %v2903
        %v2972 = vadd.f32 %v2569, %v2905
        %v2973 = vadd.f32 %v2570, %v2907
        %v2974 = vadd.f32 %v2571, %v2909
        %v2975 = vld [vmem:[%s2572 + $0x1] sm:$0xff]
        %v2976 = vld [vmem:[%s2572 + $0x9] sm:$0xff]
        %v2977 = vld [vmem:[%s2572 + $0x19] sm:$0xff]
        %v2978 = vld [vmem:[%s2572 + $0x21] sm:$0xff]
        %v2979 = vld [vmem:[%s2572 + $0x31] sm:$0xff]
        %v2980 = vld [vmem:[%s2572 + $0x39] sm:$0xff]
        %v2981 = vld [vmem:[%s2572 + $0x49] sm:$0xff]
        %v2982 = vld [vmem:[%s2572 + $0x51] sm:$0xff]
        %v2983 = vld [vmem:[%s2572 + $0x61] sm:$0xff]
        %v2984 = vld [vmem:[%s2572 + $0x69] sm:$0xff]
        %v2985 = vld [vmem:[%s2572 + $0x79] sm:$0xff]
        %v2986 = vld [vmem:[%s2572 + $0x81] sm:$0xff]
        %v2987 = vld [vmem:[%s2572 + $0x91] sm:$0xff]
        %v2988 = vld [vmem:[%s2572 + $0x99] sm:$0xff]
        %v2989 = vld [vmem:[%s2572 + $0xa9] sm:$0xff]
        %v2990 = vld [vmem:[%s2572 + $0xb1] sm:$0xff]
        %v2991 = vld [vmem:[%s2572 + $0xc1] sm:$0xff]
        %v2992 = vld [vmem:[%s2572 + $0xc9] sm:$0xff]
        %v2993 = vld [vmem:[%s2572 + $0xd9] sm:$0xff]
        %v2994 = vld [vmem:[%s2572 + $0xe1] sm:$0xff]
        %v2995 = vld [vmem:[%s2572 + $0xf1] sm:$0xff]
        %v2996 = vld [vmem:[%s2572 + $0xf9] sm:$0xff]
        %v2997 = vld [vmem:[%s2572 + $0x109] sm:$0xff]
        %v2998 = vld [vmem:[%s2572 + $0x111] sm:$0xff]
        %v2999 = vld [vmem:[%s2572 + $0x121] sm:$0xff]
        %v3000 = vld [vmem:[%s2572 + $0x129] sm:$0xff]
        %v3001 = vld [vmem:[%s2572 + $0x139] sm:$0xff]
        %v3002 = vld [vmem:[%s2572 + $0x141] sm:$0xff]
        %v3003 = vld [vmem:[%s2572 + $0x151] sm:$0xff]
        %v3004 = vld [vmem:[%s2572 + $0x159] sm:$0xff]
        %v3005 = vld [vmem:[%s2572 + $0x169] sm:$0xff]
        %v3006 = vld [vmem:[%s2572 + $0x171] sm:$0xff]
        %v3007 = vpack.c.bf16 %v2976, %v2975
        %v3008 = vpack.c.bf16 %v2978, %v2977
        %v3009 = vpack.c.bf16 %v2980, %v2979
        %v3010 = vpack.c.bf16 %v2982, %v2981
        %v3011 = vpack.c.bf16 %v2984, %v2983
        %v3012 = vpack.c.bf16 %v2986, %v2985
        %v3013 = vpack.c.bf16 %v2988, %v2987
        %v3014 = vpack.c.bf16 %v2990, %v2989
        %v3015 = vpack.c.bf16 %v2992, %v2991
        %v3016 = vpack.c.bf16 %v2994, %v2993
        %v3017 = vpack.c.bf16 %v2996, %v2995
        %v3018 = vpack.c.bf16 %v2998, %v2997
        %v3019 = vpack.c.bf16 %v3000, %v2999
        %v3020 = vpack.c.bf16 %v3002, %v3001
        %v3021 = vpack.c.bf16 %v3004, %v3003
        %v3022 = vpack.c.bf16 %v3006, %v3005
        %s3023 = scalar_lea.vmem %s1, 896
        %v3024 = vld [vmem:[%s3023] sm:$0xff]
        %v3025 = vld [vmem:[%s3023 + $0x8] sm:$0xff]
        %v3026 = vld [vmem:[%s3023 + $0x10] sm:$0xff]
        %v3027 = vld [vmem:[%s3023 + $0x18] sm:$0xff]
        %v3028 = vld [vmem:[%s3023 + $0x20] sm:$0xff]
        %v3029 = vld [vmem:[%s3023 + $0x28] sm:$0xff]
        %v3030 = vld [vmem:[%s3023 + $0x30] sm:$0xff]
        %v3031 = vld [vmem:[%s3023 + $0x38] sm:$0xff]
        %v3032 = vld [vmem:[%s3023 + $0x40] sm:$0xff]
        %v3033 = vld [vmem:[%s3023 + $0x48] sm:$0xff]
        %v3034 = vld [vmem:[%s3023 + $0x50] sm:$0xff]
        %v3035 = vld [vmem:[%s3023 + $0x58] sm:$0xff]
        %v3036 = vld [vmem:[%s3023 + $0x60] sm:$0xff]
        %v3037 = vld [vmem:[%s3023 + $0x68] sm:$0xff]
        %v3038 = vld [vmem:[%s3023 + $0x70] sm:$0xff]
        %v3039 = vld [vmem:[%s3023 + $0x78] sm:$0xff]
        %v3056 = vunpack.c.l.b16 %v3024
        %v3057 = vunpack.c.h.b16 %v3024
        %v3058 = vunpack.c.l.b16 %v3025
        %v3059 = vunpack.c.h.b16 %v3025
        %v3060 = vunpack.c.l.b16 %v3026
        %v3061 = vunpack.c.h.b16 %v3026
        %v3062 = vunpack.c.l.b16 %v3027
        %v3063 = vunpack.c.h.b16 %v3027
        %v3064 = vunpack.c.l.b16 %v3028
        %v3065 = vunpack.c.h.b16 %v3028
        %v3066 = vunpack.c.l.b16 %v3029
        %v3067 = vunpack.c.h.b16 %v3029
        %v3068 = vunpack.c.l.b16 %v3030
        %v3069 = vunpack.c.h.b16 %v3030
        %v3070 = vunpack.c.l.b16 %v3031
        %v3071 = vunpack.c.h.b16 %v3031
        %v3072 = vunpack.c.l.b16 %v3032
        %v3073 = vunpack.c.h.b16 %v3032
        %v3074 = vunpack.c.l.b16 %v3033
        %v3075 = vunpack.c.h.b16 %v3033
        %v3076 = vunpack.c.l.b16 %v3034
        %v3077 = vunpack.c.h.b16 %v3034
        %v3078 = vunpack.c.l.b16 %v3035
        %v3079 = vunpack.c.h.b16 %v3035
        %v3080 = vunpack.c.l.b16 %v3036
        %v3081 = vunpack.c.h.b16 %v3036
        %v3082 = vunpack.c.l.b16 %v3037
        %v3083 = vunpack.c.h.b16 %v3037
        %v3084 = vunpack.c.l.b16 %v3038
        %v3085 = vunpack.c.h.b16 %v3038
        %v3086 = vunpack.c.l.b16 %v3039
        %v3087 = vunpack.c.h.b16 %v3039
        %v3088 = vpack.c.b16 %v3058, %v3056
        %v3089 = vpack.c.b16 %v3059, %v3057
        %v3090 = vpack.c.b16 %v3062, %v3060
        %v3091 = vpack.c.b16 %v3063, %v3061
        %v3092 = vpack.c.b16 %v3066, %v3064
        %v3093 = vpack.c.b16 %v3067, %v3065
        %v3094 = vpack.c.b16 %v3070, %v3068
        %v3095 = vpack.c.b16 %v3071, %v3069
        %v3096 = vpack.c.b16 %v3074, %v3072
        %v3097 = vpack.c.b16 %v3075, %v3073
        %v3098 = vpack.c.b16 %v3078, %v3076
        %v3099 = vpack.c.b16 %v3079, %v3077
        %v3100 = vpack.c.b16 %v3082, %v3080
        %v3101 = vpack.c.b16 %v3083, %v3081
        %v3102 = vpack.c.b16 %v3086, %v3084
        %v3103 = vpack.c.b16 %v3087, %v3085
        %3120 = vmatprep.subr.bf16.mxu0 %v3103
        %3121 = vmatpush1.bf16.msra.mxu0 %v3102
        %3122 = vmatprep.subr.bf16.mxu0 %v3101
        %3123 = vmatpush1.bf16.msra.mxu0 %v3100
        %3124 = vmatprep.subr.bf16.mxu0 %v3099
        %3125 = vmatpush1.bf16.msra.mxu0 %v3098
        %3126 = vmatprep.subr.bf16.mxu0 %v3097
        %3127 = vmatpush1.bf16.msra.mxu0 %v3096
        %3128 = vmatprep.subr.bf16.mxu0 %v3095
        %3129 = vmatpush1.bf16.msra.mxu0 %v3094
        %3130 = vmatprep.subr.bf16.mxu0 %v3093
        %3131 = vmatpush1.bf16.msra.mxu0 %v3092
        %3132 = vmatprep.subr.bf16.mxu0 %v3091
        %3133 = vmatpush1.bf16.msra.mxu0 %v3090
        %3134 = vmatprep.subr.bf16.mxu0 %v3089
        %3135 = vmatpush1.bf16.msra.mxu0 %v3088
        %3136 = vmatprep.subr.bf16.mxu0 0
        %3137 = vmatpush2.bf16.msra.mxu0 0
        %3138 = vmatprep.subr.bf16.mxu0 0
        %3139 = vmatpush2.bf16.msra.mxu0 0
        %3140 = vmatprep.subr.bf16.mxu0 0
        %3141 = vmatpush2.bf16.msra.mxu0 0
        %3142 = vmatprep.subr.bf16.mxu0 0
        %3143 = vmatpush2.bf16.msra.mxu0 0
        %3144 = vmatprep.subr.bf16.mxu0 0
        %3145 = vmatpush2.bf16.msra.mxu0 0
        %3146 = vmatprep.subr.bf16.mxu0 0
        %3147 = vmatpush2.bf16.msra.mxu0 0
        %3148 = vmatprep.subr.bf16.mxu0 0
        %3149 = vmatpush2.bf16.msra.mxu0 0
        %3150 = vmatprep.subr.bf16.mxu0 0
        %3151 = vmatpush2.bf16.msra.mxu0 0
        %3152 = vmatprep.mubr.bf16.mxu0 0
        %3153 = vmatmul.mubr.bf16.gmra.mxu0 %v3007
        %v3154 = vpop.f32.mrf.mxu0
        %v3155 = vadd.f32 0.0, %v3154
        %v3156 = vpop.f32.mrf.mxu0
        %v3157 = vadd.f32 0.0, %v3156
        %v3158 = vpop.f32.mrf.mxu0
        %v3159 = vadd.f32 0.0, %v3158
        %v3160 = vpop.f32.mrf.mxu0
        %v3161 = vadd.f32 0.0, %v3160
        %3162 = vmatprep.mubr.bf16.mxu0 0
        %3163 = vmatmul.mubr.bf16.gmra.mxu0 %v3008
        %v3164 = vpop.f32.mrf.mxu0
        %v3165 = vadd.f32 0.0, %v3164
        %v3166 = vpop.f32.mrf.mxu0
        %v3167 = vadd.f32 0.0, %v3166
        %v3168 = vpop.f32.mrf.mxu0
        %v3169 = vadd.f32 0.0, %v3168
        %v3170 = vpop.f32.mrf.mxu0
        %v3171 = vadd.f32 0.0, %v3170
        %3172 = vmatprep.mubr.bf16.mxu0 0
        %3173 = vmatmul.mubr.bf16.gmra.mxu0 %v3009
        %v3174 = vpop.f32.mrf.mxu0
        %v3175 = vadd.f32 0.0, %v3174
        %v3176 = vpop.f32.mrf.mxu0
        %v3177 = vadd.f32 0.0, %v3176
        %v3178 = vpop.f32.mrf.mxu0
        %v3179 = vadd.f32 0.0, %v3178
        %v3180 = vpop.f32.mrf.mxu0
        %v3181 = vadd.f32 0.0, %v3180
        %3182 = vmatprep.mubr.bf16.mxu0 0
        %3183 = vmatmul.mubr.bf16.gmra.mxu0 %v3010
        %v3184 = vpop.f32.mrf.mxu0
        %v3185 = vadd.f32 0.0, %v3184
        %v3186 = vpop.f32.mrf.mxu0
        %v3187 = vadd.f32 0.0, %v3186
        %v3188 = vpop.f32.mrf.mxu0
        %v3189 = vadd.f32 0.0, %v3188
        %v3190 = vpop.f32.mrf.mxu0
        %v3191 = vadd.f32 0.0, %v3190
        %3192 = vmatprep.mubr.bf16.mxu0 0
        %3193 = vmatmul.mubr.bf16.gmra.mxu0 %v3011
        %v3194 = vpop.f32.mrf.mxu0
        %v3195 = vadd.f32 0.0, %v3194
        %v3196 = vpop.f32.mrf.mxu0
        %v3197 = vadd.f32 0.0, %v3196
        %v3198 = vpop.f32.mrf.mxu0
        %v3199 = vadd.f32 0.0, %v3198
        %v3200 = vpop.f32.mrf.mxu0
        %v3201 = vadd.f32 0.0, %v3200
        %3202 = vmatprep.mubr.bf16.mxu0 0
        %3203 = vmatmul.mubr.bf16.gmra.mxu0 %v3012
        %v3204 = vpop.f32.mrf.mxu0
        %v3205 = vadd.f32 0.0, %v3204
        %v3206 = vpop.f32.mrf.mxu0
        %v3207 = vadd.f32 0.0, %v3206
        %v3208 = vpop.f32.mrf.mxu0
        %v3209 = vadd.f32 0.0, %v3208
        %v3210 = vpop.f32.mrf.mxu0
        %v3211 = vadd.f32 0.0, %v3210
        %3212 = vmatprep.mubr.bf16.mxu0 0
        %3213 = vmatmul.mubr.bf16.gmra.mxu0 %v3013
        %v3214 = vpop.f32.mrf.mxu0
        %v3215 = vadd.f32 0.0, %v3214
        %v3216 = vpop.f32.mrf.mxu0
        %v3217 = vadd.f32 0.0, %v3216
        %v3218 = vpop.f32.mrf.mxu0
        %v3219 = vadd.f32 0.0, %v3218
        %v3220 = vpop.f32.mrf.mxu0
        %v3221 = vadd.f32 0.0, %v3220
        %3222 = vmatprep.mubr.bf16.mxu0 0
        %3223 = vmatmul.mubr.bf16.gmra.mxu0 %v3014
        %v3224 = vpop.f32.mrf.mxu0
        %v3225 = vadd.f32 0.0, %v3224
        %v3226 = vpop.f32.mrf.mxu0
        %v3227 = vadd.f32 0.0, %v3226
        %v3228 = vpop.f32.mrf.mxu0
        %v3229 = vadd.f32 0.0, %v3228
        %v3230 = vpop.f32.mrf.mxu0
        %v3231 = vadd.f32 0.0, %v3230
        %3232 = vmatprep.mubr.bf16.mxu0 0
        %3233 = vmatmul.mubr.bf16.gmra.mxu0 %v3015
        %v3234 = vpop.f32.mrf.mxu0
        %v3235 = vadd.f32 0.0, %v3234
        %v3236 = vpop.f32.mrf.mxu0
        %v3237 = vadd.f32 0.0, %v3236
        %v3238 = vpop.f32.mrf.mxu0
        %v3239 = vadd.f32 0.0, %v3238
        %v3240 = vpop.f32.mrf.mxu0
        %v3241 = vadd.f32 0.0, %v3240
        %3242 = vmatprep.mubr.bf16.mxu0 0
        %3243 = vmatmul.mubr.bf16.gmra.mxu0 %v3016
        %v3244 = vpop.f32.mrf.mxu0
        %v3245 = vadd.f32 0.0, %v3244
        %v3246 = vpop.f32.mrf.mxu0
        %v3247 = vadd.f32 0.0, %v3246
        %v3248 = vpop.f32.mrf.mxu0
        %v3249 = vadd.f32 0.0, %v3248
        %v3250 = vpop.f32.mrf.mxu0
        %v3251 = vadd.f32 0.0, %v3250
        %3252 = vmatprep.mubr.bf16.mxu0 0
        %3253 = vmatmul.mubr.bf16.gmra.mxu0 %v3017
        %v3254 = vpop.f32.mrf.mxu0
        %v3255 = vadd.f32 0.0, %v3254
        %v3256 = vpop.f32.mrf.mxu0
        %v3257 = vadd.f32 0.0, %v3256
        %v3258 = vpop.f32.mrf.mxu0
        %v3259 = vadd.f32 0.0, %v3258
        %v3260 = vpop.f32.mrf.mxu0
        %v3261 = vadd.f32 0.0, %v3260
        %3262 = vmatprep.mubr.bf16.mxu0 0
        %3263 = vmatmul.mubr.bf16.gmra.mxu0 %v3018
        %v3264 = vpop.f32.mrf.mxu0
        %v3265 = vadd.f32 0.0, %v3264
        %v3266 = vpop.f32.mrf.mxu0
        %v3267 = vadd.f32 0.0, %v3266
        %v3268 = vpop.f32.mrf.mxu0
        %v3269 = vadd.f32 0.0, %v3268
        %v3270 = vpop.f32.mrf.mxu0
        %v3271 = vadd.f32 0.0, %v3270
        %3272 = vmatprep.mubr.bf16.mxu0 0
        %3273 = vmatmul.mubr.bf16.gmra.mxu0 %v3019
        %v3274 = vpop.f32.mrf.mxu0
        %v3275 = vadd.f32 0.0, %v3274
        %v3276 = vpop.f32.mrf.mxu0
        %v3277 = vadd.f32 0.0, %v3276
        %v3278 = vpop.f32.mrf.mxu0
        %v3279 = vadd.f32 0.0, %v3278
        %v3280 = vpop.f32.mrf.mxu0
        %v3281 = vadd.f32 0.0, %v3280
        %3282 = vmatprep.mubr.bf16.mxu0 0
        %3283 = vmatmul.mubr.bf16.gmra.mxu0 %v3020
        %v3284 = vpop.f32.mrf.mxu0
        %v3285 = vadd.f32 0.0, %v3284
        %v3286 = vpop.f32.mrf.mxu0
        %v3287 = vadd.f32 0.0, %v3286
        %v3288 = vpop.f32.mrf.mxu0
        %v3289 = vadd.f32 0.0, %v3288
        %v3290 = vpop.f32.mrf.mxu0
        %v3291 = vadd.f32 0.0, %v3290
        %3292 = vmatprep.mubr.bf16.mxu0 0
        %3293 = vmatmul.mubr.bf16.gmra.mxu0 %v3021
        %v3294 = vpop.f32.mrf.mxu0
        %v3295 = vadd.f32 0.0, %v3294
        %v3296 = vpop.f32.mrf.mxu0
        %v3297 = vadd.f32 0.0, %v3296
        %v3298 = vpop.f32.mrf.mxu0
        %v3299 = vadd.f32 0.0, %v3298
        %v3300 = vpop.f32.mrf.mxu0
        %v3301 = vadd.f32 0.0, %v3300
        %3302 = vmatprep.mubr.bf16.mxu0 0
        %3303 = vmatmul.mubr.bf16.gmra.mxu0 %v3022
        %v3304 = vpop.f32.mrf.mxu0
        %v3305 = vadd.f32 0.0, %v3304
        %v3306 = vpop.f32.mrf.mxu0
        %v3307 = vadd.f32 0.0, %v3306
        %v3308 = vpop.f32.mrf.mxu0
        %v3309 = vadd.f32 0.0, %v3308
        %v3310 = vpop.f32.mrf.mxu0
        %v3311 = vadd.f32 0.0, %v3310
        %3312 = vdwg.mxu0
        %v3313 = vadd.f32 %v2911, %v3155
        %v3314 = vadd.f32 %v2912, %v3157
        %v3315 = vadd.f32 %v2913, %v3159
        %v3316 = vadd.f32 %v2914, %v3161
        %v3317 = vadd.f32 %v2915, %v3165
        %v3318 = vadd.f32 %v2916, %v3167
        %v3319 = vadd.f32 %v2917, %v3169
        %v3320 = vadd.f32 %v2918, %v3171
        %v3321 = vadd.f32 %v2919, %v3175
        %v3322 = vadd.f32 %v2920, %v3177
        %v3323 = vadd.f32 %v2921, %v3179
        %v3324 = vadd.f32 %v2922, %v3181
        %v3325 = vadd.f32 %v2923, %v3185
        %v3326 = vadd.f32 %v2924, %v3187
        %v3327 = vadd.f32 %v2925, %v3189
        %v3328 = vadd.f32 %v2926, %v3191
        %v3329 = vadd.f32 %v2927, %v3195
        %v3330 = vadd.f32 %v2928, %v3197
        %v3331 = vadd.f32 %v2929, %v3199
        %v3332 = vadd.f32 %v2930, %v3201
        %v3333 = vadd.f32 %v2931, %v3205
        %v3334 = vadd.f32 %v2932, %v3207
        %v3335 = vadd.f32 %v2933, %v3209
        %v3336 = vadd.f32 %v2934, %v3211
        %v3337 = vadd.f32 %v2935, %v3215
        %v3338 = vadd.f32 %v2936, %v3217
        %v3339 = vadd.f32 %v2937, %v3219
        %v3340 = vadd.f32 %v2938, %v3221
        %v3341 = vadd.f32 %v2939, %v3225
        %v3342 = vadd.f32 %v2940, %v3227
        %v3343 = vadd.f32 %v2941, %v3229
        %v3344 = vadd.f32 %v2942, %v3231
        %v3345 = vadd.f32 %v2943, %v3235
        %v3346 = vadd.f32 %v2944, %v3237
        %v3347 = vadd.f32 %v2945, %v3239
        %v3348 = vadd.f32 %v2946, %v3241
        %v3349 = vadd.f32 %v2947, %v3245
        %v3350 = vadd.f32 %v2948, %v3247
        %v3351 = vadd.f32 %v2949, %v3249
        %v3352 = vadd.f32 %v2950, %v3251
        %v3353 = vadd.f32 %v2951, %v3255
        %v3354 = vadd.f32 %v2952, %v3257
        %v3355 = vadd.f32 %v2953, %v3259
        %v3356 = vadd.f32 %v2954, %v3261
        %v3357 = vadd.f32 %v2955, %v3265
        %v3358 = vadd.f32 %v2956, %v3267
        %v3359 = vadd.f32 %v2957, %v3269
        %v3360 = vadd.f32 %v2958, %v3271
        %v3361 = vadd.f32 %v2959, %v3275
        %v3362 = vadd.f32 %v2960, %v3277
        %v3363 = vadd.f32 %v2961, %v3279
        %v3364 = vadd.f32 %v2962, %v3281
        %v3365 = vadd.f32 %v2963, %v3285
        %v3366 = vadd.f32 %v2964, %v3287
        %v3367 = vadd.f32 %v2965, %v3289
        %v3368 = vadd.f32 %v2966, %v3291
        %v3369 = vadd.f32 %v2967, %v3295
        %v3370 = vadd.f32 %v2968, %v3297
        %v3371 = vadd.f32 %v2969, %v3299
        %v3372 = vadd.f32 %v2970, %v3301
        %v3373 = vadd.f32 %v2971, %v3305
        %v3374 = vadd.f32 %v2972, %v3307
        %v3375 = vadd.f32 %v2973, %v3309
        %v3376 = vadd.f32 %v2974, %v3311
        %v3377 = vld [vmem:[%s2572 + $0x2] sm:$0xff]
        %v3378 = vld [vmem:[%s2572 + $0xa] sm:$0xff]
        %v3379 = vld [vmem:[%s2572 + $0x1a] sm:$0xff]
        %v3380 = vld [vmem:[%s2572 + $0x22] sm:$0xff]
        %v3381 = vld [vmem:[%s2572 + $0x32] sm:$0xff]
        %v3382 = vld [vmem:[%s2572 + $0x3a] sm:$0xff]
        %v3383 = vld [vmem:[%s2572 + $0x4a] sm:$0xff]
        %v3384 = vld [vmem:[%s2572 + $0x52] sm:$0xff]
        %v3385 = vld [vmem:[%s2572 + $0x62] sm:$0xff]
        %v3386 = vld [vmem:[%s2572 + $0x6a] sm:$0xff]
        %v3387 = vld [vmem:[%s2572 + $0x7a] sm:$0xff]
        %v3388 = vld [vmem:[%s2572 + $0x82] sm:$0xff]
        %v3389 = vld [vmem:[%s2572 + $0x92] sm:$0xff]
        %v3390 = vld [vmem:[%s2572 + $0x9a] sm:$0xff]
        %v3391 = vld [vmem:[%s2572 + $0xaa] sm:$0xff]
        %v3392 = vld [vmem:[%s2572 + $0xb2] sm:$0xff]
        %v3393 = vld [vmem:[%s2572 + $0xc2] sm:$0xff]
        %v3394 = vld [vmem:[%s2572 + $0xca] sm:$0xff]
        %v3395 = vld [vmem:[%s2572 + $0xda] sm:$0xff]
        %v3396 = vld [vmem:[%s2572 + $0xe2] sm:$0xff]
        %v3397 = vld [vmem:[%s2572 + $0xf2] sm:$0xff]
        %v3398 = vld [vmem:[%s2572 + $0xfa] sm:$0xff]
        %v3399 = vld [vmem:[%s2572 + $0x10a] sm:$0xff]
        %v3400 = vld [vmem:[%s2572 + $0x112] sm:$0xff]
        %v3401 = vld [vmem:[%s2572 + $0x122] sm:$0xff]
        %v3402 = vld [vmem:[%s2572 + $0x12a] sm:$0xff]
        %v3403 = vld [vmem:[%s2572 + $0x13a] sm:$0xff]
        %v3404 = vld [vmem:[%s2572 + $0x142] sm:$0xff]
        %v3405 = vld [vmem:[%s2572 + $0x152] sm:$0xff]
        %v3406 = vld [vmem:[%s2572 + $0x15a] sm:$0xff]
        %v3407 = vld [vmem:[%s2572 + $0x16a] sm:$0xff]
        %v3408 = vld [vmem:[%s2572 + $0x172] sm:$0xff]
        %v3409 = vpack.c.bf16 %v3378, %v3377
        %v3410 = vpack.c.bf16 %v3380, %v3379
        %v3411 = vpack.c.bf16 %v3382, %v3381
        %v3412 = vpack.c.bf16 %v3384, %v3383
        %v3413 = vpack.c.bf16 %v3386, %v3385
        %v3414 = vpack.c.bf16 %v3388, %v3387
        %v3415 = vpack.c.bf16 %v3390, %v3389
        %v3416 = vpack.c.bf16 %v3392, %v3391
        %v3417 = vpack.c.bf16 %v3394, %v3393
        %v3418 = vpack.c.bf16 %v3396, %v3395
        %v3419 = vpack.c.bf16 %v3398, %v3397
        %v3420 = vpack.c.bf16 %v3400, %v3399
        %v3421 = vpack.c.bf16 %v3402, %v3401
        %v3422 = vpack.c.bf16 %v3404, %v3403
        %v3423 = vpack.c.bf16 %v3406, %v3405
        %v3424 = vpack.c.bf16 %v3408, %v3407
        %s3425 = scalar_lea.vmem %s1, 1024
        %v3426 = vld [vmem:[%s3425] sm:$0xff]
        %v3427 = vld [vmem:[%s3425 + $0x8] sm:$0xff]
        %v3428 = vld [vmem:[%s3425 + $0x10] sm:$0xff]
        %v3429 = vld [vmem:[%s3425 + $0x18] sm:$0xff]
        %v3430 = vld [vmem:[%s3425 + $0x20] sm:$0xff]
        %v3431 = vld [vmem:[%s3425 + $0x28] sm:$0xff]
        %v3432 = vld [vmem:[%s3425 + $0x30] sm:$0xff]
        %v3433 = vld [vmem:[%s3425 + $0x38] sm:$0xff]
        %v3434 = vld [vmem:[%s3425 + $0x40] sm:$0xff]
        %v3435 = vld [vmem:[%s3425 + $0x48] sm:$0xff]
        %v3436 = vld [vmem:[%s3425 + $0x50] sm:$0xff]
        %v3437 = vld [vmem:[%s3425 + $0x58] sm:$0xff]
        %v3438 = vld [vmem:[%s3425 + $0x60] sm:$0xff]
        %v3439 = vld [vmem:[%s3425 + $0x68] sm:$0xff]
        %v3440 = vld [vmem:[%s3425 + $0x70] sm:$0xff]
        %v3441 = vld [vmem:[%s3425 + $0x78] sm:$0xff]
        %v3458 = vunpack.c.l.b16 %v3426
        %v3459 = vunpack.c.h.b16 %v3426
        %v3460 = vunpack.c.l.b16 %v3427
        %v3461 = vunpack.c.h.b16 %v3427
        %v3462 = vunpack.c.l.b16 %v3428
        %v3463 = vunpack.c.h.b16 %v3428
        %v3464 = vunpack.c.l.b16 %v3429
        %v3465 = vunpack.c.h.b16 %v3429
        %v3466 = vunpack.c.l.b16 %v3430
        %v3467 = vunpack.c.h.b16 %v3430
        %v3468 = vunpack.c.l.b16 %v3431
        %v3469 = vunpack.c.h.b16 %v3431
        %v3470 = vunpack.c.l.b16 %v3432
        %v3471 = vunpack.c.h.b16 %v3432
        %v3472 = vunpack.c.l.b16 %v3433
        %v3473 = vunpack.c.h.b16 %v3433
        %v3474 = vunpack.c.l.b16 %v3434
        %v3475 = vunpack.c.h.b16 %v3434
        %v3476 = vunpack.c.l.b16 %v3435
        %v3477 = vunpack.c.h.b16 %v3435
        %v3478 = vunpack.c.l.b16 %v3436
        %v3479 = vunpack.c.h.b16 %v3436
        %v3480 = vunpack.c.l.b16 %v3437
        %v3481 = vunpack.c.h.b16 %v3437
        %v3482 = vunpack.c.l.b16 %v3438
        %v3483 = vunpack.c.h.b16 %v3438
        %v3484 = vunpack.c.l.b16 %v3439
        %v3485 = vunpack.c.h.b16 %v3439
        %v3486 = vunpack.c.l.b16 %v3440
        %v3487 = vunpack.c.h.b16 %v3440
        %v3488 = vunpack.c.l.b16 %v3441
        %v3489 = vunpack.c.h.b16 %v3441
        %v3490 = vpack.c.b16 %v3460, %v3458
        %v3491 = vpack.c.b16 %v3461, %v3459
        %v3492 = vpack.c.b16 %v3464, %v3462
        %v3493 = vpack.c.b16 %v3465, %v3463
        %v3494 = vpack.c.b16 %v3468, %v3466
        %v3495 = vpack.c.b16 %v3469, %v3467
        %v3496 = vpack.c.b16 %v3472, %v3470
        %v3497 = vpack.c.b16 %v3473, %v3471
        %v3498 = vpack.c.b16 %v3476, %v3474
        %v3499 = vpack.c.b16 %v3477, %v3475
        %v3500 = vpack.c.b16 %v3480, %v3478
        %v3501 = vpack.c.b16 %v3481, %v3479
        %v3502 = vpack.c.b16 %v3484, %v3482
        %v3503 = vpack.c.b16 %v3485, %v3483
        %v3504 = vpack.c.b16 %v3488, %v3486
        %v3505 = vpack.c.b16 %v3489, %v3487
        %3522 = vmatprep.subr.bf16.mxu0 %v3505
        %3523 = vmatpush1.bf16.msra.mxu0 %v3504
        %3524 = vmatprep.subr.bf16.mxu0 %v3503
        %3525 = vmatpush1.bf16.msra.mxu0 %v3502
        %3526 = vmatprep.subr.bf16.mxu0 %v3501
        %3527 = vmatpush1.bf16.msra.mxu0 %v3500
        %3528 = vmatprep.subr.bf16.mxu0 %v3499
        %3529 = vmatpush1.bf16.msra.mxu0 %v3498
        %3530 = vmatprep.subr.bf16.mxu0 %v3497
        %3531 = vmatpush1.bf16.msra.mxu0 %v3496
        %3532 = vmatprep.subr.bf16.mxu0 %v3495
        %3533 = vmatpush1.bf16.msra.mxu0 %v3494
        %3534 = vmatprep.subr.bf16.mxu0 %v3493
        %3535 = vmatpush1.bf16.msra.mxu0 %v3492
        %3536 = vmatprep.subr.bf16.mxu0 %v3491
        %3537 = vmatpush1.bf16.msra.mxu0 %v3490
        %3538 = vmatprep.subr.bf16.mxu0 0
        %3539 = vmatpush2.bf16.msra.mxu0 0
        %3540 = vmatprep.subr.bf16.mxu0 0
        %3541 = vmatpush2.bf16.msra.mxu0 0
        %3542 = vmatprep.subr.bf16.mxu0 0
        %3543 = vmatpush2.bf16.msra.mxu0 0
        %3544 = vmatprep.subr.bf16.mxu0 0
        %3545 = vmatpush2.bf16.msra.mxu0 0
        %3546 = vmatprep.subr.bf16.mxu0 0
        %3547 = vmatpush2.bf16.msra.mxu0 0
        %3548 = vmatprep.subr.bf16.mxu0 0
        %3549 = vmatpush2.bf16.msra.mxu0 0
        %3550 = vmatprep.subr.bf16.mxu0 0
        %3551 = vmatpush2.bf16.msra.mxu0 0
        %3552 = vmatprep.subr.bf16.mxu0 0
        %3553 = vmatpush2.bf16.msra.mxu0 0
        %3554 = vmatprep.mubr.bf16.mxu0 0
        %3555 = vmatmul.mubr.bf16.gmra.mxu0 %v3409
        %v3556 = vpop.f32.mrf.mxu0
        %v3557 = vadd.f32 0.0, %v3556
        %v3558 = vpop.f32.mrf.mxu0
        %v3559 = vadd.f32 0.0, %v3558
        %v3560 = vpop.f32.mrf.mxu0
        %v3561 = vadd.f32 0.0, %v3560
        %v3562 = vpop.f32.mrf.mxu0
        %v3563 = vadd.f32 0.0, %v3562
        %3564 = vmatprep.mubr.bf16.mxu0 0
        %3565 = vmatmul.mubr.bf16.gmra.mxu0 %v3410
        %v3566 = vpop.f32.mrf.mxu0
        %v3567 = vadd.f32 0.0, %v3566
        %v3568 = vpop.f32.mrf.mxu0
        %v3569 = vadd.f32 0.0, %v3568
        %v3570 = vpop.f32.mrf.mxu0
        %v3571 = vadd.f32 0.0, %v3570
        %v3572 = vpop.f32.mrf.mxu0
        %v3573 = vadd.f32 0.0, %v3572
        %3574 = vmatprep.mubr.bf16.mxu0 0
        %3575 = vmatmul.mubr.bf16.gmra.mxu0 %v3411
        %v3576 = vpop.f32.mrf.mxu0
        %v3577 = vadd.f32 0.0, %v3576
        %v3578 = vpop.f32.mrf.mxu0
        %v3579 = vadd.f32 0.0, %v3578
        %v3580 = vpop.f32.mrf.mxu0
        %v3581 = vadd.f32 0.0, %v3580
        %v3582 = vpop.f32.mrf.mxu0
        %v3583 = vadd.f32 0.0, %v3582
        %3584 = vmatprep.mubr.bf16.mxu0 0
        %3585 = vmatmul.mubr.bf16.gmra.mxu0 %v3412
        %v3586 = vpop.f32.mrf.mxu0
        %v3587 = vadd.f32 0.0, %v3586
        %v3588 = vpop.f32.mrf.mxu0
        %v3589 = vadd.f32 0.0, %v3588
        %v3590 = vpop.f32.mrf.mxu0
        %v3591 = vadd.f32 0.0, %v3590
        %v3592 = vpop.f32.mrf.mxu0
        %v3593 = vadd.f32 0.0, %v3592
        %3594 = vmatprep.mubr.bf16.mxu0 0
        %3595 = vmatmul.mubr.bf16.gmra.mxu0 %v3413
        %v3596 = vpop.f32.mrf.mxu0
        %v3597 = vadd.f32 0.0, %v3596
        %v3598 = vpop.f32.mrf.mxu0
        %v3599 = vadd.f32 0.0, %v3598
        %v3600 = vpop.f32.mrf.mxu0
        %v3601 = vadd.f32 0.0, %v3600
        %v3602 = vpop.f32.mrf.mxu0
        %v3603 = vadd.f32 0.0, %v3602
        %3604 = vmatprep.mubr.bf16.mxu0 0
        %3605 = vmatmul.mubr.bf16.gmra.mxu0 %v3414
        %v3606 = vpop.f32.mrf.mxu0
        %v3607 = vadd.f32 0.0, %v3606
        %v3608 = vpop.f32.mrf.mxu0
        %v3609 = vadd.f32 0.0, %v3608
        %v3610 = vpop.f32.mrf.mxu0
        %v3611 = vadd.f32 0.0, %v3610
        %v3612 = vpop.f32.mrf.mxu0
        %v3613 = vadd.f32 0.0, %v3612
        %3614 = vmatprep.mubr.bf16.mxu0 0
        %3615 = vmatmul.mubr.bf16.gmra.mxu0 %v3415
        %v3616 = vpop.f32.mrf.mxu0
        %v3617 = vadd.f32 0.0, %v3616
        %v3618 = vpop.f32.mrf.mxu0
        %v3619 = vadd.f32 0.0, %v3618
        %v3620 = vpop.f32.mrf.mxu0
        %v3621 = vadd.f32 0.0, %v3620
        %v3622 = vpop.f32.mrf.mxu0
        %v3623 = vadd.f32 0.0, %v3622
        %3624 = vmatprep.mubr.bf16.mxu0 0
        %3625 = vmatmul.mubr.bf16.gmra.mxu0 %v3416
        %v3626 = vpop.f32.mrf.mxu0
        %v3627 = vadd.f32 0.0, %v3626
        %v3628 = vpop.f32.mrf.mxu0
        %v3629 = vadd.f32 0.0, %v3628
        %v3630 = vpop.f32.mrf.mxu0
        %v3631 = vadd.f32 0.0, %v3630
        %v3632 = vpop.f32.mrf.mxu0
        %v3633 = vadd.f32 0.0, %v3632
        %3634 = vmatprep.mubr.bf16.mxu0 0
        %3635 = vmatmul.mubr.bf16.gmra.mxu0 %v3417
        %v3636 = vpop.f32.mrf.mxu0
        %v3637 = vadd.f32 0.0, %v3636
        %v3638 = vpop.f32.mrf.mxu0
        %v3639 = vadd.f32 0.0, %v3638
        %v3640 = vpop.f32.mrf.mxu0
        %v3641 = vadd.f32 0.0, %v3640
        %v3642 = vpop.f32.mrf.mxu0
        %v3643 = vadd.f32 0.0, %v3642
        %3644 = vmatprep.mubr.bf16.mxu0 0
        %3645 = vmatmul.mubr.bf16.gmra.mxu0 %v3418
        %v3646 = vpop.f32.mrf.mxu0
        %v3647 = vadd.f32 0.0, %v3646
        %v3648 = vpop.f32.mrf.mxu0
        %v3649 = vadd.f32 0.0, %v3648
        %v3650 = vpop.f32.mrf.mxu0
        %v3651 = vadd.f32 0.0, %v3650
        %v3652 = vpop.f32.mrf.mxu0
        %v3653 = vadd.f32 0.0, %v3652
        %3654 = vmatprep.mubr.bf16.mxu0 0
        %3655 = vmatmul.mubr.bf16.gmra.mxu0 %v3419
        %v3656 = vpop.f32.mrf.mxu0
        %v3657 = vadd.f32 0.0, %v3656
        %v3658 = vpop.f32.mrf.mxu0
        %v3659 = vadd.f32 0.0, %v3658
        %v3660 = vpop.f32.mrf.mxu0
        %v3661 = vadd.f32 0.0, %v3660
        %v3662 = vpop.f32.mrf.mxu0
        %v3663 = vadd.f32 0.0, %v3662
        %3664 = vmatprep.mubr.bf16.mxu0 0
        %3665 = vmatmul.mubr.bf16.gmra.mxu0 %v3420
        %v3666 = vpop.f32.mrf.mxu0
        %v3667 = vadd.f32 0.0, %v3666
        %v3668 = vpop.f32.mrf.mxu0
        %v3669 = vadd.f32 0.0, %v3668
        %v3670 = vpop.f32.mrf.mxu0
        %v3671 = vadd.f32 0.0, %v3670
        %v3672 = vpop.f32.mrf.mxu0
        %v3673 = vadd.f32 0.0, %v3672
        %3674 = vmatprep.mubr.bf16.mxu0 0
        %3675 = vmatmul.mubr.bf16.gmra.mxu0 %v3421
        %v3676 = vpop.f32.mrf.mxu0
        %v3677 = vadd.f32 0.0, %v3676
        %v3678 = vpop.f32.mrf.mxu0
        %v3679 = vadd.f32 0.0, %v3678
        %v3680 = vpop.f32.mrf.mxu0
        %v3681 = vadd.f32 0.0, %v3680
        %v3682 = vpop.f32.mrf.mxu0
        %v3683 = vadd.f32 0.0, %v3682
        %3684 = vmatprep.mubr.bf16.mxu0 0
        %3685 = vmatmul.mubr.bf16.gmra.mxu0 %v3422
        %v3686 = vpop.f32.mrf.mxu0
        %v3687 = vadd.f32 0.0, %v3686
        %v3688 = vpop.f32.mrf.mxu0
        %v3689 = vadd.f32 0.0, %v3688
        %v3690 = vpop.f32.mrf.mxu0
        %v3691 = vadd.f32 0.0, %v3690
        %v3692 = vpop.f32.mrf.mxu0
        %v3693 = vadd.f32 0.0, %v3692
        %3694 = vmatprep.mubr.bf16.mxu0 0
        %3695 = vmatmul.mubr.bf16.gmra.mxu0 %v3423
        %v3696 = vpop.f32.mrf.mxu0
        %v3697 = vadd.f32 0.0, %v3696
        %v3698 = vpop.f32.mrf.mxu0
        %v3699 = vadd.f32 0.0, %v3698
        %v3700 = vpop.f32.mrf.mxu0
        %v3701 = vadd.f32 0.0, %v3700
        %v3702 = vpop.f32.mrf.mxu0
        %v3703 = vadd.f32 0.0, %v3702
        %3704 = vmatprep.mubr.bf16.mxu0 0
        %3705 = vmatmul.mubr.bf16.gmra.mxu0 %v3424
        %v3706 = vpop.f32.mrf.mxu0
        %v3707 = vadd.f32 0.0, %v3706
        %v3708 = vpop.f32.mrf.mxu0
        %v3709 = vadd.f32 0.0, %v3708
        %v3710 = vpop.f32.mrf.mxu0
        %v3711 = vadd.f32 0.0, %v3710
        %v3712 = vpop.f32.mrf.mxu0
        %v3713 = vadd.f32 0.0, %v3712
        %3714 = vdwg.mxu0
        %v3715 = vadd.f32 %v3313, %v3557
        %v3716 = vadd.f32 %v3314, %v3559
        %v3717 = vadd.f32 %v3315, %v3561
        %v3718 = vadd.f32 %v3316, %v3563
        %v3719 = vadd.f32 %v3317, %v3567
        %v3720 = vadd.f32 %v3318, %v3569
        %v3721 = vadd.f32 %v3319, %v3571
        %v3722 = vadd.f32 %v3320, %v3573
        %v3723 = vadd.f32 %v3321, %v3577
        %v3724 = vadd.f32 %v3322, %v3579
        %v3725 = vadd.f32 %v3323, %v3581
        %v3726 = vadd.f32 %v3324, %v3583
        %v3727 = vadd.f32 %v3325, %v3587
        %v3728 = vadd.f32 %v3326, %v3589
        %v3729 = vadd.f32 %v3327, %v3591
        %v3730 = vadd.f32 %v3328, %v3593
        %v3731 = vadd.f32 %v3329, %v3597
        %v3732 = vadd.f32 %v3330, %v3599
        %v3733 = vadd.f32 %v3331, %v3601
        %v3734 = vadd.f32 %v3332, %v3603
        %v3735 = vadd.f32 %v3333, %v3607
        %v3736 = vadd.f32 %v3334, %v3609
        %v3737 = vadd.f32 %v3335, %v3611
        %v3738 = vadd.f32 %v3336, %v3613
        %v3739 = vadd.f32 %v3337, %v3617
        %v3740 = vadd.f32 %v3338, %v3619
        %v3741 = vadd.f32 %v3339, %v3621
        %v3742 = vadd.f32 %v3340, %v3623
        %v3743 = vadd.f32 %v3341, %v3627
        %v3744 = vadd.f32 %v3342, %v3629
        %v3745 = vadd.f32 %v3343, %v3631
        %v3746 = vadd.f32 %v3344, %v3633
        %v3747 = vadd.f32 %v3345, %v3637
        %v3748 = vadd.f32 %v3346, %v3639
        %v3749 = vadd.f32 %v3347, %v3641
        %v3750 = vadd.f32 %v3348, %v3643
        %v3751 = vadd.f32 %v3349, %v3647
        %v3752 = vadd.f32 %v3350, %v3649
        %v3753 = vadd.f32 %v3351, %v3651
        %v3754 = vadd.f32 %v3352, %v3653
        %v3755 = vadd.f32 %v3353, %v3657
        %v3756 = vadd.f32 %v3354, %v3659
        %v3757 = vadd.f32 %v3355, %v3661
        %v3758 = vadd.f32 %v3356, %v3663
        %v3759 = vadd.f32 %v3357, %v3667
        %v3760 = vadd.f32 %v3358, %v3669
        %v3761 = vadd.f32 %v3359, %v3671
        %v3762 = vadd.f32 %v3360, %v3673
        %v3763 = vadd.f32 %v3361, %v3677
        %v3764 = vadd.f32 %v3362, %v3679
        %v3765 = vadd.f32 %v3363, %v3681
        %v3766 = vadd.f32 %v3364, %v3683
        %v3767 = vadd.f32 %v3365, %v3687
        %v3768 = vadd.f32 %v3366, %v3689
        %v3769 = vadd.f32 %v3367, %v3691
        %v3770 = vadd.f32 %v3368, %v3693
        %v3771 = vadd.f32 %v3369, %v3697
        %v3772 = vadd.f32 %v3370, %v3699
        %v3773 = vadd.f32 %v3371, %v3701
        %v3774 = vadd.f32 %v3372, %v3703
        %v3775 = vadd.f32 %v3373, %v3707
        %v3776 = vadd.f32 %v3374, %v3709
        %v3777 = vadd.f32 %v3375, %v3711
        %v3778 = vadd.f32 %v3376, %v3713
        %v3779 = vadd.f32 %v3715, %v3717
        %v3780 = vadd.f32 %v3779, %v3719
        %v3781 = vadd.f32 %v3780, %v3721
        %v3782 = vadd.f32 %v3781, %v3723
        %v3783 = vadd.f32 %v3782, %v3725
        %v3784 = vadd.f32 %v3783, %v3727
        %v3785 = vadd.f32 %v3784, %v3729
        %v3786 = vadd.f32 %v3785, %v3731
        %v3787 = vadd.f32 %v3786, %v3733
        %v3788 = vadd.f32 %v3787, %v3735
        %v3789 = vadd.f32 %v3788, %v3737
        %v3790 = vadd.f32 %v3789, %v3739
        %v3791 = vadd.f32 %v3790, %v3741
        %v3792 = vadd.f32 %v3791, %v3743
        %v3793 = vadd.f32 %v3792, %v3745
        %v3794 = vadd.f32 %v3793, %v3747
        %v3795 = vadd.f32 %v3794, %v3749
        %v3796 = vadd.f32 %v3795, %v3751
        %v3797 = vadd.f32 %v3796, %v3753
        %v3798 = vadd.f32 %v3797, %v3755
        %v3799 = vadd.f32 %v3798, %v3757
        %v3800 = vadd.f32 %v3799, %v3759
        %v3801 = vadd.f32 %v3800, %v3761
        %v3802 = vadd.f32 %v3801, %v3763
        %v3803 = vadd.f32 %v3802, %v3765
        %v3804 = vadd.f32 %v3803, %v3767
        %v3805 = vadd.f32 %v3804, %v3769
        %v3806 = vadd.f32 %v3805, %v3771
        %v3807 = vadd.f32 %v3806, %v3773
        %v3808 = vadd.f32 %v3807, %v3775
        %v3809 = vadd.f32 %v3808, %v3777
        %v3810 = vrot.slane %v3809, 4
        %v3811 = vadd.f32 %v3809, %v3810
        %v3812 = vrot.slane %v3811, 2
        %v3813 = vadd.f32 %v3811, %v3812
        %v3814 = vrot.slane %v3813, 1
        %v3815 = vadd.f32 %v3813, %v3814
        %v3816 = vadd.f32 %v3716, %v3718
        %v3817 = vadd.f32 %v3816, %v3720
        %v3818 = vadd.f32 %v3817, %v3722
        %v3819 = vadd.f32 %v3818, %v3724
        %v3820 = vadd.f32 %v3819, %v3726
        %v3821 = vadd.f32 %v3820, %v3728
        %v3822 = vadd.f32 %v3821, %v3730
        %v3823 = vadd.f32 %v3822, %v3732
        %v3824 = vadd.f32 %v3823, %v3734
        %v3825 = vadd.f32 %v3824, %v3736
        %v3826 = vadd.f32 %v3825, %v3738
        %v3827 = vadd.f32 %v3826, %v3740
        %v3828 = vadd.f32 %v3827, %v3742
        %v3829 = vadd.f32 %v3828, %v3744
        %v3830 = vadd.f32 %v3829, %v3746
        %v3831 = vadd.f32 %v3830, %v3748
        %v3832 = vadd.f32 %v3831, %v3750
        %v3833 = vadd.f32 %v3832, %v3752
        %v3834 = vadd.f32 %v3833, %v3754
        %v3835 = vadd.f32 %v3834, %v3756
        %v3836 = vadd.f32 %v3835, %v3758
        %v3837 = vadd.f32 %v3836, %v3760
        %v3838 = vadd.f32 %v3837, %v3762
        %v3839 = vadd.f32 %v3838, %v3764
        %v3840 = vadd.f32 %v3839, %v3766
        %v3841 = vadd.f32 %v3840, %v3768
        %v3842 = vadd.f32 %v3841, %v3770
        %v3843 = vadd.f32 %v3842, %v3772
        %v3844 = vadd.f32 %v3843, %v3774
        %v3845 = vadd.f32 %v3844, %v3776
        %v3846 = vadd.f32 %v3845, %v3778
        %v3847 = vrot.slane %v3846, 4
        %v3848 = vadd.f32 %v3846, %v3847
        %v3849 = vrot.slane %v3848, 2
        %v3850 = vadd.f32 %v3848, %v3849
        %v3851 = vrot.slane %v3850, 1
        %v3852 = vadd.f32 %v3850, %v3851
        %v3853 = vrcp.pop 256.0
        %v3854 = vmul.f32 %v3815, %v3853
        %v3855 = vmul.f32 %v3852, %v3853
        %v3856 = vsub.f32 %v3715, %v3854
        %v3857 = vsub.f32 %v3716, %v3855
        %v3858 = vsub.f32 %v3717, %v3854
        %v3859 = vsub.f32 %v3718, %v3855
        %v3860 = vsub.f32 %v3719, %v3854
        %v3861 = vsub.f32 %v3720, %v3855
        %v3862 = vsub.f32 %v3721, %v3854
        %v3863 = vsub.f32 %v3722, %v3855
        %v3864 = vsub.f32 %v3723, %v3854
        %v3865 = vsub.f32 %v3724, %v3855
        %v3866 = vsub.f32 %v3725, %v3854
        %v3867 = vsub.f32 %v3726, %v3855
        %v3868 = vsub.f32 %v3727, %v3854
        %v3869 = vsub.f32 %v3728, %v3855
        %v3870 = vsub.f32 %v3729, %v3854
        %v3871 = vsub.f32 %v3730, %v3855
        %v3872 = vsub.f32 %v3731, %v3854
        %v3873 = vsub.f32 %v3732, %v3855
        %v3874 = vsub.f32 %v3733, %v3854
        %v3875 = vsub.f32 %v3734, %v3855
        %v3876 = vsub.f32 %v3735, %v3854
        %v3877 = vsub.f32 %v3736, %v3855
        %v3878 = vsub.f32 %v3737, %v3854
        %v3879 = vsub.f32 %v3738, %v3855
        %v3880 = vsub.f32 %v3739, %v3854
        %v3881 = vsub.f32 %v3740, %v3855
        %v3882 = vsub.f32 %v3741, %v3854
        %v3883 = vsub.f32 %v3742, %v3855
        %v3884 = vsub.f32 %v3743, %v3854
        %v3885 = vsub.f32 %v3744, %v3855
        %v3886 = vsub.f32 %v3745, %v3854
        %v3887 = vsub.f32 %v3746, %v3855
        %v3888 = vsub.f32 %v3747, %v3854
        %v3889 = vsub.f32 %v3748, %v3855
        %v3890 = vsub.f32 %v3749, %v3854
        %v3891 = vsub.f32 %v3750, %v3855
        %v3892 = vsub.f32 %v3751, %v3854
        %v3893 = vsub.f32 %v3752, %v3855
        %v3894 = vsub.f32 %v3753, %v3854
        %v3895 = vsub.f32 %v3754, %v3855
        %v3896 = vsub.f32 %v3755, %v3854
        %v3897 = vsub.f32 %v3756, %v3855
        %v3898 = vsub.f32 %v3757, %v3854
        %v3899 = vsub.f32 %v3758, %v3855
        %v3900 = vsub.f32 %v3759, %v3854
        %v3901 = vsub.f32 %v3760, %v3855
        %v3902 = vsub.f32 %v3761, %v3854
        %v3903 = vsub.f32 %v3762, %v3855
        %v3904 = vsub.f32 %v3763, %v3854
        %v3905 = vsub.f32 %v3764, %v3855
        %v3906 = vsub.f32 %v3765, %v3854
        %v3907 = vsub.f32 %v3766, %v3855
        %v3908 = vsub.f32 %v3767, %v3854
        %v3909 = vsub.f32 %v3768, %v3855
        %v3910 = vsub.f32 %v3769, %v3854
        %v3911 = vsub.f32 %v3770, %v3855
        %v3912 = vsub.f32 %v3771, %v3854
        %v3913 = vsub.f32 %v3772, %v3855
        %v3914 = vsub.f32 %v3773, %v3854
        %v3915 = vsub.f32 %v3774, %v3855
        %v3916 = vsub.f32 %v3775, %v3854
        %v3917 = vsub.f32 %v3776, %v3855
        %v3918 = vsub.f32 %v3777, %v3854
        %v3919 = vsub.f32 %v3778, %v3855
        %v3920 = vmul.f32 %v3856, %v3856
        %v3921 = vmul.f32 %v3857, %v3857
        %v3922 = vmul.f32 %v3858, %v3858
        %v3923 = vmul.f32 %v3859, %v3859
        %v3924 = vmul.f32 %v3860, %v3860
        %v3925 = vmul.f32 %v3861, %v3861
        %v3926 = vmul.f32 %v3862, %v3862
        %v3927 = vmul.f32 %v3863, %v3863
        %v3928 = vmul.f32 %v3864, %v3864
        %v3929 = vmul.f32 %v3865, %v3865
        %v3930 = vmul.f32 %v3866, %v3866
        %v3931 = vmul.f32 %v3867, %v3867
        %v3932 = vmul.f32 %v3868, %v3868
        %v3933 = vmul.f32 %v3869, %v3869
        %v3934 = vmul.f32 %v3870, %v3870
        %v3935 = vmul.f32 %v3871, %v3871
        %v3936 = vmul.f32 %v3872, %v3872
        %v3937 = vmul.f32 %v3873, %v3873
        %v3938 = vmul.f32 %v3874, %v3874
        %v3939 = vmul.f32 %v3875, %v3875
        %v3940 = vmul.f32 %v3876, %v3876
        %v3941 = vmul.f32 %v3877, %v3877
        %v3942 = vmul.f32 %v3878, %v3878
        %v3943 = vmul.f32 %v3879, %v3879
        %v3944 = vmul.f32 %v3880, %v3880
        %v3945 = vmul.f32 %v3881, %v3881
        %v3946 = vmul.f32 %v3882, %v3882
        %v3947 = vmul.f32 %v3883, %v3883
        %v3948 = vmul.f32 %v3884, %v3884
        %v3949 = vmul.f32 %v3885, %v3885
        %v3950 = vmul.f32 %v3886, %v3886
        %v3951 = vmul.f32 %v3887, %v3887
        %v3952 = vmul.f32 %v3888, %v3888
        %v3953 = vmul.f32 %v3889, %v3889
        %v3954 = vmul.f32 %v3890, %v3890
        %v3955 = vmul.f32 %v3891, %v3891
        %v3956 = vmul.f32 %v3892, %v3892
        %v3957 = vmul.f32 %v3893, %v3893
        %v3958 = vmul.f32 %v3894, %v3894
        %v3959 = vmul.f32 %v3895, %v3895
        %v3960 = vmul.f32 %v3896, %v3896
        %v3961 = vmul.f32 %v3897, %v3897
        %v3962 = vmul.f32 %v3898, %v3898
        %v3963 = vmul.f32 %v3899, %v3899
        %v3964 = vmul.f32 %v3900, %v3900
        %v3965 = vmul.f32 %v3901, %v3901
        %v3966 = vmul.f32 %v3902, %v3902
        %v3967 = vmul.f32 %v3903, %v3903
        %v3968 = vmul.f32 %v3904, %v3904
        %v3969 = vmul.f32 %v3905, %v3905
        %v3970 = vmul.f32 %v3906, %v3906
        %v3971 = vmul.f32 %v3907, %v3907
        %v3972 = vmul.f32 %v3908, %v3908
        %v3973 = vmul.f32 %v3909, %v3909
        %v3974 = vmul.f32 %v3910, %v3910
        %v3975 = vmul.f32 %v3911, %v3911
        %v3976 = vmul.f32 %v3912, %v3912
        %v3977 = vmul.f32 %v3913, %v3913
        %v3978 = vmul.f32 %v3914, %v3914
        %v3979 = vmul.f32 %v3915, %v3915
        %v3980 = vmul.f32 %v3916, %v3916
        %v3981 = vmul.f32 %v3917, %v3917
        %v3982 = vmul.f32 %v3918, %v3918
        %v3983 = vmul.f32 %v3919, %v3919
        %v3984 = vadd.f32 %v3920, %v3922
        %v3985 = vadd.f32 %v3984, %v3924
        %v3986 = vadd.f32 %v3985, %v3926
        %v3987 = vadd.f32 %v3986, %v3928
        %v3988 = vadd.f32 %v3987, %v3930
        %v3989 = vadd.f32 %v3988, %v3932
        %v3990 = vadd.f32 %v3989, %v3934
        %v3991 = vadd.f32 %v3990, %v3936
        %v3992 = vadd.f32 %v3991, %v3938
        %v3993 = vadd.f32 %v3992, %v3940
        %v3994 = vadd.f32 %v3993, %v3942
        %v3995 = vadd.f32 %v3994, %v3944
        %v3996 = vadd.f32 %v3995, %v3946
        %v3997 = vadd.f32 %v3996, %v3948
        %v3998 = vadd.f32 %v3997, %v3950
        %v3999 = vadd.f32 %v3998, %v3952
        %v4000 = vadd.f32 %v3999, %v3954
        %v4001 = vadd.f32 %v4000, %v3956
        %v4002 = vadd.f32 %v4001, %v3958
        %v4003 = vadd.f32 %v4002, %v3960
        %v4004 = vadd.f32 %v4003, %v3962
        %v4005 = vadd.f32 %v4004, %v3964
        %v4006 = vadd.f32 %v4005, %v3966
        %v4007 = vadd.f32 %v4006, %v3968
        %v4008 = vadd.f32 %v4007, %v3970
        %v4009 = vadd.f32 %v4008, %v3972
        %v4010 = vadd.f32 %v4009, %v3974
        %v4011 = vadd.f32 %v4010, %v3976
        %v4012 = vadd.f32 %v4011, %v3978
        %v4013 = vadd.f32 %v4012, %v3980
        %v4014 = vadd.f32 %v4013, %v3982
        %v4015 = vrot.slane %v4014, 4
        %v4016 = vadd.f32 %v4014, %v4015
        %v4017 = vrot.slane %v4016, 2
        %v4018 = vadd.f32 %v4016, %v4017
        %v4019 = vrot.slane %v4018, 1
        %v4020 = vadd.f32 %v4018, %v4019
        %v4021 = vadd.f32 %v3921, %v3923
        %v4022 = vadd.f32 %v4021, %v3925
        %v4023 = vadd.f32 %v4022, %v3927
        %v4024 = vadd.f32 %v4023, %v3929
        %v4025 = vadd.f32 %v4024, %v3931
        %v4026 = vadd.f32 %v4025, %v3933
        %v4027 = vadd.f32 %v4026, %v3935
        %v4028 = vadd.f32 %v4027, %v3937
        %v4029 = vadd.f32 %v4028, %v3939
        %v4030 = vadd.f32 %v4029, %v3941
        %v4031 = vadd.f32 %v4030, %v3943
        %v4032 = vadd.f32 %v4031, %v3945
        %v4033 = vadd.f32 %v4032, %v3947
        %v4034 = vadd.f32 %v4033, %v3949
        %v4035 = vadd.f32 %v4034, %v3951
        %v4036 = vadd.f32 %v4035, %v3953
        %v4037 = vadd.f32 %v4036, %v3955
        %v4038 = vadd.f32 %v4037, %v3957
        %v4039 = vadd.f32 %v4038, %v3959
        %v4040 = vadd.f32 %v4039, %v3961
        %v4041 = vadd.f32 %v4040, %v3963
        %v4042 = vadd.f32 %v4041, %v3965
        %v4043 = vadd.f32 %v4042, %v3967
        %v4044 = vadd.f32 %v4043, %v3969
        %v4045 = vadd.f32 %v4044, %v3971
        %v4046 = vadd.f32 %v4045, %v3973
        %v4047 = vadd.f32 %v4046, %v3975
        %v4048 = vadd.f32 %v4047, %v3977
        %v4049 = vadd.f32 %v4048, %v3979
        %v4050 = vadd.f32 %v4049, %v3981
        %v4051 = vadd.f32 %v4050, %v3983
        %v4052 = vrot.slane %v4051, 4
        %v4053 = vadd.f32 %v4051, %v4052
        %v4054 = vrot.slane %v4053, 2
        %v4055 = vadd.f32 %v4053, %v4054
        %v4056 = vrot.slane %v4055, 1
        %v4057 = vadd.f32 %v4055, %v4056
        %v4058 = vmul.f32 %v4020, %v3853
        %v4059 = vmul.f32 %v4057, %v3853
        %v4060 = vadd.f32 %v4058, 1e-05
        %v4061 = vadd.f32 %v4059, 1e-05
        %v4062 = vrsqrt.pop %v4060
        %v4063 = vrsqrt.pop %v4061
        %v4064 = vmul.f32 %v3856, %v4062
        %v4065 = vmul.f32 %v3857, %v4063
        %v4066 = vmul.f32 %v3858, %v4062
        %v4067 = vmul.f32 %v3859, %v4063
        %v4068 = vmul.f32 %v3860, %v4062
        %v4069 = vmul.f32 %v3861, %v4063
        %v4070 = vmul.f32 %v3862, %v4062
        %v4071 = vmul.f32 %v3863, %v4063
        %v4072 = vmul.f32 %v3864, %v4062
        %v4073 = vmul.f32 %v3865, %v4063
        %v4074 = vmul.f32 %v3866, %v4062
        %v4075 = vmul.f32 %v3867, %v4063
        %v4076 = vmul.f32 %v3868, %v4062
        %v4077 = vmul.f32 %v3869, %v4063
        %v4078 = vmul.f32 %v3870, %v4062
        %v4079 = vmul.f32 %v3871, %v4063
        %v4080 = vmul.f32 %v3872, %v4062
        %v4081 = vmul.f32 %v3873, %v4063
        %v4082 = vmul.f32 %v3874, %v4062
        %v4083 = vmul.f32 %v3875, %v4063
        %v4084 = vmul.f32 %v3876, %v4062
        %v4085 = vmul.f32 %v3877, %v4063
        %v4086 = vmul.f32 %v3878, %v4062
        %v4087 = vmul.f32 %v3879, %v4063
        %v4088 = vmul.f32 %v3880, %v4062
        %v4089 = vmul.f32 %v3881, %v4063
        %v4090 = vmul.f32 %v3882, %v4062
        %v4091 = vmul.f32 %v3883, %v4063
        %v4092 = vmul.f32 %v3884, %v4062
        %v4093 = vmul.f32 %v3885, %v4063
        %v4094 = vmul.f32 %v3886, %v4062
        %v4095 = vmul.f32 %v3887, %v4063
        %v4096 = vmul.f32 %v3888, %v4062
        %v4097 = vmul.f32 %v3889, %v4063
        %v4098 = vmul.f32 %v3890, %v4062
        %v4099 = vmul.f32 %v3891, %v4063
        %v4100 = vmul.f32 %v3892, %v4062
        %v4101 = vmul.f32 %v3893, %v4063
        %v4102 = vmul.f32 %v3894, %v4062
        %v4103 = vmul.f32 %v3895, %v4063
        %v4104 = vmul.f32 %v3896, %v4062
        %v4105 = vmul.f32 %v3897, %v4063
        %v4106 = vmul.f32 %v3898, %v4062
        %v4107 = vmul.f32 %v3899, %v4063
        %v4108 = vmul.f32 %v3900, %v4062
        %v4109 = vmul.f32 %v3901, %v4063
        %v4110 = vmul.f32 %v3902, %v4062
        %v4111 = vmul.f32 %v3903, %v4063
        %v4112 = vmul.f32 %v3904, %v4062
        %v4113 = vmul.f32 %v3905, %v4063
        %v4114 = vmul.f32 %v3906, %v4062
        %v4115 = vmul.f32 %v3907, %v4063
        %v4116 = vmul.f32 %v3908, %v4062
        %v4117 = vmul.f32 %v3909, %v4063
        %v4118 = vmul.f32 %v3910, %v4062
        %v4119 = vmul.f32 %v3911, %v4063
        %v4120 = vmul.f32 %v3912, %v4062
        %v4121 = vmul.f32 %v3913, %v4063
        %v4122 = vmul.f32 %v3914, %v4062
        %v4123 = vmul.f32 %v3915, %v4063
        %v4124 = vmul.f32 %v3916, %v4062
        %v4125 = vmul.f32 %v3917, %v4063
        %v4126 = vmul.f32 %v3918, %v4062
        %v4127 = vmul.f32 %v3919, %v4063
        %v4128 = vmax.f32 %v4064, 0.0
        %v4129 = vmax.f32 %v4065, 0.0
        %v4130 = vmax.f32 %v4066, 0.0
        %v4131 = vmax.f32 %v4067, 0.0
        %v4132 = vmax.f32 %v4068, 0.0
        %v4133 = vmax.f32 %v4069, 0.0
        %v4134 = vmax.f32 %v4070, 0.0
        %v4135 = vmax.f32 %v4071, 0.0
        %v4136 = vmax.f32 %v4072, 0.0
        %v4137 = vmax.f32 %v4073, 0.0
        %v4138 = vmax.f32 %v4074, 0.0
        %v4139 = vmax.f32 %v4075, 0.0
        %v4140 = vmax.f32 %v4076, 0.0
        %v4141 = vmax.f32 %v4077, 0.0
        %v4142 = vmax.f32 %v4078, 0.0
        %v4143 = vmax.f32 %v4079, 0.0
        %v4144 = vmax.f32 %v4080, 0.0
        %v4145 = vmax.f32 %v4081, 0.0
        %v4146 = vmax.f32 %v4082, 0.0
        %v4147 = vmax.f32 %v4083, 0.0
        %v4148 = vmax.f32 %v4084, 0.0
        %v4149 = vmax.f32 %v4085, 0.0
        %v4150 = vmax.f32 %v4086, 0.0
        %v4151 = vmax.f32 %v4087, 0.0
        %v4152 = vmax.f32 %v4088, 0.0
        %v4153 = vmax.f32 %v4089, 0.0
        %v4154 = vmax.f32 %v4090, 0.0
        %v4155 = vmax.f32 %v4091, 0.0
        %v4156 = vmax.f32 %v4092, 0.0
        %v4157 = vmax.f32 %v4093, 0.0
        %v4158 = vmax.f32 %v4094, 0.0
        %v4159 = vmax.f32 %v4095, 0.0
        %v4160 = vmax.f32 %v4096, 0.0
        %v4161 = vmax.f32 %v4097, 0.0
        %v4162 = vmax.f32 %v4098, 0.0
        %v4163 = vmax.f32 %v4099, 0.0
        %v4164 = vmax.f32 %v4100, 0.0
        %v4165 = vmax.f32 %v4101, 0.0
        %v4166 = vmax.f32 %v4102, 0.0
        %v4167 = vmax.f32 %v4103, 0.0
        %v4168 = vmax.f32 %v4104, 0.0
        %v4169 = vmax.f32 %v4105, 0.0
        %v4170 = vmax.f32 %v4106, 0.0
        %v4171 = vmax.f32 %v4107, 0.0
        %v4172 = vmax.f32 %v4108, 0.0
        %v4173 = vmax.f32 %v4109, 0.0
        %v4174 = vmax.f32 %v4110, 0.0
        %v4175 = vmax.f32 %v4111, 0.0
        %v4176 = vmax.f32 %v4112, 0.0
        %v4177 = vmax.f32 %v4113, 0.0
        %v4178 = vmax.f32 %v4114, 0.0
        %v4179 = vmax.f32 %v4115, 0.0
        %v4180 = vmax.f32 %v4116, 0.0
        %v4181 = vmax.f32 %v4117, 0.0
        %v4182 = vmax.f32 %v4118, 0.0
        %v4183 = vmax.f32 %v4119, 0.0
        %v4184 = vmax.f32 %v4120, 0.0
        %v4185 = vmax.f32 %v4121, 0.0
        %v4186 = vmax.f32 %v4122, 0.0
        %v4187 = vmax.f32 %v4123, 0.0
        %v4188 = vmax.f32 %v4124, 0.0
        %v4189 = vmax.f32 %v4125, 0.0
        %v4190 = vmax.f32 %v4126, 0.0
        %v4191 = vmax.f32 %v4127, 0.0
        %4192 = vst [vmem:[#allocation3] sm:$0xff] 0.0
        %4193 = vst [vmem:[#allocation3 + $0x8] sm:$0xff] 0.0
        %4194 = vst [vmem:[#allocation3 + $0x10] sm:$0xff] 0.0
        %4195 = vst [vmem:[#allocation3 + $0x18] sm:$0xff] 0.0
        %4196 = vst [vmem:[#allocation3 + $0x20] sm:$0x3] 0.0
        %4197 = vst [vmem:[#allocation3 + $0x28] sm:$0x3] 0.0
        %4198 = vst [vmem:[#allocation3 + $0x30] sm:$0xff] 0.0
        %4199 = vst [vmem:[#allocation3 + $0x38] sm:$0xff] 0.0
        %4200 = vst [vmem:[#allocation3 + $0x40] sm:$0xff] 0.0
        %4201 = vst [vmem:[#allocation3 + $0x48] sm:$0xff] 0.0
        %4202 = vst [vmem:[#allocation3 + $0x50] sm:$0x3] 0.0
        %4203 = vst [vmem:[#allocation3 + $0x58] sm:$0x3] 0.0
        %4204 = vst [vmem:[#allocation3 + $0x60] sm:$0xff] 0.0
        %4205 = vst [vmem:[#allocation3 + $0x68] sm:$0xff] 0.0
        %4206 = vst [vmem:[#allocation3 + $0x70] sm:$0xff] 0.0
        %4207 = vst [vmem:[#allocation3 + $0x78] sm:$0xff] 0.0
        %4208 = vst [vmem:[#allocation3 + $0x80] sm:$0x3] 0.0
        %4209 = vst [vmem:[#allocation3 + $0x88] sm:$0x3] 0.0
        %4210 = vst [vmem:[#allocation3 + $0x90] sm:$0xff] 0.0
        %4211 = vst [vmem:[#allocation3 + $0x98] sm:$0xff] 0.0
        %4212 = vst [vmem:[#allocation3 + $0xa0] sm:$0xff] 0.0
        %4213 = vst [vmem:[#allocation3 + $0xa8] sm:$0xff] 0.0
        %4214 = vst [vmem:[#allocation3 + $0xb0] sm:$0x3] 0.0
        %4215 = vst [vmem:[#allocation3 + $0xb8] sm:$0x3] 0.0
        %4216 = vst [vmem:[#allocation3 + $0xc0] sm:$0xff] 0.0
        %4217 = vst [vmem:[#allocation3 + $0xc8] sm:$0xff] 0.0
        %4218 = vst [vmem:[#allocation3 + $0xd0] sm:$0xff] 0.0
        %4219 = vst [vmem:[#allocation3 + $0xd8] sm:$0xff] 0.0
        %4220 = vst [vmem:[#allocation3 + $0xe0] sm:$0x3] 0.0
        %4221 = vst [vmem:[#allocation3 + $0xe8] sm:$0x3] 0.0
        %4222 = vst [vmem:[#allocation3 + $0xf0] sm:$0xff] 0.0
        %4223 = vst [vmem:[#allocation3 + $0xf8] sm:$0xff] 0.0
        %4224 = vst [vmem:[#allocation3 + $0x100] sm:$0xff] 0.0
        %4225 = vst [vmem:[#allocation3 + $0x108] sm:$0xff] 0.0
        %4226 = vst [vmem:[#allocation3 + $0x110] sm:$0x3] 0.0
        %4227 = vst [vmem:[#allocation3 + $0x118] sm:$0x3] 0.0
        %4228 = vst [vmem:[#allocation3 + $0x120] sm:$0xff] 0.0
        %4229 = vst [vmem:[#allocation3 + $0x128] sm:$0xff] 0.0
        %4230 = vst [vmem:[#allocation3 + $0x130] sm:$0xff] 0.0
        %4231 = vst [vmem:[#allocation3 + $0x138] sm:$0xff] 0.0
        %4232 = vst [vmem:[#allocation3 + $0x140] sm:$0x3] 0.0
        %4233 = vst [vmem:[#allocation3 + $0x148] sm:$0x3] 0.0
        %4234 = vst [vmem:[#allocation3 + $0x150] sm:$0xff] 0.0
        %4235 = vst [vmem:[#allocation3 + $0x158] sm:$0xff] 0.0
        %4236 = vst [vmem:[#allocation3 + $0x160] sm:$0xff] 0.0
        %4237 = vst [vmem:[#allocation3 + $0x168] sm:$0xff] 0.0
        %4238 = vst [vmem:[#allocation3 + $0x170] sm:$0x3] 0.0
        %4239 = vst [vmem:[#allocation3 + $0x178] sm:$0x3] 0.0
        %4240 = vst [vmem:[#allocation3 + $0x180] sm:$0xff] 0.0
        %4241 = vst [vmem:[#allocation3 + $0x188] sm:$0xff] 0.0
        %4242 = vst [vmem:[#allocation3 + $0x190] sm:$0xff] 0.0
        %4243 = vst [vmem:[#allocation3 + $0x198] sm:$0xff] 0.0
        %4244 = vst [vmem:[#allocation3 + $0x1a0] sm:$0x3] 0.0
        %4245 = vst [vmem:[#allocation3 + $0x1a8] sm:$0x3] 0.0
        %4246 = vst [vmem:[#allocation3 + $0x1b0] sm:$0xff] 0.0
        %4247 = vst [vmem:[#allocation3 + $0x1b8] sm:$0xff] 0.0
        %4248 = vst [vmem:[#allocation3 + $0x1c0] sm:$0xff] 0.0
        %4249 = vst [vmem:[#allocation3 + $0x1c8] sm:$0xff] 0.0
        %4250 = vst [vmem:[#allocation3 + $0x1d0] sm:$0x3] 0.0
        %4251 = vst [vmem:[#allocation3 + $0x1d8] sm:$0x3] 0.0
        %4252 = vst [vmem:[#allocation3 + $0x1e0] sm:$0xff] 0.0
        %4253 = vst [vmem:[#allocation3 + $0x1e8] sm:$0xff] 0.0
        %4254 = vst [vmem:[#allocation3 + $0x1f0] sm:$0xff] 0.0
        %4255 = vst [vmem:[#allocation3 + $0x1f8] sm:$0xff] 0.0
        %4256 = vst [vmem:[#allocation3 + $0x200] sm:$0x3] 0.0
        %4257 = vst [vmem:[#allocation3 + $0x208] sm:$0x3] 0.0
        %4258 = vst [vmem:[#allocation3 + $0x210] sm:$0xff] 0.0
        %4259 = vst [vmem:[#allocation3 + $0x218] sm:$0xff] 0.0
        %4260 = vst [vmem:[#allocation3 + $0x220] sm:$0xff] 0.0
        %4261 = vst [vmem:[#allocation3 + $0x228] sm:$0xff] 0.0
        %4262 = vst [vmem:[#allocation3 + $0x230] sm:$0x3] 0.0
        %4263 = vst [vmem:[#allocation3 + $0x238] sm:$0x3] 0.0
        %4264 = vst [vmem:[#allocation3 + $0x240] sm:$0xff] 0.0
        %4265 = vst [vmem:[#allocation3 + $0x248] sm:$0xff] 0.0
        %4266 = vst [vmem:[#allocation3 + $0x250] sm:$0xff] 0.0
        %4267 = vst [vmem:[#allocation3 + $0x258] sm:$0xff] 0.0
        %4268 = vst [vmem:[#allocation3 + $0x260] sm:$0x3] 0.0
        %4269 = vst [vmem:[#allocation3 + $0x268] sm:$0x3] 0.0
        %4270 = vst [vmem:[#allocation3 + $0x270] sm:$0xff] 0.0
        %4271 = vst [vmem:[#allocation3 + $0x278] sm:$0xff] 0.0
        %4272 = vst [vmem:[#allocation3 + $0x280] sm:$0xff] 0.0
        %4273 = vst [vmem:[#allocation3 + $0x288] sm:$0xff] 0.0
        %4274 = vst [vmem:[#allocation3 + $0x290] sm:$0x3] 0.0
        %4275 = vst [vmem:[#allocation3 + $0x298] sm:$0x3] 0.0
        %4276 = vst [vmem:[#allocation3 + $0x2a0] sm:$0xff] 0.0
        %4277 = vst [vmem:[#allocation3 + $0x2a8] sm:$0xff] 0.0
        %4278 = vst [vmem:[#allocation3 + $0x2b0] sm:$0xff] 0.0
        %4279 = vst [vmem:[#allocation3 + $0x2b8] sm:$0xff] 0.0
        %4280 = vst [vmem:[#allocation3 + $0x2c0] sm:$0x3] 0.0
        %4281 = vst [vmem:[#allocation3 + $0x2c8] sm:$0x3] 0.0
        %4282 = vst [vmem:[#allocation3 + $0x2d0] sm:$0xff] 0.0
        %4283 = vst [vmem:[#allocation3 + $0x2d8] sm:$0xff] 0.0
        %4284 = vst [vmem:[#allocation3 + $0x2e0] sm:$0xff] 0.0
        %4285 = vst [vmem:[#allocation3 + $0x2e8] sm:$0xff] 0.0
        %4286 = vst [vmem:[#allocation3 + $0x2f0] sm:$0x3] 0.0
        %4287 = vst [vmem:[#allocation3 + $0x2f8] sm:$0x3] 0.0
        %4288 = vst [vmem:[#allocation3 + $0x300] sm:$0xff] 0.0
        %4289 = vst [vmem:[#allocation3 + $0x308] sm:$0xff] 0.0
        %4290 = vst [vmem:[#allocation3 + $0x310] sm:$0xff] 0.0
        %4291 = vst [vmem:[#allocation3 + $0x318] sm:$0xff] 0.0
        %4292 = vst [vmem:[#allocation3 + $0x320] sm:$0x3] 0.0
        %4293 = vst [vmem:[#allocation3 + $0x328] sm:$0x3] 0.0
        %4294 = vst [vmem:[#allocation3 + $0x330] sm:$0xff] 0.0
        %4295 = vst [vmem:[#allocation3 + $0x338] sm:$0xff] 0.0
        %4296 = vst [vmem:[#allocation3 + $0x340] sm:$0xff] 0.0
        %4297 = vst [vmem:[#allocation3 + $0x348] sm:$0xff] 0.0
        %4298 = vst [vmem:[#allocation3 + $0x350] sm:$0x3] 0.0
        %4299 = vst [vmem:[#allocation3 + $0x358] sm:$0x3] 0.0
        %vm4364 = vcmask 1040384
        %v4365 = vrot.slane %v4128, 7
        %v4366 = vrot.slane %v4129, 7
        %v4367 = vrot.slane %v4130, 7
        %v4368 = vsel %vm4364, %v4365, %v4367
        %v4369 = vrot.slane %v4131, 7
        %v4370 = vsel %vm4364, %v4366, %v4369
        %v4371 = vrot.slane %v4132, 7
        %v4372 = vrot.slane %v4133, 7
        %v4373 = vrot.slane %v4134, 7
        %v4374 = vsel %vm4364, %v4371, %v4373
        %v4375 = vrot.slane %v4135, 7
        %v4376 = vsel %vm4364, %v4372, %v4375
        %v4377 = vrot.slane %v4136, 7
        %v4378 = vrot.slane %v4137, 7
        %v4379 = vrot.slane %v4138, 7
        %v4380 = vsel %vm4364, %v4377, %v4379
        %v4381 = vrot.slane %v4139, 7
        %v4382 = vsel %vm4364, %v4378, %v4381
        %v4383 = vrot.slane %v4140, 7
        %v4384 = vrot.slane %v4141, 7
        %v4385 = vrot.slane %v4142, 7
        %v4386 = vsel %vm4364, %v4383, %v4385
        %v4387 = vrot.slane %v4143, 7
        %v4388 = vsel %vm4364, %v4384, %v4387
        %v4389 = vrot.slane %v4144, 7
        %v4390 = vrot.slane %v4145, 7
        %v4391 = vrot.slane %v4146, 7
        %v4392 = vsel %vm4364, %v4389, %v4391
        %v4393 = vrot.slane %v4147, 7
        %v4394 = vsel %vm4364, %v4390, %v4393
        %v4395 = vrot.slane %v4148, 7
        %v4396 = vrot.slane %v4149, 7
        %v4397 = vrot.slane %v4150, 7
        %v4398 = vsel %vm4364, %v4395, %v4397
        %v4399 = vrot.slane %v4151, 7
        %v4400 = vsel %vm4364, %v4396, %v4399
        %v4401 = vrot.slane %v4152, 7
        %v4402 = vrot.slane %v4153, 7
        %v4403 = vrot.slane %v4154, 7
        %v4404 = vsel %vm4364, %v4401, %v4403
        %v4405 = vrot.slane %v4155, 7
        %v4406 = vsel %vm4364, %v4402, %v4405
        %v4407 = vrot.slane %v4156, 7
        %v4408 = vrot.slane %v4157, 7
        %v4409 = vrot.slane %v4158, 7
        %v4410 = vsel %vm4364, %v4407, %v4409
        %v4411 = vrot.slane %v4159, 7
        %v4412 = vsel %vm4364, %v4408, %v4411
        %v4413 = vrot.slane %v4160, 7
        %v4414 = vrot.slane %v4161, 7
        %v4415 = vrot.slane %v4162, 7
        %v4416 = vsel %vm4364, %v4413, %v4415
        %v4417 = vrot.slane %v4163, 7
        %v4418 = vsel %vm4364, %v4414, %v4417
        %v4419 = vrot.slane %v4164, 7
        %v4420 = vrot.slane %v4165, 7
        %v4421 = vrot.slane %v4166, 7
        %v4422 = vsel %vm4364, %v4419, %v4421
        %v4423 = vrot.slane %v4167, 7
        %v4424 = vsel %vm4364, %v4420, %v4423
        %v4425 = vrot.slane %v4168, 7
        %v4426 = vrot.slane %v4169, 7
        %v4427 = vrot.slane %v4170, 7
        %v4428 = vsel %vm4364, %v4425, %v4427
        %v4429 = vrot.slane %v4171, 7
        %v4430 = vsel %vm4364, %v4426, %v4429
        %v4431 = vrot.slane %v4172, 7
        %v4432 = vrot.slane %v4173, 7
        %v4433 = vrot.slane %v4174, 7
        %v4434 = vsel %vm4364, %v4431, %v4433
        %v4435 = vrot.slane %v4175, 7
        %v4436 = vsel %vm4364, %v4432, %v4435
        %v4437 = vrot.slane %v4176, 7
        %v4438 = vrot.slane %v4177, 7
        %v4439 = vrot.slane %v4178, 7
        %v4440 = vsel %vm4364, %v4437, %v4439
        %v4441 = vrot.slane %v4179, 7
        %v4442 = vsel %vm4364, %v4438, %v4441
        %v4443 = vrot.slane %v4180, 7
        %v4444 = vrot.slane %v4181, 7
        %v4445 = vrot.slane %v4182, 7
        %v4446 = vsel %vm4364, %v4443, %v4445
        %v4447 = vrot.slane %v4183, 7
        %v4448 = vsel %vm4364, %v4444, %v4447
        %v4449 = vrot.slane %v4184, 7
        %v4450 = vrot.slane %v4185, 7
        %v4451 = vrot.slane %v4186, 7
        %v4452 = vsel %vm4364, %v4449, %v4451
        %v4453 = vrot.slane %v4187, 7
        %v4454 = vsel %vm4364, %v4450, %v4453
        %v4455 = vrot.slane %v4188, 7
        %v4456 = vrot.slane %v4189, 7
        %v4457 = vrot.slane %v4190, 7
        %v4458 = vsel %vm4364, %v4455, %v4457
        %v4459 = vrot.slane %v4191, 7
        %v4460 = vsel %vm4364, %v4456, %v4459
        %s4557 = scalar_lea.vmem [#allocation3], 48
        %4558 = vst [vmem:[%s4557] sm:$0xfe] %v4365
        %4559 = vst [vmem:[%s4557 + $0x8] sm:$0xfe] %v4366
        %4560 = vst [vmem:[%s4557 + $0x10] sm:$0xff] %v4368
        %4561 = vst [vmem:[%s4557 + $0x18] sm:$0xff] %v4370
        %4562 = vst [vmem:[%s4557 + $0x20] sm:$0x1] %v4367
        %4563 = vst [vmem:[%s4557 + $0x28] sm:$0x1] %v4369
        %4564 = vst [vmem:[%s4557 + $0x30] sm:$0xfe] %v4371
        %4565 = vst [vmem:[%s4557 + $0x38] sm:$0xfe] %v4372
        %4566 = vst [vmem:[%s4557 + $0x40] sm:$0xff] %v4374
        %4567 = vst [vmem:[%s4557 + $0x48] sm:$0xff] %v4376
        %4568 = vst [vmem:[%s4557 + $0x50] sm:$0x1] %v4373
        %4569 = vst [vmem:[%s4557 + $0x58] sm:$0x1] %v4375
        %4570 = vst [vmem:[%s4557 + $0x60] sm:$0xfe] %v4377
        %4571 = vst [vmem:[%s4557 + $0x68] sm:$0xfe] %v4378
        %4572 = vst [vmem:[%s4557 + $0x70] sm:$0xff] %v4380
        %4573 = vst [vmem:[%s4557 + $0x78] sm:$0xff] %v4382
        %4574 = vst [vmem:[%s4557 + $0x80] sm:$0x1] %v4379
        %4575 = vst [vmem:[%s4557 + $0x88] sm:$0x1] %v4381
        %4576 = vst [vmem:[%s4557 + $0x90] sm:$0xfe] %v4383
        %4577 = vst [vmem:[%s4557 + $0x98] sm:$0xfe] %v4384
        %4578 = vst [vmem:[%s4557 + $0xa0] sm:$0xff] %v4386
        %4579 = vst [vmem:[%s4557 + $0xa8] sm:$0xff] %v4388
        %4580 = vst [vmem:[%s4557 + $0xb0] sm:$0x1] %v4385
        %4581 = vst [vmem:[%s4557 + $0xb8] sm:$0x1] %v4387
        %4582 = vst [vmem:[%s4557 + $0xc0] sm:$0xfe] %v4389
        %4583 = vst [vmem:[%s4557 + $0xc8] sm:$0xfe] %v4390
        %4584 = vst [vmem:[%s4557 + $0xd0] sm:$0xff] %v4392
        %4585 = vst [vmem:[%s4557 + $0xd8] sm:$0xff] %v4394
        %4586 = vst [vmem:[%s4557 + $0xe0] sm:$0x1] %v4391
        %4587 = vst [vmem:[%s4557 + $0xe8] sm:$0x1] %v4393
        %4588 = vst [vmem:[%s4557 + $0xf0] sm:$0xfe] %v4395
        %4589 = vst [vmem:[%s4557 + $0xf8] sm:$0xfe] %v4396
        %4590 = vst [vmem:[%s4557 + $0x100] sm:$0xff] %v4398
        %4591 = vst [vmem:[%s4557 + $0x108] sm:$0xff] %v4400
        %4592 = vst [vmem:[%s4557 + $0x110] sm:$0x1] %v4397
        %4593 = vst [vmem:[%s4557 + $0x118] sm:$0x1] %v4399
        %4594 = vst [vmem:[%s4557 + $0x120] sm:$0xfe] %v4401
        %4595 = vst [vmem:[%s4557 + $0x128] sm:$0xfe] %v4402
        %4596 = vst [vmem:[%s4557 + $0x130] sm:$0xff] %v4404
        %4597 = vst [vmem:[%s4557 + $0x138] sm:$0xff] %v4406
        %4598 = vst [vmem:[%s4557 + $0x140] sm:$0x1] %v4403
        %4599 = vst [vmem:[%s4557 + $0x148] sm:$0x1] %v4405
        %4600 = vst [vmem:[%s4557 + $0x150] sm:$0xfe] %v4407
        %4601 = vst [vmem:[%s4557 + $0x158] sm:$0xfe] %v4408
        %4602 = vst [vmem:[%s4557 + $0x160] sm:$0xff] %v4410
        %4603 = vst [vmem:[%s4557 + $0x168] sm:$0xff] %v4412
        %4604 = vst [vmem:[%s4557 + $0x170] sm:$0x1] %v4409
        %4605 = vst [vmem:[%s4557 + $0x178] sm:$0x1] %v4411
        %4606 = vst [vmem:[%s4557 + $0x180] sm:$0xfe] %v4413
        %4607 = vst [vmem:[%s4557 + $0x188] sm:$0xfe] %v4414
        %4608 = vst [vmem:[%s4557 + $0x190] sm:$0xff] %v4416
        %4609 = vst [vmem:[%s4557 + $0x198] sm:$0xff] %v4418
        %4610 = vst [vmem:[%s4557 + $0x1a0] sm:$0x1] %v4415
        %4611 = vst [vmem:[%s4557 + $0x1a8] sm:$0x1] %v4417
        %4612 = vst [vmem:[%s4557 + $0x1b0] sm:$0xfe] %v4419
        %4613 = vst [vmem:[%s4557 + $0x1b8] sm:$0xfe] %v4420
        %4614 = vst [vmem:[%s4557 + $0x1c0] sm:$0xff] %v4422
        %4615 = vst [vmem:[%s4557 + $0x1c8] sm:$0xff] %v4424
        %4616 = vst [vmem:[%s4557 + $0x1d0] sm:$0x1] %v4421
        %4617 = vst [vmem:[%s4557 + $0x1d8] sm:$0x1] %v4423
        %4618 = vst [vmem:[%s4557 + $0x1e0] sm:$0xfe] %v4425
        %4619 = vst [vmem:[%s4557 + $0x1e8] sm:$0xfe] %v4426
        %4620 = vst [vmem:[%s4557 + $0x1f0] sm:$0xff] %v4428
        %4621 = vst [vmem:[%s4557 + $0x1f8] sm:$0xff] %v4430
        %4622 = vst [vmem:[%s4557 + $0x200] sm:$0x1] %v4427
        %4623 = vst [vmem:[%s4557 + $0x208] sm:$0x1] %v4429
        %4624 = vst [vmem:[%s4557 + $0x210] sm:$0xfe] %v4431
        %4625 = vst [vmem:[%s4557 + $0x218] sm:$0xfe] %v4432
        %4626 = vst [vmem:[%s4557 + $0x220] sm:$0xff] %v4434
        %4627 = vst [vmem:[%s4557 + $0x228] sm:$0xff] %v4436
        %4628 = vst [vmem:[%s4557 + $0x230] sm:$0x1] %v4433
        %4629 = vst [vmem:[%s4557 + $0x238] sm:$0x1] %v4435
        %4630 = vst [vmem:[%s4557 + $0x240] sm:$0xfe] %v4437
        %4631 = vst [vmem:[%s4557 + $0x248] sm:$0xfe] %v4438
        %4632 = vst [vmem:[%s4557 + $0x250] sm:$0xff] %v4440
        %4633 = vst [vmem:[%s4557 + $0x258] sm:$0xff] %v4442
        %4634 = vst [vmem:[%s4557 + $0x260] sm:$0x1] %v4439
        %4635 = vst [vmem:[%s4557 + $0x268] sm:$0x1] %v4441
        %4636 = vst [vmem:[%s4557 + $0x270] sm:$0xfe] %v4443
        %4637 = vst [vmem:[%s4557 + $0x278] sm:$0xfe] %v4444
        %4638 = vst [vmem:[%s4557 + $0x280] sm:$0xff] %v4446
        %4639 = vst [vmem:[%s4557 + $0x288] sm:$0xff] %v4448
        %4640 = vst [vmem:[%s4557 + $0x290] sm:$0x1] %v4445
        %4641 = vst [vmem:[%s4557 + $0x298] sm:$0x1] %v4447
        %4642 = vst [vmem:[%s4557 + $0x2a0] sm:$0xfe] %v4449
        %4643 = vst [vmem:[%s4557 + $0x2a8] sm:$0xfe] %v4450
        %4644 = vst [vmem:[%s4557 + $0x2b0] sm:$0xff] %v4452
        %4645 = vst [vmem:[%s4557 + $0x2b8] sm:$0xff] %v4454
        %4646 = vst [vmem:[%s4557 + $0x2c0] sm:$0x1] %v4451
        %4647 = vst [vmem:[%s4557 + $0x2c8] sm:$0x1] %v4453
        %4648 = vst [vmem:[%s4557 + $0x2d0] sm:$0xfe] %v4455
        %4649 = vst [vmem:[%s4557 + $0x2d8] sm:$0xfe] %v4456
        %4650 = vst [vmem:[%s4557 + $0x2e0] sm:$0xff] %v4458
        %4651 = vst [vmem:[%s4557 + $0x2e8] sm:$0xff] %v4460
        %4652 = vst [vmem:[%s4557 + $0x2f0] sm:$0x1] %v4457
        %4653 = vst [vmem:[%s4557 + $0x2f8] sm:$0x1] %v4459
        %v4654 = vld [vmem:[#allocation3] sm:$0xff]
        %v4655 = vld [vmem:[#allocation3 + $0x8] sm:$0xff]
        %v4656 = vld [vmem:[#allocation3 + $0x10] sm:$0xff]
        %v4657 = vld [vmem:[#allocation3 + $0x18] sm:$0xff]
        %v4658 = vld [vmem:[#allocation3 + $0x30] sm:$0xff]
        %v4659 = vld [vmem:[#allocation3 + $0x38] sm:$0xff]
        %v4660 = vld [vmem:[#allocation3 + $0x40] sm:$0xff]
        %v4661 = vld [vmem:[#allocation3 + $0x48] sm:$0xff]
        %v4662 = vld [vmem:[#allocation3 + $0x60] sm:$0xff]
        %v4663 = vld [vmem:[#allocation3 + $0x68] sm:$0xff]
        %v4664 = vld [vmem:[#allocation3 + $0x70] sm:$0xff]
        %v4665 = vld [vmem:[#allocation3 + $0x78] sm:$0xff]
        %v4666 = vld [vmem:[#allocation3 + $0x90] sm:$0xff]
        %v4667 = vld [vmem:[#allocation3 + $0x98] sm:$0xff]
        %v4668 = vld [vmem:[#allocation3 + $0xa0] sm:$0xff]
        %v4669 = vld [vmem:[#allocation3 + $0xa8] sm:$0xff]
        %v4670 = vld [vmem:[#allocation3 + $0xc0] sm:$0xff]
        %v4671 = vld [vmem:[#allocation3 + $0xc8] sm:$0xff]
        %v4672 = vld [vmem:[#allocation3 + $0xd0] sm:$0xff]
        %v4673 = vld [vmem:[#allocation3 + $0xd8] sm:$0xff]
        %v4674 = vld [vmem:[#allocation3 + $0xf0] sm:$0xff]
        %v4675 = vld [vmem:[#allocation3 + $0xf8] sm:$0xff]
        %v4676 = vld [vmem:[#allocation3 + $0x100] sm:$0xff]
        %v4677 = vld [vmem:[#allocation3 + $0x108] sm:$0xff]
        %v4678 = vld [vmem:[#allocation3 + $0x120] sm:$0xff]
        %v4679 = vld [vmem:[#allocation3 + $0x128] sm:$0xff]
        %v4680 = vld [vmem:[#allocation3 + $0x130] sm:$0xff]
        %v4681 = vld [vmem:[#allocation3 + $0x138] sm:$0xff]
        %v4682 = vld [vmem:[#allocation3 + $0x150] sm:$0xff]
        %v4683 = vld [vmem:[#allocation3 + $0x158] sm:$0xff]
        %v4684 = vld [vmem:[#allocation3 + $0x160] sm:$0xff]
        %v4685 = vld [vmem:[#allocation3 + $0x168] sm:$0xff]
        %v4686 = vld [vmem:[#allocation3 + $0x180] sm:$0xff]
        %v4687 = vld [vmem:[#allocation3 + $0x188] sm:$0xff]
        %v4688 = vld [vmem:[#allocation3 + $0x190] sm:$0xff]
        %v4689 = vld [vmem:[#allocation3 + $0x198] sm:$0xff]
        %v4690 = vld [vmem:[#allocation3 + $0x1b0] sm:$0xff]
        %v4691 = vld [vmem:[#allocation3 + $0x1b8] sm:$0xff]
        %v4692 = vld [vmem:[#allocation3 + $0x1c0] sm:$0xff]
        %v4693 = vld [vmem:[#allocation3 + $0x1c8] sm:$0xff]
        %v4694 = vld [vmem:[#allocation3 + $0x1e0] sm:$0xff]
        %v4695 = vld [vmem:[#allocation3 + $0x1e8] sm:$0xff]
        %v4696 = vld [vmem:[#allocation3 + $0x1f0] sm:$0xff]
        %v4697 = vld [vmem:[#allocation3 + $0x1f8] sm:$0xff]
        %v4698 = vld [vmem:[#allocation3 + $0x210] sm:$0xff]
        %v4699 = vld [vmem:[#allocation3 + $0x218] sm:$0xff]
        %v4700 = vld [vmem:[#allocation3 + $0x220] sm:$0xff]
        %v4701 = vld [vmem:[#allocation3 + $0x228] sm:$0xff]
        %v4702 = vld [vmem:[#allocation3 + $0x240] sm:$0xff]
        %v4703 = vld [vmem:[#allocation3 + $0x248] sm:$0xff]
        %v4704 = vld [vmem:[#allocation3 + $0x250] sm:$0xff]
        %v4705 = vld [vmem:[#allocation3 + $0x258] sm:$0xff]
        %v4706 = vld [vmem:[#allocation3 + $0x270] sm:$0xff]
        %v4707 = vld [vmem:[#allocation3 + $0x278] sm:$0xff]
        %v4708 = vld [vmem:[#allocation3 + $0x280] sm:$0xff]
        %v4709 = vld [vmem:[#allocation3 + $0x288] sm:$0xff]
        %v4710 = vld [vmem:[#allocation3 + $0x2a0] sm:$0xff]
        %v4711 = vld [vmem:[#allocation3 + $0x2a8] sm:$0xff]
        %v4712 = vld [vmem:[#allocation3 + $0x2b0] sm:$0xff]
        %v4713 = vld [vmem:[#allocation3 + $0x2b8] sm:$0xff]
        %v4714 = vld [vmem:[#allocation3 + $0x2d0] sm:$0xff]
        %v4715 = vld [vmem:[#allocation3 + $0x2d8] sm:$0xff]
        %v4716 = vld [vmem:[#allocation3 + $0x2e0] sm:$0xff]
        %v4717 = vld [vmem:[#allocation3 + $0x2e8] sm:$0xff]
        %v4718 = vpack.c.bf16 %v4656, %v4654
        %v4719 = vpack.c.bf16 %v4657, %v4655
        %v4720 = vpack.c.bf16 %v4660, %v4658
        %v4721 = vpack.c.bf16 %v4661, %v4659
        %v4722 = vpack.c.bf16 %v4664, %v4662
        %v4723 = vpack.c.bf16 %v4665, %v4663
        %v4724 = vpack.c.bf16 %v4668, %v4666
        %v4725 = vpack.c.bf16 %v4669, %v4667
        %v4726 = vpack.c.bf16 %v4672, %v4670
        %v4727 = vpack.c.bf16 %v4673, %v4671
        %v4728 = vpack.c.bf16 %v4676, %v4674
        %v4729 = vpack.c.bf16 %v4677, %v4675
        %v4730 = vpack.c.bf16 %v4680, %v4678
        %v4731 = vpack.c.bf16 %v4681, %v4679
        %v4732 = vpack.c.bf16 %v4684, %v4682
        %v4733 = vpack.c.bf16 %v4685, %v4683
        %v4734 = vpack.c.bf16 %v4688, %v4686
        %v4735 = vpack.c.bf16 %v4689, %v4687
        %v4736 = vpack.c.bf16 %v4692, %v4690
        %v4737 = vpack.c.bf16 %v4693, %v4691
        %v4738 = vpack.c.bf16 %v4696, %v4694
        %v4739 = vpack.c.bf16 %v4697, %v4695
        %v4740 = vpack.c.bf16 %v4700, %v4698
        %v4741 = vpack.c.bf16 %v4701, %v4699
        %v4742 = vpack.c.bf16 %v4704, %v4702
        %v4743 = vpack.c.bf16 %v4705, %v4703
        %v4744 = vpack.c.bf16 %v4708, %v4706
        %v4745 = vpack.c.bf16 %v4709, %v4707
        %v4746 = vpack.c.bf16 %v4712, %v4710
        %v4747 = vpack.c.bf16 %v4713, %v4711
        %v4748 = vpack.c.bf16 %v4716, %v4714
        %v4749 = vpack.c.bf16 %v4717, %v4715
        %v4750 = vld [vmem:[%s2] sm:$0xff]
        %v4751 = vld [vmem:[%s2 + $0x8] sm:$0xff]
        %v4752 = vld [vmem:[%s2 + $0x10] sm:$0xff]
        %v4753 = vld [vmem:[%s2 + $0x18] sm:$0xff]
        %v4754 = vld [vmem:[%s2 + $0x20] sm:$0xff]
        %v4755 = vld [vmem:[%s2 + $0x28] sm:$0xff]
        %v4756 = vld [vmem:[%s2 + $0x30] sm:$0xff]
        %v4757 = vld [vmem:[%s2 + $0x38] sm:$0xff]
        %v4758 = vld [vmem:[%s2 + $0x40] sm:$0xff]
        %v4759 = vld [vmem:[%s2 + $0x48] sm:$0xff]
        %v4760 = vld [vmem:[%s2 + $0x50] sm:$0xff]
        %v4761 = vld [vmem:[%s2 + $0x58] sm:$0xff]
        %v4762 = vld [vmem:[%s2 + $0x60] sm:$0xff]
        %v4763 = vld [vmem:[%s2 + $0x68] sm:$0xff]
        %v4764 = vld [vmem:[%s2 + $0x70] sm:$0xff]
        %v4765 = vld [vmem:[%s2 + $0x78] sm:$0xff]
        %v4766 = vld [vmem:[%s2 + $0x80] sm:$0xff]
        %v4767 = vld [vmem:[%s2 + $0x88] sm:$0xff]
        %v4768 = vld [vmem:[%s2 + $0x90] sm:$0xff]
        %v4769 = vld [vmem:[%s2 + $0x98] sm:$0xff]
        %v4770 = vld [vmem:[%s2 + $0xa0] sm:$0xff]
        %v4771 = vld [vmem:[%s2 + $0xa8] sm:$0xff]
        %v4772 = vld [vmem:[%s2 + $0xb0] sm:$0xff]
        %v4773 = vld [vmem:[%s2 + $0xb8] sm:$0xff]
        %v4774 = vld [vmem:[%s2 + $0xc0] sm:$0xff]
        %v4775 = vld [vmem:[%s2 + $0xc8] sm:$0xff]
        %v4776 = vld [vmem:[%s2 + $0xd0] sm:$0xff]
        %v4777 = vld [vmem:[%s2 + $0xd8] sm:$0xff]
        %v4778 = vld [vmem:[%s2 + $0xe0] sm:$0xff]
        %v4779 = vld [vmem:[%s2 + $0xe8] sm:$0xff]
        %v4780 = vld [vmem:[%s2 + $0xf0] sm:$0xff]
        %v4781 = vld [vmem:[%s2 + $0xf8] sm:$0xff]
        %v4782 = vld [vmem:[#allocation3] sm:$0xfe]
        %v4783 = vld [vmem:[#allocation3 + $0x8] sm:$0xfe]
        %v4784 = vld [vmem:[#allocation3 + $0x20] sm:$0x1]
        %v4785 = vld [vmem:[#allocation3 + $0x28] sm:$0x1]
        %v4786 = vld [vmem:[#allocation3 + $0x30] sm:$0xfe]
        %v4787 = vld [vmem:[#allocation3 + $0x38] sm:$0xfe]
        %v4788 = vld [vmem:[#allocation3 + $0x50] sm:$0x1]
        %v4789 = vld [vmem:[#allocation3 + $0x58] sm:$0x1]
        %v4790 = vld [vmem:[#allocation3 + $0x60] sm:$0xfe]
        %v4791 = vld [vmem:[#allocation3 + $0x68] sm:$0xfe]
        %v4792 = vld [vmem:[#allocation3 + $0x80] sm:$0x1]
        %v4793 = vld [vmem:[#allocation3 + $0x88] sm:$0x1]
        %v4794 = vld [vmem:[#allocation3 + $0x90] sm:$0xfe]
        %v4795 = vld [vmem:[#allocation3 + $0x98] sm:$0xfe]
        %v4796 = vld [vmem:[#allocation3 + $0xb0] sm:$0x1]
        %v4797 = vld [vmem:[#allocation3 + $0xb8] sm:$0x1]
        %v4798 = vld [vmem:[#allocation3 + $0xc0] sm:$0xfe]
        %v4799 = vld [vmem:[#allocation3 + $0xc8] sm:$0xfe]
        %v4800 = vld [vmem:[#allocation3 + $0xe0] sm:$0x1]
        %v4801 = vld [vmem:[#allocation3 + $0xe8] sm:$0x1]
        %v4802 = vld [vmem:[#allocation3 + $0xf0] sm:$0xfe]
        %v4803 = vld [vmem:[#allocation3 + $0xf8] sm:$0xfe]
        %v4804 = vld [vmem:[#allocation3 + $0x110] sm:$0x1]
        %v4805 = vld [vmem:[#allocation3 + $0x118] sm:$0x1]
        %v4806 = vld [vmem:[#allocation3 + $0x120] sm:$0xfe]
        %v4807 = vld [vmem:[#allocation3 + $0x128] sm:$0xfe]
        %v4808 = vld [vmem:[#allocation3 + $0x140] sm:$0x1]
        %v4809 = vld [vmem:[#allocation3 + $0x148] sm:$0x1]
        %v4810 = vld [vmem:[#allocation3 + $0x150] sm:$0xfe]
        %v4811 = vld [vmem:[#allocation3 + $0x158] sm:$0xfe]
        %v4812 = vld [vmem:[#allocation3 + $0x170] sm:$0x1]
        %v4813 = vld [vmem:[#allocation3 + $0x178] sm:$0x1]
        %v4814 = vld [vmem:[#allocation3 + $0x180] sm:$0xfe]
        %v4815 = vld [vmem:[#allocation3 + $0x188] sm:$0xfe]
        %v4816 = vld [vmem:[#allocation3 + $0x1a0] sm:$0x1]
        %v4817 = vld [vmem:[#allocation3 + $0x1a8] sm:$0x1]
        %v4818 = vld [vmem:[#allocation3 + $0x1b0] sm:$0xfe]
        %v4819 = vld [vmem:[#allocation3 + $0x1b8] sm:$0xfe]
        %v4820 = vld [vmem:[#allocation3 + $0x1d0] sm:$0x1]
        %v4821 = vld [vmem:[#allocation3 + $0x1d8] sm:$0x1]
        %v4822 = vld [vmem:[#allocation3 + $0x1e0] sm:$0xfe]
        %v4823 = vld [vmem:[#allocation3 + $0x1e8] sm:$0xfe]
        %v4824 = vld [vmem:[#allocation3 + $0x200] sm:$0x1]
        %v4825 = vld [vmem:[#allocation3 + $0x208] sm:$0x1]
        %v4826 = vld [vmem:[#allocation3 + $0x210] sm:$0xfe]
        %v4827 = vld [vmem:[#allocation3 + $0x218] sm:$0xfe]
        %v4828 = vld [vmem:[#allocation3 + $0x230] sm:$0x1]
        %v4829 = vld [vmem:[#allocation3 + $0x238] sm:$0x1]
        %v4830 = vld [vmem:[#allocation3 + $0x240] sm:$0xfe]
        %v4831 = vld [vmem:[#allocation3 + $0x248] sm:$0xfe]
        %v4832 = vld [vmem:[#allocation3 + $0x260] sm:$0x1]
        %v4833 = vld [vmem:[#allocation3 + $0x268] sm:$0x1]
        %v4834 = vld [vmem:[#allocation3 + $0x270] sm:$0xfe]
        %v4835 = vld [vmem:[#allocation3 + $0x278] sm:$0xfe]
        %v4836 = vld [vmem:[#allocation3 + $0x290] sm:$0x1]
        %v4837 = vld [vmem:[#allocation3 + $0x298] sm:$0x1]
        %v4838 = vld [vmem:[#allocation3 + $0x2a0] sm:$0xfe]
        %v4839 = vld [vmem:[#allocation3 + $0x2a8] sm:$0xfe]
        %v4840 = vld [vmem:[#allocation3 + $0x2c0] sm:$0x1]
        %v4841 = vld [vmem:[#allocation3 + $0x2c8] sm:$0x1]
        %v4842 = vld [vmem:[#allocation3 + $0x2d0] sm:$0xfe]
        %v4843 = vld [vmem:[#allocation3 + $0x2d8] sm:$0xfe]
        %v4844 = vld [vmem:[#allocation3 + $0x2f0] sm:$0x1]
        %v4845 = vld [vmem:[#allocation3 + $0x2f8] sm:$0x1]
        %vm4942 = vcmask 1046528
        %v4943 = vrot.slane %v4782, 1
        %v4944 = vrot.slane %v4656, 1
        %v4945 = vsel %vm4942, %v4943, %v4944
        %v4946 = vrot.slane %v4783, 1
        %v4947 = vrot.slane %v4657, 1
        %v4948 = vsel %vm4942, %v4946, %v4947
        %v4949 = vrot.slane %v4784, 1
        %v4950 = vsel %vm4942, %v4944, %v4949
        %v4951 = vrot.slane %v4785, 1
        %v4952 = vsel %vm4942, %v4947, %v4951
        %v4953 = vrot.slane %v4786, 1
        %v4954 = vrot.slane %v4660, 1
        %v4955 = vsel %vm4942, %v4953, %v4954
        %v4956 = vrot.slane %v4787, 1
        %v4957 = vrot.slane %v4661, 1
        %v4958 = vsel %vm4942, %v4956, %v4957
        %v4959 = vrot.slane %v4788, 1
        %v4960 = vsel %vm4942, %v4954, %v4959
        %v4961 = vrot.slane %v4789, 1
        %v4962 = vsel %vm4942, %v4957, %v4961
        %v4963 = vrot.slane %v4790, 1
        %v4964 = vrot.slane %v4664, 1
        %v4965 = vsel %vm4942, %v4963, %v4964
        %v4966 = vrot.slane %v4791, 1
        %v4967 = vrot.slane %v4665, 1
        %v4968 = vsel %vm4942, %v4966, %v4967
        %v4969 = vrot.slane %v4792, 1
        %v4970 = vsel %vm4942, %v4964, %v4969
        %v4971 = vrot.slane %v4793, 1
        %v4972 = vsel %vm4942, %v4967, %v4971
        %v4973 = vrot.slane %v4794, 1
        %v4974 = vrot.slane %v4668, 1
        %v4975 = vsel %vm4942, %v4973, %v4974
        %v4976 = vrot.slane %v4795, 1
        %v4977 = vrot.slane %v4669, 1
        %v4978 = vsel %vm4942, %v4976, %v4977
        %v4979 = vrot.slane %v4796, 1
        %v4980 = vsel %vm4942, %v4974, %v4979
        %v4981 = vrot.slane %v4797, 1
        %v4982 = vsel %vm4942, %v4977, %v4981
        %v4983 = vrot.slane %v4798, 1
        %v4984 = vrot.slane %v4672, 1
        %v4985 = vsel %vm4942, %v4983, %v4984
        %v4986 = vrot.slane %v4799, 1
        %v4987 = vrot.slane %v4673, 1
        %v4988 = vsel %vm4942, %v4986, %v4987
        %v4989 = vrot.slane %v4800, 1
        %v4990 = vsel %vm4942, %v4984, %v4989
        %v4991 = vrot.slane %v4801, 1
        %v4992 = vsel %vm4942, %v4987, %v4991
        %v4993 = vrot.slane %v4802, 1
        %v4994 = vrot.slane %v4676, 1
        %v4995 = vsel %vm4942, %v4993, %v4994
        %v4996 = vrot.slane %v4803, 1
        %v4997 = vrot.slane %v4677, 1
        %v4998 = vsel %vm4942, %v4996, %v4997
        %v4999 = vrot.slane %v4804, 1
        %v5000 = vsel %vm4942, %v4994, %v4999
        %v5001 = vrot.slane %v4805, 1
        %v5002 = vsel %vm4942, %v4997, %v5001
        %v5003 = vrot.slane %v4806, 1
        %v5004 = vrot.slane %v4680, 1
        %v5005 = vsel %vm4942, %v5003, %v5004
        %v5006 = vrot.slane %v4807, 1
        %v5007 = vrot.slane %v4681, 1
        %v5008 = vsel %vm4942, %v5006, %v5007
        %v5009 = vrot.slane %v4808, 1
        %v5010 = vsel %vm4942, %v5004, %v5009
        %v5011 = vrot.slane %v4809, 1
        %v5012 = vsel %vm4942, %v5007, %v5011
        %v5013 = vrot.slane %v4810, 1
        %v5014 = vrot.slane %v4684, 1
        %v5015 = vsel %vm4942, %v5013, %v5014
        %v5016 = vrot.slane %v4811, 1
        %v5017 = vrot.slane %v4685, 1
        %v5018 = vsel %vm4942, %v5016, %v5017
        %v5019 = vrot.slane %v4812, 1
        %v5020 = vsel %vm4942, %v5014, %v5019
        %v5021 = vrot.slane %v4813, 1
        %v5022 = vsel %vm4942, %v5017, %v5021
        %v5023 = vrot.slane %v4814, 1
        %v5024 = vrot.slane %v4688, 1
        %v5025 = vsel %vm4942, %v5023, %v5024
        %v5026 = vrot.slane %v4815, 1
        %v5027 = vrot.slane %v4689, 1
        %v5028 = vsel %vm4942, %v5026, %v5027
        %v5029 = vrot.slane %v4816, 1
        %v5030 = vsel %vm4942, %v5024, %v5029
        %v5031 = vrot.slane %v4817, 1
        %v5032 = vsel %vm4942, %v5027, %v5031
        %v5033 = vrot.slane %v4818, 1
        %v5034 = vrot.slane %v4692, 1
        %v5035 = vsel %vm4942, %v5033, %v5034
        %v5036 = vrot.slane %v4819, 1
        %v5037 = vrot.slane %v4693, 1
        %v5038 = vsel %vm4942, %v5036, %v5037
        %v5039 = vrot.slane %v4820, 1
        %v5040 = vsel %vm4942, %v5034, %v5039
        %v5041 = vrot.slane %v4821, 1
        %v5042 = vsel %vm4942, %v5037, %v5041
        %v5043 = vrot.slane %v4822, 1
        %v5044 = vrot.slane %v4696, 1
        %v5045 = vsel %vm4942, %v5043, %v5044
        %v5046 = vrot.slane %v4823, 1
        %v5047 = vrot.slane %v4697, 1
        %v5048 = vsel %vm4942, %v5046, %v5047
        %v5049 = vrot.slane %v4824, 1
        %v5050 = vsel %vm4942, %v5044, %v5049
        %v5051 = vrot.slane %v4825, 1
        %v5052 = vsel %vm4942, %v5047, %v5051
        %v5053 = vrot.slane %v4826, 1
        %v5054 = vrot.slane %v4700, 1
        %v5055 = vsel %vm4942, %v5053, %v5054
        %v5056 = vrot.slane %v4827, 1
        %v5057 = vrot.slane %v4701, 1
        %v5058 = vsel %vm4942, %v5056, %v5057
        %v5059 = vrot.slane %v4828, 1
        %v5060 = vsel %vm4942, %v5054, %v5059
        %v5061 = vrot.slane %v4829, 1
        %v5062 = vsel %vm4942, %v5057, %v5061
        %v5063 = vrot.slane %v4830, 1
        %v5064 = vrot.slane %v4704, 1
        %v5065 = vsel %vm4942, %v5063, %v5064
        %v5066 = vrot.slane %v4831, 1
        %v5067 = vrot.slane %v4705, 1
        %v5068 = vsel %vm4942, %v5066, %v5067
        %v5069 = vrot.slane %v4832, 1
        %v5070 = vsel %vm4942, %v5064, %v5069
        %v5071 = vrot.slane %v4833, 1
        %v5072 = vsel %vm4942, %v5067, %v5071
        %v5073 = vrot.slane %v4834, 1
        %v5074 = vrot.slane %v4708, 1
        %v5075 = vsel %vm4942, %v5073, %v5074
        %v5076 = vrot.slane %v4835, 1
        %v5077 = vrot.slane %v4709, 1
        %v5078 = vsel %vm4942, %v5076, %v5077
        %v5079 = vrot.slane %v4836, 1
        %v5080 = vsel %vm4942, %v5074, %v5079
        %v5081 = vrot.slane %v4837, 1
        %v5082 = vsel %vm4942, %v5077, %v5081
        %v5083 = vrot.slane %v4838, 1
        %v5084 = vrot.slane %v4712, 1
        %v5085 = vsel %vm4942, %v5083, %v5084
        %v5086 = vrot.slane %v4839, 1
        %v5087 = vrot.slane %v4713, 1
        %v5088 = vsel %vm4942, %v5086, %v5087
        %v5089 = vrot.slane %v4840, 1
        %v5090 = vsel %vm4942, %v5084, %v5089
        %v5091 = vrot.slane %v4841, 1
        %v5092 = vsel %vm4942, %v5087, %v5091
        %v5093 = vrot.slane %v4842, 1
        %v5094 = vrot.slane %v4716, 1
        %v5095 = vsel %vm4942, %v5093, %v5094
        %v5096 = vrot.slane %v4843, 1
        %v5097 = vrot.slane %v4717, 1
        %v5098 = vsel %vm4942, %v5096, %v5097
        %v5099 = vrot.slane %v4844, 1
        %v5100 = vsel %vm4942, %v5094, %v5099
        %v5101 = vrot.slane %v4845, 1
        %v5102 = vsel %vm4942, %v5097, %v5101
        %v5167 = vpack.c.bf16 %v4950, %v4945
        %v5168 = vpack.c.bf16 %v4952, %v4948
        %v5169 = vpack.c.bf16 %v4960, %v4955
        %v5170 = vpack.c.bf16 %v4962, %v4958
        %v5171 = vpack.c.bf16 %v4970, %v4965
        %v5172 = vpack.c.bf16 %v4972, %v4968
        %v5173 = vpack.c.bf16 %v4980, %v4975
        %v5174 = vpack.c.bf16 %v4982, %v4978
        %v5175 = vpack.c.bf16 %v4990, %v4985
        %v5176 = vpack.c.bf16 %v4992, %v4988
        %v5177 = vpack.c.bf16 %v5000, %v4995
        %v5178 = vpack.c.bf16 %v5002, %v4998
        %v5179 = vpack.c.bf16 %v5010, %v5005
        %v5180 = vpack.c.bf16 %v5012, %v5008
        %v5181 = vpack.c.bf16 %v5020, %v5015
        %v5182 = vpack.c.bf16 %v5022, %v5018
        %v5183 = vpack.c.bf16 %v5030, %v5025
        %v5184 = vpack.c.bf16 %v5032, %v5028
        %v5185 = vpack.c.bf16 %v5040, %v5035
        %v5186 = vpack.c.bf16 %v5042, %v5038
        %v5187 = vpack.c.bf16 %v5050, %v5045
        %v5188 = vpack.c.bf16 %v5052, %v5048
        %v5189 = vpack.c.bf16 %v5060, %v5055
        %v5190 = vpack.c.bf16 %v5062, %v5058
        %v5191 = vpack.c.bf16 %v5070, %v5065
        %v5192 = vpack.c.bf16 %v5072, %v5068
        %v5193 = vpack.c.bf16 %v5080, %v5075
        %v5194 = vpack.c.bf16 %v5082, %v5078
        %v5195 = vpack.c.bf16 %v5090, %v5085
        %v5196 = vpack.c.bf16 %v5092, %v5088
        %v5197 = vpack.c.bf16 %v5100, %v5095
        %v5198 = vpack.c.bf16 %v5102, %v5098
        %s5199 = scalar_lea.vmem %s2, 256
        %v5200 = vld [vmem:[%s5199] sm:$0xff]
        %v5201 = vld [vmem:[%s5199 + $0x8] sm:$0xff]
        %v5202 = vld [vmem:[%s5199 + $0x10] sm:$0xff]
        %v5203 = vld [vmem:[%s5199 + $0x18] sm:$0xff]
        %v5204 = vld [vmem:[%s5199 + $0x20] sm:$0xff]
        %v5205 = vld [vmem:[%s5199 + $0x28] sm:$0xff]
        %v5206 = vld [vmem:[%s5199 + $0x30] sm:$0xff]
        %v5207 = vld [vmem:[%s5199 + $0x38] sm:$0xff]
        %v5208 = vld [vmem:[%s5199 + $0x40] sm:$0xff]
        %v5209 = vld [vmem:[%s5199 + $0x48] sm:$0xff]
        %v5210 = vld [vmem:[%s5199 + $0x50] sm:$0xff]
        %v5211 = vld [vmem:[%s5199 + $0x58] sm:$0xff]
        %v5212 = vld [vmem:[%s5199 + $0x60] sm:$0xff]
        %v5213 = vld [vmem:[%s5199 + $0x68] sm:$0xff]
        %v5214 = vld [vmem:[%s5199 + $0x70] sm:$0xff]
        %v5215 = vld [vmem:[%s5199 + $0x78] sm:$0xff]
        %v5216 = vld [vmem:[%s5199 + $0x80] sm:$0xff]
        %v5217 = vld [vmem:[%s5199 + $0x88] sm:$0xff]
        %v5218 = vld [vmem:[%s5199 + $0x90] sm:$0xff]
        %v5219 = vld [vmem:[%s5199 + $0x98] sm:$0xff]
        %v5220 = vld [vmem:[%s5199 + $0xa0] sm:$0xff]
        %v5221 = vld [vmem:[%s5199 + $0xa8] sm:$0xff]
        %v5222 = vld [vmem:[%s5199 + $0xb0] sm:$0xff]
        %v5223 = vld [vmem:[%s5199 + $0xb8] sm:$0xff]
        %v5224 = vld [vmem:[%s5199 + $0xc0] sm:$0xff]
        %v5225 = vld [vmem:[%s5199 + $0xc8] sm:$0xff]
        %v5226 = vld [vmem:[%s5199 + $0xd0] sm:$0xff]
        %v5227 = vld [vmem:[%s5199 + $0xd8] sm:$0xff]
        %v5228 = vld [vmem:[%s5199 + $0xe0] sm:$0xff]
        %v5229 = vld [vmem:[%s5199 + $0xe8] sm:$0xff]
        %v5230 = vld [vmem:[%s5199 + $0xf0] sm:$0xff]
        %v5231 = vld [vmem:[%s5199 + $0xf8] sm:$0xff]
        %v5264 = vunpack.c.l.b16 %v5200
        %v5265 = vunpack.c.h.b16 %v5200
        %v5266 = vunpack.c.l.b16 %v5201
        %v5267 = vunpack.c.h.b16 %v5201
        %v5268 = vunpack.c.l.b16 %v5202
        %v5269 = vunpack.c.h.b16 %v5202
        %v5270 = vunpack.c.l.b16 %v5203
        %v5271 = vunpack.c.h.b16 %v5203
        %v5272 = vunpack.c.l.b16 %v5204
        %v5273 = vunpack.c.h.b16 %v5204
        %v5274 = vunpack.c.l.b16 %v5205
        %v5275 = vunpack.c.h.b16 %v5205
        %v5276 = vunpack.c.l.b16 %v5206
        %v5277 = vunpack.c.h.b16 %v5206
        %v5278 = vunpack.c.l.b16 %v5207
        %v5279 = vunpack.c.h.b16 %v5207
        %v5280 = vunpack.c.l.b16 %v5208
        %v5281 = vunpack.c.h.b16 %v5208
        %v5282 = vunpack.c.l.b16 %v5209
        %v5283 = vunpack.c.h.b16 %v5209
        %v5284 = vunpack.c.l.b16 %v5210
        %v5285 = vunpack.c.h.b16 %v5210
        %v5286 = vunpack.c.l.b16 %v5211
        %v5287 = vunpack.c.h.b16 %v5211
        %v5288 = vunpack.c.l.b16 %v5212
        %v5289 = vunpack.c.h.b16 %v5212
        %v5290 = vunpack.c.l.b16 %v5213
        %v5291 = vunpack.c.h.b16 %v5213
        %v5292 = vunpack.c.l.b16 %v5214
        %v5293 = vunpack.c.h.b16 %v5214
        %v5294 = vunpack.c.l.b16 %v5215
        %v5295 = vunpack.c.h.b16 %v5215
        %v5296 = vunpack.c.l.b16 %v5216
        %v5297 = vunpack.c.h.b16 %v5216
        %v5298 = vunpack.c.l.b16 %v5217
        %v5299 = vunpack.c.h.b16 %v5217
        %v5300 = vunpack.c.l.b16 %v5218
        %v5301 = vunpack.c.h.b16 %v5218
        %v5302 = vunpack.c.l.b16 %v5219
        %v5303 = vunpack.c.h.b16 %v5219
        %v5304 = vunpack.c.l.b16 %v5220
        %v5305 = vunpack.c.h.b16 %v5220
        %v5306 = vunpack.c.l.b16 %v5221
        %v5307 = vunpack.c.h.b16 %v5221
        %v5308 = vunpack.c.l.b16 %v5222
        %v5309 = vunpack.c.h.b16 %v5222
        %v5310 = vunpack.c.l.b16 %v5223
        %v5311 = vunpack.c.h.b16 %v5223
        %v5312 = vunpack.c.l.b16 %v5224
        %v5313 = vunpack.c.h.b16 %v5224
        %v5314 = vunpack.c.l.b16 %v5225
        %v5315 = vunpack.c.h.b16 %v5225
        %v5316 = vunpack.c.l.b16 %v5226
        %v5317 = vunpack.c.h.b16 %v5226
        %v5318 = vunpack.c.l.b16 %v5227
        %v5319 = vunpack.c.h.b16 %v5227
        %v5320 = vunpack.c.l.b16 %v5228
        %v5321 = vunpack.c.h.b16 %v5228
        %v5322 = vunpack.c.l.b16 %v5229
        %v5323 = vunpack.c.h.b16 %v5229
        %v5324 = vunpack.c.l.b16 %v5230
        %v5325 = vunpack.c.h.b16 %v5230
        %v5326 = vunpack.c.l.b16 %v5231
        %v5327 = vunpack.c.h.b16 %v5231
        %v5328 = vpack.c.b16 %v5266, %v5264
        %v5329 = vpack.c.b16 %v5267, %v5265
        %v5330 = vpack.c.b16 %v5270, %v5268
        %v5331 = vpack.c.b16 %v5271, %v5269
        %v5332 = vpack.c.b16 %v5274, %v5272
        %v5333 = vpack.c.b16 %v5275, %v5273
        %v5334 = vpack.c.b16 %v5278, %v5276
        %v5335 = vpack.c.b16 %v5279, %v5277
        %v5336 = vpack.c.b16 %v5282, %v5280
        %v5337 = vpack.c.b16 %v5283, %v5281
        %v5338 = vpack.c.b16 %v5286, %v5284
        %v5339 = vpack.c.b16 %v5287, %v5285
        %v5340 = vpack.c.b16 %v5290, %v5288
        %v5341 = vpack.c.b16 %v5291, %v5289
        %v5342 = vpack.c.b16 %v5294, %v5292
        %v5343 = vpack.c.b16 %v5295, %v5293
        %v5344 = vpack.c.b16 %v5298, %v5296
        %v5345 = vpack.c.b16 %v5299, %v5297
        %v5346 = vpack.c.b16 %v5302, %v5300
        %v5347 = vpack.c.b16 %v5303, %v5301
        %v5348 = vpack.c.b16 %v5306, %v5304
        %v5349 = vpack.c.b16 %v5307, %v5305
        %v5350 = vpack.c.b16 %v5310, %v5308
        %v5351 = vpack.c.b16 %v5311, %v5309
        %v5352 = vpack.c.b16 %v5314, %v5312
        %v5353 = vpack.c.b16 %v5315, %v5313
        %v5354 = vpack.c.b16 %v5318, %v5316
        %v5355 = vpack.c.b16 %v5319, %v5317
        %v5356 = vpack.c.b16 %v5322, %v5320
        %v5357 = vpack.c.b16 %v5323, %v5321
        %v5358 = vpack.c.b16 %v5326, %v5324
        %v5359 = vpack.c.b16 %v5327, %v5325
        %5392 = vmatprep.subr.bf16.mxu0 %v5343
        %5393 = vmatpush1.bf16.msra.mxu0 %v5342
        %5394 = vmatprep.subr.bf16.mxu0 %v5341
        %5395 = vmatpush1.bf16.msra.mxu0 %v5340
        %5396 = vmatprep.subr.bf16.mxu0 %v5339
        %5397 = vmatpush1.bf16.msra.mxu0 %v5338
        %5398 = vmatprep.subr.bf16.mxu0 %v5337
        %5399 = vmatpush1.bf16.msra.mxu0 %v5336
        %5400 = vmatprep.subr.bf16.mxu0 %v5335
        %5401 = vmatpush1.bf16.msra.mxu0 %v5334
        %5402 = vmatprep.subr.bf16.mxu0 %v5333
        %5403 = vmatpush1.bf16.msra.mxu0 %v5332
        %5404 = vmatprep.subr.bf16.mxu0 %v5331
        %5405 = vmatpush1.bf16.msra.mxu0 %v5330
        %5406 = vmatprep.subr.bf16.mxu0 %v5329
        %5407 = vmatpush1.bf16.msra.mxu0 %v5328
        %5408 = vmatprep.subr.bf16.mxu0 %v5359
        %5409 = vmatpush2.bf16.msra.mxu0 %v5358
        %5410 = vmatprep.subr.bf16.mxu0 %v5357
        %5411 = vmatpush2.bf16.msra.mxu0 %v5356
        %5412 = vmatprep.subr.bf16.mxu0 %v5355
        %5413 = vmatpush2.bf16.msra.mxu0 %v5354
        %5414 = vmatprep.subr.bf16.mxu0 %v5353
        %5415 = vmatpush2.bf16.msra.mxu0 %v5352
        %5416 = vmatprep.subr.bf16.mxu0 %v5351
        %5417 = vmatpush2.bf16.msra.mxu0 %v5350
        %5418 = vmatprep.subr.bf16.mxu0 %v5349
        %5419 = vmatpush2.bf16.msra.mxu0 %v5348
        %5420 = vmatprep.subr.bf16.mxu0 %v5347
        %5421 = vmatpush2.bf16.msra.mxu0 %v5346
        %5422 = vmatprep.subr.bf16.mxu0 %v5345
        %5423 = vmatpush2.bf16.msra.mxu0 %v5344
        %5424 = vmatprep.mubr.bf16.mxu0 %v5168
        %5425 = vmatmul.mubr.bf16.gmra.mxu0 %v5167
        %v5426 = vpop.f32.mrf.mxu0
        %v5427 = vadd.f32 0.0, %v5426
        %v5428 = vpop.f32.mrf.mxu0
        %v5429 = vadd.f32 0.0, %v5428
        %v5430 = vpop.f32.mrf.mxu0
        %v5431 = vadd.f32 0.0, %v5430
        %v5432 = vpop.f32.mrf.mxu0
        %v5433 = vadd.f32 0.0, %v5432
        %5434 = vmatprep.mubr.bf16.mxu0 %v5170
        %5435 = vmatmul.mubr.bf16.gmra.mxu0 %v5169
        %v5436 = vpop.f32.mrf.mxu0
        %v5437 = vadd.f32 0.0, %v5436
        %v5438 = vpop.f32.mrf.mxu0
        %v5439 = vadd.f32 0.0, %v5438
        %v5440 = vpop.f32.mrf.mxu0
        %v5441 = vadd.f32 0.0, %v5440
        %v5442 = vpop.f32.mrf.mxu0
        %v5443 = vadd.f32 0.0, %v5442
        %5444 = vmatprep.mubr.bf16.mxu0 %v5172
        %5445 = vmatmul.mubr.bf16.gmra.mxu0 %v5171
        %v5446 = vpop.f32.mrf.mxu0
        %v5447 = vadd.f32 0.0, %v5446
        %v5448 = vpop.f32.mrf.mxu0
        %v5449 = vadd.f32 0.0, %v5448
        %v5450 = vpop.f32.mrf.mxu0
        %v5451 = vadd.f32 0.0, %v5450
        %v5452 = vpop.f32.mrf.mxu0
        %v5453 = vadd.f32 0.0, %v5452
        %5454 = vmatprep.mubr.bf16.mxu0 %v5174
        %5455 = vmatmul.mubr.bf16.gmra.mxu0 %v5173
        %v5456 = vpop.f32.mrf.mxu0
        %v5457 = vadd.f32 0.0, %v5456
        %v5458 = vpop.f32.mrf.mxu0
        %v5459 = vadd.f32 0.0, %v5458
        %v5460 = vpop.f32.mrf.mxu0
        %v5461 = vadd.f32 0.0, %v5460
        %v5462 = vpop.f32.mrf.mxu0
        %v5463 = vadd.f32 0.0, %v5462
        %5464 = vmatprep.mubr.bf16.mxu0 %v5176
        %5465 = vmatmul.mubr.bf16.gmra.mxu0 %v5175
        %v5466 = vpop.f32.mrf.mxu0
        %v5467 = vadd.f32 0.0, %v5466
        %v5468 = vpop.f32.mrf.mxu0
        %v5469 = vadd.f32 0.0, %v5468
        %v5470 = vpop.f32.mrf.mxu0
        %v5471 = vadd.f32 0.0, %v5470
        %v5472 = vpop.f32.mrf.mxu0
        %v5473 = vadd.f32 0.0, %v5472
        %5474 = vmatprep.mubr.bf16.mxu0 %v5178
        %5475 = vmatmul.mubr.bf16.gmra.mxu0 %v5177
        %v5476 = vpop.f32.mrf.mxu0
        %v5477 = vadd.f32 0.0, %v5476
        %v5478 = vpop.f32.mrf.mxu0
        %v5479 = vadd.f32 0.0, %v5478
        %v5480 = vpop.f32.mrf.mxu0
        %v5481 = vadd.f32 0.0, %v5480
        %v5482 = vpop.f32.mrf.mxu0
        %v5483 = vadd.f32 0.0, %v5482
        %5484 = vmatprep.mubr.bf16.mxu0 %v5180
        %5485 = vmatmul.mubr.bf16.gmra.mxu0 %v5179
        %v5486 = vpop.f32.mrf.mxu0
        %v5487 = vadd.f32 0.0, %v5486
        %v5488 = vpop.f32.mrf.mxu0
        %v5489 = vadd.f32 0.0, %v5488
        %v5490 = vpop.f32.mrf.mxu0
        %v5491 = vadd.f32 0.0, %v5490
        %v5492 = vpop.f32.mrf.mxu0
        %v5493 = vadd.f32 0.0, %v5492
        %5494 = vmatprep.mubr.bf16.mxu0 %v5182
        %5495 = vmatmul.mubr.bf16.gmra.mxu0 %v5181
        %v5496 = vpop.f32.mrf.mxu0
        %v5497 = vadd.f32 0.0, %v5496
        %v5498 = vpop.f32.mrf.mxu0
        %v5499 = vadd.f32 0.0, %v5498
        %v5500 = vpop.f32.mrf.mxu0
        %v5501 = vadd.f32 0.0, %v5500
        %v5502 = vpop.f32.mrf.mxu0
        %v5503 = vadd.f32 0.0, %v5502
        %5504 = vmatprep.mubr.bf16.mxu0 %v5184
        %5505 = vmatmul.mubr.bf16.gmra.mxu0 %v5183
        %v5506 = vpop.f32.mrf.mxu0
        %v5507 = vadd.f32 0.0, %v5506
        %v5508 = vpop.f32.mrf.mxu0
        %v5509 = vadd.f32 0.0, %v5508
        %v5510 = vpop.f32.mrf.mxu0
        %v5511 = vadd.f32 0.0, %v5510
        %v5512 = vpop.f32.mrf.mxu0
        %v5513 = vadd.f32 0.0, %v5512
        %5514 = vmatprep.mubr.bf16.mxu0 %v5186
        %5515 = vmatmul.mubr.bf16.gmra.mxu0 %v5185
        %v5516 = vpop.f32.mrf.mxu0
        %v5517 = vadd.f32 0.0, %v5516
        %v5518 = vpop.f32.mrf.mxu0
        %v5519 = vadd.f32 0.0, %v5518
        %v5520 = vpop.f32.mrf.mxu0
        %v5521 = vadd.f32 0.0, %v5520
        %v5522 = vpop.f32.mrf.mxu0
        %v5523 = vadd.f32 0.0, %v5522
        %5524 = vmatprep.mubr.bf16.mxu0 %v5188
        %5525 = vmatmul.mubr.bf16.gmra.mxu0 %v5187
        %v5526 = vpop.f32.mrf.mxu0
        %v5527 = vadd.f32 0.0, %v5526
        %v5528 = vpop.f32.mrf.mxu0
        %v5529 = vadd.f32 0.0, %v5528
        %v5530 = vpop.f32.mrf.mxu0
        %v5531 = vadd.f32 0.0, %v5530
        %v5532 = vpop.f32.mrf.mxu0
        %v5533 = vadd.f32 0.0, %v5532
        %5534 = vmatprep.mubr.bf16.mxu0 %v5190
        %5535 = vmatmul.mubr.bf16.gmra.mxu0 %v5189
        %v5536 = vpop.f32.mrf.mxu0
        %v5537 = vadd.f32 0.0, %v5536
        %v5538 = vpop.f32.mrf.mxu0
        %v5539 = vadd.f32 0.0, %v5538
        %v5540 = vpop.f32.mrf.mxu0
        %v5541 = vadd.f32 0.0, %v5540
        %v5542 = vpop.f32.mrf.mxu0
        %v5543 = vadd.f32 0.0, %v5542
        %5544 = vmatprep.mubr.bf16.mxu0 %v5192
        %5545 = vmatmul.mubr.bf16.gmra.mxu0 %v5191
        %v5546 = vpop.f32.mrf.mxu0
        %v5547 = vadd.f32 0.0, %v5546
        %v5548 = vpop.f32.mrf.mxu0
        %v5549 = vadd.f32 0.0, %v5548
        %v5550 = vpop.f32.mrf.mxu0
        %v5551 = vadd.f32 0.0, %v5550
        %v5552 = vpop.f32.mrf.mxu0
        %v5553 = vadd.f32 0.0, %v5552
        %5554 = vmatprep.mubr.bf16.mxu0 %v5194
        %5555 = vmatmul.mubr.bf16.gmra.mxu0 %v5193
        %v5556 = vpop.f32.mrf.mxu0
        %v5557 = vadd.f32 0.0, %v5556
        %v5558 = vpop.f32.mrf.mxu0
        %v5559 = vadd.f32 0.0, %v5558
        %v5560 = vpop.f32.mrf.mxu0
        %v5561 = vadd.f32 0.0, %v5560
        %v5562 = vpop.f32.mrf.mxu0
        %v5563 = vadd.f32 0.0, %v5562
        %5564 = vmatprep.mubr.bf16.mxu0 %v5196
        %5565 = vmatmul.mubr.bf16.gmra.mxu0 %v5195
        %v5566 = vpop.f32.mrf.mxu0
        %v5567 = vadd.f32 0.0, %v5566
        %v5568 = vpop.f32.mrf.mxu0
        %v5569 = vadd.f32 0.0, %v5568
        %v5570 = vpop.f32.mrf.mxu0
        %v5571 = vadd.f32 0.0, %v5570
        %v5572 = vpop.f32.mrf.mxu0
        %v5573 = vadd.f32 0.0, %v5572
        %5574 = vmatprep.mubr.bf16.mxu0 %v5198
        %5575 = vmatmul.mubr.bf16.gmra.mxu0 %v5197
        %v5576 = vpop.f32.mrf.mxu0
        %v5577 = vadd.f32 0.0, %v5576
        %v5578 = vpop.f32.mrf.mxu0
        %v5579 = vadd.f32 0.0, %v5578
        %v5580 = vpop.f32.mrf.mxu0
        %v5581 = vadd.f32 0.0, %v5580
        %v5582 = vpop.f32.mrf.mxu0
        %v5583 = vadd.f32 0.0, %v5582
        %5584 = vdwg.mxu0
        %v5617 = vunpack.c.l.b16 %v4750
        %v5618 = vunpack.c.h.b16 %v4750
        %v5619 = vunpack.c.l.b16 %v4751
        %v5620 = vunpack.c.h.b16 %v4751
        %v5621 = vunpack.c.l.b16 %v4752
        %v5622 = vunpack.c.h.b16 %v4752
        %v5623 = vunpack.c.l.b16 %v4753
        %v5624 = vunpack.c.h.b16 %v4753
        %v5625 = vunpack.c.l.b16 %v4754
        %v5626 = vunpack.c.h.b16 %v4754
        %v5627 = vunpack.c.l.b16 %v4755
        %v5628 = vunpack.c.h.b16 %v4755
        %v5629 = vunpack.c.l.b16 %v4756
        %v5630 = vunpack.c.h.b16 %v4756
        %v5631 = vunpack.c.l.b16 %v4757
        %v5632 = vunpack.c.h.b16 %v4757
        %v5633 = vunpack.c.l.b16 %v4758
        %v5634 = vunpack.c.h.b16 %v4758
        %v5635 = vunpack.c.l.b16 %v4759
        %v5636 = vunpack.c.h.b16 %v4759
        %v5637 = vunpack.c.l.b16 %v4760
        %v5638 = vunpack.c.h.b16 %v4760
        %v5639 = vunpack.c.l.b16 %v4761
        %v5640 = vunpack.c.h.b16 %v4761
        %v5641 = vunpack.c.l.b16 %v4762
        %v5642 = vunpack.c.h.b16 %v4762
        %v5643 = vunpack.c.l.b16 %v4763
        %v5644 = vunpack.c.h.b16 %v4763
        %v5645 = vunpack.c.l.b16 %v4764
        %v5646 = vunpack.c.h.b16 %v4764
        %v5647 = vunpack.c.l.b16 %v4765
        %v5648 = vunpack.c.h.b16 %v4765
        %v5649 = vunpack.c.l.b16 %v4766
        %v5650 = vunpack.c.h.b16 %v4766
        %v5651 = vunpack.c.l.b16 %v4767
        %v5652 = vunpack.c.h.b16 %v4767
        %v5653 = vunpack.c.l.b16 %v4768
        %v5654 = vunpack.c.h.b16 %v4768
        %v5655 = vunpack.c.l.b16 %v4769
        %v5656 = vunpack.c.h.b16 %v4769
        %v5657 = vunpack.c.l.b16 %v4770
        %v5658 = vunpack.c.h.b16 %v4770
        %v5659 = vunpack.c.l.b16 %v4771
        %v5660 = vunpack.c.h.b16 %v4771
        %v5661 = vunpack.c.l.b16 %v4772
        %v5662 = vunpack.c.h.b16 %v4772
        %v5663 = vunpack.c.l.b16 %v4773
        %v5664 = vunpack.c.h.b16 %v4773
        %v5665 = vunpack.c.l.b16 %v4774
        %v5666 = vunpack.c.h.b16 %v4774
        %v5667 = vunpack.c.l.b16 %v4775
        %v5668 = vunpack.c.h.b16 %v4775
        %v5669 = vunpack.c.l.b16 %v4776
        %v5670 = vunpack.c.h.b16 %v4776
        %v5671 = vunpack.c.l.b16 %v4777
        %v5672 = vunpack.c.h.b16 %v4777
        %v5673 = vunpack.c.l.b16 %v4778
        %v5674 = vunpack.c.h.b16 %v4778
        %v5675 = vunpack.c.l.b16 %v4779
        %v5676 = vunpack.c.h.b16 %v4779
        %v5677 = vunpack.c.l.b16 %v4780
        %v5678 = vunpack.c.h.b16 %v4780
        %v5679 = vunpack.c.l.b16 %v4781
        %v5680 = vunpack.c.h.b16 %v4781
        %v5681 = vpack.c.b16 %v5619, %v5617
        %v5682 = vpack.c.b16 %v5620, %v5618
        %v5683 = vpack.c.b16 %v5623, %v5621
        %v5684 = vpack.c.b16 %v5624, %v5622
        %v5685 = vpack.c.b16 %v5627, %v5625
        %v5686 = vpack.c.b16 %v5628, %v5626
        %v5687 = vpack.c.b16 %v5631, %v5629
        %v5688 = vpack.c.b16 %v5632, %v5630
        %v5689 = vpack.c.b16 %v5635, %v5633
        %v5690 = vpack.c.b16 %v5636, %v5634
        %v5691 = vpack.c.b16 %v5639, %v5637
        %v5692 = vpack.c.b16 %v5640, %v5638
        %v5693 = vpack.c.b16 %v5643, %v5641
        %v5694 = vpack.c.b16 %v5644, %v5642
        %v5695 = vpack.c.b16 %v5647, %v5645
        %v5696 = vpack.c.b16 %v5648, %v5646
        %v5697 = vpack.c.b16 %v5651, %v5649
        %v5698 = vpack.c.b16 %v5652, %v5650
        %v5699 = vpack.c.b16 %v5655, %v5653
        %v5700 = vpack.c.b16 %v5656, %v5654
        %v5701 = vpack.c.b16 %v5659, %v5657
        %v5702 = vpack.c.b16 %v5660, %v5658
        %v5703 = vpack.c.b16 %v5663, %v5661
        %v5704 = vpack.c.b16 %v5664, %v5662
        %v5705 = vpack.c.b16 %v5667, %v5665
        %v5706 = vpack.c.b16 %v5668, %v5666
        %v5707 = vpack.c.b16 %v5671, %v5669
        %v5708 = vpack.c.b16 %v5672, %v5670
        %v5709 = vpack.c.b16 %v5675, %v5673
        %v5710 = vpack.c.b16 %v5676, %v5674
        %v5711 = vpack.c.b16 %v5679, %v5677
        %v5712 = vpack.c.b16 %v5680, %v5678
        %5745 = vmatprep.subr.bf16.mxu0 %v5696
        %5746 = vmatpush1.bf16.msra.mxu0 %v5695
        %5747 = vmatprep.subr.bf16.mxu0 %v5694
        %5748 = vmatpush1.bf16.msra.mxu0 %v5693
        %5749 = vmatprep.subr.bf16.mxu0 %v5692
        %5750 = vmatpush1.bf16.msra.mxu0 %v5691
        %5751 = vmatprep.subr.bf16.mxu0 %v5690
        %5752 = vmatpush1.bf16.msra.mxu0 %v5689
        %5753 = vmatprep.subr.bf16.mxu0 %v5688
        %5754 = vmatpush1.bf16.msra.mxu0 %v5687
        %5755 = vmatprep.subr.bf16.mxu0 %v5686
        %5756 = vmatpush1.bf16.msra.mxu0 %v5685
        %5757 = vmatprep.subr.bf16.mxu0 %v5684
        %5758 = vmatpush1.bf16.msra.mxu0 %v5683
        %5759 = vmatprep.subr.bf16.mxu0 %v5682
        %5760 = vmatpush1.bf16.msra.mxu0 %v5681
        %5761 = vmatprep.subr.bf16.mxu0 %v5712
        %5762 = vmatpush2.bf16.msra.mxu0 %v5711
        %5763 = vmatprep.subr.bf16.mxu0 %v5710
        %5764 = vmatpush2.bf16.msra.mxu0 %v5709
        %5765 = vmatprep.subr.bf16.mxu0 %v5708
        %5766 = vmatpush2.bf16.msra.mxu0 %v5707
        %5767 = vmatprep.subr.bf16.mxu0 %v5706
        %5768 = vmatpush2.bf16.msra.mxu0 %v5705
        %5769 = vmatprep.subr.bf16.mxu0 %v5704
        %5770 = vmatpush2.bf16.msra.mxu0 %v5703
        %5771 = vmatprep.subr.bf16.mxu0 %v5702
        %5772 = vmatpush2.bf16.msra.mxu0 %v5701
        %5773 = vmatprep.subr.bf16.mxu0 %v5700
        %5774 = vmatpush2.bf16.msra.mxu0 %v5699
        %5775 = vmatprep.subr.bf16.mxu0 %v5698
        %5776 = vmatpush2.bf16.msra.mxu0 %v5697
        %5777 = vmatprep.mubr.bf16.mxu0 %v4719
        %5778 = vmatmul.mubr.bf16.gmra.mxu0 %v4718
        %v5779 = vpop.f32.mrf.mxu0
        %v5780 = vadd.f32 %v5427, %v5779
        %v5781 = vpop.f32.mrf.mxu0
        %v5782 = vadd.f32 %v5429, %v5781
        %v5783 = vpop.f32.mrf.mxu0
        %v5784 = vadd.f32 %v5431, %v5783
        %v5785 = vpop.f32.mrf.mxu0
        %v5786 = vadd.f32 %v5433, %v5785
        %5787 = vmatprep.mubr.bf16.mxu0 %v4721
        %5788 = vmatmul.mubr.bf16.gmra.mxu0 %v4720
        %v5789 = vpop.f32.mrf.mxu0
        %v5790 = vadd.f32 %v5437, %v5789
        %v5791 = vpop.f32.mrf.mxu0
        %v5792 = vadd.f32 %v5439, %v5791
        %v5793 = vpop.f32.mrf.mxu0
        %v5794 = vadd.f32 %v5441, %v5793
        %v5795 = vpop.f32.mrf.mxu0
        %v5796 = vadd.f32 %v5443, %v5795
        %5797 = vmatprep.mubr.bf16.mxu0 %v4723
        %5798 = vmatmul.mubr.bf16.gmra.mxu0 %v4722
        %v5799 = vpop.f32.mrf.mxu0
        %v5800 = vadd.f32 %v5447, %v5799
        %v5801 = vpop.f32.mrf.mxu0
        %v5802 = vadd.f32 %v5449, %v5801
        %v5803 = vpop.f32.mrf.mxu0
        %v5804 = vadd.f32 %v5451, %v5803
        %v5805 = vpop.f32.mrf.mxu0
        %v5806 = vadd.f32 %v5453, %v5805
        %5807 = vmatprep.mubr.bf16.mxu0 %v4725
        %5808 = vmatmul.mubr.bf16.gmra.mxu0 %v4724
        %v5809 = vpop.f32.mrf.mxu0
        %v5810 = vadd.f32 %v5457, %v5809
        %v5811 = vpop.f32.mrf.mxu0
        %v5812 = vadd.f32 %v5459, %v5811
        %v5813 = vpop.f32.mrf.mxu0
        %v5814 = vadd.f32 %v5461, %v5813
        %v5815 = vpop.f32.mrf.mxu0
        %v5816 = vadd.f32 %v5463, %v5815
        %5817 = vmatprep.mubr.bf16.mxu0 %v4727
        %5818 = vmatmul.mubr.bf16.gmra.mxu0 %v4726
        %v5819 = vpop.f32.mrf.mxu0
        %v5820 = vadd.f32 %v5467, %v5819
        %v5821 = vpop.f32.mrf.mxu0
        %v5822 = vadd.f32 %v5469, %v5821
        %v5823 = vpop.f32.mrf.mxu0
        %v5824 = vadd.f32 %v5471, %v5823
        %v5825 = vpop.f32.mrf.mxu0
        %v5826 = vadd.f32 %v5473, %v5825
        %5827 = vmatprep.mubr.bf16.mxu0 %v4729
        %5828 = vmatmul.mubr.bf16.gmra.mxu0 %v4728
        %v5829 = vpop.f32.mrf.mxu0
        %v5830 = vadd.f32 %v5477, %v5829
        %v5831 = vpop.f32.mrf.mxu0
        %v5832 = vadd.f32 %v5479, %v5831
        %v5833 = vpop.f32.mrf.mxu0
        %v5834 = vadd.f32 %v5481, %v5833
        %v5835 = vpop.f32.mrf.mxu0
        %v5836 = vadd.f32 %v5483, %v5835
        %5837 = vmatprep.mubr.bf16.mxu0 %v4731
        %5838 = vmatmul.mubr.bf16.gmra.mxu0 %v4730
        %v5839 = vpop.f32.mrf.mxu0
        %v5840 = vadd.f32 %v5487, %v5839
        %v5841 = vpop.f32.mrf.mxu0
        %v5842 = vadd.f32 %v5489, %v5841
        %v5843 = vpop.f32.mrf.mxu0
        %v5844 = vadd.f32 %v5491, %v5843
        %v5845 = vpop.f32.mrf.mxu0
        %v5846 = vadd.f32 %v5493, %v5845
        %5847 = vmatprep.mubr.bf16.mxu0 %v4733
        %5848 = vmatmul.mubr.bf16.gmra.mxu0 %v4732
        %v5849 = vpop.f32.mrf.mxu0
        %v5850 = vadd.f32 %v5497, %v5849
        %v5851 = vpop.f32.mrf.mxu0
        %v5852 = vadd.f32 %v5499, %v5851
        %v5853 = vpop.f32.mrf.mxu0
        %v5854 = vadd.f32 %v5501, %v5853
        %v5855 = vpop.f32.mrf.mxu0
        %v5856 = vadd.f32 %v5503, %v5855
        %5857 = vmatprep.mubr.bf16.mxu0 %v4735
        %5858 = vmatmul.mubr.bf16.gmra.mxu0 %v4734
        %v5859 = vpop.f32.mrf.mxu0
        %v5860 = vadd.f32 %v5507, %v5859
        %v5861 = vpop.f32.mrf.mxu0
        %v5862 = vadd.f32 %v5509, %v5861
        %v5863 = vpop.f32.mrf.mxu0
        %v5864 = vadd.f32 %v5511, %v5863
        %v5865 = vpop.f32.mrf.mxu0
        %v5866 = vadd.f32 %v5513, %v5865
        %5867 = vmatprep.mubr.bf16.mxu0 %v4737
        %5868 = vmatmul.mubr.bf16.gmra.mxu0 %v4736
        %v5869 = vpop.f32.mrf.mxu0
        %v5870 = vadd.f32 %v5517, %v5869
        %v5871 = vpop.f32.mrf.mxu0
        %v5872 = vadd.f32 %v5519, %v5871
        %v5873 = vpop.f32.mrf.mxu0
        %v5874 = vadd.f32 %v5521, %v5873
        %v5875 = vpop.f32.mrf.mxu0
        %v5876 = vadd.f32 %v5523, %v5875
        %5877 = vmatprep.mubr.bf16.mxu0 %v4739
        %5878 = vmatmul.mubr.bf16.gmra.mxu0 %v4738
        %v5879 = vpop.f32.mrf.mxu0
        %v5880 = vadd.f32 %v5527, %v5879
        %v5881 = vpop.f32.mrf.mxu0
        %v5882 = vadd.f32 %v5529, %v5881
        %v5883 = vpop.f32.mrf.mxu0
        %v5884 = vadd.f32 %v5531, %v5883
        %v5885 = vpop.f32.mrf.mxu0
        %v5886 = vadd.f32 %v5533, %v5885
        %5887 = vmatprep.mubr.bf16.mxu0 %v4741
        %5888 = vmatmul.mubr.bf16.gmra.mxu0 %v4740
        %v5889 = vpop.f32.mrf.mxu0
        %v5890 = vadd.f32 %v5537, %v5889
        %v5891 = vpop.f32.mrf.mxu0
        %v5892 = vadd.f32 %v5539, %v5891
        %v5893 = vpop.f32.mrf.mxu0
        %v5894 = vadd.f32 %v5541, %v5893
        %v5895 = vpop.f32.mrf.mxu0
        %v5896 = vadd.f32 %v5543, %v5895
        %5897 = vmatprep.mubr.bf16.mxu0 %v4743
        %5898 = vmatmul.mubr.bf16.gmra.mxu0 %v4742
        %v5899 = vpop.f32.mrf.mxu0
        %v5900 = vadd.f32 %v5547, %v5899
        %v5901 = vpop.f32.mrf.mxu0
        %v5902 = vadd.f32 %v5549, %v5901
        %v5903 = vpop.f32.mrf.mxu0
        %v5904 = vadd.f32 %v5551, %v5903
        %v5905 = vpop.f32.mrf.mxu0
        %v5906 = vadd.f32 %v5553, %v5905
        %5907 = vmatprep.mubr.bf16.mxu0 %v4745
        %5908 = vmatmul.mubr.bf16.gmra.mxu0 %v4744
        %v5909 = vpop.f32.mrf.mxu0
        %v5910 = vadd.f32 %v5557, %v5909
        %v5911 = vpop.f32.mrf.mxu0
        %v5912 = vadd.f32 %v5559, %v5911
        %v5913 = vpop.f32.mrf.mxu0
        %v5914 = vadd.f32 %v5561, %v5913
        %v5915 = vpop.f32.mrf.mxu0
        %v5916 = vadd.f32 %v5563, %v5915
        %5917 = vmatprep.mubr.bf16.mxu0 %v4747
        %5918 = vmatmul.mubr.bf16.gmra.mxu0 %v4746
        %v5919 = vpop.f32.mrf.mxu0
        %v5920 = vadd.f32 %v5567, %v5919
        %v5921 = vpop.f32.mrf.mxu0
        %v5922 = vadd.f32 %v5569, %v5921
        %v5923 = vpop.f32.mrf.mxu0
        %v5924 = vadd.f32 %v5571, %v5923
        %v5925 = vpop.f32.mrf.mxu0
        %v5926 = vadd.f32 %v5573, %v5925
        %5927 = vmatprep.mubr.bf16.mxu0 %v4749
        %5928 = vmatmul.mubr.bf16.gmra.mxu0 %v4748
        %v5929 = vpop.f32.mrf.mxu0
        %v5930 = vadd.f32 %v5577, %v5929
        %v5931 = vpop.f32.mrf.mxu0
        %v5932 = vadd.f32 %v5579, %v5931
        %v5933 = vpop.f32.mrf.mxu0
        %v5934 = vadd.f32 %v5581, %v5933
        %v5935 = vpop.f32.mrf.mxu0
        %v5936 = vadd.f32 %v5583, %v5935
        %5937 = vdwg.mxu0
        %v5938 = vld [vmem:[#allocation3] sm:$0xfc]
        %v5939 = vld [vmem:[#allocation3 + $0x8] sm:$0xfc]
        %v5940 = vld [vmem:[#allocation3 + $0x20] sm:$0x3]
        %v5941 = vld [vmem:[#allocation3 + $0x28] sm:$0x3]
        %v5942 = vld [vmem:[#allocation3 + $0x30] sm:$0xfc]
        %v5943 = vld [vmem:[#allocation3 + $0x38] sm:$0xfc]
        %v5944 = vld [vmem:[#allocation3 + $0x50] sm:$0x3]
        %v5945 = vld [vmem:[#allocation3 + $0x58] sm:$0x3]
        %v5946 = vld [vmem:[#allocation3 + $0x60] sm:$0xfc]
        %v5947 = vld [vmem:[#allocation3 + $0x68] sm:$0xfc]
        %v5948 = vld [vmem:[#allocation3 + $0x80] sm:$0x3]
        %v5949 = vld [vmem:[#allocation3 + $0x88] sm:$0x3]
        %v5950 = vld [vmem:[#allocation3 + $0x90] sm:$0xfc]
        %v5951 = vld [vmem:[#allocation3 + $0x98] sm:$0xfc]
        %v5952 = vld [vmem:[#allocation3 + $0xb0] sm:$0x3]
        %v5953 = vld [vmem:[#allocation3 + $0xb8] sm:$0x3]
        %v5954 = vld [vmem:[#allocation3 + $0xc0] sm:$0xfc]
        %v5955 = vld [vmem:[#allocation3 + $0xc8] sm:$0xfc]
        %v5956 = vld [vmem:[#allocation3 + $0xe0] sm:$0x3]
        %v5957 = vld [vmem:[#allocation3 + $0xe8] sm:$0x3]
        %v5958 = vld [vmem:[#allocation3 + $0xf0] sm:$0xfc]
        %v5959 = vld [vmem:[#allocation3 + $0xf8] sm:$0xfc]
        %v5960 = vld [vmem:[#allocation3 + $0x110] sm:$0x3]
        %v5961 = vld [vmem:[#allocation3 + $0x118] sm:$0x3]
        %v5962 = vld [vmem:[#allocation3 + $0x120] sm:$0xfc]
        %v5963 = vld [vmem:[#allocation3 + $0x128] sm:$0xfc]
        %v5964 = vld [vmem:[#allocation3 + $0x140] sm:$0x3]
        %v5965 = vld [vmem:[#allocation3 + $0x148] sm:$0x3]
        %v5966 = vld [vmem:[#allocation3 + $0x150] sm:$0xfc]
        %v5967 = vld [vmem:[#allocation3 + $0x158] sm:$0xfc]
        %v5968 = vld [vmem:[#allocation3 + $0x170] sm:$0x3]
        %v5969 = vld [vmem:[#allocation3 + $0x178] sm:$0x3]
        %v5970 = vld [vmem:[#allocation3 + $0x180] sm:$0xfc]
        %v5971 = vld [vmem:[#allocation3 + $0x188] sm:$0xfc]
        %v5972 = vld [vmem:[#allocation3 + $0x1a0] sm:$0x3]
        %v5973 = vld [vmem:[#allocation3 + $0x1a8] sm:$0x3]
        %v5974 = vld [vmem:[#allocation3 + $0x1b0] sm:$0xfc]
        %v5975 = vld [vmem:[#allocation3 + $0x1b8] sm:$0xfc]
        %v5976 = vld [vmem:[#allocation3 + $0x1d0] sm:$0x3]
        %v5977 = vld [vmem:[#allocation3 + $0x1d8] sm:$0x3]
        %v5978 = vld [vmem:[#allocation3 + $0x1e0] sm:$0xfc]
        %v5979 = vld [vmem:[#allocation3 + $0x1e8] sm:$0xfc]
        %v5980 = vld [vmem:[#allocation3 + $0x200] sm:$0x3]
        %v5981 = vld [vmem:[#allocation3 + $0x208] sm:$0x3]
        %v5982 = vld [vmem:[#allocation3 + $0x210] sm:$0xfc]
        %v5983 = vld [vmem:[#allocation3 + $0x218] sm:$0xfc]
        %v5984 = vld [vmem:[#allocation3 + $0x230] sm:$0x3]
        %v5985 = vld [vmem:[#allocation3 + $0x238] sm:$0x3]
        %v5986 = vld [vmem:[#allocation3 + $0x240] sm:$0xfc]
        %v5987 = vld [vmem:[#allocation3 + $0x248] sm:$0xfc]
        %v5988 = vld [vmem:[#allocation3 + $0x260] sm:$0x3]
        %v5989 = vld [vmem:[#allocation3 + $0x268] sm:$0x3]
        %v5990 = vld [vmem:[#allocation3 + $0x270] sm:$0xfc]
        %v5991 = vld [vmem:[#allocation3 + $0x278] sm:$0xfc]
        %v5992 = vld [vmem:[#allocation3 + $0x290] sm:$0x3]
        %v5993 = vld [vmem:[#allocation3 + $0x298] sm:$0x3]
        %v5994 = vld [vmem:[#allocation3 + $0x2a0] sm:$0xfc]
        %v5995 = vld [vmem:[#allocation3 + $0x2a8] sm:$0xfc]
        %v5996 = vld [vmem:[#allocation3 + $0x2c0] sm:$0x3]
        %v5997 = vld [vmem:[#allocation3 + $0x2c8] sm:$0x3]
        %v5998 = vld [vmem:[#allocation3 + $0x2d0] sm:$0xfc]
        %v5999 = vld [vmem:[#allocation3 + $0x2d8] sm:$0xfc]
        %v6000 = vld [vmem:[#allocation3 + $0x2f0] sm:$0x3]
        %v6001 = vld [vmem:[#allocation3 + $0x2f8] sm:$0x3]
        %vm6066 = vcmask 1045504
        %v6067 = vrot.slane %v5938, 2
        %v6068 = vrot.slane %v4656, 2
        %v6069 = vsel %vm6066, %v6067, %v6068
        %v6070 = vrot.slane %v5939, 2
        %v6071 = vrot.slane %v4657, 2
        %v6072 = vsel %vm6066, %v6070, %v6071
        %v6073 = vrot.slane %v5940, 2
        %v6074 = vsel %vm6066, %v6068, %v6073
        %v6075 = vrot.slane %v5941, 2
        %v6076 = vsel %vm6066, %v6071, %v6075
        %v6077 = vrot.slane %v5942, 2
        %v6078 = vrot.slane %v4660, 2
        %v6079 = vsel %vm6066, %v6077, %v6078
        %v6080 = vrot.slane %v5943, 2
        %v6081 = vrot.slane %v4661, 2
        %v6082 = vsel %vm6066, %v6080, %v6081
        %v6083 = vrot.slane %v5944, 2
        %v6084 = vsel %vm6066, %v6078, %v6083
        %v6085 = vrot.slane %v5945, 2
        %v6086 = vsel %vm6066, %v6081, %v6085
        %v6087 = vrot.slane %v5946, 2
        %v6088 = vrot.slane %v4664, 2
        %v6089 = vsel %vm6066, %v6087, %v6088
        %v6090 = vrot.slane %v5947, 2
        %v6091 = vrot.slane %v4665, 2
        %v6092 = vsel %vm6066, %v6090, %v6091
        %v6093 = vrot.slane %v5948, 2
        %v6094 = vsel %vm6066, %v6088, %v6093
        %v6095 = vrot.slane %v5949, 2
        %v6096 = vsel %vm6066, %v6091, %v6095
        %v6097 = vrot.slane %v5950, 2
        %v6098 = vrot.slane %v4668, 2
        %v6099 = vsel %vm6066, %v6097, %v6098
        %v6100 = vrot.slane %v5951, 2
        %v6101 = vrot.slane %v4669, 2
        %v6102 = vsel %vm6066, %v6100, %v6101
        %v6103 = vrot.slane %v5952, 2
        %v6104 = vsel %vm6066, %v6098, %v6103
        %v6105 = vrot.slane %v5953, 2
        %v6106 = vsel %vm6066, %v6101, %v6105
        %v6107 = vrot.slane %v5954, 2
        %v6108 = vrot.slane %v4672, 2
        %v6109 = vsel %vm6066, %v6107, %v6108
        %v6110 = vrot.slane %v5955, 2
        %v6111 = vrot.slane %v4673, 2
        %v6112 = vsel %vm6066, %v6110, %v6111
        %v6113 = vrot.slane %v5956, 2
        %v6114 = vsel %vm6066, %v6108, %v6113
        %v6115 = vrot.slane %v5957, 2
        %v6116 = vsel %vm6066, %v6111, %v6115
        %v6117 = vrot.slane %v5958, 2
        %v6118 = vrot.slane %v4676, 2
        %v6119 = vsel %vm6066, %v6117, %v6118
        %v6120 = vrot.slane %v5959, 2
        %v6121 = vrot.slane %v4677, 2
        %v6122 = vsel %vm6066, %v6120, %v6121
        %v6123 = vrot.slane %v5960, 2
        %v6124 = vsel %vm6066, %v6118, %v6123
        %v6125 = vrot.slane %v5961, 2
        %v6126 = vsel %vm6066, %v6121, %v6125
        %v6127 = vrot.slane %v5962, 2
        %v6128 = vrot.slane %v4680, 2
        %v6129 = vsel %vm6066, %v6127, %v6128
        %v6130 = vrot.slane %v5963, 2
        %v6131 = vrot.slane %v4681, 2
        %v6132 = vsel %vm6066, %v6130, %v6131
        %v6133 = vrot.slane %v5964, 2
        %v6134 = vsel %vm6066, %v6128, %v6133
        %v6135 = vrot.slane %v5965, 2
        %v6136 = vsel %vm6066, %v6131, %v6135
        %v6137 = vrot.slane %v5966, 2
        %v6138 = vrot.slane %v4684, 2
        %v6139 = vsel %vm6066, %v6137, %v6138
        %v6140 = vrot.slane %v5967, 2
        %v6141 = vrot.slane %v4685, 2
        %v6142 = vsel %vm6066, %v6140, %v6141
        %v6143 = vrot.slane %v5968, 2
        %v6144 = vsel %vm6066, %v6138, %v6143
        %v6145 = vrot.slane %v5969, 2
        %v6146 = vsel %vm6066, %v6141, %v6145
        %v6147 = vrot.slane %v5970, 2
        %v6148 = vrot.slane %v4688, 2
        %v6149 = vsel %vm6066, %v6147, %v6148
        %v6150 = vrot.slane %v5971, 2
        %v6151 = vrot.slane %v4689, 2
        %v6152 = vsel %vm6066, %v6150, %v6151
        %v6153 = vrot.slane %v5972, 2
        %v6154 = vsel %vm6066, %v6148, %v6153
        %v6155 = vrot.slane %v5973, 2
        %v6156 = vsel %vm6066, %v6151, %v6155
        %v6157 = vrot.slane %v5974, 2
        %v6158 = vrot.slane %v4692, 2
        %v6159 = vsel %vm6066, %v6157, %v6158
        %v6160 = vrot.slane %v5975, 2
        %v6161 = vrot.slane %v4693, 2
        %v6162 = vsel %vm6066, %v6160, %v6161
        %v6163 = vrot.slane %v5976, 2
        %v6164 = vsel %vm6066, %v6158, %v6163
        %v6165 = vrot.slane %v5977, 2
        %v6166 = vsel %vm6066, %v6161, %v6165
        %v6167 = vrot.slane %v5978, 2
        %v6168 = vrot.slane %v4696, 2
        %v6169 = vsel %vm6066, %v6167, %v6168
        %v6170 = vrot.slane %v5979, 2
        %v6171 = vrot.slane %v4697, 2
        %v6172 = vsel %vm6066, %v6170, %v6171
        %v6173 = vrot.slane %v5980, 2
        %v6174 = vsel %vm6066, %v6168, %v6173
        %v6175 = vrot.slane %v5981, 2
        %v6176 = vsel %vm6066, %v6171, %v6175
        %v6177 = vrot.slane %v5982, 2
        %v6178 = vrot.slane %v4700, 2
        %v6179 = vsel %vm6066, %v6177, %v6178
        %v6180 = vrot.slane %v5983, 2
        %v6181 = vrot.slane %v4701, 2
        %v6182 = vsel %vm6066, %v6180, %v6181
        %v6183 = vrot.slane %v5984, 2
        %v6184 = vsel %vm6066, %v6178, %v6183
        %v6185 = vrot.slane %v5985, 2
        %v6186 = vsel %vm6066, %v6181, %v6185
        %v6187 = vrot.slane %v5986, 2
        %v6188 = vrot.slane %v4704, 2
        %v6189 = vsel %vm6066, %v6187, %v6188
        %v6190 = vrot.slane %v5987, 2
        %v6191 = vrot.slane %v4705, 2
        %v6192 = vsel %vm6066, %v6190, %v6191
        %v6193 = vrot.slane %v5988, 2
        %v6194 = vsel %vm6066, %v6188, %v6193
        %v6195 = vrot.slane %v5989, 2
        %v6196 = vsel %vm6066, %v6191, %v6195
        %v6197 = vrot.slane %v5990, 2
        %v6198 = vrot.slane %v4708, 2
        %v6199 = vsel %vm6066, %v6197, %v6198
        %v6200 = vrot.slane %v5991, 2
        %v6201 = vrot.slane %v4709, 2
        %v6202 = vsel %vm6066, %v6200, %v6201
        %v6203 = vrot.slane %v5992, 2
        %v6204 = vsel %vm6066, %v6198, %v6203
        %v6205 = vrot.slane %v5993, 2
        %v6206 = vsel %vm6066, %v6201, %v6205
        %v6207 = vrot.slane %v5994, 2
        %v6208 = vrot.slane %v4712, 2
        %v6209 = vsel %vm6066, %v6207, %v6208
        %v6210 = vrot.slane %v5995, 2
        %v6211 = vrot.slane %v4713, 2
        %v6212 = vsel %vm6066, %v6210, %v6211
        %v6213 = vrot.slane %v5996, 2
        %v6214 = vsel %vm6066, %v6208, %v6213
        %v6215 = vrot.slane %v5997, 2
        %v6216 = vsel %vm6066, %v6211, %v6215
        %v6217 = vrot.slane %v5998, 2
        %v6218 = vrot.slane %v4716, 2
        %v6219 = vsel %vm6066, %v6217, %v6218
        %v6220 = vrot.slane %v5999, 2
        %v6221 = vrot.slane %v4717, 2
        %v6222 = vsel %vm6066, %v6220, %v6221
        %v6223 = vrot.slane %v6000, 2
        %v6224 = vsel %vm6066, %v6218, %v6223
        %v6225 = vrot.slane %v6001, 2
        %v6226 = vsel %vm6066, %v6221, %v6225
        %v6291 = vpack.c.bf16 %v6074, %v6069
        %v6292 = vpack.c.bf16 %v6076, %v6072
        %v6293 = vpack.c.bf16 %v6084, %v6079
        %v6294 = vpack.c.bf16 %v6086, %v6082
        %v6295 = vpack.c.bf16 %v6094, %v6089
        %v6296 = vpack.c.bf16 %v6096, %v6092
        %v6297 = vpack.c.bf16 %v6104, %v6099
        %v6298 = vpack.c.bf16 %v6106, %v6102
        %v6299 = vpack.c.bf16 %v6114, %v6109
        %v6300 = vpack.c.bf16 %v6116, %v6112
        %v6301 = vpack.c.bf16 %v6124, %v6119
        %v6302 = vpack.c.bf16 %v6126, %v6122
        %v6303 = vpack.c.bf16 %v6134, %v6129
        %v6304 = vpack.c.bf16 %v6136, %v6132
        %v6305 = vpack.c.bf16 %v6144, %v6139
        %v6306 = vpack.c.bf16 %v6146, %v6142
        %v6307 = vpack.c.bf16 %v6154, %v6149
        %v6308 = vpack.c.bf16 %v6156, %v6152
        %v6309 = vpack.c.bf16 %v6164, %v6159
        %v6310 = vpack.c.bf16 %v6166, %v6162
        %v6311 = vpack.c.bf16 %v6174, %v6169
        %v6312 = vpack.c.bf16 %v6176, %v6172
        %v6313 = vpack.c.bf16 %v6184, %v6179
        %v6314 = vpack.c.bf16 %v6186, %v6182
        %v6315 = vpack.c.bf16 %v6194, %v6189
        %v6316 = vpack.c.bf16 %v6196, %v6192
        %v6317 = vpack.c.bf16 %v6204, %v6199
        %v6318 = vpack.c.bf16 %v6206, %v6202
        %v6319 = vpack.c.bf16 %v6214, %v6209
        %v6320 = vpack.c.bf16 %v6216, %v6212
        %v6321 = vpack.c.bf16 %v6224, %v6219
        %v6322 = vpack.c.bf16 %v6226, %v6222
        %s6323 = scalar_lea.vmem %s2, 512
        %v6324 = vld [vmem:[%s6323] sm:$0xff]
        %v6325 = vld [vmem:[%s6323 + $0x8] sm:$0xff]
        %v6326 = vld [vmem:[%s6323 + $0x10] sm:$0xff]
        %v6327 = vld [vmem:[%s6323 + $0x18] sm:$0xff]
        %v6328 = vld [vmem:[%s6323 + $0x20] sm:$0xff]
        %v6329 = vld [vmem:[%s6323 + $0x28] sm:$0xff]
        %v6330 = vld [vmem:[%s6323 + $0x30] sm:$0xff]
        %v6331 = vld [vmem:[%s6323 + $0x38] sm:$0xff]
        %v6332 = vld [vmem:[%s6323 + $0x40] sm:$0xff]
        %v6333 = vld [vmem:[%s6323 + $0x48] sm:$0xff]
        %v6334 = vld [vmem:[%s6323 + $0x50] sm:$0xff]
        %v6335 = vld [vmem:[%s6323 + $0x58] sm:$0xff]
        %v6336 = vld [vmem:[%s6323 + $0x60] sm:$0xff]
        %v6337 = vld [vmem:[%s6323 + $0x68] sm:$0xff]
        %v6338 = vld [vmem:[%s6323 + $0x70] sm:$0xff]
        %v6339 = vld [vmem:[%s6323 + $0x78] sm:$0xff]
        %v6340 = vld [vmem:[%s6323 + $0x80] sm:$0xff]
        %v6341 = vld [vmem:[%s6323 + $0x88] sm:$0xff]
        %v6342 = vld [vmem:[%s6323 + $0x90] sm:$0xff]
        %v6343 = vld [vmem:[%s6323 + $0x98] sm:$0xff]
        %v6344 = vld [vmem:[%s6323 + $0xa0] sm:$0xff]
        %v6345 = vld [vmem:[%s6323 + $0xa8] sm:$0xff]
        %v6346 = vld [vmem:[%s6323 + $0xb0] sm:$0xff]
        %v6347 = vld [vmem:[%s6323 + $0xb8] sm:$0xff]
        %v6348 = vld [vmem:[%s6323 + $0xc0] sm:$0xff]
        %v6349 = vld [vmem:[%s6323 + $0xc8] sm:$0xff]
        %v6350 = vld [vmem:[%s6323 + $0xd0] sm:$0xff]
        %v6351 = vld [vmem:[%s6323 + $0xd8] sm:$0xff]
        %v6352 = vld [vmem:[%s6323 + $0xe0] sm:$0xff]
        %v6353 = vld [vmem:[%s6323 + $0xe8] sm:$0xff]
        %v6354 = vld [vmem:[%s6323 + $0xf0] sm:$0xff]
        %v6355 = vld [vmem:[%s6323 + $0xf8] sm:$0xff]
        %v6388 = vunpack.c.l.b16 %v6324
        %v6389 = vunpack.c.h.b16 %v6324
        %v6390 = vunpack.c.l.b16 %v6325
        %v6391 = vunpack.c.h.b16 %v6325
        %v6392 = vunpack.c.l.b16 %v6326
        %v6393 = vunpack.c.h.b16 %v6326
        %v6394 = vunpack.c.l.b16 %v6327
        %v6395 = vunpack.c.h.b16 %v6327
        %v6396 = vunpack.c.l.b16 %v6328
        %v6397 = vunpack.c.h.b16 %v6328
        %v6398 = vunpack.c.l.b16 %v6329
        %v6399 = vunpack.c.h.b16 %v6329
        %v6400 = vunpack.c.l.b16 %v6330
        %v6401 = vunpack.c.h.b16 %v6330
        %v6402 = vunpack.c.l.b16 %v6331
        %v6403 = vunpack.c.h.b16 %v6331
        %v6404 = vunpack.c.l.b16 %v6332
        %v6405 = vunpack.c.h.b16 %v6332
        %v6406 = vunpack.c.l.b16 %v6333
        %v6407 = vunpack.c.h.b16 %v6333
        %v6408 = vunpack.c.l.b16 %v6334
        %v6409 = vunpack.c.h.b16 %v6334
        %v6410 = vunpack.c.l.b16 %v6335
        %v6411 = vunpack.c.h.b16 %v6335
        %v6412 = vunpack.c.l.b16 %v6336
        %v6413 = vunpack.c.h.b16 %v6336
        %v6414 = vunpack.c.l.b16 %v6337
        %v6415 = vunpack.c.h.b16 %v6337
        %v6416 = vunpack.c.l.b16 %v6338
        %v6417 = vunpack.c.h.b16 %v6338
        %v6418 = vunpack.c.l.b16 %v6339
        %v6419 = vunpack.c.h.b16 %v6339
        %v6420 = vunpack.c.l.b16 %v6340
        %v6421 = vunpack.c.h.b16 %v6340
        %v6422 = vunpack.c.l.b16 %v6341
        %v6423 = vunpack.c.h.b16 %v6341
        %v6424 = vunpack.c.l.b16 %v6342
        %v6425 = vunpack.c.h.b16 %v6342
        %v6426 = vunpack.c.l.b16 %v6343
        %v6427 = vunpack.c.h.b16 %v6343
        %v6428 = vunpack.c.l.b16 %v6344
        %v6429 = vunpack.c.h.b16 %v6344
        %v6430 = vunpack.c.l.b16 %v6345
        %v6431 = vunpack.c.h.b16 %v6345
        %v6432 = vunpack.c.l.b16 %v6346
        %v6433 = vunpack.c.h.b16 %v6346
        %v6434 = vunpack.c.l.b16 %v6347
        %v6435 = vunpack.c.h.b16 %v6347
        %v6436 = vunpack.c.l.b16 %v6348
        %v6437 = vunpack.c.h.b16 %v6348
        %v6438 = vunpack.c.l.b16 %v6349
        %v6439 = vunpack.c.h.b16 %v6349
        %v6440 = vunpack.c.l.b16 %v6350
        %v6441 = vunpack.c.h.b16 %v6350
        %v6442 = vunpack.c.l.b16 %v6351
        %v6443 = vunpack.c.h.b16 %v6351
        %v6444 = vunpack.c.l.b16 %v6352
        %v6445 = vunpack.c.h.b16 %v6352
        %v6446 = vunpack.c.l.b16 %v6353
        %v6447 = vunpack.c.h.b16 %v6353
        %v6448 = vunpack.c.l.b16 %v6354
        %v6449 = vunpack.c.h.b16 %v6354
        %v6450 = vunpack.c.l.b16 %v6355
        %v6451 = vunpack.c.h.b16 %v6355
        %v6452 = vpack.c.b16 %v6390, %v6388
        %v6453 = vpack.c.b16 %v6391, %v6389
        %v6454 = vpack.c.b16 %v6394, %v6392
        %v6455 = vpack.c.b16 %v6395, %v6393
        %v6456 = vpack.c.b16 %v6398, %v6396
        %v6457 = vpack.c.b16 %v6399, %v6397
        %v6458 = vpack.c.b16 %v6402, %v6400
        %v6459 = vpack.c.b16 %v6403, %v6401
        %v6460 = vpack.c.b16 %v6406, %v6404
        %v6461 = vpack.c.b16 %v6407, %v6405
        %v6462 = vpack.c.b16 %v6410, %v6408
        %v6463 = vpack.c.b16 %v6411, %v6409
        %v6464 = vpack.c.b16 %v6414, %v6412
        %v6465 = vpack.c.b16 %v6415, %v6413
        %v6466 = vpack.c.b16 %v6418, %v6416
        %v6467 = vpack.c.b16 %v6419, %v6417
        %v6468 = vpack.c.b16 %v6422, %v6420
        %v6469 = vpack.c.b16 %v6423, %v6421
        %v6470 = vpack.c.b16 %v6426, %v6424
        %v6471 = vpack.c.b16 %v6427, %v6425
        %v6472 = vpack.c.b16 %v6430, %v6428
        %v6473 = vpack.c.b16 %v6431, %v6429
        %v6474 = vpack.c.b16 %v6434, %v6432
        %v6475 = vpack.c.b16 %v6435, %v6433
        %v6476 = vpack.c.b16 %v6438, %v6436
        %v6477 = vpack.c.b16 %v6439, %v6437
        %v6478 = vpack.c.b16 %v6442, %v6440
        %v6479 = vpack.c.b16 %v6443, %v6441
        %v6480 = vpack.c.b16 %v6446, %v6444
        %v6481 = vpack.c.b16 %v6447, %v6445
        %v6482 = vpack.c.b16 %v6450, %v6448
        %v6483 = vpack.c.b16 %v6451, %v6449
        %6516 = vmatprep.subr.bf16.mxu0 %v6467
        %6517 = vmatpush1.bf16.msra.mxu0 %v6466
        %6518 = vmatprep.subr.bf16.mxu0 %v6465
        %6519 = vmatpush1.bf16.msra.mxu0 %v6464
        %6520 = vmatprep.subr.bf16.mxu0 %v6463
        %6521 = vmatpush1.bf16.msra.mxu0 %v6462
        %6522 = vmatprep.subr.bf16.mxu0 %v6461
        %6523 = vmatpush1.bf16.msra.mxu0 %v6460
        %6524 = vmatprep.subr.bf16.mxu0 %v6459
        %6525 = vmatpush1.bf16.msra.mxu0 %v6458
        %6526 = vmatprep.subr.bf16.mxu0 %v6457
        %6527 = vmatpush1.bf16.msra.mxu0 %v6456
        %6528 = vmatprep.subr.bf16.mxu0 %v6455
        %6529 = vmatpush1.bf16.msra.mxu0 %v6454
        %6530 = vmatprep.subr.bf16.mxu0 %v6453
        %6531 = vmatpush1.bf16.msra.mxu0 %v6452
        %6532 = vmatprep.subr.bf16.mxu0 %v6483
        %6533 = vmatpush2.bf16.msra.mxu0 %v6482
        %6534 = vmatprep.subr.bf16.mxu0 %v6481
        %6535 = vmatpush2.bf16.msra.mxu0 %v6480
        %6536 = vmatprep.subr.bf16.mxu0 %v6479
        %6537 = vmatpush2.bf16.msra.mxu0 %v6478
        %6538 = vmatprep.subr.bf16.mxu0 %v6477
        %6539 = vmatpush2.bf16.msra.mxu0 %v6476
        %6540 = vmatprep.subr.bf16.mxu0 %v6475
        %6541 = vmatpush2.bf16.msra.mxu0 %v6474
        %6542 = vmatprep.subr.bf16.mxu0 %v6473
        %6543 = vmatpush2.bf16.msra.mxu0 %v6472
        %6544 = vmatprep.subr.bf16.mxu0 %v6471
        %6545 = vmatpush2.bf16.msra.mxu0 %v6470
        %6546 = vmatprep.subr.bf16.mxu0 %v6469
        %6547 = vmatpush2.bf16.msra.mxu0 %v6468
        %6548 = vmatprep.mubr.bf16.mxu0 %v6292
        %6549 = vmatmul.mubr.bf16.gmra.mxu0 %v6291
        %v6550 = vpop.f32.mrf.mxu0
        %v6551 = vadd.f32 0.0, %v6550
        %v6552 = vpop.f32.mrf.mxu0
        %v6553 = vadd.f32 0.0, %v6552
        %v6554 = vpop.f32.mrf.mxu0
        %v6555 = vadd.f32 0.0, %v6554
        %v6556 = vpop.f32.mrf.mxu0
        %v6557 = vadd.f32 0.0, %v6556
        %6558 = vmatprep.mubr.bf16.mxu0 %v6294
        %6559 = vmatmul.mubr.bf16.gmra.mxu0 %v6293
        %v6560 = vpop.f32.mrf.mxu0
        %v6561 = vadd.f32 0.0, %v6560
        %v6562 = vpop.f32.mrf.mxu0
        %v6563 = vadd.f32 0.0, %v6562
        %v6564 = vpop.f32.mrf.mxu0
        %v6565 = vadd.f32 0.0, %v6564
        %v6566 = vpop.f32.mrf.mxu0
        %v6567 = vadd.f32 0.0, %v6566
        %6568 = vmatprep.mubr.bf16.mxu0 %v6296
        %6569 = vmatmul.mubr.bf16.gmra.mxu0 %v6295
        %v6570 = vpop.f32.mrf.mxu0
        %v6571 = vadd.f32 0.0, %v6570
        %v6572 = vpop.f32.mrf.mxu0
        %v6573 = vadd.f32 0.0, %v6572
        %v6574 = vpop.f32.mrf.mxu0
        %v6575 = vadd.f32 0.0, %v6574
        %v6576 = vpop.f32.mrf.mxu0
        %v6577 = vadd.f32 0.0, %v6576
        %6578 = vmatprep.mubr.bf16.mxu0 %v6298
        %6579 = vmatmul.mubr.bf16.gmra.mxu0 %v6297
        %v6580 = vpop.f32.mrf.mxu0
        %v6581 = vadd.f32 0.0, %v6580
        %v6582 = vpop.f32.mrf.mxu0
        %v6583 = vadd.f32 0.0, %v6582
        %v6584 = vpop.f32.mrf.mxu0
        %v6585 = vadd.f32 0.0, %v6584
        %v6586 = vpop.f32.mrf.mxu0
        %v6587 = vadd.f32 0.0, %v6586
        %6588 = vmatprep.mubr.bf16.mxu0 %v6300
        %6589 = vmatmul.mubr.bf16.gmra.mxu0 %v6299
        %v6590 = vpop.f32.mrf.mxu0
        %v6591 = vadd.f32 0.0, %v6590
        %v6592 = vpop.f32.mrf.mxu0
        %v6593 = vadd.f32 0.0, %v6592
        %v6594 = vpop.f32.mrf.mxu0
        %v6595 = vadd.f32 0.0, %v6594
        %v6596 = vpop.f32.mrf.mxu0
        %v6597 = vadd.f32 0.0, %v6596
        %6598 = vmatprep.mubr.bf16.mxu0 %v6302
        %6599 = vmatmul.mubr.bf16.gmra.mxu0 %v6301
        %v6600 = vpop.f32.mrf.mxu0
        %v6601 = vadd.f32 0.0, %v6600
        %v6602 = vpop.f32.mrf.mxu0
        %v6603 = vadd.f32 0.0, %v6602
        %v6604 = vpop.f32.mrf.mxu0
        %v6605 = vadd.f32 0.0, %v6604
        %v6606 = vpop.f32.mrf.mxu0
        %v6607 = vadd.f32 0.0, %v6606
        %6608 = vmatprep.mubr.bf16.mxu0 %v6304
        %6609 = vmatmul.mubr.bf16.gmra.mxu0 %v6303
        %v6610 = vpop.f32.mrf.mxu0
        %v6611 = vadd.f32 0.0, %v6610
        %v6612 = vpop.f32.mrf.mxu0
        %v6613 = vadd.f32 0.0, %v6612
        %v6614 = vpop.f32.mrf.mxu0
        %v6615 = vadd.f32 0.0, %v6614
        %v6616 = vpop.f32.mrf.mxu0
        %v6617 = vadd.f32 0.0, %v6616
        %6618 = vmatprep.mubr.bf16.mxu0 %v6306
        %6619 = vmatmul.mubr.bf16.gmra.mxu0 %v6305
        %v6620 = vpop.f32.mrf.mxu0
        %v6621 = vadd.f32 0.0, %v6620
        %v6622 = vpop.f32.mrf.mxu0
        %v6623 = vadd.f32 0.0, %v6622
        %v6624 = vpop.f32.mrf.mxu0
        %v6625 = vadd.f32 0.0, %v6624
        %v6626 = vpop.f32.mrf.mxu0
        %v6627 = vadd.f32 0.0, %v6626
        %6628 = vmatprep.mubr.bf16.mxu0 %v6308
        %6629 = vmatmul.mubr.bf16.gmra.mxu0 %v6307
        %v6630 = vpop.f32.mrf.mxu0
        %v6631 = vadd.f32 0.0, %v6630
        %v6632 = vpop.f32.mrf.mxu0
        %v6633 = vadd.f32 0.0, %v6632
        %v6634 = vpop.f32.mrf.mxu0
        %v6635 = vadd.f32 0.0, %v6634
        %v6636 = vpop.f32.mrf.mxu0
        %v6637 = vadd.f32 0.0, %v6636
        %6638 = vmatprep.mubr.bf16.mxu0 %v6310
        %6639 = vmatmul.mubr.bf16.gmra.mxu0 %v6309
        %v6640 = vpop.f32.mrf.mxu0
        %v6641 = vadd.f32 0.0, %v6640
        %v6642 = vpop.f32.mrf.mxu0
        %v6643 = vadd.f32 0.0, %v6642
        %v6644 = vpop.f32.mrf.mxu0
        %v6645 = vadd.f32 0.0, %v6644
        %v6646 = vpop.f32.mrf.mxu0
        %v6647 = vadd.f32 0.0, %v6646
        %6648 = vmatprep.mubr.bf16.mxu0 %v6312
        %6649 = vmatmul.mubr.bf16.gmra.mxu0 %v6311
        %v6650 = vpop.f32.mrf.mxu0
        %v6651 = vadd.f32 0.0, %v6650
        %v6652 = vpop.f32.mrf.mxu0
        %v6653 = vadd.f32 0.0, %v6652
        %v6654 = vpop.f32.mrf.mxu0
        %v6655 = vadd.f32 0.0, %v6654
        %v6656 = vpop.f32.mrf.mxu0
        %v6657 = vadd.f32 0.0, %v6656
        %6658 = vmatprep.mubr.bf16.mxu0 %v6314
        %6659 = vmatmul.mubr.bf16.gmra.mxu0 %v6313
        %v6660 = vpop.f32.mrf.mxu0
        %v6661 = vadd.f32 0.0, %v6660
        %v6662 = vpop.f32.mrf.mxu0
        %v6663 = vadd.f32 0.0, %v6662
        %v6664 = vpop.f32.mrf.mxu0
        %v6665 = vadd.f32 0.0, %v6664
        %v6666 = vpop.f32.mrf.mxu0
        %v6667 = vadd.f32 0.0, %v6666
        %6668 = vmatprep.mubr.bf16.mxu0 %v6316
        %6669 = vmatmul.mubr.bf16.gmra.mxu0 %v6315
        %v6670 = vpop.f32.mrf.mxu0
        %v6671 = vadd.f32 0.0, %v6670
        %v6672 = vpop.f32.mrf.mxu0
        %v6673 = vadd.f32 0.0, %v6672
        %v6674 = vpop.f32.mrf.mxu0
        %v6675 = vadd.f32 0.0, %v6674
        %v6676 = vpop.f32.mrf.mxu0
        %v6677 = vadd.f32 0.0, %v6676
        %6678 = vmatprep.mubr.bf16.mxu0 %v6318
        %6679 = vmatmul.mubr.bf16.gmra.mxu0 %v6317
        %v6680 = vpop.f32.mrf.mxu0
        %v6681 = vadd.f32 0.0, %v6680
        %v6682 = vpop.f32.mrf.mxu0
        %v6683 = vadd.f32 0.0, %v6682
        %v6684 = vpop.f32.mrf.mxu0
        %v6685 = vadd.f32 0.0, %v6684
        %v6686 = vpop.f32.mrf.mxu0
        %v6687 = vadd.f32 0.0, %v6686
        %6688 = vmatprep.mubr.bf16.mxu0 %v6320
        %6689 = vmatmul.mubr.bf16.gmra.mxu0 %v6319
        %v6690 = vpop.f32.mrf.mxu0
        %v6691 = vadd.f32 0.0, %v6690
        %v6692 = vpop.f32.mrf.mxu0
        %v6693 = vadd.f32 0.0, %v6692
        %v6694 = vpop.f32.mrf.mxu0
        %v6695 = vadd.f32 0.0, %v6694
        %v6696 = vpop.f32.mrf.mxu0
        %v6697 = vadd.f32 0.0, %v6696
        %6698 = vmatprep.mubr.bf16.mxu0 %v6322
        %6699 = vmatmul.mubr.bf16.gmra.mxu0 %v6321
        %v6700 = vpop.f32.mrf.mxu0
        %v6701 = vadd.f32 0.0, %v6700
        %v6702 = vpop.f32.mrf.mxu0
        %v6703 = vadd.f32 0.0, %v6702
        %v6704 = vpop.f32.mrf.mxu0
        %v6705 = vadd.f32 0.0, %v6704
        %v6706 = vpop.f32.mrf.mxu0
        %v6707 = vadd.f32 0.0, %v6706
        %6708 = vdwg.mxu0
        %v6709 = vadd.f32 %v5780, %v6551
        %v6710 = vadd.f32 %v5782, %v6553
        %v6711 = vadd.f32 %v5784, %v6555
        %v6712 = vadd.f32 %v5786, %v6557
        %v6713 = vadd.f32 %v5790, %v6561
        %v6714 = vadd.f32 %v5792, %v6563
        %v6715 = vadd.f32 %v5794, %v6565
        %v6716 = vadd.f32 %v5796, %v6567
        %v6717 = vadd.f32 %v5800, %v6571
        %v6718 = vadd.f32 %v5802, %v6573
        %v6719 = vadd.f32 %v5804, %v6575
        %v6720 = vadd.f32 %v5806, %v6577
        %v6721 = vadd.f32 %v5810, %v6581
        %v6722 = vadd.f32 %v5812, %v6583
        %v6723 = vadd.f32 %v5814, %v6585
        %v6724 = vadd.f32 %v5816, %v6587
        %v6725 = vadd.f32 %v5820, %v6591
        %v6726 = vadd.f32 %v5822, %v6593
        %v6727 = vadd.f32 %v5824, %v6595
        %v6728 = vadd.f32 %v5826, %v6597
        %v6729 = vadd.f32 %v5830, %v6601
        %v6730 = vadd.f32 %v5832, %v6603
        %v6731 = vadd.f32 %v5834, %v6605
        %v6732 = vadd.f32 %v5836, %v6607
        %v6733 = vadd.f32 %v5840, %v6611
        %v6734 = vadd.f32 %v5842, %v6613
        %v6735 = vadd.f32 %v5844, %v6615
        %v6736 = vadd.f32 %v5846, %v6617
        %v6737 = vadd.f32 %v5850, %v6621
        %v6738 = vadd.f32 %v5852, %v6623
        %v6739 = vadd.f32 %v5854, %v6625
        %v6740 = vadd.f32 %v5856, %v6627
        %v6741 = vadd.f32 %v5860, %v6631
        %v6742 = vadd.f32 %v5862, %v6633
        %v6743 = vadd.f32 %v5864, %v6635
        %v6744 = vadd.f32 %v5866, %v6637
        %v6745 = vadd.f32 %v5870, %v6641
        %v6746 = vadd.f32 %v5872, %v6643
        %v6747 = vadd.f32 %v5874, %v6645
        %v6748 = vadd.f32 %v5876, %v6647
        %v6749 = vadd.f32 %v5880, %v6651
        %v6750 = vadd.f32 %v5882, %v6653
        %v6751 = vadd.f32 %v5884, %v6655
        %v6752 = vadd.f32 %v5886, %v6657
        %v6753 = vadd.f32 %v5890, %v6661
        %v6754 = vadd.f32 %v5892, %v6663
        %v6755 = vadd.f32 %v5894, %v6665
        %v6756 = vadd.f32 %v5896, %v6667
        %v6757 = vadd.f32 %v5900, %v6671
        %v6758 = vadd.f32 %v5902, %v6673
        %v6759 = vadd.f32 %v5904, %v6675
        %v6760 = vadd.f32 %v5906, %v6677
        %v6761 = vadd.f32 %v5910, %v6681
        %v6762 = vadd.f32 %v5912, %v6683
        %v6763 = vadd.f32 %v5914, %v6685
        %v6764 = vadd.f32 %v5916, %v6687
        %v6765 = vadd.f32 %v5920, %v6691
        %v6766 = vadd.f32 %v5922, %v6693
        %v6767 = vadd.f32 %v5924, %v6695
        %v6768 = vadd.f32 %v5926, %v6697
        %v6769 = vadd.f32 %v5930, %v6701
        %v6770 = vadd.f32 %v5932, %v6703
        %v6771 = vadd.f32 %v5934, %v6705
        %v6772 = vadd.f32 %v5936, %v6707
        %v6773 = vld [vmem:[%s4557] sm:$0xff]
        %v6774 = vld [vmem:[%s4557 + $0x8] sm:$0xff]
        %v6775 = vld [vmem:[%s4557 + $0x10] sm:$0xff]
        %v6776 = vld [vmem:[%s4557 + $0x18] sm:$0xff]
        %v6777 = vld [vmem:[%s4557 + $0x30] sm:$0xff]
        %v6778 = vld [vmem:[%s4557 + $0x38] sm:$0xff]
        %v6779 = vld [vmem:[%s4557 + $0x40] sm:$0xff]
        %v6780 = vld [vmem:[%s4557 + $0x48] sm:$0xff]
        %v6781 = vld [vmem:[%s4557 + $0x60] sm:$0xff]
        %v6782 = vld [vmem:[%s4557 + $0x68] sm:$0xff]
        %v6783 = vld [vmem:[%s4557 + $0x70] sm:$0xff]
        %v6784 = vld [vmem:[%s4557 + $0x78] sm:$0xff]
        %v6785 = vld [vmem:[%s4557 + $0x90] sm:$0xff]
        %v6786 = vld [vmem:[%s4557 + $0x98] sm:$0xff]
        %v6787 = vld [vmem:[%s4557 + $0xa0] sm:$0xff]
        %v6788 = vld [vmem:[%s4557 + $0xa8] sm:$0xff]
        %v6789 = vld [vmem:[%s4557 + $0xc0] sm:$0xff]
        %v6790 = vld [vmem:[%s4557 + $0xc8] sm:$0xff]
        %v6791 = vld [vmem:[%s4557 + $0xd0] sm:$0xff]
        %v6792 = vld [vmem:[%s4557 + $0xd8] sm:$0xff]
        %v6793 = vld [vmem:[%s4557 + $0xf0] sm:$0xff]
        %v6794 = vld [vmem:[%s4557 + $0xf8] sm:$0xff]
        %v6795 = vld [vmem:[%s4557 + $0x100] sm:$0xff]
        %v6796 = vld [vmem:[%s4557 + $0x108] sm:$0xff]
        %v6797 = vld [vmem:[%s4557 + $0x120] sm:$0xff]
        %v6798 = vld [vmem:[%s4557 + $0x128] sm:$0xff]
        %v6799 = vld [vmem:[%s4557 + $0x130] sm:$0xff]
        %v6800 = vld [vmem:[%s4557 + $0x138] sm:$0xff]
        %v6801 = vld [vmem:[%s4557 + $0x150] sm:$0xff]
        %v6802 = vld [vmem:[%s4557 + $0x158] sm:$0xff]
        %v6803 = vld [vmem:[%s4557 + $0x160] sm:$0xff]
        %v6804 = vld [vmem:[%s4557 + $0x168] sm:$0xff]
        %v6805 = vld [vmem:[%s4557 + $0x180] sm:$0xff]
        %v6806 = vld [vmem:[%s4557 + $0x188] sm:$0xff]
        %v6807 = vld [vmem:[%s4557 + $0x190] sm:$0xff]
        %v6808 = vld [vmem:[%s4557 + $0x198] sm:$0xff]
        %v6809 = vld [vmem:[%s4557 + $0x1b0] sm:$0xff]
        %v6810 = vld [vmem:[%s4557 + $0x1b8] sm:$0xff]
        %v6811 = vld [vmem:[%s4557 + $0x1c0] sm:$0xff]
        %v6812 = vld [vmem:[%s4557 + $0x1c8] sm:$0xff]
        %v6813 = vld [vmem:[%s4557 + $0x1e0] sm:$0xff]
        %v6814 = vld [vmem:[%s4557 + $0x1e8] sm:$0xff]
        %v6815 = vld [vmem:[%s4557 + $0x1f0] sm:$0xff]
        %v6816 = vld [vmem:[%s4557 + $0x1f8] sm:$0xff]
        %v6817 = vld [vmem:[%s4557 + $0x210] sm:$0xff]
        %v6818 = vld [vmem:[%s4557 + $0x218] sm:$0xff]
        %v6819 = vld [vmem:[%s4557 + $0x220] sm:$0xff]
        %v6820 = vld [vmem:[%s4557 + $0x228] sm:$0xff]
        %v6821 = vld [vmem:[%s4557 + $0x240] sm:$0xff]
        %v6822 = vld [vmem:[%s4557 + $0x248] sm:$0xff]
        %v6823 = vld [vmem:[%s4557 + $0x250] sm:$0xff]
        %v6824 = vld [vmem:[%s4557 + $0x258] sm:$0xff]
        %v6825 = vld [vmem:[%s4557 + $0x270] sm:$0xff]
        %v6826 = vld [vmem:[%s4557 + $0x278] sm:$0xff]
        %v6827 = vld [vmem:[%s4557 + $0x280] sm:$0xff]
        %v6828 = vld [vmem:[%s4557 + $0x288] sm:$0xff]
        %v6829 = vld [vmem:[%s4557 + $0x2a0] sm:$0xff]
        %v6830 = vld [vmem:[%s4557 + $0x2a8] sm:$0xff]
        %v6831 = vld [vmem:[%s4557 + $0x2b0] sm:$0xff]
        %v6832 = vld [vmem:[%s4557 + $0x2b8] sm:$0xff]
        %v6833 = vld [vmem:[%s4557 + $0x2d0] sm:$0xff]
        %v6834 = vld [vmem:[%s4557 + $0x2d8] sm:$0xff]
        %v6835 = vld [vmem:[%s4557 + $0x2e0] sm:$0xff]
        %v6836 = vld [vmem:[%s4557 + $0x2e8] sm:$0xff]
        %v6837 = vpack.c.bf16 %v6775, %v6773
        %v6838 = vpack.c.bf16 %v6776, %v6774
        %v6839 = vpack.c.bf16 %v6779, %v6777
        %v6840 = vpack.c.bf16 %v6780, %v6778
        %v6841 = vpack.c.bf16 %v6783, %v6781
        %v6842 = vpack.c.bf16 %v6784, %v6782
        %v6843 = vpack.c.bf16 %v6787, %v6785
        %v6844 = vpack.c.bf16 %v6788, %v6786
        %v6845 = vpack.c.bf16 %v6791, %v6789
        %v6846 = vpack.c.bf16 %v6792, %v6790
        %v6847 = vpack.c.bf16 %v6795, %v6793
        %v6848 = vpack.c.bf16 %v6796, %v6794
        %v6849 = vpack.c.bf16 %v6799, %v6797
        %v6850 = vpack.c.bf16 %v6800, %v6798
        %v6851 = vpack.c.bf16 %v6803, %v6801
        %v6852 = vpack.c.bf16 %v6804, %v6802
        %v6853 = vpack.c.bf16 %v6807, %v6805
        %v6854 = vpack.c.bf16 %v6808, %v6806
        %v6855 = vpack.c.bf16 %v6811, %v6809
        %v6856 = vpack.c.bf16 %v6812, %v6810
        %v6857 = vpack.c.bf16 %v6815, %v6813
        %v6858 = vpack.c.bf16 %v6816, %v6814
        %v6859 = vpack.c.bf16 %v6819, %v6817
        %v6860 = vpack.c.bf16 %v6820, %v6818
        %v6861 = vpack.c.bf16 %v6823, %v6821
        %v6862 = vpack.c.bf16 %v6824, %v6822
        %v6863 = vpack.c.bf16 %v6827, %v6825
        %v6864 = vpack.c.bf16 %v6828, %v6826
        %v6865 = vpack.c.bf16 %v6831, %v6829
        %v6866 = vpack.c.bf16 %v6832, %v6830
        %v6867 = vpack.c.bf16 %v6835, %v6833
        %v6868 = vpack.c.bf16 %v6836, %v6834
        %s6869 = scalar_lea.vmem %s2, 768
        %v6870 = vld [vmem:[%s6869] sm:$0xff]
        %v6871 = vld [vmem:[%s6869 + $0x8] sm:$0xff]
        %v6872 = vld [vmem:[%s6869 + $0x10] sm:$0xff]
        %v6873 = vld [vmem:[%s6869 + $0x18] sm:$0xff]
        %v6874 = vld [vmem:[%s6869 + $0x20] sm:$0xff]
        %v6875 = vld [vmem:[%s6869 + $0x28] sm:$0xff]
        %v6876 = vld [vmem:[%s6869 + $0x30] sm:$0xff]
        %v6877 = vld [vmem:[%s6869 + $0x38] sm:$0xff]
        %v6878 = vld [vmem:[%s6869 + $0x40] sm:$0xff]
        %v6879 = vld [vmem:[%s6869 + $0x48] sm:$0xff]
        %v6880 = vld [vmem:[%s6869 + $0x50] sm:$0xff]
        %v6881 = vld [vmem:[%s6869 + $0x58] sm:$0xff]
        %v6882 = vld [vmem:[%s6869 + $0x60] sm:$0xff]
        %v6883 = vld [vmem:[%s6869 + $0x68] sm:$0xff]
        %v6884 = vld [vmem:[%s6869 + $0x70] sm:$0xff]
        %v6885 = vld [vmem:[%s6869 + $0x78] sm:$0xff]
        %v6886 = vld [vmem:[%s6869 + $0x80] sm:$0xff]
        %v6887 = vld [vmem:[%s6869 + $0x88] sm:$0xff]
        %v6888 = vld [vmem:[%s6869 + $0x90] sm:$0xff]
        %v6889 = vld [vmem:[%s6869 + $0x98] sm:$0xff]
        %v6890 = vld [vmem:[%s6869 + $0xa0] sm:$0xff]
        %v6891 = vld [vmem:[%s6869 + $0xa8] sm:$0xff]
        %v6892 = vld [vmem:[%s6869 + $0xb0] sm:$0xff]
        %v6893 = vld [vmem:[%s6869 + $0xb8] sm:$0xff]
        %v6894 = vld [vmem:[%s6869 + $0xc0] sm:$0xff]
        %v6895 = vld [vmem:[%s6869 + $0xc8] sm:$0xff]
        %v6896 = vld [vmem:[%s6869 + $0xd0] sm:$0xff]
        %v6897 = vld [vmem:[%s6869 + $0xd8] sm:$0xff]
        %v6898 = vld [vmem:[%s6869 + $0xe0] sm:$0xff]
        %v6899 = vld [vmem:[%s6869 + $0xe8] sm:$0xff]
        %v6900 = vld [vmem:[%s6869 + $0xf0] sm:$0xff]
        %v6901 = vld [vmem:[%s6869 + $0xf8] sm:$0xff]
        %v6934 = vunpack.c.l.b16 %v6870
        %v6935 = vunpack.c.h.b16 %v6870
        %v6936 = vunpack.c.l.b16 %v6871
        %v6937 = vunpack.c.h.b16 %v6871
        %v6938 = vunpack.c.l.b16 %v6872
        %v6939 = vunpack.c.h.b16 %v6872
        %v6940 = vunpack.c.l.b16 %v6873
        %v6941 = vunpack.c.h.b16 %v6873
        %v6942 = vunpack.c.l.b16 %v6874
        %v6943 = vunpack.c.h.b16 %v6874
        %v6944 = vunpack.c.l.b16 %v6875
        %v6945 = vunpack.c.h.b16 %v6875
        %v6946 = vunpack.c.l.b16 %v6876
        %v6947 = vunpack.c.h.b16 %v6876
        %v6948 = vunpack.c.l.b16 %v6877
        %v6949 = vunpack.c.h.b16 %v6877
        %v6950 = vunpack.c.l.b16 %v6878
        %v6951 = vunpack.c.h.b16 %v6878
        %v6952 = vunpack.c.l.b16 %v6879
        %v6953 = vunpack.c.h.b16 %v6879
        %v6954 = vunpack.c.l.b16 %v6880
        %v6955 = vunpack.c.h.b16 %v6880
        %v6956 = vunpack.c.l.b16 %v6881
        %v6957 = vunpack.c.h.b16 %v6881
        %v6958 = vunpack.c.l.b16 %v6882
        %v6959 = vunpack.c.h.b16 %v6882
        %v6960 = vunpack.c.l.b16 %v6883
        %v6961 = vunpack.c.h.b16 %v6883
        %v6962 = vunpack.c.l.b16 %v6884
        %v6963 = vunpack.c.h.b16 %v6884
        %v6964 = vunpack.c.l.b16 %v6885
        %v6965 = vunpack.c.h.b16 %v6885
        %v6966 = vunpack.c.l.b16 %v6886
        %v6967 = vunpack.c.h.b16 %v6886
        %v6968 = vunpack.c.l.b16 %v6887
        %v6969 = vunpack.c.h.b16 %v6887
        %v6970 = vunpack.c.l.b16 %v6888
        %v6971 = vunpack.c.h.b16 %v6888
        %v6972 = vunpack.c.l.b16 %v6889
        %v6973 = vunpack.c.h.b16 %v6889
        %v6974 = vunpack.c.l.b16 %v6890
        %v6975 = vunpack.c.h.b16 %v6890
        %v6976 = vunpack.c.l.b16 %v6891
        %v6977 = vunpack.c.h.b16 %v6891
        %v6978 = vunpack.c.l.b16 %v6892
        %v6979 = vunpack.c.h.b16 %v6892
        %v6980 = vunpack.c.l.b16 %v6893
        %v6981 = vunpack.c.h.b16 %v6893
        %v6982 = vunpack.c.l.b16 %v6894
        %v6983 = vunpack.c.h.b16 %v6894
        %v6984 = vunpack.c.l.b16 %v6895
        %v6985 = vunpack.c.h.b16 %v6895
        %v6986 = vunpack.c.l.b16 %v6896
        %v6987 = vunpack.c.h.b16 %v6896
        %v6988 = vunpack.c.l.b16 %v6897
        %v6989 = vunpack.c.h.b16 %v6897
        %v6990 = vunpack.c.l.b16 %v6898
        %v6991 = vunpack.c.h.b16 %v6898
        %v6992 = vunpack.c.l.b16 %v6899
        %v6993 = vunpack.c.h.b16 %v6899
        %v6994 = vunpack.c.l.b16 %v6900
        %v6995 = vunpack.c.h.b16 %v6900
        %v6996 = vunpack.c.l.b16 %v6901
        %v6997 = vunpack.c.h.b16 %v6901
        %v6998 = vpack.c.b16 %v6936, %v6934
        %v6999 = vpack.c.b16 %v6937, %v6935
        %v7000 = vpack.c.b16 %v6940, %v6938
        %v7001 = vpack.c.b16 %v6941, %v6939
        %v7002 = vpack.c.b16 %v6944, %v6942
        %v7003 = vpack.c.b16 %v6945, %v6943
        %v7004 = vpack.c.b16 %v6948, %v6946
        %v7005 = vpack.c.b16 %v6949, %v6947
        %v7006 = vpack.c.b16 %v6952, %v6950
        %v7007 = vpack.c.b16 %v6953, %v6951
        %v7008 = vpack.c.b16 %v6956, %v6954
        %v7009 = vpack.c.b16 %v6957, %v6955
        %v7010 = vpack.c.b16 %v6960, %v6958
        %v7011 = vpack.c.b16 %v6961, %v6959
        %v7012 = vpack.c.b16 %v6964, %v6962
        %v7013 = vpack.c.b16 %v6965, %v6963
        %v7014 = vpack.c.b16 %v6968, %v6966
        %v7015 = vpack.c.b16 %v6969, %v6967
        %v7016 = vpack.c.b16 %v6972, %v6970
        %v7017 = vpack.c.b16 %v6973, %v6971
        %v7018 = vpack.c.b16 %v6976, %v6974
        %v7019 = vpack.c.b16 %v6977, %v6975
        %v7020 = vpack.c.b16 %v6980, %v6978
        %v7021 = vpack.c.b16 %v6981, %v6979
        %v7022 = vpack.c.b16 %v6984, %v6982
        %v7023 = vpack.c.b16 %v6985, %v6983
        %v7024 = vpack.c.b16 %v6988, %v6986
        %v7025 = vpack.c.b16 %v6989, %v6987
        %v7026 = vpack.c.b16 %v6992, %v6990
        %v7027 = vpack.c.b16 %v6993, %v6991
        %v7028 = vpack.c.b16 %v6996, %v6994
        %v7029 = vpack.c.b16 %v6997, %v6995
        %7062 = vmatprep.subr.bf16.mxu0 %v7013
        %7063 = vmatpush1.bf16.msra.mxu0 %v7012
        %7064 = vmatprep.subr.bf16.mxu0 %v7011
        %7065 = vmatpush1.bf16.msra.mxu0 %v7010
        %7066 = vmatprep.subr.bf16.mxu0 %v7009
        %7067 = vmatpush1.bf16.msra.mxu0 %v7008
        %7068 = vmatprep.subr.bf16.mxu0 %v7007
        %7069 = vmatpush1.bf16.msra.mxu0 %v7006
        %7070 = vmatprep.subr.bf16.mxu0 %v7005
        %7071 = vmatpush1.bf16.msra.mxu0 %v7004
        %7072 = vmatprep.subr.bf16.mxu0 %v7003
        %7073 = vmatpush1.bf16.msra.mxu0 %v7002
        %7074 = vmatprep.subr.bf16.mxu0 %v7001
        %7075 = vmatpush1.bf16.msra.mxu0 %v7000
        %7076 = vmatprep.subr.bf16.mxu0 %v6999
        %7077 = vmatpush1.bf16.msra.mxu0 %v6998
        %7078 = vmatprep.subr.bf16.mxu0 %v7029
        %7079 = vmatpush2.bf16.msra.mxu0 %v7028
        %7080 = vmatprep.subr.bf16.mxu0 %v7027
        %7081 = vmatpush2.bf16.msra.mxu0 %v7026
        %7082 = vmatprep.subr.bf16.mxu0 %v7025
        %7083 = vmatpush2.bf16.msra.mxu0 %v7024
        %7084 = vmatprep.subr.bf16.mxu0 %v7023
        %7085 = vmatpush2.bf16.msra.mxu0 %v7022
        %7086 = vmatprep.subr.bf16.mxu0 %v7021
        %7087 = vmatpush2.bf16.msra.mxu0 %v7020
        %7088 = vmatprep.subr.bf16.mxu0 %v7019
        %7089 = vmatpush2.bf16.msra.mxu0 %v7018
        %7090 = vmatprep.subr.bf16.mxu0 %v7017
        %7091 = vmatpush2.bf16.msra.mxu0 %v7016
        %7092 = vmatprep.subr.bf16.mxu0 %v7015
        %7093 = vmatpush2.bf16.msra.mxu0 %v7014
        %7094 = vmatprep.mubr.bf16.mxu0 %v6838
        %7095 = vmatmul.mubr.bf16.gmra.mxu0 %v6837
        %v7096 = vpop.f32.mrf.mxu0
        %v7097 = vadd.f32 0.0, %v7096
        %v7098 = vpop.f32.mrf.mxu0
        %v7099 = vadd.f32 0.0, %v7098
        %v7100 = vpop.f32.mrf.mxu0
        %v7101 = vadd.f32 0.0, %v7100
        %v7102 = vpop.f32.mrf.mxu0
        %v7103 = vadd.f32 0.0, %v7102
        %7104 = vmatprep.mubr.bf16.mxu0 %v6840
        %7105 = vmatmul.mubr.bf16.gmra.mxu0 %v6839
        %v7106 = vpop.f32.mrf.mxu0
        %v7107 = vadd.f32 0.0, %v7106
        %v7108 = vpop.f32.mrf.mxu0
        %v7109 = vadd.f32 0.0, %v7108
        %v7110 = vpop.f32.mrf.mxu0
        %v7111 = vadd.f32 0.0, %v7110
        %v7112 = vpop.f32.mrf.mxu0
        %v7113 = vadd.f32 0.0, %v7112
        %7114 = vmatprep.mubr.bf16.mxu0 %v6842
        %7115 = vmatmul.mubr.bf16.gmra.mxu0 %v6841
        %v7116 = vpop.f32.mrf.mxu0
        %v7117 = vadd.f32 0.0, %v7116
        %v7118 = vpop.f32.mrf.mxu0
        %v7119 = vadd.f32 0.0, %v7118
        %v7120 = vpop.f32.mrf.mxu0
        %v7121 = vadd.f32 0.0, %v7120
        %v7122 = vpop.f32.mrf.mxu0
        %v7123 = vadd.f32 0.0, %v7122
        %7124 = vmatprep.mubr.bf16.mxu0 %v6844
        %7125 = vmatmul.mubr.bf16.gmra.mxu0 %v6843
        %v7126 = vpop.f32.mrf.mxu0
        %v7127 = vadd.f32 0.0, %v7126
        %v7128 = vpop.f32.mrf.mxu0
        %v7129 = vadd.f32 0.0, %v7128
        %v7130 = vpop.f32.mrf.mxu0
        %v7131 = vadd.f32 0.0, %v7130
        %v7132 = vpop.f32.mrf.mxu0
        %v7133 = vadd.f32 0.0, %v7132
        %7134 = vmatprep.mubr.bf16.mxu0 %v6846
        %7135 = vmatmul.mubr.bf16.gmra.mxu0 %v6845
        %v7136 = vpop.f32.mrf.mxu0
        %v7137 = vadd.f32 0.0, %v7136
        %v7138 = vpop.f32.mrf.mxu0
        %v7139 = vadd.f32 0.0, %v7138
        %v7140 = vpop.f32.mrf.mxu0
        %v7141 = vadd.f32 0.0, %v7140
        %v7142 = vpop.f32.mrf.mxu0
        %v7143 = vadd.f32 0.0, %v7142
        %7144 = vmatprep.mubr.bf16.mxu0 %v6848
        %7145 = vmatmul.mubr.bf16.gmra.mxu0 %v6847
        %v7146 = vpop.f32.mrf.mxu0
        %v7147 = vadd.f32 0.0, %v7146
        %v7148 = vpop.f32.mrf.mxu0
        %v7149 = vadd.f32 0.0, %v7148
        %v7150 = vpop.f32.mrf.mxu0
        %v7151 = vadd.f32 0.0, %v7150
        %v7152 = vpop.f32.mrf.mxu0
        %v7153 = vadd.f32 0.0, %v7152
        %7154 = vmatprep.mubr.bf16.mxu0 %v6850
        %7155 = vmatmul.mubr.bf16.gmra.mxu0 %v6849
        %v7156 = vpop.f32.mrf.mxu0
        %v7157 = vadd.f32 0.0, %v7156
        %v7158 = vpop.f32.mrf.mxu0
        %v7159 = vadd.f32 0.0, %v7158
        %v7160 = vpop.f32.mrf.mxu0
        %v7161 = vadd.f32 0.0, %v7160
        %v7162 = vpop.f32.mrf.mxu0
        %v7163 = vadd.f32 0.0, %v7162
        %7164 = vmatprep.mubr.bf16.mxu0 %v6852
        %7165 = vmatmul.mubr.bf16.gmra.mxu0 %v6851
        %v7166 = vpop.f32.mrf.mxu0
        %v7167 = vadd.f32 0.0, %v7166
        %v7168 = vpop.f32.mrf.mxu0
        %v7169 = vadd.f32 0.0, %v7168
        %v7170 = vpop.f32.mrf.mxu0
        %v7171 = vadd.f32 0.0, %v7170
        %v7172 = vpop.f32.mrf.mxu0
        %v7173 = vadd.f32 0.0, %v7172
        %7174 = vmatprep.mubr.bf16.mxu0 %v6854
        %7175 = vmatmul.mubr.bf16.gmra.mxu0 %v6853
        %v7176 = vpop.f32.mrf.mxu0
        %v7177 = vadd.f32 0.0, %v7176
        %v7178 = vpop.f32.mrf.mxu0
        %v7179 = vadd.f32 0.0, %v7178
        %v7180 = vpop.f32.mrf.mxu0
        %v7181 = vadd.f32 0.0, %v7180
        %v7182 = vpop.f32.mrf.mxu0
        %v7183 = vadd.f32 0.0, %v7182
        %7184 = vmatprep.mubr.bf16.mxu0 %v6856
        %7185 = vmatmul.mubr.bf16.gmra.mxu0 %v6855
        %v7186 = vpop.f32.mrf.mxu0
        %v7187 = vadd.f32 0.0, %v7186
        %v7188 = vpop.f32.mrf.mxu0
        %v7189 = vadd.f32 0.0, %v7188
        %v7190 = vpop.f32.mrf.mxu0
        %v7191 = vadd.f32 0.0, %v7190
        %v7192 = vpop.f32.mrf.mxu0
        %v7193 = vadd.f32 0.0, %v7192
        %7194 = vmatprep.mubr.bf16.mxu0 %v6858
        %7195 = vmatmul.mubr.bf16.gmra.mxu0 %v6857
        %v7196 = vpop.f32.mrf.mxu0
        %v7197 = vadd.f32 0.0, %v7196
        %v7198 = vpop.f32.mrf.mxu0
        %v7199 = vadd.f32 0.0, %v7198
        %v7200 = vpop.f32.mrf.mxu0
        %v7201 = vadd.f32 0.0, %v7200
        %v7202 = vpop.f32.mrf.mxu0
        %v7203 = vadd.f32 0.0, %v7202
        %7204 = vmatprep.mubr.bf16.mxu0 %v6860
        %7205 = vmatmul.mubr.bf16.gmra.mxu0 %v6859
        %v7206 = vpop.f32.mrf.mxu0
        %v7207 = vadd.f32 0.0, %v7206
        %v7208 = vpop.f32.mrf.mxu0
        %v7209 = vadd.f32 0.0, %v7208
        %v7210 = vpop.f32.mrf.mxu0
        %v7211 = vadd.f32 0.0, %v7210
        %v7212 = vpop.f32.mrf.mxu0
        %v7213 = vadd.f32 0.0, %v7212
        %7214 = vmatprep.mubr.bf16.mxu0 %v6862
        %7215 = vmatmul.mubr.bf16.gmra.mxu0 %v6861
        %v7216 = vpop.f32.mrf.mxu0
        %v7217 = vadd.f32 0.0, %v7216
        %v7218 = vpop.f32.mrf.mxu0
        %v7219 = vadd.f32 0.0, %v7218
        %v7220 = vpop.f32.mrf.mxu0
        %v7221 = vadd.f32 0.0, %v7220
        %v7222 = vpop.f32.mrf.mxu0
        %v7223 = vadd.f32 0.0, %v7222
        %7224 = vmatprep.mubr.bf16.mxu0 %v6864
        %7225 = vmatmul.mubr.bf16.gmra.mxu0 %v6863
        %v7226 = vpop.f32.mrf.mxu0
        %v7227 = vadd.f32 0.0, %v7226
        %v7228 = vpop.f32.mrf.mxu0
        %v7229 = vadd.f32 0.0, %v7228
        %v7230 = vpop.f32.mrf.mxu0
        %v7231 = vadd.f32 0.0, %v7230
        %v7232 = vpop.f32.mrf.mxu0
        %v7233 = vadd.f32 0.0, %v7232
        %7234 = vmatprep.mubr.bf16.mxu0 %v6866
        %7235 = vmatmul.mubr.bf16.gmra.mxu0 %v6865
        %v7236 = vpop.f32.mrf.mxu0
        %v7237 = vadd.f32 0.0, %v7236
        %v7238 = vpop.f32.mrf.mxu0
        %v7239 = vadd.f32 0.0, %v7238
        %v7240 = vpop.f32.mrf.mxu0
        %v7241 = vadd.f32 0.0, %v7240
        %v7242 = vpop.f32.mrf.mxu0
        %v7243 = vadd.f32 0.0, %v7242
        %7244 = vmatprep.mubr.bf16.mxu0 %v6868
        %7245 = vmatmul.mubr.bf16.gmra.mxu0 %v6867
        %v7246 = vpop.f32.mrf.mxu0
        %v7247 = vadd.f32 0.0, %v7246
        %v7248 = vpop.f32.mrf.mxu0
        %v7249 = vadd.f32 0.0, %v7248
        %v7250 = vpop.f32.mrf.mxu0
        %v7251 = vadd.f32 0.0, %v7250
        %v7252 = vpop.f32.mrf.mxu0
        %v7253 = vadd.f32 0.0, %v7252
        %7254 = vdwg.mxu0
        %v7255 = vadd.f32 %v6709, %v7097
        %v7256 = vadd.f32 %v6710, %v7099
        %v7257 = vadd.f32 %v6711, %v7101
        %v7258 = vadd.f32 %v6712, %v7103
        %v7259 = vadd.f32 %v6713, %v7107
        %v7260 = vadd.f32 %v6714, %v7109
        %v7261 = vadd.f32 %v6715, %v7111
        %v7262 = vadd.f32 %v6716, %v7113
        %v7263 = vadd.f32 %v6717, %v7117
        %v7264 = vadd.f32 %v6718, %v7119
        %v7265 = vadd.f32 %v6719, %v7121
        %v7266 = vadd.f32 %v6720, %v7123
        %v7267 = vadd.f32 %v6721, %v7127
        %v7268 = vadd.f32 %v6722, %v7129
        %v7269 = vadd.f32 %v6723, %v7131
        %v7270 = vadd.f32 %v6724, %v7133
        %v7271 = vadd.f32 %v6725, %v7137
        %v7272 = vadd.f32 %v6726, %v7139
        %v7273 = vadd.f32 %v6727, %v7141
        %v7274 = vadd.f32 %v6728, %v7143
        %v7275 = vadd.f32 %v6729, %v7147
        %v7276 = vadd.f32 %v6730, %v7149
        %v7277 = vadd.f32 %v6731, %v7151
        %v7278 = vadd.f32 %v6732, %v7153
        %v7279 = vadd.f32 %v6733, %v7157
        %v7280 = vadd.f32 %v6734, %v7159
        %v7281 = vadd.f32 %v6735, %v7161
        %v7282 = vadd.f32 %v6736, %v7163
        %v7283 = vadd.f32 %v6737, %v7167
        %v7284 = vadd.f32 %v6738, %v7169
        %v7285 = vadd.f32 %v6739, %v7171
        %v7286 = vadd.f32 %v6740, %v7173
        %v7287 = vadd.f32 %v6741, %v7177
        %v7288 = vadd.f32 %v6742, %v7179
        %v7289 = vadd.f32 %v6743, %v7181
        %v7290 = vadd.f32 %v6744, %v7183
        %v7291 = vadd.f32 %v6745, %v7187
        %v7292 = vadd.f32 %v6746, %v7189
        %v7293 = vadd.f32 %v6747, %v7191
        %v7294 = vadd.f32 %v6748, %v7193
        %v7295 = vadd.f32 %v6749, %v7197
        %v7296 = vadd.f32 %v6750, %v7199
        %v7297 = vadd.f32 %v6751, %v7201
        %v7298 = vadd.f32 %v6752, %v7203
        %v7299 = vadd.f32 %v6753, %v7207
        %v7300 = vadd.f32 %v6754, %v7209
        %v7301 = vadd.f32 %v6755, %v7211
        %v7302 = vadd.f32 %v6756, %v7213
        %v7303 = vadd.f32 %v6757, %v7217
        %v7304 = vadd.f32 %v6758, %v7219
        %v7305 = vadd.f32 %v6759, %v7221
        %v7306 = vadd.f32 %v6760, %v7223
        %v7307 = vadd.f32 %v6761, %v7227
        %v7308 = vadd.f32 %v6762, %v7229
        %v7309 = vadd.f32 %v6763, %v7231
        %v7310 = vadd.f32 %v6764, %v7233
        %v7311 = vadd.f32 %v6765, %v7237
        %v7312 = vadd.f32 %v6766, %v7239
        %v7313 = vadd.f32 %v6767, %v7241
        %v7314 = vadd.f32 %v6768, %v7243
        %v7315 = vadd.f32 %v6769, %v7247
        %v7316 = vadd.f32 %v6770, %v7249
        %v7317 = vadd.f32 %v6771, %v7251
        %v7318 = vadd.f32 %v6772, %v7253
        %v7319 = vld [vmem:[%s4557] sm:$0xfe]
        %v7320 = vld [vmem:[%s4557 + $0x8] sm:$0xfe]
        %v7321 = vld [vmem:[%s4557 + $0x10] sm:$0xff]
        %v7322 = vld [vmem:[%s4557 + $0x18] sm:$0xff]
        %v7323 = vld [vmem:[%s4557 + $0x20] sm:$0x1]
        %v7324 = vld [vmem:[%s4557 + $0x28] sm:$0x1]
        %v7325 = vld [vmem:[%s4557 + $0x30] sm:$0xfe]
        %v7326 = vld [vmem:[%s4557 + $0x38] sm:$0xfe]
        %v7327 = vld [vmem:[%s4557 + $0x40] sm:$0xff]
        %v7328 = vld [vmem:[%s4557 + $0x48] sm:$0xff]
        %v7329 = vld [vmem:[%s4557 + $0x50] sm:$0x1]
        %v7330 = vld [vmem:[%s4557 + $0x58] sm:$0x1]
        %v7331 = vld [vmem:[%s4557 + $0x60] sm:$0xfe]
        %v7332 = vld [vmem:[%s4557 + $0x68] sm:$0xfe]
        %v7333 = vld [vmem:[%s4557 + $0x70] sm:$0xff]
        %v7334 = vld [vmem:[%s4557 + $0x78] sm:$0xff]
        %v7335 = vld [vmem:[%s4557 + $0x80] sm:$0x1]
        %v7336 = vld [vmem:[%s4557 + $0x88] sm:$0x1]
        %v7337 = vld [vmem:[%s4557 + $0x90] sm:$0xfe]
        %v7338 = vld [vmem:[%s4557 + $0x98] sm:$0xfe]
        %v7339 = vld [vmem:[%s4557 + $0xa0] sm:$0xff]
        %v7340 = vld [vmem:[%s4557 + $0xa8] sm:$0xff]
        %v7341 = vld [vmem:[%s4557 + $0xb0] sm:$0x1]
        %v7342 = vld [vmem:[%s4557 + $0xb8] sm:$0x1]
        %v7343 = vld [vmem:[%s4557 + $0xc0] sm:$0xfe]
        %v7344 = vld [vmem:[%s4557 + $0xc8] sm:$0xfe]
        %v7345 = vld [vmem:[%s4557 + $0xd0] sm:$0xff]
        %v7346 = vld [vmem:[%s4557 + $0xd8] sm:$0xff]
        %v7347 = vld [vmem:[%s4557 + $0xe0] sm:$0x1]
        %v7348 = vld [vmem:[%s4557 + $0xe8] sm:$0x1]
        %v7349 = vld [vmem:[%s4557 + $0xf0] sm:$0xfe]
        %v7350 = vld [vmem:[%s4557 + $0xf8] sm:$0xfe]
        %v7351 = vld [vmem:[%s4557 + $0x100] sm:$0xff]
        %v7352 = vld [vmem:[%s4557 + $0x108] sm:$0xff]
        %v7353 = vld [vmem:[%s4557 + $0x110] sm:$0x1]
        %v7354 = vld [vmem:[%s4557 + $0x118] sm:$0x1]
        %v7355 = vld [vmem:[%s4557 + $0x120] sm:$0xfe]
        %v7356 = vld [vmem:[%s4557 + $0x128] sm:$0xfe]
        %v7357 = vld [vmem:[%s4557 + $0x130] sm:$0xff]
        %v7358 = vld [vmem:[%s4557 + $0x138] sm:$0xff]
        %v7359 = vld [vmem:[%s4557 + $0x140] sm:$0x1]
        %v7360 = vld [vmem:[%s4557 + $0x148] sm:$0x1]
        %v7361 = vld [vmem:[%s4557 + $0x150] sm:$0xfe]
        %v7362 = vld [vmem:[%s4557 + $0x158] sm:$0xfe]
        %v7363 = vld [vmem:[%s4557 + $0x160] sm:$0xff]
        %v7364 = vld [vmem:[%s4557 + $0x168] sm:$0xff]
        %v7365 = vld [vmem:[%s4557 + $0x170] sm:$0x1]
        %v7366 = vld [vmem:[%s4557 + $0x178] sm:$0x1]
        %v7367 = vld [vmem:[%s4557 + $0x180] sm:$0xfe]
        %v7368 = vld [vmem:[%s4557 + $0x188] sm:$0xfe]
        %v7369 = vld [vmem:[%s4557 + $0x190] sm:$0xff]
        %v7370 = vld [vmem:[%s4557 + $0x198] sm:$0xff]
        %v7371 = vld [vmem:[%s4557 + $0x1a0] sm:$0x1]
        %v7372 = vld [vmem:[%s4557 + $0x1a8] sm:$0x1]
        %v7373 = vld [vmem:[%s4557 + $0x1b0] sm:$0xfe]
        %v7374 = vld [vmem:[%s4557 + $0x1b8] sm:$0xfe]
        %v7375 = vld [vmem:[%s4557 + $0x1c0] sm:$0xff]
        %v7376 = vld [vmem:[%s4557 + $0x1c8] sm:$0xff]
        %v7377 = vld [vmem:[%s4557 + $0x1d0] sm:$0x1]
        %v7378 = vld [vmem:[%s4557 + $0x1d8] sm:$0x1]
        %v7379 = vld [vmem:[%s4557 + $0x1e0] sm:$0xfe]
        %v7380 = vld [vmem:[%s4557 + $0x1e8] sm:$0xfe]
        %v7381 = vld [vmem:[%s4557 + $0x1f0] sm:$0xff]
        %v7382 = vld [vmem:[%s4557 + $0x1f8] sm:$0xff]
        %v7383 = vld [vmem:[%s4557 + $0x200] sm:$0x1]
        %v7384 = vld [vmem:[%s4557 + $0x208] sm:$0x1]
        %v7385 = vld [vmem:[%s4557 + $0x210] sm:$0xfe]
        %v7386 = vld [vmem:[%s4557 + $0x218] sm:$0xfe]
        %v7387 = vld [vmem:[%s4557 + $0x220] sm:$0xff]
        %v7388 = vld [vmem:[%s4557 + $0x228] sm:$0xff]
        %v7389 = vld [vmem:[%s4557 + $0x230] sm:$0x1]
        %v7390 = vld [vmem:[%s4557 + $0x238] sm:$0x1]
        %v7391 = vld [vmem:[%s4557 + $0x240] sm:$0xfe]
        %v7392 = vld [vmem:[%s4557 + $0x248] sm:$0xfe]
        %v7393 = vld [vmem:[%s4557 + $0x250] sm:$0xff]
        %v7394 = vld [vmem:[%s4557 + $0x258] sm:$0xff]
        %v7395 = vld [vmem:[%s4557 + $0x260] sm:$0x1]
        %v7396 = vld [vmem:[%s4557 + $0x268] sm:$0x1]
        %v7397 = vld [vmem:[%s4557 + $0x270] sm:$0xfe]
        %v7398 = vld [vmem:[%s4557 + $0x278] sm:$0xfe]
        %v7399 = vld [vmem:[%s4557 + $0x280] sm:$0xff]
        %v7400 = vld [vmem:[%s4557 + $0x288] sm:$0xff]
        %v7401 = vld [vmem:[%s4557 + $0x290] sm:$0x1]
        %v7402 = vld [vmem:[%s4557 + $0x298] sm:$0x1]
        %v7403 = vld [vmem:[%s4557 + $0x2a0] sm:$0xfe]
        %v7404 = vld [vmem:[%s4557 + $0x2a8] sm:$0xfe]
        %v7405 = vld [vmem:[%s4557 + $0x2b0] sm:$0xff]
        %v7406 = vld [vmem:[%s4557 + $0x2b8] sm:$0xff]
        %v7407 = vld [vmem:[%s4557 + $0x2c0] sm:$0x1]
        %v7408 = vld [vmem:[%s4557 + $0x2c8] sm:$0x1]
        %v7409 = vld [vmem:[%s4557 + $0x2d0] sm:$0xfe]
        %v7410 = vld [vmem:[%s4557 + $0x2d8] sm:$0xfe]
        %v7411 = vld [vmem:[%s4557 + $0x2e0] sm:$0xff]
        %v7412 = vld [vmem:[%s4557 + $0x2e8] sm:$0xff]
        %v7413 = vld [vmem:[%s4557 + $0x2f0] sm:$0x1]
        %v7414 = vld [vmem:[%s4557 + $0x2f8] sm:$0x1]
        %v7511 = vrot.slane %v7319, 1
        %v7512 = vrot.slane %v7321, 1
        %v7513 = vsel %vm4942, %v7511, %v7512
        %v7514 = vrot.slane %v7320, 1
        %v7515 = vrot.slane %v7322, 1
        %v7516 = vsel %vm4942, %v7514, %v7515
        %v7517 = vrot.slane %v7323, 1
        %v7518 = vsel %vm4942, %v7512, %v7517
        %v7519 = vrot.slane %v7324, 1
        %v7520 = vsel %vm4942, %v7515, %v7519
        %v7521 = vrot.slane %v7325, 1
        %v7522 = vrot.slane %v7327, 1
        %v7523 = vsel %vm4942, %v7521, %v7522
        %v7524 = vrot.slane %v7326, 1
        %v7525 = vrot.slane %v7328, 1
        %v7526 = vsel %vm4942, %v7524, %v7525
        %v7527 = vrot.slane %v7329, 1
        %v7528 = vsel %vm4942, %v7522, %v7527
        %v7529 = vrot.slane %v7330, 1
        %v7530 = vsel %vm4942, %v7525, %v7529
        %v7531 = vrot.slane %v7331, 1
        %v7532 = vrot.slane %v7333, 1
        %v7533 = vsel %vm4942, %v7531, %v7532
        %v7534 = vrot.slane %v7332, 1
        %v7535 = vrot.slane %v7334, 1
        %v7536 = vsel %vm4942, %v7534, %v7535
        %v7537 = vrot.slane %v7335, 1
        %v7538 = vsel %vm4942, %v7532, %v7537
        %v7539 = vrot.slane %v7336, 1
        %v7540 = vsel %vm4942, %v7535, %v7539
        %v7541 = vrot.slane %v7337, 1
        %v7542 = vrot.slane %v7339, 1
        %v7543 = vsel %vm4942, %v7541, %v7542
        %v7544 = vrot.slane %v7338, 1
        %v7545 = vrot.slane %v7340, 1
        %v7546 = vsel %vm4942, %v7544, %v7545
        %v7547 = vrot.slane %v7341, 1
        %v7548 = vsel %vm4942, %v7542, %v7547
        %v7549 = vrot.slane %v7342, 1
        %v7550 = vsel %vm4942, %v7545, %v7549
        %v7551 = vrot.slane %v7343, 1
        %v7552 = vrot.slane %v7345, 1
        %v7553 = vsel %vm4942, %v7551, %v7552
        %v7554 = vrot.slane %v7344, 1
        %v7555 = vrot.slane %v7346, 1
        %v7556 = vsel %vm4942, %v7554, %v7555
        %v7557 = vrot.slane %v7347, 1
        %v7558 = vsel %vm4942, %v7552, %v7557
        %v7559 = vrot.slane %v7348, 1
        %v7560 = vsel %vm4942, %v7555, %v7559
        %v7561 = vrot.slane %v7349, 1
        %v7562 = vrot.slane %v7351, 1
        %v7563 = vsel %vm4942, %v7561, %v7562
        %v7564 = vrot.slane %v7350, 1
        %v7565 = vrot.slane %v7352, 1
        %v7566 = vsel %vm4942, %v7564, %v7565
        %v7567 = vrot.slane %v7353, 1
        %v7568 = vsel %vm4942, %v7562, %v7567
        %v7569 = vrot.slane %v7354, 1
        %v7570 = vsel %vm4942, %v7565, %v7569
        %v7571 = vrot.slane %v7355, 1
        %v7572 = vrot.slane %v7357, 1
        %v7573 = vsel %vm4942, %v7571, %v7572
        %v7574 = vrot.slane %v7356, 1
        %v7575 = vrot.slane %v7358, 1
        %v7576 = vsel %vm4942, %v7574, %v7575
        %v7577 = vrot.slane %v7359, 1
        %v7578 = vsel %vm4942, %v7572, %v7577
        %v7579 = vrot.slane %v7360, 1
        %v7580 = vsel %vm4942, %v7575, %v7579
        %v7581 = vrot.slane %v7361, 1
        %v7582 = vrot.slane %v7363, 1
        %v7583 = vsel %vm4942, %v7581, %v7582
        %v7584 = vrot.slane %v7362, 1
        %v7585 = vrot.slane %v7364, 1
        %v7586 = vsel %vm4942, %v7584, %v7585
        %v7587 = vrot.slane %v7365, 1
        %v7588 = vsel %vm4942, %v7582, %v7587
        %v7589 = vrot.slane %v7366, 1
        %v7590 = vsel %vm4942, %v7585, %v7589
        %v7591 = vrot.slane %v7367, 1
        %v7592 = vrot.slane %v7369, 1
        %v7593 = vsel %vm4942, %v7591, %v7592
        %v7594 = vrot.slane %v7368, 1
        %v7595 = vrot.slane %v7370, 1
        %v7596 = vsel %vm4942, %v7594, %v7595
        %v7597 = vrot.slane %v7371, 1
        %v7598 = vsel %vm4942, %v7592, %v7597
        %v7599 = vrot.slane %v7372, 1
        %v7600 = vsel %vm4942, %v7595, %v7599
        %v7601 = vrot.slane %v7373, 1
        %v7602 = vrot.slane %v7375, 1
        %v7603 = vsel %vm4942, %v7601, %v7602
        %v7604 = vrot.slane %v7374, 1
        %v7605 = vrot.slane %v7376, 1
        %v7606 = vsel %vm4942, %v7604, %v7605
        %v7607 = vrot.slane %v7377, 1
        %v7608 = vsel %vm4942, %v7602, %v7607
        %v7609 = vrot.slane %v7378, 1
        %v7610 = vsel %vm4942, %v7605, %v7609
        %v7611 = vrot.slane %v7379, 1
        %v7612 = vrot.slane %v7381, 1
        %v7613 = vsel %vm4942, %v7611, %v7612
        %v7614 = vrot.slane %v7380, 1
        %v7615 = vrot.slane %v7382, 1
        %v7616 = vsel %vm4942, %v7614, %v7615
        %v7617 = vrot.slane %v7383, 1
        %v7618 = vsel %vm4942, %v7612, %v7617
        %v7619 = vrot.slane %v7384, 1
        %v7620 = vsel %vm4942, %v7615, %v7619
        %v7621 = vrot.slane %v7385, 1
        %v7622 = vrot.slane %v7387, 1
        %v7623 = vsel %vm4942, %v7621, %v7622
        %v7624 = vrot.slane %v7386, 1
        %v7625 = vrot.slane %v7388, 1
        %v7626 = vsel %vm4942, %v7624, %v7625
        %v7627 = vrot.slane %v7389, 1
        %v7628 = vsel %vm4942, %v7622, %v7627
        %v7629 = vrot.slane %v7390, 1
        %v7630 = vsel %vm4942, %v7625, %v7629
        %v7631 = vrot.slane %v7391, 1
        %v7632 = vrot.slane %v7393, 1
        %v7633 = vsel %vm4942, %v7631, %v7632
        %v7634 = vrot.slane %v7392, 1
        %v7635 = vrot.slane %v7394, 1
        %v7636 = vsel %vm4942, %v7634, %v7635
        %v7637 = vrot.slane %v7395, 1
        %v7638 = vsel %vm4942, %v7632, %v7637
        %v7639 = vrot.slane %v7396, 1
        %v7640 = vsel %vm4942, %v7635, %v7639
        %v7641 = vrot.slane %v7397, 1
        %v7642 = vrot.slane %v7399, 1
        %v7643 = vsel %vm4942, %v7641, %v7642
        %v7644 = vrot.slane %v7398, 1
        %v7645 = vrot.slane %v7400, 1
        %v7646 = vsel %vm4942, %v7644, %v7645
        %v7647 = vrot.slane %v7401, 1
        %v7648 = vsel %vm4942, %v7642, %v7647
        %v7649 = vrot.slane %v7402, 1
        %v7650 = vsel %vm4942, %v7645, %v7649
        %v7651 = vrot.slane %v7403, 1
        %v7652 = vrot.slane %v7405, 1
        %v7653 = vsel %vm4942, %v7651, %v7652
        %v7654 = vrot.slane %v7404, 1
        %v7655 = vrot.slane %v7406, 1
        %v7656 = vsel %vm4942, %v7654, %v7655
        %v7657 = vrot.slane %v7407, 1
        %v7658 = vsel %vm4942, %v7652, %v7657
        %v7659 = vrot.slane %v7408, 1
        %v7660 = vsel %vm4942, %v7655, %v7659
        %v7661 = vrot.slane %v7409, 1
        %v7662 = vrot.slane %v7411, 1
        %v7663 = vsel %vm4942, %v7661, %v7662
        %v7664 = vrot.slane %v7410, 1
        %v7665 = vrot.slane %v7412, 1
        %v7666 = vsel %vm4942, %v7664, %v7665
        %v7667 = vrot.slane %v7413, 1
        %v7668 = vsel %vm4942, %v7662, %v7667
        %v7669 = vrot.slane %v7414, 1
        %v7670 = vsel %vm4942, %v7665, %v7669
        %v7735 = vpack.c.bf16 %v7518, %v7513
        %v7736 = vpack.c.bf16 %v7520, %v7516
        %v7737 = vpack.c.bf16 %v7528, %v7523
        %v7738 = vpack.c.bf16 %v7530, %v7526
        %v7739 = vpack.c.bf16 %v7538, %v7533
        %v7740 = vpack.c.bf16 %v7540, %v7536
        %v7741 = vpack.c.bf16 %v7548, %v7543
        %v7742 = vpack.c.bf16 %v7550, %v7546
        %v7743 = vpack.c.bf16 %v7558, %v7553
        %v7744 = vpack.c.bf16 %v7560, %v7556
        %v7745 = vpack.c.bf16 %v7568, %v7563
        %v7746 = vpack.c.bf16 %v7570, %v7566
        %v7747 = vpack.c.bf16 %v7578, %v7573
        %v7748 = vpack.c.bf16 %v7580, %v7576
        %v7749 = vpack.c.bf16 %v7588, %v7583
        %v7750 = vpack.c.bf16 %v7590, %v7586
        %v7751 = vpack.c.bf16 %v7598, %v7593
        %v7752 = vpack.c.bf16 %v7600, %v7596
        %v7753 = vpack.c.bf16 %v7608, %v7603
        %v7754 = vpack.c.bf16 %v7610, %v7606
        %v7755 = vpack.c.bf16 %v7618, %v7613
        %v7756 = vpack.c.bf16 %v7620, %v7616
        %v7757 = vpack.c.bf16 %v7628, %v7623
        %v7758 = vpack.c.bf16 %v7630, %v7626
        %v7759 = vpack.c.bf16 %v7638, %v7633
        %v7760 = vpack.c.bf16 %v7640, %v7636
        %v7761 = vpack.c.bf16 %v7648, %v7643
        %v7762 = vpack.c.bf16 %v7650, %v7646
        %v7763 = vpack.c.bf16 %v7658, %v7653
        %v7764 = vpack.c.bf16 %v7660, %v7656
        %v7765 = vpack.c.bf16 %v7668, %v7663
        %v7766 = vpack.c.bf16 %v7670, %v7666
        %s7767 = scalar_lea.vmem %s2, 1024
        %v7768 = vld [vmem:[%s7767] sm:$0xff]
        %v7769 = vld [vmem:[%s7767 + $0x8] sm:$0xff]
        %v7770 = vld [vmem:[%s7767 + $0x10] sm:$0xff]
        %v7771 = vld [vmem:[%s7767 + $0x18] sm:$0xff]
        %v7772 = vld [vmem:[%s7767 + $0x20] sm:$0xff]
        %v7773 = vld [vmem:[%s7767 + $0x28] sm:$0xff]
        %v7774 = vld [vmem:[%s7767 + $0x30] sm:$0xff]
        %v7775 = vld [vmem:[%s7767 + $0x38] sm:$0xff]
        %v7776 = vld [vmem:[%s7767 + $0x40] sm:$0xff]
        %v7777 = vld [vmem:[%s7767 + $0x48] sm:$0xff]
        %v7778 = vld [vmem:[%s7767 + $0x50] sm:$0xff]
        %v7779 = vld [vmem:[%s7767 + $0x58] sm:$0xff]
        %v7780 = vld [vmem:[%s7767 + $0x60] sm:$0xff]
        %v7781 = vld [vmem:[%s7767 + $0x68] sm:$0xff]
        %v7782 = vld [vmem:[%s7767 + $0x70] sm:$0xff]
        %v7783 = vld [vmem:[%s7767 + $0x78] sm:$0xff]
        %v7784 = vld [vmem:[%s7767 + $0x80] sm:$0xff]
        %v7785 = vld [vmem:[%s7767 + $0x88] sm:$0xff]
        %v7786 = vld [vmem:[%s7767 + $0x90] sm:$0xff]
        %v7787 = vld [vmem:[%s7767 + $0x98] sm:$0xff]
        %v7788 = vld [vmem:[%s7767 + $0xa0] sm:$0xff]
        %v7789 = vld [vmem:[%s7767 + $0xa8] sm:$0xff]
        %v7790 = vld [vmem:[%s7767 + $0xb0] sm:$0xff]
        %v7791 = vld [vmem:[%s7767 + $0xb8] sm:$0xff]
        %v7792 = vld [vmem:[%s7767 + $0xc0] sm:$0xff]
        %v7793 = vld [vmem:[%s7767 + $0xc8] sm:$0xff]
        %v7794 = vld [vmem:[%s7767 + $0xd0] sm:$0xff]
        %v7795 = vld [vmem:[%s7767 + $0xd8] sm:$0xff]
        %v7796 = vld [vmem:[%s7767 + $0xe0] sm:$0xff]
        %v7797 = vld [vmem:[%s7767 + $0xe8] sm:$0xff]
        %v7798 = vld [vmem:[%s7767 + $0xf0] sm:$0xff]
        %v7799 = vld [vmem:[%s7767 + $0xf8] sm:$0xff]
        %v7832 = vunpack.c.l.b16 %v7768
        %v7833 = vunpack.c.h.b16 %v7768
        %v7834 = vunpack.c.l.b16 %v7769
        %v7835 = vunpack.c.h.b16 %v7769
        %v7836 = vunpack.c.l.b16 %v7770
        %v7837 = vunpack.c.h.b16 %v7770
        %v7838 = vunpack.c.l.b16 %v7771
        %v7839 = vunpack.c.h.b16 %v7771
        %v7840 = vunpack.c.l.b16 %v7772
        %v7841 = vunpack.c.h.b16 %v7772
        %v7842 = vunpack.c.l.b16 %v7773
        %v7843 = vunpack.c.h.b16 %v7773
        %v7844 = vunpack.c.l.b16 %v7774
        %v7845 = vunpack.c.h.b16 %v7774
        %v7846 = vunpack.c.l.b16 %v7775
        %v7847 = vunpack.c.h.b16 %v7775
        %v7848 = vunpack.c.l.b16 %v7776
        %v7849 = vunpack.c.h.b16 %v7776
        %v7850 = vunpack.c.l.b16 %v7777
        %v7851 = vunpack.c.h.b16 %v7777
        %v7852 = vunpack.c.l.b16 %v7778
        %v7853 = vunpack.c.h.b16 %v7778
        %v7854 = vunpack.c.l.b16 %v7779
        %v7855 = vunpack.c.h.b16 %v7779
        %v7856 = vunpack.c.l.b16 %v7780
        %v7857 = vunpack.c.h.b16 %v7780
        %v7858 = vunpack.c.l.b16 %v7781
        %v7859 = vunpack.c.h.b16 %v7781
        %v7860 = vunpack.c.l.b16 %v7782
        %v7861 = vunpack.c.h.b16 %v7782
        %v7862 = vunpack.c.l.b16 %v7783
        %v7863 = vunpack.c.h.b16 %v7783
        %v7864 = vunpack.c.l.b16 %v7784
        %v7865 = vunpack.c.h.b16 %v7784
        %v7866 = vunpack.c.l.b16 %v7785
        %v7867 = vunpack.c.h.b16 %v7785
        %v7868 = vunpack.c.l.b16 %v7786
        %v7869 = vunpack.c.h.b16 %v7786
        %v7870 = vunpack.c.l.b16 %v7787
        %v7871 = vunpack.c.h.b16 %v7787
        %v7872 = vunpack.c.l.b16 %v7788
        %v7873 = vunpack.c.h.b16 %v7788
        %v7874 = vunpack.c.l.b16 %v7789
        %v7875 = vunpack.c.h.b16 %v7789
        %v7876 = vunpack.c.l.b16 %v7790
        %v7877 = vunpack.c.h.b16 %v7790
        %v7878 = vunpack.c.l.b16 %v7791
        %v7879 = vunpack.c.h.b16 %v7791
        %v7880 = vunpack.c.l.b16 %v7792
        %v7881 = vunpack.c.h.b16 %v7792
        %v7882 = vunpack.c.l.b16 %v7793
        %v7883 = vunpack.c.h.b16 %v7793
        %v7884 = vunpack.c.l.b16 %v7794
        %v7885 = vunpack.c.h.b16 %v7794
        %v7886 = vunpack.c.l.b16 %v7795
        %v7887 = vunpack.c.h.b16 %v7795
        %v7888 = vunpack.c.l.b16 %v7796
        %v7889 = vunpack.c.h.b16 %v7796
        %v7890 = vunpack.c.l.b16 %v7797
        %v7891 = vunpack.c.h.b16 %v7797
        %v7892 = vunpack.c.l.b16 %v7798
        %v7893 = vunpack.c.h.b16 %v7798
        %v7894 = vunpack.c.l.b16 %v7799
        %v7895 = vunpack.c.h.b16 %v7799
        %v7896 = vpack.c.b16 %v7834, %v7832
        %v7897 = vpack.c.b16 %v7835, %v7833
        %v7898 = vpack.c.b16 %v7838, %v7836
        %v7899 = vpack.c.b16 %v7839, %v7837
        %v7900 = vpack.c.b16 %v7842, %v7840
        %v7901 = vpack.c.b16 %v7843, %v7841
        %v7902 = vpack.c.b16 %v7846, %v7844
        %v7903 = vpack.c.b16 %v7847, %v7845
        %v7904 = vpack.c.b16 %v7850, %v7848
        %v7905 = vpack.c.b16 %v7851, %v7849
        %v7906 = vpack.c.b16 %v7854, %v7852
        %v7907 = vpack.c.b16 %v7855, %v7853
        %v7908 = vpack.c.b16 %v7858, %v7856
        %v7909 = vpack.c.b16 %v7859, %v7857
        %v7910 = vpack.c.b16 %v7862, %v7860
        %v7911 = vpack.c.b16 %v7863, %v7861
        %v7912 = vpack.c.b16 %v7866, %v7864
        %v7913 = vpack.c.b16 %v7867, %v7865
        %v7914 = vpack.c.b16 %v7870, %v7868
        %v7915 = vpack.c.b16 %v7871, %v7869
        %v7916 = vpack.c.b16 %v7874, %v7872
        %v7917 = vpack.c.b16 %v7875, %v7873
        %v7918 = vpack.c.b16 %v7878, %v7876
        %v7919 = vpack.c.b16 %v7879, %v7877
        %v7920 = vpack.c.b16 %v7882, %v7880
        %v7921 = vpack.c.b16 %v7883, %v7881
        %v7922 = vpack.c.b16 %v7886, %v7884
        %v7923 = vpack.c.b16 %v7887, %v7885
        %v7924 = vpack.c.b16 %v7890, %v7888
        %v7925 = vpack.c.b16 %v7891, %v7889
        %v7926 = vpack.c.b16 %v7894, %v7892
        %v7927 = vpack.c.b16 %v7895, %v7893
        %7960 = vmatprep.subr.bf16.mxu0 %v7911
        %7961 = vmatpush1.bf16.msra.mxu0 %v7910
        %7962 = vmatprep.subr.bf16.mxu0 %v7909
        %7963 = vmatpush1.bf16.msra.mxu0 %v7908
        %7964 = vmatprep.subr.bf16.mxu0 %v7907
        %7965 = vmatpush1.bf16.msra.mxu0 %v7906
        %7966 = vmatprep.subr.bf16.mxu0 %v7905
        %7967 = vmatpush1.bf16.msra.mxu0 %v7904
        %7968 = vmatprep.subr.bf16.mxu0 %v7903
        %7969 = vmatpush1.bf16.msra.mxu0 %v7902
        %7970 = vmatprep.subr.bf16.mxu0 %v7901
        %7971 = vmatpush1.bf16.msra.mxu0 %v7900
        %7972 = vmatprep.subr.bf16.mxu0 %v7899
        %7973 = vmatpush1.bf16.msra.mxu0 %v7898
        %7974 = vmatprep.subr.bf16.mxu0 %v7897
        %7975 = vmatpush1.bf16.msra.mxu0 %v7896
        %7976 = vmatprep.subr.bf16.mxu0 %v7927
        %7977 = vmatpush2.bf16.msra.mxu0 %v7926
        %7978 = vmatprep.subr.bf16.mxu0 %v7925
        %7979 = vmatpush2.bf16.msra.mxu0 %v7924
        %7980 = vmatprep.subr.bf16.mxu0 %v7923
        %7981 = vmatpush2.bf16.msra.mxu0 %v7922
        %7982 = vmatprep.subr.bf16.mxu0 %v7921
        %7983 = vmatpush2.bf16.msra.mxu0 %v7920
        %7984 = vmatprep.subr.bf16.mxu0 %v7919
        %7985 = vmatpush2.bf16.msra.mxu0 %v7918
        %7986 = vmatprep.subr.bf16.mxu0 %v7917
        %7987 = vmatpush2.bf16.msra.mxu0 %v7916
        %7988 = vmatprep.subr.bf16.mxu0 %v7915
        %7989 = vmatpush2.bf16.msra.mxu0 %v7914
        %7990 = vmatprep.subr.bf16.mxu0 %v7913
        %7991 = vmatpush2.bf16.msra.mxu0 %v7912
        %7992 = vmatprep.mubr.bf16.mxu0 %v7736
        %7993 = vmatmul.mubr.bf16.gmra.mxu0 %v7735
        %v7994 = vpop.f32.mrf.mxu0
        %v7995 = vadd.f32 0.0, %v7994
        %v7996 = vpop.f32.mrf.mxu0
        %v7997 = vadd.f32 0.0, %v7996
        %v7998 = vpop.f32.mrf.mxu0
        %v7999 = vadd.f32 0.0, %v7998
        %v8000 = vpop.f32.mrf.mxu0
        %v8001 = vadd.f32 0.0, %v8000
        %8002 = vmatprep.mubr.bf16.mxu0 %v7738
        %8003 = vmatmul.mubr.bf16.gmra.mxu0 %v7737
        %v8004 = vpop.f32.mrf.mxu0
        %v8005 = vadd.f32 0.0, %v8004
        %v8006 = vpop.f32.mrf.mxu0
        %v8007 = vadd.f32 0.0, %v8006
        %v8008 = vpop.f32.mrf.mxu0
        %v8009 = vadd.f32 0.0, %v8008
        %v8010 = vpop.f32.mrf.mxu0
        %v8011 = vadd.f32 0.0, %v8010
        %8012 = vmatprep.mubr.bf16.mxu0 %v7740
        %8013 = vmatmul.mubr.bf16.gmra.mxu0 %v7739
        %v8014 = vpop.f32.mrf.mxu0
        %v8015 = vadd.f32 0.0, %v8014
        %v8016 = vpop.f32.mrf.mxu0
        %v8017 = vadd.f32 0.0, %v8016
        %v8018 = vpop.f32.mrf.mxu0
        %v8019 = vadd.f32 0.0, %v8018
        %v8020 = vpop.f32.mrf.mxu0
        %v8021 = vadd.f32 0.0, %v8020
        %8022 = vmatprep.mubr.bf16.mxu0 %v7742
        %8023 = vmatmul.mubr.bf16.gmra.mxu0 %v7741
        %v8024 = vpop.f32.mrf.mxu0
        %v8025 = vadd.f32 0.0, %v8024
        %v8026 = vpop.f32.mrf.mxu0
        %v8027 = vadd.f32 0.0, %v8026
        %v8028 = vpop.f32.mrf.mxu0
        %v8029 = vadd.f32 0.0, %v8028
        %v8030 = vpop.f32.mrf.mxu0
        %v8031 = vadd.f32 0.0, %v8030
        %8032 = vmatprep.mubr.bf16.mxu0 %v7744
        %8033 = vmatmul.mubr.bf16.gmra.mxu0 %v7743
        %v8034 = vpop.f32.mrf.mxu0
        %v8035 = vadd.f32 0.0, %v8034
        %v8036 = vpop.f32.mrf.mxu0
        %v8037 = vadd.f32 0.0, %v8036
        %v8038 = vpop.f32.mrf.mxu0
        %v8039 = vadd.f32 0.0, %v8038
        %v8040 = vpop.f32.mrf.mxu0
        %v8041 = vadd.f32 0.0, %v8040
        %8042 = vmatprep.mubr.bf16.mxu0 %v7746
        %8043 = vmatmul.mubr.bf16.gmra.mxu0 %v7745
        %v8044 = vpop.f32.mrf.mxu0
        %v8045 = vadd.f32 0.0, %v8044
        %v8046 = vpop.f32.mrf.mxu0
        %v8047 = vadd.f32 0.0, %v8046
        %v8048 = vpop.f32.mrf.mxu0
        %v8049 = vadd.f32 0.0, %v8048
        %v8050 = vpop.f32.mrf.mxu0
        %v8051 = vadd.f32 0.0, %v8050
        %8052 = vmatprep.mubr.bf16.mxu0 %v7748
        %8053 = vmatmul.mubr.bf16.gmra.mxu0 %v7747
        %v8054 = vpop.f32.mrf.mxu0
        %v8055 = vadd.f32 0.0, %v8054
        %v8056 = vpop.f32.mrf.mxu0
        %v8057 = vadd.f32 0.0, %v8056
        %v8058 = vpop.f32.mrf.mxu0
        %v8059 = vadd.f32 0.0, %v8058
        %v8060 = vpop.f32.mrf.mxu0
        %v8061 = vadd.f32 0.0, %v8060
        %8062 = vmatprep.mubr.bf16.mxu0 %v7750
        %8063 = vmatmul.mubr.bf16.gmra.mxu0 %v7749
        %v8064 = vpop.f32.mrf.mxu0
        %v8065 = vadd.f32 0.0, %v8064
        %v8066 = vpop.f32.mrf.mxu0
        %v8067 = vadd.f32 0.0, %v8066
        %v8068 = vpop.f32.mrf.mxu0
        %v8069 = vadd.f32 0.0, %v8068
        %v8070 = vpop.f32.mrf.mxu0
        %v8071 = vadd.f32 0.0, %v8070
        %8072 = vmatprep.mubr.bf16.mxu0 %v7752
        %8073 = vmatmul.mubr.bf16.gmra.mxu0 %v7751
        %v8074 = vpop.f32.mrf.mxu0
        %v8075 = vadd.f32 0.0, %v8074
        %v8076 = vpop.f32.mrf.mxu0
        %v8077 = vadd.f32 0.0, %v8076
        %v8078 = vpop.f32.mrf.mxu0
        %v8079 = vadd.f32 0.0, %v8078
        %v8080 = vpop.f32.mrf.mxu0
        %v8081 = vadd.f32 0.0, %v8080
        %8082 = vmatprep.mubr.bf16.mxu0 %v7754
        %8083 = vmatmul.mubr.bf16.gmra.mxu0 %v7753
        %v8084 = vpop.f32.mrf.mxu0
        %v8085 = vadd.f32 0.0, %v8084
        %v8086 = vpop.f32.mrf.mxu0
        %v8087 = vadd.f32 0.0, %v8086
        %v8088 = vpop.f32.mrf.mxu0
        %v8089 = vadd.f32 0.0, %v8088
        %v8090 = vpop.f32.mrf.mxu0
        %v8091 = vadd.f32 0.0, %v8090
        %8092 = vmatprep.mubr.bf16.mxu0 %v7756
        %8093 = vmatmul.mubr.bf16.gmra.mxu0 %v7755
        %v8094 = vpop.f32.mrf.mxu0
        %v8095 = vadd.f32 0.0, %v8094
        %v8096 = vpop.f32.mrf.mxu0
        %v8097 = vadd.f32 0.0, %v8096
        %v8098 = vpop.f32.mrf.mxu0
        %v8099 = vadd.f32 0.0, %v8098
        %v8100 = vpop.f32.mrf.mxu0
        %v8101 = vadd.f32 0.0, %v8100
        %8102 = vmatprep.mubr.bf16.mxu0 %v7758
        %8103 = vmatmul.mubr.bf16.gmra.mxu0 %v7757
        %v8104 = vpop.f32.mrf.mxu0
        %v8105 = vadd.f32 0.0, %v8104
        %v8106 = vpop.f32.mrf.mxu0
        %v8107 = vadd.f32 0.0, %v8106
        %v8108 = vpop.f32.mrf.mxu0
        %v8109 = vadd.f32 0.0, %v8108
        %v8110 = vpop.f32.mrf.mxu0
        %v8111 = vadd.f32 0.0, %v8110
        %8112 = vmatprep.mubr.bf16.mxu0 %v7760
        %8113 = vmatmul.mubr.bf16.gmra.mxu0 %v7759
        %v8114 = vpop.f32.mrf.mxu0
        %v8115 = vadd.f32 0.0, %v8114
        %v8116 = vpop.f32.mrf.mxu0
        %v8117 = vadd.f32 0.0, %v8116
        %v8118 = vpop.f32.mrf.mxu0
        %v8119 = vadd.f32 0.0, %v8118
        %v8120 = vpop.f32.mrf.mxu0
        %v8121 = vadd.f32 0.0, %v8120
        %8122 = vmatprep.mubr.bf16.mxu0 %v7762
        %8123 = vmatmul.mubr.bf16.gmra.mxu0 %v7761
        %v8124 = vpop.f32.mrf.mxu0
        %v8125 = vadd.f32 0.0, %v8124
        %v8126 = vpop.f32.mrf.mxu0
        %v8127 = vadd.f32 0.0, %v8126
        %v8128 = vpop.f32.mrf.mxu0
        %v8129 = vadd.f32 0.0, %v8128
        %v8130 = vpop.f32.mrf.mxu0
        %v8131 = vadd.f32 0.0, %v8130
        %8132 = vmatprep.mubr.bf16.mxu0 %v7764
        %8133 = vmatmul.mubr.bf16.gmra.mxu0 %v7763
        %v8134 = vpop.f32.mrf.mxu0
        %v8135 = vadd.f32 0.0, %v8134
        %v8136 = vpop.f32.mrf.mxu0
        %v8137 = vadd.f32 0.0, %v8136
        %v8138 = vpop.f32.mrf.mxu0
        %v8139 = vadd.f32 0.0, %v8138
        %v8140 = vpop.f32.mrf.mxu0
        %v8141 = vadd.f32 0.0, %v8140
        %8142 = vmatprep.mubr.bf16.mxu0 %v7766
        %8143 = vmatmul.mubr.bf16.gmra.mxu0 %v7765
        %v8144 = vpop.f32.mrf.mxu0
        %v8145 = vadd.f32 0.0, %v8144
        %v8146 = vpop.f32.mrf.mxu0
        %v8147 = vadd.f32 0.0, %v8146
        %v8148 = vpop.f32.mrf.mxu0
        %v8149 = vadd.f32 0.0, %v8148
        %v8150 = vpop.f32.mrf.mxu0
        %v8151 = vadd.f32 0.0, %v8150
        %8152 = vdwg.mxu0
        %v8153 = vadd.f32 %v7255, %v7995
        %v8154 = vadd.f32 %v7256, %v7997
        %v8155 = vadd.f32 %v7257, %v7999
        %v8156 = vadd.f32 %v7258, %v8001
        %v8157 = vadd.f32 %v7259, %v8005
        %v8158 = vadd.f32 %v7260, %v8007
        %v8159 = vadd.f32 %v7261, %v8009
        %v8160 = vadd.f32 %v7262, %v8011
        %v8161 = vadd.f32 %v7263, %v8015
        %v8162 = vadd.f32 %v7264, %v8017
        %v8163 = vadd.f32 %v7265, %v8019
        %v8164 = vadd.f32 %v7266, %v8021
        %v8165 = vadd.f32 %v7267, %v8025
        %v8166 = vadd.f32 %v7268, %v8027
        %v8167 = vadd.f32 %v7269, %v8029
        %v8168 = vadd.f32 %v7270, %v8031
        %v8169 = vadd.f32 %v7271, %v8035
        %v8170 = vadd.f32 %v7272, %v8037
        %v8171 = vadd.f32 %v7273, %v8039
        %v8172 = vadd.f32 %v7274, %v8041
        %v8173 = vadd.f32 %v7275, %v8045
        %v8174 = vadd.f32 %v7276, %v8047
        %v8175 = vadd.f32 %v7277, %v8049
        %v8176 = vadd.f32 %v7278, %v8051
        %v8177 = vadd.f32 %v7279, %v8055
        %v8178 = vadd.f32 %v7280, %v8057
        %v8179 = vadd.f32 %v7281, %v8059
        %v8180 = vadd.f32 %v7282, %v8061
        %v8181 = vadd.f32 %v7283, %v8065
        %v8182 = vadd.f32 %v7284, %v8067
        %v8183 = vadd.f32 %v7285, %v8069
        %v8184 = vadd.f32 %v7286, %v8071
        %v8185 = vadd.f32 %v7287, %v8075
        %v8186 = vadd.f32 %v7288, %v8077
        %v8187 = vadd.f32 %v7289, %v8079
        %v8188 = vadd.f32 %v7290, %v8081
        %v8189 = vadd.f32 %v7291, %v8085
        %v8190 = vadd.f32 %v7292, %v8087
        %v8191 = vadd.f32 %v7293, %v8089
        %v8192 = vadd.f32 %v7294, %v8091
        %v8193 = vadd.f32 %v7295, %v8095
        %v8194 = vadd.f32 %v7296, %v8097
        %v8195 = vadd.f32 %v7297, %v8099
        %v8196 = vadd.f32 %v7298, %v8101
        %v8197 = vadd.f32 %v7299, %v8105
        %v8198 = vadd.f32 %v7300, %v8107
        %v8199 = vadd.f32 %v7301, %v8109
        %v8200 = vadd.f32 %v7302, %v8111
        %v8201 = vadd.f32 %v7303, %v8115
        %v8202 = vadd.f32 %v7304, %v8117
        %v8203 = vadd.f32 %v7305, %v8119
        %v8204 = vadd.f32 %v7306, %v8121
        %v8205 = vadd.f32 %v7307, %v8125
        %v8206 = vadd.f32 %v7308, %v8127
        %v8207 = vadd.f32 %v7309, %v8129
        %v8208 = vadd.f32 %v7310, %v8131
        %v8209 = vadd.f32 %v7311, %v8135
        %v8210 = vadd.f32 %v7312, %v8137
        %v8211 = vadd.f32 %v7313, %v8139
        %v8212 = vadd.f32 %v7314, %v8141
        %v8213 = vadd.f32 %v7315, %v8145
        %v8214 = vadd.f32 %v7316, %v8147
        %v8215 = vadd.f32 %v7317, %v8149
        %v8216 = vadd.f32 %v7318, %v8151
        %v8217 = vld [vmem:[%s4557] sm:$0xfc]
        %v8218 = vld [vmem:[%s4557 + $0x8] sm:$0xfc]
        %v8219 = vld [vmem:[%s4557 + $0x20] sm:$0x3]
        %v8220 = vld [vmem:[%s4557 + $0x28] sm:$0x3]
        %v8221 = vld [vmem:[%s4557 + $0x30] sm:$0xfc]
        %v8222 = vld [vmem:[%s4557 + $0x38] sm:$0xfc]
        %v8223 = vld [vmem:[%s4557 + $0x50] sm:$0x3]
        %v8224 = vld [vmem:[%s4557 + $0x58] sm:$0x3]
        %v8225 = vld [vmem:[%s4557 + $0x60] sm:$0xfc]
        %v8226 = vld [vmem:[%s4557 + $0x68] sm:$0xfc]
        %v8227 = vld [vmem:[%s4557 + $0x80] sm:$0x3]
        %v8228 = vld [vmem:[%s4557 + $0x88] sm:$0x3]
        %v8229 = vld [vmem:[%s4557 + $0x90] sm:$0xfc]
        %v8230 = vld [vmem:[%s4557 + $0x98] sm:$0xfc]
        %v8231 = vld [vmem:[%s4557 + $0xb0] sm:$0x3]
        %v8232 = vld [vmem:[%s4557 + $0xb8] sm:$0x3]
        %v8233 = vld [vmem:[%s4557 + $0xc0] sm:$0xfc]
        %v8234 = vld [vmem:[%s4557 + $0xc8] sm:$0xfc]
        %v8235 = vld [vmem:[%s4557 + $0xe0] sm:$0x3]
        %v8236 = vld [vmem:[%s4557 + $0xe8] sm:$0x3]
        %v8237 = vld [vmem:[%s4557 + $0xf0] sm:$0xfc]
        %v8238 = vld [vmem:[%s4557 + $0xf8] sm:$0xfc]
        %v8239 = vld [vmem:[%s4557 + $0x110] sm:$0x3]
        %v8240 = vld [vmem:[%s4557 + $0x118] sm:$0x3]
        %v8241 = vld [vmem:[%s4557 + $0x120] sm:$0xfc]
        %v8242 = vld [vmem:[%s4557 + $0x128] sm:$0xfc]
        %v8243 = vld [vmem:[%s4557 + $0x140] sm:$0x3]
        %v8244 = vld [vmem:[%s4557 + $0x148] sm:$0x3]
        %v8245 = vld [vmem:[%s4557 + $0x150] sm:$0xfc]
        %v8246 = vld [vmem:[%s4557 + $0x158] sm:$0xfc]
        %v8247 = vld [vmem:[%s4557 + $0x170] sm:$0x3]
        %v8248 = vld [vmem:[%s4557 + $0x178] sm:$0x3]
        %v8249 = vld [vmem:[%s4557 + $0x180] sm:$0xfc]
        %v8250 = vld [vmem:[%s4557 + $0x188] sm:$0xfc]
        %v8251 = vld [vmem:[%s4557 + $0x1a0] sm:$0x3]
        %v8252 = vld [vmem:[%s4557 + $0x1a8] sm:$0x3]
        %v8253 = vld [vmem:[%s4557 + $0x1b0] sm:$0xfc]
        %v8254 = vld [vmem:[%s4557 + $0x1b8] sm:$0xfc]
        %v8255 = vld [vmem:[%s4557 + $0x1d0] sm:$0x3]
        %v8256 = vld [vmem:[%s4557 + $0x1d8] sm:$0x3]
        %v8257 = vld [vmem:[%s4557 + $0x1e0] sm:$0xfc]
        %v8258 = vld [vmem:[%s4557 + $0x1e8] sm:$0xfc]
        %v8259 = vld [vmem:[%s4557 + $0x200] sm:$0x3]
        %v8260 = vld [vmem:[%s4557 + $0x208] sm:$0x3]
        %v8261 = vld [vmem:[%s4557 + $0x210] sm:$0xfc]
        %v8262 = vld [vmem:[%s4557 + $0x218] sm:$0xfc]
        %v8263 = vld [vmem:[%s4557 + $0x230] sm:$0x3]
        %v8264 = vld [vmem:[%s4557 + $0x238] sm:$0x3]
        %v8265 = vld [vmem:[%s4557 + $0x240] sm:$0xfc]
        %v8266 = vld [vmem:[%s4557 + $0x248] sm:$0xfc]
        %v8267 = vld [vmem:[%s4557 + $0x260] sm:$0x3]
        %v8268 = vld [vmem:[%s4557 + $0x268] sm:$0x3]
        %v8269 = vld [vmem:[%s4557 + $0x270] sm:$0xfc]
        %v8270 = vld [vmem:[%s4557 + $0x278] sm:$0xfc]
        %v8271 = vld [vmem:[%s4557 + $0x290] sm:$0x3]
        %v8272 = vld [vmem:[%s4557 + $0x298] sm:$0x3]
        %v8273 = vld [vmem:[%s4557 + $0x2a0] sm:$0xfc]
        %v8274 = vld [vmem:[%s4557 + $0x2a8] sm:$0xfc]
        %v8275 = vld [vmem:[%s4557 + $0x2c0] sm:$0x3]
        %v8276 = vld [vmem:[%s4557 + $0x2c8] sm:$0x3]
        %v8277 = vld [vmem:[%s4557 + $0x2d0] sm:$0xfc]
        %v8278 = vld [vmem:[%s4557 + $0x2d8] sm:$0xfc]
        %v8279 = vld [vmem:[%s4557 + $0x2f0] sm:$0x3]
        %v8280 = vld [vmem:[%s4557 + $0x2f8] sm:$0x3]
        %v8345 = vrot.slane %v8217, 2
        %v8346 = vrot.slane %v7321, 2
        %v8347 = vsel %vm6066, %v8345, %v8346
        %v8348 = vrot.slane %v8218, 2
        %v8349 = vrot.slane %v7322, 2
        %v8350 = vsel %vm6066, %v8348, %v8349
        %v8351 = vrot.slane %v8219, 2
        %v8352 = vsel %vm6066, %v8346, %v8351
        %v8353 = vrot.slane %v8220, 2
        %v8354 = vsel %vm6066, %v8349, %v8353
        %v8355 = vrot.slane %v8221, 2
        %v8356 = vrot.slane %v7327, 2
        %v8357 = vsel %vm6066, %v8355, %v8356
        %v8358 = vrot.slane %v8222, 2
        %v8359 = vrot.slane %v7328, 2
        %v8360 = vsel %vm6066, %v8358, %v8359
        %v8361 = vrot.slane %v8223, 2
        %v8362 = vsel %vm6066, %v8356, %v8361
        %v8363 = vrot.slane %v8224, 2
        %v8364 = vsel %vm6066, %v8359, %v8363
        %v8365 = vrot.slane %v8225, 2
        %v8366 = vrot.slane %v7333, 2
        %v8367 = vsel %vm6066, %v8365, %v8366
        %v8368 = vrot.slane %v8226, 2
        %v8369 = vrot.slane %v7334, 2
        %v8370 = vsel %vm6066, %v8368, %v8369
        %v8371 = vrot.slane %v8227, 2
        %v8372 = vsel %vm6066, %v8366, %v8371
        %v8373 = vrot.slane %v8228, 2
        %v8374 = vsel %vm6066, %v8369, %v8373
        %v8375 = vrot.slane %v8229, 2
        %v8376 = vrot.slane %v7339, 2
        %v8377 = vsel %vm6066, %v8375, %v8376
        %v8378 = vrot.slane %v8230, 2
        %v8379 = vrot.slane %v7340, 2
        %v8380 = vsel %vm6066, %v8378, %v8379
        %v8381 = vrot.slane %v8231, 2
        %v8382 = vsel %vm6066, %v8376, %v8381
        %v8383 = vrot.slane %v8232, 2
        %v8384 = vsel %vm6066, %v8379, %v8383
        %v8385 = vrot.slane %v8233, 2
        %v8386 = vrot.slane %v7345, 2
        %v8387 = vsel %vm6066, %v8385, %v8386
        %v8388 = vrot.slane %v8234, 2
        %v8389 = vrot.slane %v7346, 2
        %v8390 = vsel %vm6066, %v8388, %v8389
        %v8391 = vrot.slane %v8235, 2
        %v8392 = vsel %vm6066, %v8386, %v8391
        %v8393 = vrot.slane %v8236, 2
        %v8394 = vsel %vm6066, %v8389, %v8393
        %v8395 = vrot.slane %v8237, 2
        %v8396 = vrot.slane %v7351, 2
        %v8397 = vsel %vm6066, %v8395, %v8396
        %v8398 = vrot.slane %v8238, 2
        %v8399 = vrot.slane %v7352, 2
        %v8400 = vsel %vm6066, %v8398, %v8399
        %v8401 = vrot.slane %v8239, 2
        %v8402 = vsel %vm6066, %v8396, %v8401
        %v8403 = vrot.slane %v8240, 2
        %v8404 = vsel %vm6066, %v8399, %v8403
        %v8405 = vrot.slane %v8241, 2
        %v8406 = vrot.slane %v7357, 2
        %v8407 = vsel %vm6066, %v8405, %v8406
        %v8408 = vrot.slane %v8242, 2
        %v8409 = vrot.slane %v7358, 2
        %v8410 = vsel %vm6066, %v8408, %v8409
        %v8411 = vrot.slane %v8243, 2
        %v8412 = vsel %vm6066, %v8406, %v8411
        %v8413 = vrot.slane %v8244, 2
        %v8414 = vsel %vm6066, %v8409, %v8413
        %v8415 = vrot.slane %v8245, 2
        %v8416 = vrot.slane %v7363, 2
        %v8417 = vsel %vm6066, %v8415, %v8416
        %v8418 = vrot.slane %v8246, 2
        %v8419 = vrot.slane %v7364, 2
        %v8420 = vsel %vm6066, %v8418, %v8419
        %v8421 = vrot.slane %v8247, 2
        %v8422 = vsel %vm6066, %v8416, %v8421
        %v8423 = vrot.slane %v8248, 2
        %v8424 = vsel %vm6066, %v8419, %v8423
        %v8425 = vrot.slane %v8249, 2
        %v8426 = vrot.slane %v7369, 2
        %v8427 = vsel %vm6066, %v8425, %v8426
        %v8428 = vrot.slane %v8250, 2
        %v8429 = vrot.slane %v7370, 2
        %v8430 = vsel %vm6066, %v8428, %v8429
        %v8431 = vrot.slane %v8251, 2
        %v8432 = vsel %vm6066, %v8426, %v8431
        %v8433 = vrot.slane %v8252, 2
        %v8434 = vsel %vm6066, %v8429, %v8433
        %v8435 = vrot.slane %v8253, 2
        %v8436 = vrot.slane %v7375, 2
        %v8437 = vsel %vm6066, %v8435, %v8436
        %v8438 = vrot.slane %v8254, 2
        %v8439 = vrot.slane %v7376, 2
        %v8440 = vsel %vm6066, %v8438, %v8439
        %v8441 = vrot.slane %v8255, 2
        %v8442 = vsel %vm6066, %v8436, %v8441
        %v8443 = vrot.slane %v8256, 2
        %v8444 = vsel %vm6066, %v8439, %v8443
        %v8445 = vrot.slane %v8257, 2
        %v8446 = vrot.slane %v7381, 2
        %v8447 = vsel %vm6066, %v8445, %v8446
        %v8448 = vrot.slane %v8258, 2
        %v8449 = vrot.slane %v7382, 2
        %v8450 = vsel %vm6066, %v8448, %v8449
        %v8451 = vrot.slane %v8259, 2
        %v8452 = vsel %vm6066, %v8446, %v8451
        %v8453 = vrot.slane %v8260, 2
        %v8454 = vsel %vm6066, %v8449, %v8453
        %v8455 = vrot.slane %v8261, 2
        %v8456 = vrot.slane %v7387, 2
        %v8457 = vsel %vm6066, %v8455, %v8456
        %v8458 = vrot.slane %v8262, 2
        %v8459 = vrot.slane %v7388, 2
        %v8460 = vsel %vm6066, %v8458, %v8459
        %v8461 = vrot.slane %v8263, 2
        %v8462 = vsel %vm6066, %v8456, %v8461
        %v8463 = vrot.slane %v8264, 2
        %v8464 = vsel %vm6066, %v8459, %v8463
        %v8465 = vrot.slane %v8265, 2
        %v8466 = vrot.slane %v7393, 2
        %v8467 = vsel %vm6066, %v8465, %v8466
        %v8468 = vrot.slane %v8266, 2
        %v8469 = vrot.slane %v7394, 2
        %v8470 = vsel %vm6066, %v8468, %v8469
        %v8471 = vrot.slane %v8267, 2
        %v8472 = vsel %vm6066, %v8466, %v8471
        %v8473 = vrot.slane %v8268, 2
        %v8474 = vsel %vm6066, %v8469, %v8473
        %v8475 = vrot.slane %v8269, 2
        %v8476 = vrot.slane %v7399, 2
        %v8477 = vsel %vm6066, %v8475, %v8476
        %v8478 = vrot.slane %v8270, 2
        %v8479 = vrot.slane %v7400, 2
        %v8480 = vsel %vm6066, %v8478, %v8479
        %v8481 = vrot.slane %v8271, 2
        %v8482 = vsel %vm6066, %v8476, %v8481
        %v8483 = vrot.slane %v8272, 2
        %v8484 = vsel %vm6066, %v8479, %v8483
        %v8485 = vrot.slane %v8273, 2
        %v8486 = vrot.slane %v7405, 2
        %v8487 = vsel %vm6066, %v8485, %v8486
        %v8488 = vrot.slane %v8274, 2
        %v8489 = vrot.slane %v7406, 2
        %v8490 = vsel %vm6066, %v8488, %v8489
        %v8491 = vrot.slane %v8275, 2
        %v8492 = vsel %vm6066, %v8486, %v8491
        %v8493 = vrot.slane %v8276, 2
        %v8494 = vsel %vm6066, %v8489, %v8493
        %v8495 = vrot.slane %v8277, 2
        %v8496 = vrot.slane %v7411, 2
        %v8497 = vsel %vm6066, %v8495, %v8496
        %v8498 = vrot.slane %v8278, 2
        %v8499 = vrot.slane %v7412, 2
        %v8500 = vsel %vm6066, %v8498, %v8499
        %v8501 = vrot.slane %v8279, 2
        %v8502 = vsel %vm6066, %v8496, %v8501
        %v8503 = vrot.slane %v8280, 2
        %v8504 = vsel %vm6066, %v8499, %v8503
        %v8569 = vpack.c.bf16 %v8352, %v8347
        %v8570 = vpack.c.bf16 %v8354, %v8350
        %v8571 = vpack.c.bf16 %v8362, %v8357
        %v8572 = vpack.c.bf16 %v8364, %v8360
        %v8573 = vpack.c.bf16 %v8372, %v8367
        %v8574 = vpack.c.bf16 %v8374, %v8370
        %v8575 = vpack.c.bf16 %v8382, %v8377
        %v8576 = vpack.c.bf16 %v8384, %v8380
        %v8577 = vpack.c.bf16 %v8392, %v8387
        %v8578 = vpack.c.bf16 %v8394, %v8390
        %v8579 = vpack.c.bf16 %v8402, %v8397
        %v8580 = vpack.c.bf16 %v8404, %v8400
        %v8581 = vpack.c.bf16 %v8412, %v8407
        %v8582 = vpack.c.bf16 %v8414, %v8410
        %v8583 = vpack.c.bf16 %v8422, %v8417
        %v8584 = vpack.c.bf16 %v8424, %v8420
        %v8585 = vpack.c.bf16 %v8432, %v8427
        %v8586 = vpack.c.bf16 %v8434, %v8430
        %v8587 = vpack.c.bf16 %v8442, %v8437
        %v8588 = vpack.c.bf16 %v8444, %v8440
        %v8589 = vpack.c.bf16 %v8452, %v8447
        %v8590 = vpack.c.bf16 %v8454, %v8450
        %v8591 = vpack.c.bf16 %v8462, %v8457
        %v8592 = vpack.c.bf16 %v8464, %v8460
        %v8593 = vpack.c.bf16 %v8472, %v8467
        %v8594 = vpack.c.bf16 %v8474, %v8470
        %v8595 = vpack.c.bf16 %v8482, %v8477
        %v8596 = vpack.c.bf16 %v8484, %v8480
        %v8597 = vpack.c.bf16 %v8492, %v8487
        %v8598 = vpack.c.bf16 %v8494, %v8490
        %v8599 = vpack.c.bf16 %v8502, %v8497
        %v8600 = vpack.c.bf16 %v8504, %v8500
        %s8601 = scalar_lea.vmem %s2, 1280
        %v8602 = vld [vmem:[%s8601] sm:$0xff]
        %v8603 = vld [vmem:[%s8601 + $0x8] sm:$0xff]
        %v8604 = vld [vmem:[%s8601 + $0x10] sm:$0xff]
        %v8605 = vld [vmem:[%s8601 + $0x18] sm:$0xff]
        %v8606 = vld [vmem:[%s8601 + $0x20] sm:$0xff]
        %v8607 = vld [vmem:[%s8601 + $0x28] sm:$0xff]
        %v8608 = vld [vmem:[%s8601 + $0x30] sm:$0xff]
        %v8609 = vld [vmem:[%s8601 + $0x38] sm:$0xff]
        %v8610 = vld [vmem:[%s8601 + $0x40] sm:$0xff]
        %v8611 = vld [vmem:[%s8601 + $0x48] sm:$0xff]
        %v8612 = vld [vmem:[%s8601 + $0x50] sm:$0xff]
        %v8613 = vld [vmem:[%s8601 + $0x58] sm:$0xff]
        %v8614 = vld [vmem:[%s8601 + $0x60] sm:$0xff]
        %v8615 = vld [vmem:[%s8601 + $0x68] sm:$0xff]
        %v8616 = vld [vmem:[%s8601 + $0x70] sm:$0xff]
        %v8617 = vld [vmem:[%s8601 + $0x78] sm:$0xff]
        %v8618 = vld [vmem:[%s8601 + $0x80] sm:$0xff]
        %v8619 = vld [vmem:[%s8601 + $0x88] sm:$0xff]
        %v8620 = vld [vmem:[%s8601 + $0x90] sm:$0xff]
        %v8621 = vld [vmem:[%s8601 + $0x98] sm:$0xff]
        %v8622 = vld [vmem:[%s8601 + $0xa0] sm:$0xff]
        %v8623 = vld [vmem:[%s8601 + $0xa8] sm:$0xff]
        %v8624 = vld [vmem:[%s8601 + $0xb0] sm:$0xff]
        %v8625 = vld [vmem:[%s8601 + $0xb8] sm:$0xff]
        %v8626 = vld [vmem:[%s8601 + $0xc0] sm:$0xff]
        %v8627 = vld [vmem:[%s8601 + $0xc8] sm:$0xff]
        %v8628 = vld [vmem:[%s8601 + $0xd0] sm:$0xff]
        %v8629 = vld [vmem:[%s8601 + $0xd8] sm:$0xff]
        %v8630 = vld [vmem:[%s8601 + $0xe0] sm:$0xff]
        %v8631 = vld [vmem:[%s8601 + $0xe8] sm:$0xff]
        %v8632 = vld [vmem:[%s8601 + $0xf0] sm:$0xff]
        %v8633 = vld [vmem:[%s8601 + $0xf8] sm:$0xff]
        %v8666 = vunpack.c.l.b16 %v8602
        %v8667 = vunpack.c.h.b16 %v8602
        %v8668 = vunpack.c.l.b16 %v8603
        %v8669 = vunpack.c.h.b16 %v8603
        %v8670 = vunpack.c.l.b16 %v8604
        %v8671 = vunpack.c.h.b16 %v8604
        %v8672 = vunpack.c.l.b16 %v8605
        %v8673 = vunpack.c.h.b16 %v8605
        %v8674 = vunpack.c.l.b16 %v8606
        %v8675 = vunpack.c.h.b16 %v8606
        %v8676 = vunpack.c.l.b16 %v8607
        %v8677 = vunpack.c.h.b16 %v8607
        %v8678 = vunpack.c.l.b16 %v8608
        %v8679 = vunpack.c.h.b16 %v8608
        %v8680 = vunpack.c.l.b16 %v8609
        %v8681 = vunpack.c.h.b16 %v8609
        %v8682 = vunpack.c.l.b16 %v8610
        %v8683 = vunpack.c.h.b16 %v8610
        %v8684 = vunpack.c.l.b16 %v8611
        %v8685 = vunpack.c.h.b16 %v8611
        %v8686 = vunpack.c.l.b16 %v8612
        %v8687 = vunpack.c.h.b16 %v8612
        %v8688 = vunpack.c.l.b16 %v8613
        %v8689 = vunpack.c.h.b16 %v8613
        %v8690 = vunpack.c.l.b16 %v8614
        %v8691 = vunpack.c.h.b16 %v8614
        %v8692 = vunpack.c.l.b16 %v8615
        %v8693 = vunpack.c.h.b16 %v8615
        %v8694 = vunpack.c.l.b16 %v8616
        %v8695 = vunpack.c.h.b16 %v8616
        %v8696 = vunpack.c.l.b16 %v8617
        %v8697 = vunpack.c.h.b16 %v8617
        %v8698 = vunpack.c.l.b16 %v8618
        %v8699 = vunpack.c.h.b16 %v8618
        %v8700 = vunpack.c.l.b16 %v8619
        %v8701 = vunpack.c.h.b16 %v8619
        %v8702 = vunpack.c.l.b16 %v8620
        %v8703 = vunpack.c.h.b16 %v8620
        %v8704 = vunpack.c.l.b16 %v8621
        %v8705 = vunpack.c.h.b16 %v8621
        %v8706 = vunpack.c.l.b16 %v8622
        %v8707 = vunpack.c.h.b16 %v8622
        %v8708 = vunpack.c.l.b16 %v8623
        %v8709 = vunpack.c.h.b16 %v8623
        %v8710 = vunpack.c.l.b16 %v8624
        %v8711 = vunpack.c.h.b16 %v8624
        %v8712 = vunpack.c.l.b16 %v8625
        %v8713 = vunpack.c.h.b16 %v8625
        %v8714 = vunpack.c.l.b16 %v8626
        %v8715 = vunpack.c.h.b16 %v8626
        %v8716 = vunpack.c.l.b16 %v8627
        %v8717 = vunpack.c.h.b16 %v8627
        %v8718 = vunpack.c.l.b16 %v8628
        %v8719 = vunpack.c.h.b16 %v8628
        %v8720 = vunpack.c.l.b16 %v8629
        %v8721 = vunpack.c.h.b16 %v8629
        %v8722 = vunpack.c.l.b16 %v8630
        %v8723 = vunpack.c.h.b16 %v8630
        %v8724 = vunpack.c.l.b16 %v8631
        %v8725 = vunpack.c.h.b16 %v8631
        %v8726 = vunpack.c.l.b16 %v8632
        %v8727 = vunpack.c.h.b16 %v8632
        %v8728 = vunpack.c.l.b16 %v8633
        %v8729 = vunpack.c.h.b16 %v8633
        %v8730 = vpack.c.b16 %v8668, %v8666
        %v8731 = vpack.c.b16 %v8669, %v8667
        %v8732 = vpack.c.b16 %v8672, %v8670
        %v8733 = vpack.c.b16 %v8673, %v8671
        %v8734 = vpack.c.b16 %v8676, %v8674
        %v8735 = vpack.c.b16 %v8677, %v8675
        %v8736 = vpack.c.b16 %v8680, %v8678
        %v8737 = vpack.c.b16 %v8681, %v8679
        %v8738 = vpack.c.b16 %v8684, %v8682
        %v8739 = vpack.c.b16 %v8685, %v8683
        %v8740 = vpack.c.b16 %v8688, %v8686
        %v8741 = vpack.c.b16 %v8689, %v8687
        %v8742 = vpack.c.b16 %v8692, %v8690
        %v8743 = vpack.c.b16 %v8693, %v8691
        %v8744 = vpack.c.b16 %v8696, %v8694
        %v8745 = vpack.c.b16 %v8697, %v8695
        %v8746 = vpack.c.b16 %v8700, %v8698
        %v8747 = vpack.c.b16 %v8701, %v8699
        %v8748 = vpack.c.b16 %v8704, %v8702
        %v8749 = vpack.c.b16 %v8705, %v8703
        %v8750 = vpack.c.b16 %v8708, %v8706
        %v8751 = vpack.c.b16 %v8709, %v8707
        %v8752 = vpack.c.b16 %v8712, %v8710
        %v8753 = vpack.c.b16 %v8713, %v8711
        %v8754 = vpack.c.b16 %v8716, %v8714
        %v8755 = vpack.c.b16 %v8717, %v8715
        %v8756 = vpack.c.b16 %v8720, %v8718
        %v8757 = vpack.c.b16 %v8721, %v8719
        %v8758 = vpack.c.b16 %v8724, %v8722
        %v8759 = vpack.c.b16 %v8725, %v8723
        %v8760 = vpack.c.b16 %v8728, %v8726
        %v8761 = vpack.c.b16 %v8729, %v8727
        %8794 = vmatprep.subr.bf16.mxu0 %v8745
        %8795 = vmatpush1.bf16.msra.mxu0 %v8744
        %8796 = vmatprep.subr.bf16.mxu0 %v8743
        %8797 = vmatpush1.bf16.msra.mxu0 %v8742
        %8798 = vmatprep.subr.bf16.mxu0 %v8741
        %8799 = vmatpush1.bf16.msra.mxu0 %v8740
        %8800 = vmatprep.subr.bf16.mxu0 %v8739
        %8801 = vmatpush1.bf16.msra.mxu0 %v8738
        %8802 = vmatprep.subr.bf16.mxu0 %v8737
        %8803 = vmatpush1.bf16.msra.mxu0 %v8736
        %8804 = vmatprep.subr.bf16.mxu0 %v8735
        %8805 = vmatpush1.bf16.msra.mxu0 %v8734
        %8806 = vmatprep.subr.bf16.mxu0 %v8733
        %8807 = vmatpush1.bf16.msra.mxu0 %v8732
        %8808 = vmatprep.subr.bf16.mxu0 %v8731
        %8809 = vmatpush1.bf16.msra.mxu0 %v8730
        %8810 = vmatprep.subr.bf16.mxu0 %v8761
        %8811 = vmatpush2.bf16.msra.mxu0 %v8760
        %8812 = vmatprep.subr.bf16.mxu0 %v8759
        %8813 = vmatpush2.bf16.msra.mxu0 %v8758
        %8814 = vmatprep.subr.bf16.mxu0 %v8757
        %8815 = vmatpush2.bf16.msra.mxu0 %v8756
        %8816 = vmatprep.subr.bf16.mxu0 %v8755
        %8817 = vmatpush2.bf16.msra.mxu0 %v8754
        %8818 = vmatprep.subr.bf16.mxu0 %v8753
        %8819 = vmatpush2.bf16.msra.mxu0 %v8752
        %8820 = vmatprep.subr.bf16.mxu0 %v8751
        %8821 = vmatpush2.bf16.msra.mxu0 %v8750
        %8822 = vmatprep.subr.bf16.mxu0 %v8749
        %8823 = vmatpush2.bf16.msra.mxu0 %v8748
        %8824 = vmatprep.subr.bf16.mxu0 %v8747
        %8825 = vmatpush2.bf16.msra.mxu0 %v8746
        %8826 = vmatprep.mubr.bf16.mxu0 %v8570
        %8827 = vmatmul.mubr.bf16.gmra.mxu0 %v8569
        %v8828 = vpop.f32.mrf.mxu0
        %v8829 = vadd.f32 0.0, %v8828
        %v8830 = vpop.f32.mrf.mxu0
        %v8831 = vadd.f32 0.0, %v8830
        %v8832 = vpop.f32.mrf.mxu0
        %v8833 = vadd.f32 0.0, %v8832
        %v8834 = vpop.f32.mrf.mxu0
        %v8835 = vadd.f32 0.0, %v8834
        %8836 = vmatprep.mubr.bf16.mxu0 %v8572
        %8837 = vmatmul.mubr.bf16.gmra.mxu0 %v8571
        %v8838 = vpop.f32.mrf.mxu0
        %v8839 = vadd.f32 0.0, %v8838
        %v8840 = vpop.f32.mrf.mxu0
        %v8841 = vadd.f32 0.0, %v8840
        %v8842 = vpop.f32.mrf.mxu0
        %v8843 = vadd.f32 0.0, %v8842
        %v8844 = vpop.f32.mrf.mxu0
        %v8845 = vadd.f32 0.0, %v8844
        %8846 = vmatprep.mubr.bf16.mxu0 %v8574
        %8847 = vmatmul.mubr.bf16.gmra.mxu0 %v8573
        %v8848 = vpop.f32.mrf.mxu0
        %v8849 = vadd.f32 0.0, %v8848
        %v8850 = vpop.f32.mrf.mxu0
        %v8851 = vadd.f32 0.0, %v8850
        %v8852 = vpop.f32.mrf.mxu0
        %v8853 = vadd.f32 0.0, %v8852
        %v8854 = vpop.f32.mrf.mxu0
        %v8855 = vadd.f32 0.0, %v8854
        %8856 = vmatprep.mubr.bf16.mxu0 %v8576
        %8857 = vmatmul.mubr.bf16.gmra.mxu0 %v8575
        %v8858 = vpop.f32.mrf.mxu0
        %v8859 = vadd.f32 0.0, %v8858
        %v8860 = vpop.f32.mrf.mxu0
        %v8861 = vadd.f32 0.0, %v8860
        %v8862 = vpop.f32.mrf.mxu0
        %v8863 = vadd.f32 0.0, %v8862
        %v8864 = vpop.f32.mrf.mxu0
        %v8865 = vadd.f32 0.0, %v8864
        %8866 = vmatprep.mubr.bf16.mxu0 %v8578
        %8867 = vmatmul.mubr.bf16.gmra.mxu0 %v8577
        %v8868 = vpop.f32.mrf.mxu0
        %v8869 = vadd.f32 0.0, %v8868
        %v8870 = vpop.f32.mrf.mxu0
        %v8871 = vadd.f32 0.0, %v8870
        %v8872 = vpop.f32.mrf.mxu0
        %v8873 = vadd.f32 0.0, %v8872
        %v8874 = vpop.f32.mrf.mxu0
        %v8875 = vadd.f32 0.0, %v8874
        %8876 = vmatprep.mubr.bf16.mxu0 %v8580
        %8877 = vmatmul.mubr.bf16.gmra.mxu0 %v8579
        %v8878 = vpop.f32.mrf.mxu0
        %v8879 = vadd.f32 0.0, %v8878
        %v8880 = vpop.f32.mrf.mxu0
        %v8881 = vadd.f32 0.0, %v8880
        %v8882 = vpop.f32.mrf.mxu0
        %v8883 = vadd.f32 0.0, %v8882
        %v8884 = vpop.f32.mrf.mxu0
        %v8885 = vadd.f32 0.0, %v8884
        %8886 = vmatprep.mubr.bf16.mxu0 %v8582
        %8887 = vmatmul.mubr.bf16.gmra.mxu0 %v8581
        %v8888 = vpop.f32.mrf.mxu0
        %v8889 = vadd.f32 0.0, %v8888
        %v8890 = vpop.f32.mrf.mxu0
        %v8891 = vadd.f32 0.0, %v8890
        %v8892 = vpop.f32.mrf.mxu0
        %v8893 = vadd.f32 0.0, %v8892
        %v8894 = vpop.f32.mrf.mxu0
        %v8895 = vadd.f32 0.0, %v8894
        %8896 = vmatprep.mubr.bf16.mxu0 %v8584
        %8897 = vmatmul.mubr.bf16.gmra.mxu0 %v8583
        %v8898 = vpop.f32.mrf.mxu0
        %v8899 = vadd.f32 0.0, %v8898
        %v8900 = vpop.f32.mrf.mxu0
        %v8901 = vadd.f32 0.0, %v8900
        %v8902 = vpop.f32.mrf.mxu0
        %v8903 = vadd.f32 0.0, %v8902
        %v8904 = vpop.f32.mrf.mxu0
        %v8905 = vadd.f32 0.0, %v8904
        %8906 = vmatprep.mubr.bf16.mxu0 %v8586
        %8907 = vmatmul.mubr.bf16.gmra.mxu0 %v8585
        %v8908 = vpop.f32.mrf.mxu0
        %v8909 = vadd.f32 0.0, %v8908
        %v8910 = vpop.f32.mrf.mxu0
        %v8911 = vadd.f32 0.0, %v8910
        %v8912 = vpop.f32.mrf.mxu0
        %v8913 = vadd.f32 0.0, %v8912
        %v8914 = vpop.f32.mrf.mxu0
        %v8915 = vadd.f32 0.0, %v8914
        %8916 = vmatprep.mubr.bf16.mxu0 %v8588
        %8917 = vmatmul.mubr.bf16.gmra.mxu0 %v8587
        %v8918 = vpop.f32.mrf.mxu0
        %v8919 = vadd.f32 0.0, %v8918
        %v8920 = vpop.f32.mrf.mxu0
        %v8921 = vadd.f32 0.0, %v8920
        %v8922 = vpop.f32.mrf.mxu0
        %v8923 = vadd.f32 0.0, %v8922
        %v8924 = vpop.f32.mrf.mxu0
        %v8925 = vadd.f32 0.0, %v8924
        %8926 = vmatprep.mubr.bf16.mxu0 %v8590
        %8927 = vmatmul.mubr.bf16.gmra.mxu0 %v8589
        %v8928 = vpop.f32.mrf.mxu0
        %v8929 = vadd.f32 0.0, %v8928
        %v8930 = vpop.f32.mrf.mxu0
        %v8931 = vadd.f32 0.0, %v8930
        %v8932 = vpop.f32.mrf.mxu0
        %v8933 = vadd.f32 0.0, %v8932
        %v8934 = vpop.f32.mrf.mxu0
        %v8935 = vadd.f32 0.0, %v8934
        %8936 = vmatprep.mubr.bf16.mxu0 %v8592
        %8937 = vmatmul.mubr.bf16.gmra.mxu0 %v8591
        %v8938 = vpop.f32.mrf.mxu0
        %v8939 = vadd.f32 0.0, %v8938
        %v8940 = vpop.f32.mrf.mxu0
        %v8941 = vadd.f32 0.0, %v8940
        %v8942 = vpop.f32.mrf.mxu0
        %v8943 = vadd.f32 0.0, %v8942
        %v8944 = vpop.f32.mrf.mxu0
        %v8945 = vadd.f32 0.0, %v8944
        %8946 = vmatprep.mubr.bf16.mxu0 %v8594
        %8947 = vmatmul.mubr.bf16.gmra.mxu0 %v8593
        %v8948 = vpop.f32.mrf.mxu0
        %v8949 = vadd.f32 0.0, %v8948
        %v8950 = vpop.f32.mrf.mxu0
        %v8951 = vadd.f32 0.0, %v8950
        %v8952 = vpop.f32.mrf.mxu0
        %v8953 = vadd.f32 0.0, %v8952
        %v8954 = vpop.f32.mrf.mxu0
        %v8955 = vadd.f32 0.0, %v8954
        %8956 = vmatprep.mubr.bf16.mxu0 %v8596
        %8957 = vmatmul.mubr.bf16.gmra.mxu0 %v8595
        %v8958 = vpop.f32.mrf.mxu0
        %v8959 = vadd.f32 0.0, %v8958
        %v8960 = vpop.f32.mrf.mxu0
        %v8961 = vadd.f32 0.0, %v8960
        %v8962 = vpop.f32.mrf.mxu0
        %v8963 = vadd.f32 0.0, %v8962
        %v8964 = vpop.f32.mrf.mxu0
        %v8965 = vadd.f32 0.0, %v8964
        %8966 = vmatprep.mubr.bf16.mxu0 %v8598
        %8967 = vmatmul.mubr.bf16.gmra.mxu0 %v8597
        %v8968 = vpop.f32.mrf.mxu0
        %v8969 = vadd.f32 0.0, %v8968
        %v8970 = vpop.f32.mrf.mxu0
        %v8971 = vadd.f32 0.0, %v8970
        %v8972 = vpop.f32.mrf.mxu0
        %v8973 = vadd.f32 0.0, %v8972
        %v8974 = vpop.f32.mrf.mxu0
        %v8975 = vadd.f32 0.0, %v8974
        %8976 = vmatprep.mubr.bf16.mxu0 %v8600
        %8977 = vmatmul.mubr.bf16.gmra.mxu0 %v8599
        %v8978 = vpop.f32.mrf.mxu0
        %v8979 = vadd.f32 0.0, %v8978
        %v8980 = vpop.f32.mrf.mxu0
        %v8981 = vadd.f32 0.0, %v8980
        %v8982 = vpop.f32.mrf.mxu0
        %v8983 = vadd.f32 0.0, %v8982
        %v8984 = vpop.f32.mrf.mxu0
        %v8985 = vadd.f32 0.0, %v8984
        %8986 = vdwg.mxu0
        %v8987 = vadd.f32 %v8153, %v8829
        %v8988 = vadd.f32 %v8154, %v8831
        %v8989 = vadd.f32 %v8155, %v8833
        %v8990 = vadd.f32 %v8156, %v8835
        %v8991 = vadd.f32 %v8157, %v8839
        %v8992 = vadd.f32 %v8158, %v8841
        %v8993 = vadd.f32 %v8159, %v8843
        %v8994 = vadd.f32 %v8160, %v8845
        %v8995 = vadd.f32 %v8161, %v8849
        %v8996 = vadd.f32 %v8162, %v8851
        %v8997 = vadd.f32 %v8163, %v8853
        %v8998 = vadd.f32 %v8164, %v8855
        %v8999 = vadd.f32 %v8165, %v8859
        %v9000 = vadd.f32 %v8166, %v8861
        %v9001 = vadd.f32 %v8167, %v8863
        %v9002 = vadd.f32 %v8168, %v8865
        %v9003 = vadd.f32 %v8169, %v8869
        %v9004 = vadd.f32 %v8170, %v8871
        %v9005 = vadd.f32 %v8171, %v8873
        %v9006 = vadd.f32 %v8172, %v8875
        %v9007 = vadd.f32 %v8173, %v8879
        %v9008 = vadd.f32 %v8174, %v8881
        %v9009 = vadd.f32 %v8175, %v8883
        %v9010 = vadd.f32 %v8176, %v8885
        %v9011 = vadd.f32 %v8177, %v8889
        %v9012 = vadd.f32 %v8178, %v8891
        %v9013 = vadd.f32 %v8179, %v8893
        %v9014 = vadd.f32 %v8180, %v8895
        %v9015 = vadd.f32 %v8181, %v8899
        %v9016 = vadd.f32 %v8182, %v8901
        %v9017 = vadd.f32 %v8183, %v8903
        %v9018 = vadd.f32 %v8184, %v8905
        %v9019 = vadd.f32 %v8185, %v8909
        %v9020 = vadd.f32 %v8186, %v8911
        %v9021 = vadd.f32 %v8187, %v8913
        %v9022 = vadd.f32 %v8188, %v8915
        %v9023 = vadd.f32 %v8189, %v8919
        %v9024 = vadd.f32 %v8190, %v8921
        %v9025 = vadd.f32 %v8191, %v8923
        %v9026 = vadd.f32 %v8192, %v8925
        %v9027 = vadd.f32 %v8193, %v8929
        %v9028 = vadd.f32 %v8194, %v8931
        %v9029 = vadd.f32 %v8195, %v8933
        %v9030 = vadd.f32 %v8196, %v8935
        %v9031 = vadd.f32 %v8197, %v8939
        %v9032 = vadd.f32 %v8198, %v8941
        %v9033 = vadd.f32 %v8199, %v8943
        %v9034 = vadd.f32 %v8200, %v8945
        %v9035 = vadd.f32 %v8201, %v8949
        %v9036 = vadd.f32 %v8202, %v8951
        %v9037 = vadd.f32 %v8203, %v8953
        %v9038 = vadd.f32 %v8204, %v8955
        %v9039 = vadd.f32 %v8205, %v8959
        %v9040 = vadd.f32 %v8206, %v8961
        %v9041 = vadd.f32 %v8207, %v8963
        %v9042 = vadd.f32 %v8208, %v8965
        %v9043 = vadd.f32 %v8209, %v8969
        %v9044 = vadd.f32 %v8210, %v8971
        %v9045 = vadd.f32 %v8211, %v8973
        %v9046 = vadd.f32 %v8212, %v8975
        %v9047 = vadd.f32 %v8213, %v8979
        %v9048 = vadd.f32 %v8214, %v8981
        %v9049 = vadd.f32 %v8215, %v8983
        %v9050 = vadd.f32 %v8216, %v8985
        %s9051 = scalar_lea.vmem [#allocation3], 96
        %v9052 = vld [vmem:[%s9051] sm:$0xff]
        %v9053 = vld [vmem:[%s9051 + $0x8] sm:$0xff]
        %v9054 = vld [vmem:[%s9051 + $0x10] sm:$0xff]
        %v9055 = vld [vmem:[%s9051 + $0x18] sm:$0xff]
        %v9056 = vld [vmem:[%s9051 + $0x30] sm:$0xff]
        %v9057 = vld [vmem:[%s9051 + $0x38] sm:$0xff]
        %v9058 = vld [vmem:[%s9051 + $0x40] sm:$0xff]
        %v9059 = vld [vmem:[%s9051 + $0x48] sm:$0xff]
        %v9060 = vld [vmem:[%s9051 + $0x60] sm:$0xff]
        %v9061 = vld [vmem:[%s9051 + $0x68] sm:$0xff]
        %v9062 = vld [vmem:[%s9051 + $0x70] sm:$0xff]
        %v9063 = vld [vmem:[%s9051 + $0x78] sm:$0xff]
        %v9064 = vld [vmem:[%s9051 + $0x90] sm:$0xff]
        %v9065 = vld [vmem:[%s9051 + $0x98] sm:$0xff]
        %v9066 = vld [vmem:[%s9051 + $0xa0] sm:$0xff]
        %v9067 = vld [vmem:[%s9051 + $0xa8] sm:$0xff]
        %v9068 = vld [vmem:[%s9051 + $0xc0] sm:$0xff]
        %v9069 = vld [vmem:[%s9051 + $0xc8] sm:$0xff]
        %v9070 = vld [vmem:[%s9051 + $0xd0] sm:$0xff]
        %v9071 = vld [vmem:[%s9051 + $0xd8] sm:$0xff]
        %v9072 = vld [vmem:[%s9051 + $0xf0] sm:$0xff]
        %v9073 = vld [vmem:[%s9051 + $0xf8] sm:$0xff]
        %v9074 = vld [vmem:[%s9051 + $0x100] sm:$0xff]
        %v9075 = vld [vmem:[%s9051 + $0x108] sm:$0xff]
        %v9076 = vld [vmem:[%s9051 + $0x120] sm:$0xff]
        %v9077 = vld [vmem:[%s9051 + $0x128] sm:$0xff]
        %v9078 = vld [vmem:[%s9051 + $0x130] sm:$0xff]
        %v9079 = vld [vmem:[%s9051 + $0x138] sm:$0xff]
        %v9080 = vld [vmem:[%s9051 + $0x150] sm:$0xff]
        %v9081 = vld [vmem:[%s9051 + $0x158] sm:$0xff]
        %v9082 = vld [vmem:[%s9051 + $0x160] sm:$0xff]
        %v9083 = vld [vmem:[%s9051 + $0x168] sm:$0xff]
        %v9084 = vld [vmem:[%s9051 + $0x180] sm:$0xff]
        %v9085 = vld [vmem:[%s9051 + $0x188] sm:$0xff]
        %v9086 = vld [vmem:[%s9051 + $0x190] sm:$0xff]
        %v9087 = vld [vmem:[%s9051 + $0x198] sm:$0xff]
        %v9088 = vld [vmem:[%s9051 + $0x1b0] sm:$0xff]
        %v9089 = vld [vmem:[%s9051 + $0x1b8] sm:$0xff]
        %v9090 = vld [vmem:[%s9051 + $0x1c0] sm:$0xff]
        %v9091 = vld [vmem:[%s9051 + $0x1c8] sm:$0xff]
        %v9092 = vld [vmem:[%s9051 + $0x1e0] sm:$0xff]
        %v9093 = vld [vmem:[%s9051 + $0x1e8] sm:$0xff]
        %v9094 = vld [vmem:[%s9051 + $0x1f0] sm:$0xff]
        %v9095 = vld [vmem:[%s9051 + $0x1f8] sm:$0xff]
        %v9096 = vld [vmem:[%s9051 + $0x210] sm:$0xff]
        %v9097 = vld [vmem:[%s9051 + $0x218] sm:$0xff]
        %v9098 = vld [vmem:[%s9051 + $0x220] sm:$0xff]
        %v9099 = vld [vmem:[%s9051 + $0x228] sm:$0xff]
        %v9100 = vld [vmem:[%s9051 + $0x240] sm:$0xff]
        %v9101 = vld [vmem:[%s9051 + $0x248] sm:$0xff]
        %v9102 = vld [vmem:[%s9051 + $0x250] sm:$0xff]
        %v9103 = vld [vmem:[%s9051 + $0x258] sm:$0xff]
        %v9104 = vld [vmem:[%s9051 + $0x270] sm:$0xff]
        %v9105 = vld [vmem:[%s9051 + $0x278] sm:$0xff]
        %v9106 = vld [vmem:[%s9051 + $0x280] sm:$0xff]
        %v9107 = vld [vmem:[%s9051 + $0x288] sm:$0xff]
        %v9108 = vld [vmem:[%s9051 + $0x2a0] sm:$0xff]
        %v9109 = vld [vmem:[%s9051 + $0x2a8] sm:$0xff]
        %v9110 = vld [vmem:[%s9051 + $0x2b0] sm:$0xff]
        %v9111 = vld [vmem:[%s9051 + $0x2b8] sm:$0xff]
        %v9112 = vld [vmem:[%s9051 + $0x2d0] sm:$0xff]
        %v9113 = vld [vmem:[%s9051 + $0x2d8] sm:$0xff]
        %v9114 = vld [vmem:[%s9051 + $0x2e0] sm:$0xff]
        %v9115 = vld [vmem:[%s9051 + $0x2e8] sm:$0xff]
        %v9116 = vpack.c.bf16 %v9054, %v9052
        %v9117 = vpack.c.bf16 %v9055, %v9053
        %v9118 = vpack.c.bf16 %v9058, %v9056
        %v9119 = vpack.c.bf16 %v9059, %v9057
        %v9120 = vpack.c.bf16 %v9062, %v9060
        %v9121 = vpack.c.bf16 %v9063, %v9061
        %v9122 = vpack.c.bf16 %v9066, %v9064
        %v9123 = vpack.c.bf16 %v9067, %v9065
        %v9124 = vpack.c.bf16 %v9070, %v9068
        %v9125 = vpack.c.bf16 %v9071, %v9069
        %v9126 = vpack.c.bf16 %v9074, %v9072
        %v9127 = vpack.c.bf16 %v9075, %v9073
        %v9128 = vpack.c.bf16 %v9078, %v9076
        %v9129 = vpack.c.bf16 %v9079, %v9077
        %v9130 = vpack.c.bf16 %v9082, %v9080
        %v9131 = vpack.c.bf16 %v9083, %v9081
        %v9132 = vpack.c.bf16 %v9086, %v9084
        %v9133 = vpack.c.bf16 %v9087, %v9085
        %v9134 = vpack.c.bf16 %v9090, %v9088
        %v9135 = vpack.c.bf16 %v9091, %v9089
        %v9136 = vpack.c.bf16 %v9094, %v9092
        %v9137 = vpack.c.bf16 %v9095, %v9093
        %v9138 = vpack.c.bf16 %v9098, %v9096
        %v9139 = vpack.c.bf16 %v9099, %v9097
        %v9140 = vpack.c.bf16 %v9102, %v9100
        %v9141 = vpack.c.bf16 %v9103, %v9101
        %v9142 = vpack.c.bf16 %v9106, %v9104
        %v9143 = vpack.c.bf16 %v9107, %v9105
        %v9144 = vpack.c.bf16 %v9110, %v9108
        %v9145 = vpack.c.bf16 %v9111, %v9109
        %v9146 = vpack.c.bf16 %v9114, %v9112
        %v9147 = vpack.c.bf16 %v9115, %v9113
        %s9148 = scalar_lea.vmem %s2, 1536
        %v9149 = vld [vmem:[%s9148] sm:$0xff]
        %v9150 = vld [vmem:[%s9148 + $0x8] sm:$0xff]
        %v9151 = vld [vmem:[%s9148 + $0x10] sm:$0xff]
        %v9152 = vld [vmem:[%s9148 + $0x18] sm:$0xff]
        %v9153 = vld [vmem:[%s9148 + $0x20] sm:$0xff]
        %v9154 = vld [vmem:[%s9148 + $0x28] sm:$0xff]
        %v9155 = vld [vmem:[%s9148 + $0x30] sm:$0xff]
        %v9156 = vld [vmem:[%s9148 + $0x38] sm:$0xff]
        %v9157 = vld [vmem:[%s9148 + $0x40] sm:$0xff]
        %v9158 = vld [vmem:[%s9148 + $0x48] sm:$0xff]
        %v9159 = vld [vmem:[%s9148 + $0x50] sm:$0xff]
        %v9160 = vld [vmem:[%s9148 + $0x58] sm:$0xff]
        %v9161 = vld [vmem:[%s9148 + $0x60] sm:$0xff]
        %v9162 = vld [vmem:[%s9148 + $0x68] sm:$0xff]
        %v9163 = vld [vmem:[%s9148 + $0x70] sm:$0xff]
        %v9164 = vld [vmem:[%s9148 + $0x78] sm:$0xff]
        %v9165 = vld [vmem:[%s9148 + $0x80] sm:$0xff]
        %v9166 = vld [vmem:[%s9148 + $0x88] sm:$0xff]
        %v9167 = vld [vmem:[%s9148 + $0x90] sm:$0xff]
        %v9168 = vld [vmem:[%s9148 + $0x98] sm:$0xff]
        %v9169 = vld [vmem:[%s9148 + $0xa0] sm:$0xff]
        %v9170 = vld [vmem:[%s9148 + $0xa8] sm:$0xff]
        %v9171 = vld [vmem:[%s9148 + $0xb0] sm:$0xff]
        %v9172 = vld [vmem:[%s9148 + $0xb8] sm:$0xff]
        %v9173 = vld [vmem:[%s9148 + $0xc0] sm:$0xff]
        %v9174 = vld [vmem:[%s9148 + $0xc8] sm:$0xff]
        %v9175 = vld [vmem:[%s9148 + $0xd0] sm:$0xff]
        %v9176 = vld [vmem:[%s9148 + $0xd8] sm:$0xff]
        %v9177 = vld [vmem:[%s9148 + $0xe0] sm:$0xff]
        %v9178 = vld [vmem:[%s9148 + $0xe8] sm:$0xff]
        %v9179 = vld [vmem:[%s9148 + $0xf0] sm:$0xff]
        %v9180 = vld [vmem:[%s9148 + $0xf8] sm:$0xff]
        %v9213 = vunpack.c.l.b16 %v9149
        %v9214 = vunpack.c.h.b16 %v9149
        %v9215 = vunpack.c.l.b16 %v9150
        %v9216 = vunpack.c.h.b16 %v9150
        %v9217 = vunpack.c.l.b16 %v9151
        %v9218 = vunpack.c.h.b16 %v9151
        %v9219 = vunpack.c.l.b16 %v9152
        %v9220 = vunpack.c.h.b16 %v9152
        %v9221 = vunpack.c.l.b16 %v9153
        %v9222 = vunpack.c.h.b16 %v9153
        %v9223 = vunpack.c.l.b16 %v9154
        %v9224 = vunpack.c.h.b16 %v9154
        %v9225 = vunpack.c.l.b16 %v9155
        %v9226 = vunpack.c.h.b16 %v9155
        %v9227 = vunpack.c.l.b16 %v9156
        %v9228 = vunpack.c.h.b16 %v9156
        %v9229 = vunpack.c.l.b16 %v9157
        %v9230 = vunpack.c.h.b16 %v9157
        %v9231 = vunpack.c.l.b16 %v9158
        %v9232 = vunpack.c.h.b16 %v9158
        %v9233 = vunpack.c.l.b16 %v9159
        %v9234 = vunpack.c.h.b16 %v9159
        %v9235 = vunpack.c.l.b16 %v9160
        %v9236 = vunpack.c.h.b16 %v9160
        %v9237 = vunpack.c.l.b16 %v9161
        %v9238 = vunpack.c.h.b16 %v9161
        %v9239 = vunpack.c.l.b16 %v9162
        %v9240 = vunpack.c.h.b16 %v9162
        %v9241 = vunpack.c.l.b16 %v9163
        %v9242 = vunpack.c.h.b16 %v9163
        %v9243 = vunpack.c.l.b16 %v9164
        %v9244 = vunpack.c.h.b16 %v9164
        %v9245 = vunpack.c.l.b16 %v9165
        %v9246 = vunpack.c.h.b16 %v9165
        %v9247 = vunpack.c.l.b16 %v9166
        %v9248 = vunpack.c.h.b16 %v9166
        %v9249 = vunpack.c.l.b16 %v9167
        %v9250 = vunpack.c.h.b16 %v9167
        %v9251 = vunpack.c.l.b16 %v9168
        %v9252 = vunpack.c.h.b16 %v9168
        %v9253 = vunpack.c.l.b16 %v9169
        %v9254 = vunpack.c.h.b16 %v9169
        %v9255 = vunpack.c.l.b16 %v9170
        %v9256 = vunpack.c.h.b16 %v9170
        %v9257 = vunpack.c.l.b16 %v9171
        %v9258 = vunpack.c.h.b16 %v9171
        %v9259 = vunpack.c.l.b16 %v9172
        %v9260 = vunpack.c.h.b16 %v9172
        %v9261 = vunpack.c.l.b16 %v9173
        %v9262 = vunpack.c.h.b16 %v9173
        %v9263 = vunpack.c.l.b16 %v9174
        %v9264 = vunpack.c.h.b16 %v9174
        %v9265 = vunpack.c.l.b16 %v9175
        %v9266 = vunpack.c.h.b16 %v9175
        %v9267 = vunpack.c.l.b16 %v9176
        %v9268 = vunpack.c.h.b16 %v9176
        %v9269 = vunpack.c.l.b16 %v9177
        %v9270 = vunpack.c.h.b16 %v9177
        %v9271 = vunpack.c.l.b16 %v9178
        %v9272 = vunpack.c.h.b16 %v9178
        %v9273 = vunpack.c.l.b16 %v9179
        %v9274 = vunpack.c.h.b16 %v9179
        %v9275 = vunpack.c.l.b16 %v9180
        %v9276 = vunpack.c.h.b16 %v9180
        %v9277 = vpack.c.b16 %v9215, %v9213
        %v9278 = vpack.c.b16 %v9216, %v9214
        %v9279 = vpack.c.b16 %v9219, %v9217
        %v9280 = vpack.c.b16 %v9220, %v9218
        %v9281 = vpack.c.b16 %v9223, %v9221
        %v9282 = vpack.c.b16 %v9224, %v9222
        %v9283 = vpack.c.b16 %v9227, %v9225
        %v9284 = vpack.c.b16 %v9228, %v9226
        %v9285 = vpack.c.b16 %v9231, %v9229
        %v9286 = vpack.c.b16 %v9232, %v9230
        %v9287 = vpack.c.b16 %v9235, %v9233
        %v9288 = vpack.c.b16 %v9236, %v9234
        %v9289 = vpack.c.b16 %v9239, %v9237
        %v9290 = vpack.c.b16 %v9240, %v9238
        %v9291 = vpack.c.b16 %v9243, %v9241
        %v9292 = vpack.c.b16 %v9244, %v9242
        %v9293 = vpack.c.b16 %v9247, %v9245
        %v9294 = vpack.c.b16 %v9248, %v9246
        %v9295 = vpack.c.b16 %v9251, %v9249
        %v9296 = vpack.c.b16 %v9252, %v9250
        %v9297 = vpack.c.b16 %v9255, %v9253
        %v9298 = vpack.c.b16 %v9256, %v9254
        %v9299 = vpack.c.b16 %v9259, %v9257
        %v9300 = vpack.c.b16 %v9260, %v9258
        %v9301 = vpack.c.b16 %v9263, %v9261
        %v9302 = vpack.c.b16 %v9264, %v9262
        %v9303 = vpack.c.b16 %v9267, %v9265
        %v9304 = vpack.c.b16 %v9268, %v9266
        %v9305 = vpack.c.b16 %v9271, %v9269
        %v9306 = vpack.c.b16 %v9272, %v9270
        %v9307 = vpack.c.b16 %v9275, %v9273
        %v9308 = vpack.c.b16 %v9276, %v9274
        %9341 = vmatprep.subr.bf16.mxu0 %v9292
        %9342 = vmatpush1.bf16.msra.mxu0 %v9291
        %9343 = vmatprep.subr.bf16.mxu0 %v9290
        %9344 = vmatpush1.bf16.msra.mxu0 %v9289
        %9345 = vmatprep.subr.bf16.mxu0 %v9288
        %9346 = vmatpush1.bf16.msra.mxu0 %v9287
        %9347 = vmatprep.subr.bf16.mxu0 %v9286
        %9348 = vmatpush1.bf16.msra.mxu0 %v9285
        %9349 = vmatprep.subr.bf16.mxu0 %v9284
        %9350 = vmatpush1.bf16.msra.mxu0 %v9283
        %9351 = vmatprep.subr.bf16.mxu0 %v9282
        %9352 = vmatpush1.bf16.msra.mxu0 %v9281
        %9353 = vmatprep.subr.bf16.mxu0 %v9280
        %9354 = vmatpush1.bf16.msra.mxu0 %v9279
        %9355 = vmatprep.subr.bf16.mxu0 %v9278
        %9356 = vmatpush1.bf16.msra.mxu0 %v9277
        %9357 = vmatprep.subr.bf16.mxu0 %v9308
        %9358 = vmatpush2.bf16.msra.mxu0 %v9307
        %9359 = vmatprep.subr.bf16.mxu0 %v9306
        %9360 = vmatpush2.bf16.msra.mxu0 %v9305
        %9361 = vmatprep.subr.bf16.mxu0 %v9304
        %9362 = vmatpush2.bf16.msra.mxu0 %v9303
        %9363 = vmatprep.subr.bf16.mxu0 %v9302
        %9364 = vmatpush2.bf16.msra.mxu0 %v9301
        %9365 = vmatprep.subr.bf16.mxu0 %v9300
        %9366 = vmatpush2.bf16.msra.mxu0 %v9299
        %9367 = vmatprep.subr.bf16.mxu0 %v9298
        %9368 = vmatpush2.bf16.msra.mxu0 %v9297
        %9369 = vmatprep.subr.bf16.mxu0 %v9296
        %9370 = vmatpush2.bf16.msra.mxu0 %v9295
        %9371 = vmatprep.subr.bf16.mxu0 %v9294
        %9372 = vmatpush2.bf16.msra.mxu0 %v9293
        %9373 = vmatprep.mubr.bf16.mxu0 %v9117
        %9374 = vmatmul.mubr.bf16.gmra.mxu0 %v9116
        %v9375 = vpop.f32.mrf.mxu0
        %v9376 = vadd.f32 0.0, %v9375
        %v9377 = vpop.f32.mrf.mxu0
        %v9378 = vadd.f32 0.0, %v9377
        %v9379 = vpop.f32.mrf.mxu0
        %v9380 = vadd.f32 0.0, %v9379
        %v9381 = vpop.f32.mrf.mxu0
        %v9382 = vadd.f32 0.0, %v9381
        %9383 = vmatprep.mubr.bf16.mxu0 %v9119
        %9384 = vmatmul.mubr.bf16.gmra.mxu0 %v9118
        %v9385 = vpop.f32.mrf.mxu0
        %v9386 = vadd.f32 0.0, %v9385
        %v9387 = vpop.f32.mrf.mxu0
        %v9388 = vadd.f32 0.0, %v9387
        %v9389 = vpop.f32.mrf.mxu0
        %v9390 = vadd.f32 0.0, %v9389
        %v9391 = vpop.f32.mrf.mxu0
        %v9392 = vadd.f32 0.0, %v9391
        %9393 = vmatprep.mubr.bf16.mxu0 %v9121
        %9394 = vmatmul.mubr.bf16.gmra.mxu0 %v9120
        %v9395 = vpop.f32.mrf.mxu0
        %v9396 = vadd.f32 0.0, %v9395
        %v9397 = vpop.f32.mrf.mxu0
        %v9398 = vadd.f32 0.0, %v9397
        %v9399 = vpop.f32.mrf.mxu0
        %v9400 = vadd.f32 0.0, %v9399
        %v9401 = vpop.f32.mrf.mxu0
        %v9402 = vadd.f32 0.0, %v9401
        %9403 = vmatprep.mubr.bf16.mxu0 %v9123
        %9404 = vmatmul.mubr.bf16.gmra.mxu0 %v9122
        %v9405 = vpop.f32.mrf.mxu0
        %v9406 = vadd.f32 0.0, %v9405
        %v9407 = vpop.f32.mrf.mxu0
        %v9408 = vadd.f32 0.0, %v9407
        %v9409 = vpop.f32.mrf.mxu0
        %v9410 = vadd.f32 0.0, %v9409
        %v9411 = vpop.f32.mrf.mxu0
        %v9412 = vadd.f32 0.0, %v9411
        %9413 = vmatprep.mubr.bf16.mxu0 %v9125
        %9414 = vmatmul.mubr.bf16.gmra.mxu0 %v9124
        %v9415 = vpop.f32.mrf.mxu0
        %v9416 = vadd.f32 0.0, %v9415
        %v9417 = vpop.f32.mrf.mxu0
        %v9418 = vadd.f32 0.0, %v9417
        %v9419 = vpop.f32.mrf.mxu0
        %v9420 = vadd.f32 0.0, %v9419
        %v9421 = vpop.f32.mrf.mxu0
        %v9422 = vadd.f32 0.0, %v9421
        %9423 = vmatprep.mubr.bf16.mxu0 %v9127
        %9424 = vmatmul.mubr.bf16.gmra.mxu0 %v9126
        %v9425 = vpop.f32.mrf.mxu0
        %v9426 = vadd.f32 0.0, %v9425
        %v9427 = vpop.f32.mrf.mxu0
        %v9428 = vadd.f32 0.0, %v9427
        %v9429 = vpop.f32.mrf.mxu0
        %v9430 = vadd.f32 0.0, %v9429
        %v9431 = vpop.f32.mrf.mxu0
        %v9432 = vadd.f32 0.0, %v9431
        %9433 = vmatprep.mubr.bf16.mxu0 %v9129
        %9434 = vmatmul.mubr.bf16.gmra.mxu0 %v9128
        %v9435 = vpop.f32.mrf.mxu0
        %v9436 = vadd.f32 0.0, %v9435
        %v9437 = vpop.f32.mrf.mxu0
        %v9438 = vadd.f32 0.0, %v9437
        %v9439 = vpop.f32.mrf.mxu0
        %v9440 = vadd.f32 0.0, %v9439
        %v9441 = vpop.f32.mrf.mxu0
        %v9442 = vadd.f32 0.0, %v9441
        %9443 = vmatprep.mubr.bf16.mxu0 %v9131
        %9444 = vmatmul.mubr.bf16.gmra.mxu0 %v9130
        %v9445 = vpop.f32.mrf.mxu0
        %v9446 = vadd.f32 0.0, %v9445
        %v9447 = vpop.f32.mrf.mxu0
        %v9448 = vadd.f32 0.0, %v9447
        %v9449 = vpop.f32.mrf.mxu0
        %v9450 = vadd.f32 0.0, %v9449
        %v9451 = vpop.f32.mrf.mxu0
        %v9452 = vadd.f32 0.0, %v9451
        %9453 = vmatprep.mubr.bf16.mxu0 %v9133
        %9454 = vmatmul.mubr.bf16.gmra.mxu0 %v9132
        %v9455 = vpop.f32.mrf.mxu0
        %v9456 = vadd.f32 0.0, %v9455
        %v9457 = vpop.f32.mrf.mxu0
        %v9458 = vadd.f32 0.0, %v9457
        %v9459 = vpop.f32.mrf.mxu0
        %v9460 = vadd.f32 0.0, %v9459
        %v9461 = vpop.f32.mrf.mxu0
        %v9462 = vadd.f32 0.0, %v9461
        %9463 = vmatprep.mubr.bf16.mxu0 %v9135
        %9464 = vmatmul.mubr.bf16.gmra.mxu0 %v9134
        %v9465 = vpop.f32.mrf.mxu0
        %v9466 = vadd.f32 0.0, %v9465
        %v9467 = vpop.f32.mrf.mxu0
        %v9468 = vadd.f32 0.0, %v9467
        %v9469 = vpop.f32.mrf.mxu0
        %v9470 = vadd.f32 0.0, %v9469
        %v9471 = vpop.f32.mrf.mxu0
        %v9472 = vadd.f32 0.0, %v9471
        %9473 = vmatprep.mubr.bf16.mxu0 %v9137
        %9474 = vmatmul.mubr.bf16.gmra.mxu0 %v9136
        %v9475 = vpop.f32.mrf.mxu0
        %v9476 = vadd.f32 0.0, %v9475
        %v9477 = vpop.f32.mrf.mxu0
        %v9478 = vadd.f32 0.0, %v9477
        %v9479 = vpop.f32.mrf.mxu0
        %v9480 = vadd.f32 0.0, %v9479
        %v9481 = vpop.f32.mrf.mxu0
        %v9482 = vadd.f32 0.0, %v9481
        %9483 = vmatprep.mubr.bf16.mxu0 %v9139
        %9484 = vmatmul.mubr.bf16.gmra.mxu0 %v9138
        %v9485 = vpop.f32.mrf.mxu0
        %v9486 = vadd.f32 0.0, %v9485
        %v9487 = vpop.f32.mrf.mxu0
        %v9488 = vadd.f32 0.0, %v9487
        %v9489 = vpop.f32.mrf.mxu0
        %v9490 = vadd.f32 0.0, %v9489
        %v9491 = vpop.f32.mrf.mxu0
        %v9492 = vadd.f32 0.0, %v9491
        %9493 = vmatprep.mubr.bf16.mxu0 %v9141
        %9494 = vmatmul.mubr.bf16.gmra.mxu0 %v9140
        %v9495 = vpop.f32.mrf.mxu0
        %v9496 = vadd.f32 0.0, %v9495
        %v9497 = vpop.f32.mrf.mxu0
        %v9498 = vadd.f32 0.0, %v9497
        %v9499 = vpop.f32.mrf.mxu0
        %v9500 = vadd.f32 0.0, %v9499
        %v9501 = vpop.f32.mrf.mxu0
        %v9502 = vadd.f32 0.0, %v9501
        %9503 = vmatprep.mubr.bf16.mxu0 %v9143
        %9504 = vmatmul.mubr.bf16.gmra.mxu0 %v9142
        %v9505 = vpop.f32.mrf.mxu0
        %v9506 = vadd.f32 0.0, %v9505
        %v9507 = vpop.f32.mrf.mxu0
        %v9508 = vadd.f32 0.0, %v9507
        %v9509 = vpop.f32.mrf.mxu0
        %v9510 = vadd.f32 0.0, %v9509
        %v9511 = vpop.f32.mrf.mxu0
        %v9512 = vadd.f32 0.0, %v9511
        %9513 = vmatprep.mubr.bf16.mxu0 %v9145
        %9514 = vmatmul.mubr.bf16.gmra.mxu0 %v9144
        %v9515 = vpop.f32.mrf.mxu0
        %v9516 = vadd.f32 0.0, %v9515
        %v9517 = vpop.f32.mrf.mxu0
        %v9518 = vadd.f32 0.0, %v9517
        %v9519 = vpop.f32.mrf.mxu0
        %v9520 = vadd.f32 0.0, %v9519
        %v9521 = vpop.f32.mrf.mxu0
        %v9522 = vadd.f32 0.0, %v9521
        %9523 = vmatprep.mubr.bf16.mxu0 %v9147
        %9524 = vmatmul.mubr.bf16.gmra.mxu0 %v9146
        %v9525 = vpop.f32.mrf.mxu0
        %v9526 = vadd.f32 0.0, %v9525
        %v9527 = vpop.f32.mrf.mxu0
        %v9528 = vadd.f32 0.0, %v9527
        %v9529 = vpop.f32.mrf.mxu0
        %v9530 = vadd.f32 0.0, %v9529
        %v9531 = vpop.f32.mrf.mxu0
        %v9532 = vadd.f32 0.0, %v9531
        %9533 = vdwg.mxu0
        %v9534 = vadd.f32 %v8987, %v9376
        %v9535 = vadd.f32 %v8988, %v9378
        %v9536 = vadd.f32 %v8989, %v9380
        %v9537 = vadd.f32 %v8990, %v9382
        %v9538 = vadd.f32 %v8991, %v9386
        %v9539 = vadd.f32 %v8992, %v9388
        %v9540 = vadd.f32 %v8993, %v9390
        %v9541 = vadd.f32 %v8994, %v9392
        %v9542 = vadd.f32 %v8995, %v9396
        %v9543 = vadd.f32 %v8996, %v9398
        %v9544 = vadd.f32 %v8997, %v9400
        %v9545 = vadd.f32 %v8998, %v9402
        %v9546 = vadd.f32 %v8999, %v9406
        %v9547 = vadd.f32 %v9000, %v9408
        %v9548 = vadd.f32 %v9001, %v9410
        %v9549 = vadd.f32 %v9002, %v9412
        %v9550 = vadd.f32 %v9003, %v9416
        %v9551 = vadd.f32 %v9004, %v9418
        %v9552 = vadd.f32 %v9005, %v9420
        %v9553 = vadd.f32 %v9006, %v9422
        %v9554 = vadd.f32 %v9007, %v9426
        %v9555 = vadd.f32 %v9008, %v9428
        %v9556 = vadd.f32 %v9009, %v9430
        %v9557 = vadd.f32 %v9010, %v9432
        %v9558 = vadd.f32 %v9011, %v9436
        %v9559 = vadd.f32 %v9012, %v9438
        %v9560 = vadd.f32 %v9013, %v9440
        %v9561 = vadd.f32 %v9014, %v9442
        %v9562 = vadd.f32 %v9015, %v9446
        %v9563 = vadd.f32 %v9016, %v9448
        %v9564 = vadd.f32 %v9017, %v9450
        %v9565 = vadd.f32 %v9018, %v9452
        %v9566 = vadd.f32 %v9019, %v9456
        %v9567 = vadd.f32 %v9020, %v9458
        %v9568 = vadd.f32 %v9021, %v9460
        %v9569 = vadd.f32 %v9022, %v9462
        %v9570 = vadd.f32 %v9023, %v9466
        %v9571 = vadd.f32 %v9024, %v9468
        %v9572 = vadd.f32 %v9025, %v9470
        %v9573 = vadd.f32 %v9026, %v9472
        %v9574 = vadd.f32 %v9027, %v9476
        %v9575 = vadd.f32 %v9028, %v9478
        %v9576 = vadd.f32 %v9029, %v9480
        %v9577 = vadd.f32 %v9030, %v9482
        %v9578 = vadd.f32 %v9031, %v9486
        %v9579 = vadd.f32 %v9032, %v9488
        %v9580 = vadd.f32 %v9033, %v9490
        %v9581 = vadd.f32 %v9034, %v9492
        %v9582 = vadd.f32 %v9035, %v9496
        %v9583 = vadd.f32 %v9036, %v9498
        %v9584 = vadd.f32 %v9037, %v9500
        %v9585 = vadd.f32 %v9038, %v9502
        %v9586 = vadd.f32 %v9039, %v9506
        %v9587 = vadd.f32 %v9040, %v9508
        %v9588 = vadd.f32 %v9041, %v9510
        %v9589 = vadd.f32 %v9042, %v9512
        %v9590 = vadd.f32 %v9043, %v9516
        %v9591 = vadd.f32 %v9044, %v9518
        %v9592 = vadd.f32 %v9045, %v9520
        %v9593 = vadd.f32 %v9046, %v9522
        %v9594 = vadd.f32 %v9047, %v9526
        %v9595 = vadd.f32 %v9048, %v9528
        %v9596 = vadd.f32 %v9049, %v9530
        %v9597 = vadd.f32 %v9050, %v9532
        %v9598 = vld [vmem:[%s9051] sm:$0xfe]
        %v9599 = vld [vmem:[%s9051 + $0x8] sm:$0xfe]
        %v9600 = vld [vmem:[%s9051 + $0x10] sm:$0xff]
        %v9601 = vld [vmem:[%s9051 + $0x18] sm:$0xff]
        %v9602 = vld [vmem:[%s9051 + $0x20] sm:$0x1]
        %v9603 = vld [vmem:[%s9051 + $0x28] sm:$0x1]
        %v9604 = vld [vmem:[%s9051 + $0x30] sm:$0xfe]
        %v9605 = vld [vmem:[%s9051 + $0x38] sm:$0xfe]
        %v9606 = vld [vmem:[%s9051 + $0x40] sm:$0xff]
        %v9607 = vld [vmem:[%s9051 + $0x48] sm:$0xff]
        %v9608 = vld [vmem:[%s9051 + $0x50] sm:$0x1]
        %v9609 = vld [vmem:[%s9051 + $0x58] sm:$0x1]
        %v9610 = vld [vmem:[%s9051 + $0x60] sm:$0xfe]
        %v9611 = vld [vmem:[%s9051 + $0x68] sm:$0xfe]
        %v9612 = vld [vmem:[%s9051 + $0x70] sm:$0xff]
        %v9613 = vld [vmem:[%s9051 + $0x78] sm:$0xff]
        %v9614 = vld [vmem:[%s9051 + $0x80] sm:$0x1]
        %v9615 = vld [vmem:[%s9051 + $0x88] sm:$0x1]
        %v9616 = vld [vmem:[%s9051 + $0x90] sm:$0xfe]
        %v9617 = vld [vmem:[%s9051 + $0x98] sm:$0xfe]
        %v9618 = vld [vmem:[%s9051 + $0xa0] sm:$0xff]
        %v9619 = vld [vmem:[%s9051 + $0xa8] sm:$0xff]
        %v9620 = vld [vmem:[%s9051 + $0xb0] sm:$0x1]
        %v9621 = vld [vmem:[%s9051 + $0xb8] sm:$0x1]
        %v9622 = vld [vmem:[%s9051 + $0xc0] sm:$0xfe]
        %v9623 = vld [vmem:[%s9051 + $0xc8] sm:$0xfe]
        %v9624 = vld [vmem:[%s9051 + $0xd0] sm:$0xff]
        %v9625 = vld [vmem:[%s9051 + $0xd8] sm:$0xff]
        %v9626 = vld [vmem:[%s9051 + $0xe0] sm:$0x1]
        %v9627 = vld [vmem:[%s9051 + $0xe8] sm:$0x1]
        %v9628 = vld [vmem:[%s9051 + $0xf0] sm:$0xfe]
        %v9629 = vld [vmem:[%s9051 + $0xf8] sm:$0xfe]
        %v9630 = vld [vmem:[%s9051 + $0x100] sm:$0xff]
        %v9631 = vld [vmem:[%s9051 + $0x108] sm:$0xff]
        %v9632 = vld [vmem:[%s9051 + $0x110] sm:$0x1]
        %v9633 = vld [vmem:[%s9051 + $0x118] sm:$0x1]
        %v9634 = vld [vmem:[%s9051 + $0x120] sm:$0xfe]
        %v9635 = vld [vmem:[%s9051 + $0x128] sm:$0xfe]
        %v9636 = vld [vmem:[%s9051 + $0x130] sm:$0xff]
        %v9637 = vld [vmem:[%s9051 + $0x138] sm:$0xff]
        %v9638 = vld [vmem:[%s9051 + $0x140] sm:$0x1]
        %v9639 = vld [vmem:[%s9051 + $0x148] sm:$0x1]
        %v9640 = vld [vmem:[%s9051 + $0x150] sm:$0xfe]
        %v9641 = vld [vmem:[%s9051 + $0x158] sm:$0xfe]
        %v9642 = vld [vmem:[%s9051 + $0x160] sm:$0xff]
        %v9643 = vld [vmem:[%s9051 + $0x168] sm:$0xff]
        %v9644 = vld [vmem:[%s9051 + $0x170] sm:$0x1]
        %v9645 = vld [vmem:[%s9051 + $0x178] sm:$0x1]
        %v9646 = vld [vmem:[%s9051 + $0x180] sm:$0xfe]
        %v9647 = vld [vmem:[%s9051 + $0x188] sm:$0xfe]
        %v9648 = vld [vmem:[%s9051 + $0x190] sm:$0xff]
        %v9649 = vld [vmem:[%s9051 + $0x198] sm:$0xff]
        %v9650 = vld [vmem:[%s9051 + $0x1a0] sm:$0x1]
        %v9651 = vld [vmem:[%s9051 + $0x1a8] sm:$0x1]
        %v9652 = vld [vmem:[%s9051 + $0x1b0] sm:$0xfe]
        %v9653 = vld [vmem:[%s9051 + $0x1b8] sm:$0xfe]
        %v9654 = vld [vmem:[%s9051 + $0x1c0] sm:$0xff]
        %v9655 = vld [vmem:[%s9051 + $0x1c8] sm:$0xff]
        %v9656 = vld [vmem:[%s9051 + $0x1d0] sm:$0x1]
        %v9657 = vld [vmem:[%s9051 + $0x1d8] sm:$0x1]
        %v9658 = vld [vmem:[%s9051 + $0x1e0] sm:$0xfe]
        %v9659 = vld [vmem:[%s9051 + $0x1e8] sm:$0xfe]
        %v9660 = vld [vmem:[%s9051 + $0x1f0] sm:$0xff]
        %v9661 = vld [vmem:[%s9051 + $0x1f8] sm:$0xff]
        %v9662 = vld [vmem:[%s9051 + $0x200] sm:$0x1]
        %v9663 = vld [vmem:[%s9051 + $0x208] sm:$0x1]
        %v9664 = vld [vmem:[%s9051 + $0x210] sm:$0xfe]
        %v9665 = vld [vmem:[%s9051 + $0x218] sm:$0xfe]
        %v9666 = vld [vmem:[%s9051 + $0x220] sm:$0xff]
        %v9667 = vld [vmem:[%s9051 + $0x228] sm:$0xff]
        %v9668 = vld [vmem:[%s9051 + $0x230] sm:$0x1]
        %v9669 = vld [vmem:[%s9051 + $0x238] sm:$0x1]
        %v9670 = vld [vmem:[%s9051 + $0x240] sm:$0xfe]
        %v9671 = vld [vmem:[%s9051 + $0x248] sm:$0xfe]
        %v9672 = vld [vmem:[%s9051 + $0x250] sm:$0xff]
        %v9673 = vld [vmem:[%s9051 + $0x258] sm:$0xff]
        %v9674 = vld [vmem:[%s9051 + $0x260] sm:$0x1]
        %v9675 = vld [vmem:[%s9051 + $0x268] sm:$0x1]
        %v9676 = vld [vmem:[%s9051 + $0x270] sm:$0xfe]
        %v9677 = vld [vmem:[%s9051 + $0x278] sm:$0xfe]
        %v9678 = vld [vmem:[%s9051 + $0x280] sm:$0xff]
        %v9679 = vld [vmem:[%s9051 + $0x288] sm:$0xff]
        %v9680 = vld [vmem:[%s9051 + $0x290] sm:$0x1]
        %v9681 = vld [vmem:[%s9051 + $0x298] sm:$0x1]
        %v9682 = vld [vmem:[%s9051 + $0x2a0] sm:$0xfe]
        %v9683 = vld [vmem:[%s9051 + $0x2a8] sm:$0xfe]
        %v9684 = vld [vmem:[%s9051 + $0x2b0] sm:$0xff]
        %v9685 = vld [vmem:[%s9051 + $0x2b8] sm:$0xff]
        %v9686 = vld [vmem:[%s9051 + $0x2c0] sm:$0x1]
        %v9687 = vld [vmem:[%s9051 + $0x2c8] sm:$0x1]
        %v9688 = vld [vmem:[%s9051 + $0x2d0] sm:$0xfe]
        %v9689 = vld [vmem:[%s9051 + $0x2d8] sm:$0xfe]
        %v9690 = vld [vmem:[%s9051 + $0x2e0] sm:$0xff]
        %v9691 = vld [vmem:[%s9051 + $0x2e8] sm:$0xff]
        %v9692 = vld [vmem:[%s9051 + $0x2f0] sm:$0x1]
        %v9693 = vld [vmem:[%s9051 + $0x2f8] sm:$0x1]
        %v9790 = vrot.slane %v9598, 1
        %v9791 = vrot.slane %v9600, 1
        %v9792 = vsel %vm4942, %v9790, %v9791
        %v9793 = vrot.slane %v9599, 1
        %v9794 = vrot.slane %v9601, 1
        %v9795 = vsel %vm4942, %v9793, %v9794
        %v9796 = vrot.slane %v9602, 1
        %v9797 = vsel %vm4942, %v9791, %v9796
        %v9798 = vrot.slane %v9603, 1
        %v9799 = vsel %vm4942, %v9794, %v9798
        %v9800 = vrot.slane %v9604, 1
        %v9801 = vrot.slane %v9606, 1
        %v9802 = vsel %vm4942, %v9800, %v9801
        %v9803 = vrot.slane %v9605, 1
        %v9804 = vrot.slane %v9607, 1
        %v9805 = vsel %vm4942, %v9803, %v9804
        %v9806 = vrot.slane %v9608, 1
        %v9807 = vsel %vm4942, %v9801, %v9806
        %v9808 = vrot.slane %v9609, 1
        %v9809 = vsel %vm4942, %v9804, %v9808
        %v9810 = vrot.slane %v9610, 1
        %v9811 = vrot.slane %v9612, 1
        %v9812 = vsel %vm4942, %v9810, %v9811
        %v9813 = vrot.slane %v9611, 1
        %v9814 = vrot.slane %v9613, 1
        %v9815 = vsel %vm4942, %v9813, %v9814
        %v9816 = vrot.slane %v9614, 1
        %v9817 = vsel %vm4942, %v9811, %v9816
        %v9818 = vrot.slane %v9615, 1
        %v9819 = vsel %vm4942, %v9814, %v9818
        %v9820 = vrot.slane %v9616, 1
        %v9821 = vrot.slane %v9618, 1
        %v9822 = vsel %vm4942, %v9820, %v9821
        %v9823 = vrot.slane %v9617, 1
        %v9824 = vrot.slane %v9619, 1
        %v9825 = vsel %vm4942, %v9823, %v9824
        %v9826 = vrot.slane %v9620, 1
        %v9827 = vsel %vm4942, %v9821, %v9826
        %v9828 = vrot.slane %v9621, 1
        %v9829 = vsel %vm4942, %v9824, %v9828
        %v9830 = vrot.slane %v9622, 1
        %v9831 = vrot.slane %v9624, 1
        %v9832 = vsel %vm4942, %v9830, %v9831
        %v9833 = vrot.slane %v9623, 1
        %v9834 = vrot.slane %v9625, 1
        %v9835 = vsel %vm4942, %v9833, %v9834
        %v9836 = vrot.slane %v9626, 1
        %v9837 = vsel %vm4942, %v9831, %v9836
        %v9838 = vrot.slane %v9627, 1
        %v9839 = vsel %vm4942, %v9834, %v9838
        %v9840 = vrot.slane %v9628, 1
        %v9841 = vrot.slane %v9630, 1
        %v9842 = vsel %vm4942, %v9840, %v9841
        %v9843 = vrot.slane %v9629, 1
        %v9844 = vrot.slane %v9631, 1
        %v9845 = vsel %vm4942, %v9843, %v9844
        %v9846 = vrot.slane %v9632, 1
        %v9847 = vsel %vm4942, %v9841, %v9846
        %v9848 = vrot.slane %v9633, 1
        %v9849 = vsel %vm4942, %v9844, %v9848
        %v9850 = vrot.slane %v9634, 1
        %v9851 = vrot.slane %v9636, 1
        %v9852 = vsel %vm4942, %v9850, %v9851
        %v9853 = vrot.slane %v9635, 1
        %v9854 = vrot.slane %v9637, 1
        %v9855 = vsel %vm4942, %v9853, %v9854
        %v9856 = vrot.slane %v9638, 1
        %v9857 = vsel %vm4942, %v9851, %v9856
        %v9858 = vrot.slane %v9639, 1
        %v9859 = vsel %vm4942, %v9854, %v9858
        %v9860 = vrot.slane %v9640, 1
        %v9861 = vrot.slane %v9642, 1
        %v9862 = vsel %vm4942, %v9860, %v9861
        %v9863 = vrot.slane %v9641, 1
        %v9864 = vrot.slane %v9643, 1
        %v9865 = vsel %vm4942, %v9863, %v9864
        %v9866 = vrot.slane %v9644, 1
        %v9867 = vsel %vm4942, %v9861, %v9866
        %v9868 = vrot.slane %v9645, 1
        %v9869 = vsel %vm4942, %v9864, %v9868
        %v9870 = vrot.slane %v9646, 1
        %v9871 = vrot.slane %v9648, 1
        %v9872 = vsel %vm4942, %v9870, %v9871
        %v9873 = vrot.slane %v9647, 1
        %v9874 = vrot.slane %v9649, 1
        %v9875 = vsel %vm4942, %v9873, %v9874
        %v9876 = vrot.slane %v9650, 1
        %v9877 = vsel %vm4942, %v9871, %v9876
        %v9878 = vrot.slane %v9651, 1
        %v9879 = vsel %vm4942, %v9874, %v9878
        %v9880 = vrot.slane %v9652, 1
        %v9881 = vrot.slane %v9654, 1
        %v9882 = vsel %vm4942, %v9880, %v9881
        %v9883 = vrot.slane %v9653, 1
        %v9884 = vrot.slane %v9655, 1
        %v9885 = vsel %vm4942, %v9883, %v9884
        %v9886 = vrot.slane %v9656, 1
        %v9887 = vsel %vm4942, %v9881, %v9886
        %v9888 = vrot.slane %v9657, 1
        %v9889 = vsel %vm4942, %v9884, %v9888
        %v9890 = vrot.slane %v9658, 1
        %v9891 = vrot.slane %v9660, 1
        %v9892 = vsel %vm4942, %v9890, %v9891
        %v9893 = vrot.slane %v9659, 1
        %v9894 = vrot.slane %v9661, 1
        %v9895 = vsel %vm4942, %v9893, %v9894
        %v9896 = vrot.slane %v9662, 1
        %v9897 = vsel %vm4942, %v9891, %v9896
        %v9898 = vrot.slane %v9663, 1
        %v9899 = vsel %vm4942, %v9894, %v9898
        %v9900 = vrot.slane %v9664, 1
        %v9901 = vrot.slane %v9666, 1
        %v9902 = vsel %vm4942, %v9900, %v9901
        %v9903 = vrot.slane %v9665, 1
        %v9904 = vrot.slane %v9667, 1
        %v9905 = vsel %vm4942, %v9903, %v9904
        %v9906 = vrot.slane %v9668, 1
        %v9907 = vsel %vm4942, %v9901, %v9906
        %v9908 = vrot.slane %v9669, 1
        %v9909 = vsel %vm4942, %v9904, %v9908
        %v9910 = vrot.slane %v9670, 1
        %v9911 = vrot.slane %v9672, 1
        %v9912 = vsel %vm4942, %v9910, %v9911
        %v9913 = vrot.slane %v9671, 1
        %v9914 = vrot.slane %v9673, 1
        %v9915 = vsel %vm4942, %v9913, %v9914
        %v9916 = vrot.slane %v9674, 1
        %v9917 = vsel %vm4942, %v9911, %v9916
        %v9918 = vrot.slane %v9675, 1
        %v9919 = vsel %vm4942, %v9914, %v9918
        %v9920 = vrot.slane %v9676, 1
        %v9921 = vrot.slane %v9678, 1
        %v9922 = vsel %vm4942, %v9920, %v9921
        %v9923 = vrot.slane %v9677, 1
        %v9924 = vrot.slane %v9679, 1
        %v9925 = vsel %vm4942, %v9923, %v9924
        %v9926 = vrot.slane %v9680, 1
        %v9927 = vsel %vm4942, %v9921, %v9926
        %v9928 = vrot.slane %v9681, 1
        %v9929 = vsel %vm4942, %v9924, %v9928
        %v9930 = vrot.slane %v9682, 1
        %v9931 = vrot.slane %v9684, 1
        %v9932 = vsel %vm4942, %v9930, %v9931
        %v9933 = vrot.slane %v9683, 1
        %v9934 = vrot.slane %v9685, 1
        %v9935 = vsel %vm4942, %v9933, %v9934
        %v9936 = vrot.slane %v9686, 1
        %v9937 = vsel %vm4942, %v9931, %v9936
        %v9938 = vrot.slane %v9687, 1
        %v9939 = vsel %vm4942, %v9934, %v9938
        %v9940 = vrot.slane %v9688, 1
        %v9941 = vrot.slane %v9690, 1
        %v9942 = vsel %vm4942, %v9940, %v9941
        %v9943 = vrot.slane %v9689, 1
        %v9944 = vrot.slane %v9691, 1
        %v9945 = vsel %vm4942, %v9943, %v9944
        %v9946 = vrot.slane %v9692, 1
        %v9947 = vsel %vm4942, %v9941, %v9946
        %v9948 = vrot.slane %v9693, 1
        %v9949 = vsel %vm4942, %v9944, %v9948
        %v10014 = vpack.c.bf16 %v9797, %v9792
        %v10015 = vpack.c.bf16 %v9799, %v9795
        %v10016 = vpack.c.bf16 %v9807, %v9802
        %v10017 = vpack.c.bf16 %v9809, %v9805
        %v10018 = vpack.c.bf16 %v9817, %v9812
        %v10019 = vpack.c.bf16 %v9819, %v9815
        %v10020 = vpack.c.bf16 %v9827, %v9822
        %v10021 = vpack.c.bf16 %v9829, %v9825
        %v10022 = vpack.c.bf16 %v9837, %v9832
        %v10023 = vpack.c.bf16 %v9839, %v9835
        %v10024 = vpack.c.bf16 %v9847, %v9842
        %v10025 = vpack.c.bf16 %v9849, %v9845
        %v10026 = vpack.c.bf16 %v9857, %v9852
        %v10027 = vpack.c.bf16 %v9859, %v9855
        %v10028 = vpack.c.bf16 %v9867, %v9862
        %v10029 = vpack.c.bf16 %v9869, %v9865
        %v10030 = vpack.c.bf16 %v9877, %v9872
        %v10031 = vpack.c.bf16 %v9879, %v9875
        %v10032 = vpack.c.bf16 %v9887, %v9882
        %v10033 = vpack.c.bf16 %v9889, %v9885
        %v10034 = vpack.c.bf16 %v9897, %v9892
        %v10035 = vpack.c.bf16 %v9899, %v9895
        %v10036 = vpack.c.bf16 %v9907, %v9902
        %v10037 = vpack.c.bf16 %v9909, %v9905
        %v10038 = vpack.c.bf16 %v9917, %v9912
        %v10039 = vpack.c.bf16 %v9919, %v9915
        %v10040 = vpack.c.bf16 %v9927, %v9922
        %v10041 = vpack.c.bf16 %v9929, %v9925
        %v10042 = vpack.c.bf16 %v9937, %v9932
        %v10043 = vpack.c.bf16 %v9939, %v9935
        %v10044 = vpack.c.bf16 %v9947, %v9942
        %v10045 = vpack.c.bf16 %v9949, %v9945
        %s10046 = scalar_lea.vmem %s2, 1792
        %v10047 = vld [vmem:[%s10046] sm:$0xff]
        %v10048 = vld [vmem:[%s10046 + $0x8] sm:$0xff]
        %v10049 = vld [vmem:[%s10046 + $0x10] sm:$0xff]
        %v10050 = vld [vmem:[%s10046 + $0x18] sm:$0xff]
        %v10051 = vld [vmem:[%s10046 + $0x20] sm:$0xff]
        %v10052 = vld [vmem:[%s10046 + $0x28] sm:$0xff]
        %v10053 = vld [vmem:[%s10046 + $0x30] sm:$0xff]
        %v10054 = vld [vmem:[%s10046 + $0x38] sm:$0xff]
        %v10055 = vld [vmem:[%s10046 + $0x40] sm:$0xff]
        %v10056 = vld [vmem:[%s10046 + $0x48] sm:$0xff]
        %v10057 = vld [vmem:[%s10046 + $0x50] sm:$0xff]
        %v10058 = vld [vmem:[%s10046 + $0x58] sm:$0xff]
        %v10059 = vld [vmem:[%s10046 + $0x60] sm:$0xff]
        %v10060 = vld [vmem:[%s10046 + $0x68] sm:$0xff]
        %v10061 = vld [vmem:[%s10046 + $0x70] sm:$0xff]
        %v10062 = vld [vmem:[%s10046 + $0x78] sm:$0xff]
        %v10063 = vld [vmem:[%s10046 + $0x80] sm:$0xff]
        %v10064 = vld [vmem:[%s10046 + $0x88] sm:$0xff]
        %v10065 = vld [vmem:[%s10046 + $0x90] sm:$0xff]
        %v10066 = vld [vmem:[%s10046 + $0x98] sm:$0xff]
        %v10067 = vld [vmem:[%s10046 + $0xa0] sm:$0xff]
        %v10068 = vld [vmem:[%s10046 + $0xa8] sm:$0xff]
        %v10069 = vld [vmem:[%s10046 + $0xb0] sm:$0xff]
        %v10070 = vld [vmem:[%s10046 + $0xb8] sm:$0xff]
        %v10071 = vld [vmem:[%s10046 + $0xc0] sm:$0xff]
        %v10072 = vld [vmem:[%s10046 + $0xc8] sm:$0xff]
        %v10073 = vld [vmem:[%s10046 + $0xd0] sm:$0xff]
        %v10074 = vld [vmem:[%s10046 + $0xd8] sm:$0xff]
        %v10075 = vld [vmem:[%s10046 + $0xe0] sm:$0xff]
        %v10076 = vld [vmem:[%s10046 + $0xe8] sm:$0xff]
        %v10077 = vld [vmem:[%s10046 + $0xf0] sm:$0xff]
        %v10078 = vld [vmem:[%s10046 + $0xf8] sm:$0xff]
        %v10111 = vunpack.c.l.b16 %v10047
        %v10112 = vunpack.c.h.b16 %v10047
        %v10113 = vunpack.c.l.b16 %v10048
        %v10114 = vunpack.c.h.b16 %v10048
        %v10115 = vunpack.c.l.b16 %v10049
        %v10116 = vunpack.c.h.b16 %v10049
        %v10117 = vunpack.c.l.b16 %v10050
        %v10118 = vunpack.c.h.b16 %v10050
        %v10119 = vunpack.c.l.b16 %v10051
        %v10120 = vunpack.c.h.b16 %v10051
        %v10121 = vunpack.c.l.b16 %v10052
        %v10122 = vunpack.c.h.b16 %v10052
        %v10123 = vunpack.c.l.b16 %v10053
        %v10124 = vunpack.c.h.b16 %v10053
        %v10125 = vunpack.c.l.b16 %v10054
        %v10126 = vunpack.c.h.b16 %v10054
        %v10127 = vunpack.c.l.b16 %v10055
        %v10128 = vunpack.c.h.b16 %v10055
        %v10129 = vunpack.c.l.b16 %v10056
        %v10130 = vunpack.c.h.b16 %v10056
        %v10131 = vunpack.c.l.b16 %v10057
        %v10132 = vunpack.c.h.b16 %v10057
        %v10133 = vunpack.c.l.b16 %v10058
        %v10134 = vunpack.c.h.b16 %v10058
        %v10135 = vunpack.c.l.b16 %v10059
        %v10136 = vunpack.c.h.b16 %v10059
        %v10137 = vunpack.c.l.b16 %v10060
        %v10138 = vunpack.c.h.b16 %v10060
        %v10139 = vunpack.c.l.b16 %v10061
        %v10140 = vunpack.c.h.b16 %v10061
        %v10141 = vunpack.c.l.b16 %v10062
        %v10142 = vunpack.c.h.b16 %v10062
        %v10143 = vunpack.c.l.b16 %v10063
        %v10144 = vunpack.c.h.b16 %v10063
        %v10145 = vunpack.c.l.b16 %v10064
        %v10146 = vunpack.c.h.b16 %v10064
        %v10147 = vunpack.c.l.b16 %v10065
        %v10148 = vunpack.c.h.b16 %v10065
        %v10149 = vunpack.c.l.b16 %v10066
        %v10150 = vunpack.c.h.b16 %v10066
        %v10151 = vunpack.c.l.b16 %v10067
        %v10152 = vunpack.c.h.b16 %v10067
        %v10153 = vunpack.c.l.b16 %v10068
        %v10154 = vunpack.c.h.b16 %v10068
        %v10155 = vunpack.c.l.b16 %v10069
        %v10156 = vunpack.c.h.b16 %v10069
        %v10157 = vunpack.c.l.b16 %v10070
        %v10158 = vunpack.c.h.b16 %v10070
        %v10159 = vunpack.c.l.b16 %v10071
        %v10160 = vunpack.c.h.b16 %v10071
        %v10161 = vunpack.c.l.b16 %v10072
        %v10162 = vunpack.c.h.b16 %v10072
        %v10163 = vunpack.c.l.b16 %v10073
        %v10164 = vunpack.c.h.b16 %v10073
        %v10165 = vunpack.c.l.b16 %v10074
        %v10166 = vunpack.c.h.b16 %v10074
        %v10167 = vunpack.c.l.b16 %v10075
        %v10168 = vunpack.c.h.b16 %v10075
        %v10169 = vunpack.c.l.b16 %v10076
        %v10170 = vunpack.c.h.b16 %v10076
        %v10171 = vunpack.c.l.b16 %v10077
        %v10172 = vunpack.c.h.b16 %v10077
        %v10173 = vunpack.c.l.b16 %v10078
        %v10174 = vunpack.c.h.b16 %v10078
        %v10175 = vpack.c.b16 %v10113, %v10111
        %v10176 = vpack.c.b16 %v10114, %v10112
        %v10177 = vpack.c.b16 %v10117, %v10115
        %v10178 = vpack.c.b16 %v10118, %v10116
        %v10179 = vpack.c.b16 %v10121, %v10119
        %v10180 = vpack.c.b16 %v10122, %v10120
        %v10181 = vpack.c.b16 %v10125, %v10123
        %v10182 = vpack.c.b16 %v10126, %v10124
        %v10183 = vpack.c.b16 %v10129, %v10127
        %v10184 = vpack.c.b16 %v10130, %v10128
        %v10185 = vpack.c.b16 %v10133, %v10131
        %v10186 = vpack.c.b16 %v10134, %v10132
        %v10187 = vpack.c.b16 %v10137, %v10135
        %v10188 = vpack.c.b16 %v10138, %v10136
        %v10189 = vpack.c.b16 %v10141, %v10139
        %v10190 = vpack.c.b16 %v10142, %v10140
        %v10191 = vpack.c.b16 %v10145, %v10143
        %v10192 = vpack.c.b16 %v10146, %v10144
        %v10193 = vpack.c.b16 %v10149, %v10147
        %v10194 = vpack.c.b16 %v10150, %v10148
        %v10195 = vpack.c.b16 %v10153, %v10151
        %v10196 = vpack.c.b16 %v10154, %v10152
        %v10197 = vpack.c.b16 %v10157, %v10155
        %v10198 = vpack.c.b16 %v10158, %v10156
        %v10199 = vpack.c.b16 %v10161, %v10159
        %v10200 = vpack.c.b16 %v10162, %v10160
        %v10201 = vpack.c.b16 %v10165, %v10163
        %v10202 = vpack.c.b16 %v10166, %v10164
        %v10203 = vpack.c.b16 %v10169, %v10167
        %v10204 = vpack.c.b16 %v10170, %v10168
        %v10205 = vpack.c.b16 %v10173, %v10171
        %v10206 = vpack.c.b16 %v10174, %v10172
        %10239 = vmatprep.subr.bf16.mxu0 %v10190
        %10240 = vmatpush1.bf16.msra.mxu0 %v10189
        %10241 = vmatprep.subr.bf16.mxu0 %v10188
        %10242 = vmatpush1.bf16.msra.mxu0 %v10187
        %10243 = vmatprep.subr.bf16.mxu0 %v10186
        %10244 = vmatpush1.bf16.msra.mxu0 %v10185
        %10245 = vmatprep.subr.bf16.mxu0 %v10184
        %10246 = vmatpush1.bf16.msra.mxu0 %v10183
        %10247 = vmatprep.subr.bf16.mxu0 %v10182
        %10248 = vmatpush1.bf16.msra.mxu0 %v10181
        %10249 = vmatprep.subr.bf16.mxu0 %v10180
        %10250 = vmatpush1.bf16.msra.mxu0 %v10179
        %10251 = vmatprep.subr.bf16.mxu0 %v10178
        %10252 = vmatpush1.bf16.msra.mxu0 %v10177
        %10253 = vmatprep.subr.bf16.mxu0 %v10176
        %10254 = vmatpush1.bf16.msra.mxu0 %v10175
        %10255 = vmatprep.subr.bf16.mxu0 %v10206
        %10256 = vmatpush2.bf16.msra.mxu0 %v10205
        %10257 = vmatprep.subr.bf16.mxu0 %v10204
        %10258 = vmatpush2.bf16.msra.mxu0 %v10203
        %10259 = vmatprep.subr.bf16.mxu0 %v10202
        %10260 = vmatpush2.bf16.msra.mxu0 %v10201
        %10261 = vmatprep.subr.bf16.mxu0 %v10200
        %10262 = vmatpush2.bf16.msra.mxu0 %v10199
        %10263 = vmatprep.subr.bf16.mxu0 %v10198
        %10264 = vmatpush2.bf16.msra.mxu0 %v10197
        %10265 = vmatprep.subr.bf16.mxu0 %v10196
        %10266 = vmatpush2.bf16.msra.mxu0 %v10195
        %10267 = vmatprep.subr.bf16.mxu0 %v10194
        %10268 = vmatpush2.bf16.msra.mxu0 %v10193
        %10269 = vmatprep.subr.bf16.mxu0 %v10192
        %10270 = vmatpush2.bf16.msra.mxu0 %v10191
        %10271 = vmatprep.mubr.bf16.mxu0 %v10015
        %10272 = vmatmul.mubr.bf16.gmra.mxu0 %v10014
        %v10273 = vpop.f32.mrf.mxu0
        %v10274 = vadd.f32 0.0, %v10273
        %v10275 = vpop.f32.mrf.mxu0
        %v10276 = vadd.f32 0.0, %v10275
        %v10277 = vpop.f32.mrf.mxu0
        %v10278 = vadd.f32 0.0, %v10277
        %v10279 = vpop.f32.mrf.mxu0
        %v10280 = vadd.f32 0.0, %v10279
        %10281 = vmatprep.mubr.bf16.mxu0 %v10017
        %10282 = vmatmul.mubr.bf16.gmra.mxu0 %v10016
        %v10283 = vpop.f32.mrf.mxu0
        %v10284 = vadd.f32 0.0, %v10283
        %v10285 = vpop.f32.mrf.mxu0
        %v10286 = vadd.f32 0.0, %v10285
        %v10287 = vpop.f32.mrf.mxu0
        %v10288 = vadd.f32 0.0, %v10287
        %v10289 = vpop.f32.mrf.mxu0
        %v10290 = vadd.f32 0.0, %v10289
        %10291 = vmatprep.mubr.bf16.mxu0 %v10019
        %10292 = vmatmul.mubr.bf16.gmra.mxu0 %v10018
        %v10293 = vpop.f32.mrf.mxu0
        %v10294 = vadd.f32 0.0, %v10293
        %v10295 = vpop.f32.mrf.mxu0
        %v10296 = vadd.f32 0.0, %v10295
        %v10297 = vpop.f32.mrf.mxu0
        %v10298 = vadd.f32 0.0, %v10297
        %v10299 = vpop.f32.mrf.mxu0
        %v10300 = vadd.f32 0.0, %v10299
        %10301 = vmatprep.mubr.bf16.mxu0 %v10021
        %10302 = vmatmul.mubr.bf16.gmra.mxu0 %v10020
        %v10303 = vpop.f32.mrf.mxu0
        %v10304 = vadd.f32 0.0, %v10303
        %v10305 = vpop.f32.mrf.mxu0
        %v10306 = vadd.f32 0.0, %v10305
        %v10307 = vpop.f32.mrf.mxu0
        %v10308 = vadd.f32 0.0, %v10307
        %v10309 = vpop.f32.mrf.mxu0
        %v10310 = vadd.f32 0.0, %v10309
        %10311 = vmatprep.mubr.bf16.mxu0 %v10023
        %10312 = vmatmul.mubr.bf16.gmra.mxu0 %v10022
        %v10313 = vpop.f32.mrf.mxu0
        %v10314 = vadd.f32 0.0, %v10313
        %v10315 = vpop.f32.mrf.mxu0
        %v10316 = vadd.f32 0.0, %v10315
        %v10317 = vpop.f32.mrf.mxu0
        %v10318 = vadd.f32 0.0, %v10317
        %v10319 = vpop.f32.mrf.mxu0
        %v10320 = vadd.f32 0.0, %v10319
        %10321 = vmatprep.mubr.bf16.mxu0 %v10025
        %10322 = vmatmul.mubr.bf16.gmra.mxu0 %v10024
        %v10323 = vpop.f32.mrf.mxu0
        %v10324 = vadd.f32 0.0, %v10323
        %v10325 = vpop.f32.mrf.mxu0
        %v10326 = vadd.f32 0.0, %v10325
        %v10327 = vpop.f32.mrf.mxu0
        %v10328 = vadd.f32 0.0, %v10327
        %v10329 = vpop.f32.mrf.mxu0
        %v10330 = vadd.f32 0.0, %v10329
        %10331 = vmatprep.mubr.bf16.mxu0 %v10027
        %10332 = vmatmul.mubr.bf16.gmra.mxu0 %v10026
        %v10333 = vpop.f32.mrf.mxu0
        %v10334 = vadd.f32 0.0, %v10333
        %v10335 = vpop.f32.mrf.mxu0
        %v10336 = vadd.f32 0.0, %v10335
        %v10337 = vpop.f32.mrf.mxu0
        %v10338 = vadd.f32 0.0, %v10337
        %v10339 = vpop.f32.mrf.mxu0
        %v10340 = vadd.f32 0.0, %v10339
        %10341 = vmatprep.mubr.bf16.mxu0 %v10029
        %10342 = vmatmul.mubr.bf16.gmra.mxu0 %v10028
        %v10343 = vpop.f32.mrf.mxu0
        %v10344 = vadd.f32 0.0, %v10343
        %v10345 = vpop.f32.mrf.mxu0
        %v10346 = vadd.f32 0.0, %v10345
        %v10347 = vpop.f32.mrf.mxu0
        %v10348 = vadd.f32 0.0, %v10347
        %v10349 = vpop.f32.mrf.mxu0
        %v10350 = vadd.f32 0.0, %v10349
        %10351 = vmatprep.mubr.bf16.mxu0 %v10031
        %10352 = vmatmul.mubr.bf16.gmra.mxu0 %v10030
        %v10353 = vpop.f32.mrf.mxu0
        %v10354 = vadd.f32 0.0, %v10353
        %v10355 = vpop.f32.mrf.mxu0
        %v10356 = vadd.f32 0.0, %v10355
        %v10357 = vpop.f32.mrf.mxu0
        %v10358 = vadd.f32 0.0, %v10357
        %v10359 = vpop.f32.mrf.mxu0
        %v10360 = vadd.f32 0.0, %v10359
        %10361 = vmatprep.mubr.bf16.mxu0 %v10033
        %10362 = vmatmul.mubr.bf16.gmra.mxu0 %v10032
        %v10363 = vpop.f32.mrf.mxu0
        %v10364 = vadd.f32 0.0, %v10363
        %v10365 = vpop.f32.mrf.mxu0
        %v10366 = vadd.f32 0.0, %v10365
        %v10367 = vpop.f32.mrf.mxu0
        %v10368 = vadd.f32 0.0, %v10367
        %v10369 = vpop.f32.mrf.mxu0
        %v10370 = vadd.f32 0.0, %v10369
        %10371 = vmatprep.mubr.bf16.mxu0 %v10035
        %10372 = vmatmul.mubr.bf16.gmra.mxu0 %v10034
        %v10373 = vpop.f32.mrf.mxu0
        %v10374 = vadd.f32 0.0, %v10373
        %v10375 = vpop.f32.mrf.mxu0
        %v10376 = vadd.f32 0.0, %v10375
        %v10377 = vpop.f32.mrf.mxu0
        %v10378 = vadd.f32 0.0, %v10377
        %v10379 = vpop.f32.mrf.mxu0
        %v10380 = vadd.f32 0.0, %v10379
        %10381 = vmatprep.mubr.bf16.mxu0 %v10037
        %10382 = vmatmul.mubr.bf16.gmra.mxu0 %v10036
        %v10383 = vpop.f32.mrf.mxu0
        %v10384 = vadd.f32 0.0, %v10383
        %v10385 = vpop.f32.mrf.mxu0
        %v10386 = vadd.f32 0.0, %v10385
        %v10387 = vpop.f32.mrf.mxu0
        %v10388 = vadd.f32 0.0, %v10387
        %v10389 = vpop.f32.mrf.mxu0
        %v10390 = vadd.f32 0.0, %v10389
        %10391 = vmatprep.mubr.bf16.mxu0 %v10039
        %10392 = vmatmul.mubr.bf16.gmra.mxu0 %v10038
        %v10393 = vpop.f32.mrf.mxu0
        %v10394 = vadd.f32 0.0, %v10393
        %v10395 = vpop.f32.mrf.mxu0
        %v10396 = vadd.f32 0.0, %v10395
        %v10397 = vpop.f32.mrf.mxu0
        %v10398 = vadd.f32 0.0, %v10397
        %v10399 = vpop.f32.mrf.mxu0
        %v10400 = vadd.f32 0.0, %v10399
        %10401 = vmatprep.mubr.bf16.mxu0 %v10041
        %10402 = vmatmul.mubr.bf16.gmra.mxu0 %v10040
        %v10403 = vpop.f32.mrf.mxu0
        %v10404 = vadd.f32 0.0, %v10403
        %v10405 = vpop.f32.mrf.mxu0
        %v10406 = vadd.f32 0.0, %v10405
        %v10407 = vpop.f32.mrf.mxu0
        %v10408 = vadd.f32 0.0, %v10407
        %v10409 = vpop.f32.mrf.mxu0
        %v10410 = vadd.f32 0.0, %v10409
        %10411 = vmatprep.mubr.bf16.mxu0 %v10043
        %10412 = vmatmul.mubr.bf16.gmra.mxu0 %v10042
        %v10413 = vpop.f32.mrf.mxu0
        %v10414 = vadd.f32 0.0, %v10413
        %v10415 = vpop.f32.mrf.mxu0
        %v10416 = vadd.f32 0.0, %v10415
        %v10417 = vpop.f32.mrf.mxu0
        %v10418 = vadd.f32 0.0, %v10417
        %v10419 = vpop.f32.mrf.mxu0
        %v10420 = vadd.f32 0.0, %v10419
        %10421 = vmatprep.mubr.bf16.mxu0 %v10045
        %10422 = vmatmul.mubr.bf16.gmra.mxu0 %v10044
        %v10423 = vpop.f32.mrf.mxu0
        %v10424 = vadd.f32 0.0, %v10423
        %v10425 = vpop.f32.mrf.mxu0
        %v10426 = vadd.f32 0.0, %v10425
        %v10427 = vpop.f32.mrf.mxu0
        %v10428 = vadd.f32 0.0, %v10427
        %v10429 = vpop.f32.mrf.mxu0
        %v10430 = vadd.f32 0.0, %v10429
        %10431 = vdwg.mxu0
        %v10432 = vadd.f32 %v9534, %v10274
        %v10433 = vadd.f32 %v9535, %v10276
        %v10434 = vadd.f32 %v9536, %v10278
        %v10435 = vadd.f32 %v9537, %v10280
        %v10436 = vadd.f32 %v9538, %v10284
        %v10437 = vadd.f32 %v9539, %v10286
        %v10438 = vadd.f32 %v9540, %v10288
        %v10439 = vadd.f32 %v9541, %v10290
        %v10440 = vadd.f32 %v9542, %v10294
        %v10441 = vadd.f32 %v9543, %v10296
        %v10442 = vadd.f32 %v9544, %v10298
        %v10443 = vadd.f32 %v9545, %v10300
        %v10444 = vadd.f32 %v9546, %v10304
        %v10445 = vadd.f32 %v9547, %v10306
        %v10446 = vadd.f32 %v9548, %v10308
        %v10447 = vadd.f32 %v9549, %v10310
        %v10448 = vadd.f32 %v9550, %v10314
        %v10449 = vadd.f32 %v9551, %v10316
        %v10450 = vadd.f32 %v9552, %v10318
        %v10451 = vadd.f32 %v9553, %v10320
        %v10452 = vadd.f32 %v9554, %v10324
        %v10453 = vadd.f32 %v9555, %v10326
        %v10454 = vadd.f32 %v9556, %v10328
        %v10455 = vadd.f32 %v9557, %v10330
        %v10456 = vadd.f32 %v9558, %v10334
        %v10457 = vadd.f32 %v9559, %v10336
        %v10458 = vadd.f32 %v9560, %v10338
        %v10459 = vadd.f32 %v9561, %v10340
        %v10460 = vadd.f32 %v9562, %v10344
        %v10461 = vadd.f32 %v9563, %v10346
        %v10462 = vadd.f32 %v9564, %v10348
        %v10463 = vadd.f32 %v9565, %v10350
        %v10464 = vadd.f32 %v9566, %v10354
        %v10465 = vadd.f32 %v9567, %v10356
        %v10466 = vadd.f32 %v9568, %v10358
        %v10467 = vadd.f32 %v9569, %v10360
        %v10468 = vadd.f32 %v9570, %v10364
        %v10469 = vadd.f32 %v9571, %v10366
        %v10470 = vadd.f32 %v9572, %v10368
        %v10471 = vadd.f32 %v9573, %v10370
        %v10472 = vadd.f32 %v9574, %v10374
        %v10473 = vadd.f32 %v9575, %v10376
        %v10474 = vadd.f32 %v9576, %v10378
        %v10475 = vadd.f32 %v9577, %v10380
        %v10476 = vadd.f32 %v9578, %v10384
        %v10477 = vadd.f32 %v9579, %v10386
        %v10478 = vadd.f32 %v9580, %v10388
        %v10479 = vadd.f32 %v9581, %v10390
        %v10480 = vadd.f32 %v9582, %v10394
        %v10481 = vadd.f32 %v9583, %v10396
        %v10482 = vadd.f32 %v9584, %v10398
        %v10483 = vadd.f32 %v9585, %v10400
        %v10484 = vadd.f32 %v9586, %v10404
        %v10485 = vadd.f32 %v9587, %v10406
        %v10486 = vadd.f32 %v9588, %v10408
        %v10487 = vadd.f32 %v9589, %v10410
        %v10488 = vadd.f32 %v9590, %v10414
        %v10489 = vadd.f32 %v9591, %v10416
        %v10490 = vadd.f32 %v9592, %v10418
        %v10491 = vadd.f32 %v9593, %v10420
        %v10492 = vadd.f32 %v9594, %v10424
        %v10493 = vadd.f32 %v9595, %v10426
        %v10494 = vadd.f32 %v9596, %v10428
        %v10495 = vadd.f32 %v9597, %v10430
        %v10496 = vld [vmem:[%s9051] sm:$0xfc]
        %v10497 = vld [vmem:[%s9051 + $0x8] sm:$0xfc]
        %v10498 = vld [vmem:[%s9051 + $0x20] sm:$0x3]
        %v10499 = vld [vmem:[%s9051 + $0x28] sm:$0x3]
        %v10500 = vld [vmem:[%s9051 + $0x30] sm:$0xfc]
        %v10501 = vld [vmem:[%s9051 + $0x38] sm:$0xfc]
        %v10502 = vld [vmem:[%s9051 + $0x50] sm:$0x3]
        %v10503 = vld [vmem:[%s9051 + $0x58] sm:$0x3]
        %v10504 = vld [vmem:[%s9051 + $0x60] sm:$0xfc]
        %v10505 = vld [vmem:[%s9051 + $0x68] sm:$0xfc]
        %v10506 = vld [vmem:[%s9051 + $0x80] sm:$0x3]
        %v10507 = vld [vmem:[%s9051 + $0x88] sm:$0x3]
        %v10508 = vld [vmem:[%s9051 + $0x90] sm:$0xfc]
        %v10509 = vld [vmem:[%s9051 + $0x98] sm:$0xfc]
        %v10510 = vld [vmem:[%s9051 + $0xb0] sm:$0x3]
        %v10511 = vld [vmem:[%s9051 + $0xb8] sm:$0x3]
        %v10512 = vld [vmem:[%s9051 + $0xc0] sm:$0xfc]
        %v10513 = vld [vmem:[%s9051 + $0xc8] sm:$0xfc]
        %v10514 = vld [vmem:[%s9051 + $0xe0] sm:$0x3]
        %v10515 = vld [vmem:[%s9051 + $0xe8] sm:$0x3]
        %v10516 = vld [vmem:[%s9051 + $0xf0] sm:$0xfc]
        %v10517 = vld [vmem:[%s9051 + $0xf8] sm:$0xfc]
        %v10518 = vld [vmem:[%s9051 + $0x110] sm:$0x3]
        %v10519 = vld [vmem:[%s9051 + $0x118] sm:$0x3]
        %v10520 = vld [vmem:[%s9051 + $0x120] sm:$0xfc]
        %v10521 = vld [vmem:[%s9051 + $0x128] sm:$0xfc]
        %v10522 = vld [vmem:[%s9051 + $0x140] sm:$0x3]
        %v10523 = vld [vmem:[%s9051 + $0x148] sm:$0x3]
        %v10524 = vld [vmem:[%s9051 + $0x150] sm:$0xfc]
        %v10525 = vld [vmem:[%s9051 + $0x158] sm:$0xfc]
        %v10526 = vld [vmem:[%s9051 + $0x170] sm:$0x3]
        %v10527 = vld [vmem:[%s9051 + $0x178] sm:$0x3]
        %v10528 = vld [vmem:[%s9051 + $0x180] sm:$0xfc]
        %v10529 = vld [vmem:[%s9051 + $0x188] sm:$0xfc]
        %v10530 = vld [vmem:[%s9051 + $0x1a0] sm:$0x3]
        %v10531 = vld [vmem:[%s9051 + $0x1a8] sm:$0x3]
        %v10532 = vld [vmem:[%s9051 + $0x1b0] sm:$0xfc]
        %v10533 = vld [vmem:[%s9051 + $0x1b8] sm:$0xfc]
        %v10534 = vld [vmem:[%s9051 + $0x1d0] sm:$0x3]
        %v10535 = vld [vmem:[%s9051 + $0x1d8] sm:$0x3]
        %v10536 = vld [vmem:[%s9051 + $0x1e0] sm:$0xfc]
        %v10537 = vld [vmem:[%s9051 + $0x1e8] sm:$0xfc]
        %v10538 = vld [vmem:[%s9051 + $0x200] sm:$0x3]
        %v10539 = vld [vmem:[%s9051 + $0x208] sm:$0x3]
        %v10540 = vld [vmem:[%s9051 + $0x210] sm:$0xfc]
        %v10541 = vld [vmem:[%s9051 + $0x218] sm:$0xfc]
        %v10542 = vld [vmem:[%s9051 + $0x230] sm:$0x3]
        %v10543 = vld [vmem:[%s9051 + $0x238] sm:$0x3]
        %v10544 = vld [vmem:[%s9051 + $0x240] sm:$0xfc]
        %v10545 = vld [vmem:[%s9051 + $0x248] sm:$0xfc]
        %v10546 = vld [vmem:[%s9051 + $0x260] sm:$0x3]
        %v10547 = vld [vmem:[%s9051 + $0x268] sm:$0x3]
        %v10548 = vld [vmem:[%s9051 + $0x270] sm:$0xfc]
        %v10549 = vld [vmem:[%s9051 + $0x278] sm:$0xfc]
        %v10550 = vld [vmem:[%s9051 + $0x290] sm:$0x3]
        %v10551 = vld [vmem:[%s9051 + $0x298] sm:$0x3]
        %v10552 = vld [vmem:[%s9051 + $0x2a0] sm:$0xfc]
        %v10553 = vld [vmem:[%s9051 + $0x2a8] sm:$0xfc]
        %v10554 = vld [vmem:[%s9051 + $0x2c0] sm:$0x3]
        %v10555 = vld [vmem:[%s9051 + $0x2c8] sm:$0x3]
        %v10556 = vld [vmem:[%s9051 + $0x2d0] sm:$0xfc]
        %v10557 = vld [vmem:[%s9051 + $0x2d8] sm:$0xfc]
        %v10558 = vld [vmem:[%s9051 + $0x2f0] sm:$0x3]
        %v10559 = vld [vmem:[%s9051 + $0x2f8] sm:$0x3]
        %v10624 = vrot.slane %v10496, 2
        %v10625 = vrot.slane %v9600, 2
        %v10626 = vsel %vm6066, %v10624, %v10625
        %v10627 = vrot.slane %v10497, 2
        %v10628 = vrot.slane %v9601, 2
        %v10629 = vsel %vm6066, %v10627, %v10628
        %v10630 = vrot.slane %v10498, 2
        %v10631 = vsel %vm6066, %v10625, %v10630
        %v10632 = vrot.slane %v10499, 2
        %v10633 = vsel %vm6066, %v10628, %v10632
        %v10634 = vrot.slane %v10500, 2
        %v10635 = vrot.slane %v9606, 2
        %v10636 = vsel %vm6066, %v10634, %v10635
        %v10637 = vrot.slane %v10501, 2
        %v10638 = vrot.slane %v9607, 2
        %v10639 = vsel %vm6066, %v10637, %v10638
        %v10640 = vrot.slane %v10502, 2
        %v10641 = vsel %vm6066, %v10635, %v10640
        %v10642 = vrot.slane %v10503, 2
        %v10643 = vsel %vm6066, %v10638, %v10642
        %v10644 = vrot.slane %v10504, 2
        %v10645 = vrot.slane %v9612, 2
        %v10646 = vsel %vm6066, %v10644, %v10645
        %v10647 = vrot.slane %v10505, 2
        %v10648 = vrot.slane %v9613, 2
        %v10649 = vsel %vm6066, %v10647, %v10648
        %v10650 = vrot.slane %v10506, 2
        %v10651 = vsel %vm6066, %v10645, %v10650
        %v10652 = vrot.slane %v10507, 2
        %v10653 = vsel %vm6066, %v10648, %v10652
        %v10654 = vrot.slane %v10508, 2
        %v10655 = vrot.slane %v9618, 2
        %v10656 = vsel %vm6066, %v10654, %v10655
        %v10657 = vrot.slane %v10509, 2
        %v10658 = vrot.slane %v9619, 2
        %v10659 = vsel %vm6066, %v10657, %v10658
        %v10660 = vrot.slane %v10510, 2
        %v10661 = vsel %vm6066, %v10655, %v10660
        %v10662 = vrot.slane %v10511, 2
        %v10663 = vsel %vm6066, %v10658, %v10662
        %v10664 = vrot.slane %v10512, 2
        %v10665 = vrot.slane %v9624, 2
        %v10666 = vsel %vm6066, %v10664, %v10665
        %v10667 = vrot.slane %v10513, 2
        %v10668 = vrot.slane %v9625, 2
        %v10669 = vsel %vm6066, %v10667, %v10668
        %v10670 = vrot.slane %v10514, 2
        %v10671 = vsel %vm6066, %v10665, %v10670
        %v10672 = vrot.slane %v10515, 2
        %v10673 = vsel %vm6066, %v10668, %v10672
        %v10674 = vrot.slane %v10516, 2
        %v10675 = vrot.slane %v9630, 2
        %v10676 = vsel %vm6066, %v10674, %v10675
        %v10677 = vrot.slane %v10517, 2
        %v10678 = vrot.slane %v9631, 2
        %v10679 = vsel %vm6066, %v10677, %v10678
        %v10680 = vrot.slane %v10518, 2
        %v10681 = vsel %vm6066, %v10675, %v10680
        %v10682 = vrot.slane %v10519, 2
        %v10683 = vsel %vm6066, %v10678, %v10682
        %v10684 = vrot.slane %v10520, 2
        %v10685 = vrot.slane %v9636, 2
        %v10686 = vsel %vm6066, %v10684, %v10685
        %v10687 = vrot.slane %v10521, 2
        %v10688 = vrot.slane %v9637, 2
        %v10689 = vsel %vm6066, %v10687, %v10688
        %v10690 = vrot.slane %v10522, 2
        %v10691 = vsel %vm6066, %v10685, %v10690
        %v10692 = vrot.slane %v10523, 2
        %v10693 = vsel %vm6066, %v10688, %v10692
        %v10694 = vrot.slane %v10524, 2
        %v10695 = vrot.slane %v9642, 2
        %v10696 = vsel %vm6066, %v10694, %v10695
        %v10697 = vrot.slane %v10525, 2
        %v10698 = vrot.slane %v9643, 2
        %v10699 = vsel %vm6066, %v10697, %v10698
        %v10700 = vrot.slane %v10526, 2
        %v10701 = vsel %vm6066, %v10695, %v10700
        %v10702 = vrot.slane %v10527, 2
        %v10703 = vsel %vm6066, %v10698, %v10702
        %v10704 = vrot.slane %v10528, 2
        %v10705 = vrot.slane %v9648, 2
        %v10706 = vsel %vm6066, %v10704, %v10705
        %v10707 = vrot.slane %v10529, 2
        %v10708 = vrot.slane %v9649, 2
        %v10709 = vsel %vm6066, %v10707, %v10708
        %v10710 = vrot.slane %v10530, 2
        %v10711 = vsel %vm6066, %v10705, %v10710
        %v10712 = vrot.slane %v10531, 2
        %v10713 = vsel %vm6066, %v10708, %v10712
        %v10714 = vrot.slane %v10532, 2
        %v10715 = vrot.slane %v9654, 2
        %v10716 = vsel %vm6066, %v10714, %v10715
        %v10717 = vrot.slane %v10533, 2
        %v10718 = vrot.slane %v9655, 2
        %v10719 = vsel %vm6066, %v10717, %v10718
        %v10720 = vrot.slane %v10534, 2
        %v10721 = vsel %vm6066, %v10715, %v10720
        %v10722 = vrot.slane %v10535, 2
        %v10723 = vsel %vm6066, %v10718, %v10722
        %v10724 = vrot.slane %v10536, 2
        %v10725 = vrot.slane %v9660, 2
        %v10726 = vsel %vm6066, %v10724, %v10725
        %v10727 = vrot.slane %v10537, 2
        %v10728 = vrot.slane %v9661, 2
        %v10729 = vsel %vm6066, %v10727, %v10728
        %v10730 = vrot.slane %v10538, 2
        %v10731 = vsel %vm6066, %v10725, %v10730
        %v10732 = vrot.slane %v10539, 2
        %v10733 = vsel %vm6066, %v10728, %v10732
        %v10734 = vrot.slane %v10540, 2
        %v10735 = vrot.slane %v9666, 2
        %v10736 = vsel %vm6066, %v10734, %v10735
        %v10737 = vrot.slane %v10541, 2
        %v10738 = vrot.slane %v9667, 2
        %v10739 = vsel %vm6066, %v10737, %v10738
        %v10740 = vrot.slane %v10542, 2
        %v10741 = vsel %vm6066, %v10735, %v10740
        %v10742 = vrot.slane %v10543, 2
        %v10743 = vsel %vm6066, %v10738, %v10742
        %v10744 = vrot.slane %v10544, 2
        %v10745 = vrot.slane %v9672, 2
        %v10746 = vsel %vm6066, %v10744, %v10745
        %v10747 = vrot.slane %v10545, 2
        %v10748 = vrot.slane %v9673, 2
        %v10749 = vsel %vm6066, %v10747, %v10748
        %v10750 = vrot.slane %v10546, 2
        %v10751 = vsel %vm6066, %v10745, %v10750
        %v10752 = vrot.slane %v10547, 2
        %v10753 = vsel %vm6066, %v10748, %v10752
        %v10754 = vrot.slane %v10548, 2
        %v10755 = vrot.slane %v9678, 2
        %v10756 = vsel %vm6066, %v10754, %v10755
        %v10757 = vrot.slane %v10549, 2
        %v10758 = vrot.slane %v9679, 2
        %v10759 = vsel %vm6066, %v10757, %v10758
        %v10760 = vrot.slane %v10550, 2
        %v10761 = vsel %vm6066, %v10755, %v10760
        %v10762 = vrot.slane %v10551, 2
        %v10763 = vsel %vm6066, %v10758, %v10762
        %v10764 = vrot.slane %v10552, 2
        %v10765 = vrot.slane %v9684, 2
        %v10766 = vsel %vm6066, %v10764, %v10765
        %v10767 = vrot.slane %v10553, 2
        %v10768 = vrot.slane %v9685, 2
        %v10769 = vsel %vm6066, %v10767, %v10768
        %v10770 = vrot.slane %v10554, 2
        %v10771 = vsel %vm6066, %v10765, %v10770
        %v10772 = vrot.slane %v10555, 2
        %v10773 = vsel %vm6066, %v10768, %v10772
        %v10774 = vrot.slane %v10556, 2
        %v10775 = vrot.slane %v9690, 2
        %v10776 = vsel %vm6066, %v10774, %v10775
        %v10777 = vrot.slane %v10557, 2
        %v10778 = vrot.slane %v9691, 2
        %v10779 = vsel %vm6066, %v10777, %v10778
        %v10780 = vrot.slane %v10558, 2
        %v10781 = vsel %vm6066, %v10775, %v10780
        %v10782 = vrot.slane %v10559, 2
        %v10783 = vsel %vm6066, %v10778, %v10782
        %v10848 = vpack.c.bf16 %v10631, %v10626
        %v10849 = vpack.c.bf16 %v10633, %v10629
        %v10850 = vpack.c.bf16 %v10641, %v10636
        %v10851 = vpack.c.bf16 %v10643, %v10639
        %v10852 = vpack.c.bf16 %v10651, %v10646
        %v10853 = vpack.c.bf16 %v10653, %v10649
        %v10854 = vpack.c.bf16 %v10661, %v10656
        %v10855 = vpack.c.bf16 %v10663, %v10659
        %v10856 = vpack.c.bf16 %v10671, %v10666
        %v10857 = vpack.c.bf16 %v10673, %v10669
        %v10858 = vpack.c.bf16 %v10681, %v10676
        %v10859 = vpack.c.bf16 %v10683, %v10679
        %v10860 = vpack.c.bf16 %v10691, %v10686
        %v10861 = vpack.c.bf16 %v10693, %v10689
        %v10862 = vpack.c.bf16 %v10701, %v10696
        %v10863 = vpack.c.bf16 %v10703, %v10699
        %v10864 = vpack.c.bf16 %v10711, %v10706
        %v10865 = vpack.c.bf16 %v10713, %v10709
        %v10866 = vpack.c.bf16 %v10721, %v10716
        %v10867 = vpack.c.bf16 %v10723, %v10719
        %v10868 = vpack.c.bf16 %v10731, %v10726
        %v10869 = vpack.c.bf16 %v10733, %v10729
        %v10870 = vpack.c.bf16 %v10741, %v10736
        %v10871 = vpack.c.bf16 %v10743, %v10739
        %v10872 = vpack.c.bf16 %v10751, %v10746
        %v10873 = vpack.c.bf16 %v10753, %v10749
        %v10874 = vpack.c.bf16 %v10761, %v10756
        %v10875 = vpack.c.bf16 %v10763, %v10759
        %v10876 = vpack.c.bf16 %v10771, %v10766
        %v10877 = vpack.c.bf16 %v10773, %v10769
        %v10878 = vpack.c.bf16 %v10781, %v10776
        %v10879 = vpack.c.bf16 %v10783, %v10779
        %s10880 = scalar_lea.vmem %s2, 2048
        %v10881 = vld [vmem:[%s10880] sm:$0xff]
        %v10882 = vld [vmem:[%s10880 + $0x8] sm:$0xff]
        %v10883 = vld [vmem:[%s10880 + $0x10] sm:$0xff]
        %v10884 = vld [vmem:[%s10880 + $0x18] sm:$0xff]
        %v10885 = vld [vmem:[%s10880 + $0x20] sm:$0xff]
        %v10886 = vld [vmem:[%s10880 + $0x28] sm:$0xff]
        %v10887 = vld [vmem:[%s10880 + $0x30] sm:$0xff]
        %v10888 = vld [vmem:[%s10880 + $0x38] sm:$0xff]
        %v10889 = vld [vmem:[%s10880 + $0x40] sm:$0xff]
        %v10890 = vld [vmem:[%s10880 + $0x48] sm:$0xff]
        %v10891 = vld [vmem:[%s10880 + $0x50] sm:$0xff]
        %v10892 = vld [vmem:[%s10880 + $0x58] sm:$0xff]
        %v10893 = vld [vmem:[%s10880 + $0x60] sm:$0xff]
        %v10894 = vld [vmem:[%s10880 + $0x68] sm:$0xff]
        %v10895 = vld [vmem:[%s10880 + $0x70] sm:$0xff]
        %v10896 = vld [vmem:[%s10880 + $0x78] sm:$0xff]
        %v10897 = vld [vmem:[%s10880 + $0x80] sm:$0xff]
        %v10898 = vld [vmem:[%s10880 + $0x88] sm:$0xff]
        %v10899 = vld [vmem:[%s10880 + $0x90] sm:$0xff]
        %v10900 = vld [vmem:[%s10880 + $0x98] sm:$0xff]
        %v10901 = vld [vmem:[%s10880 + $0xa0] sm:$0xff]
        %v10902 = vld [vmem:[%s10880 + $0xa8] sm:$0xff]
        %v10903 = vld [vmem:[%s10880 + $0xb0] sm:$0xff]
        %v10904 = vld [vmem:[%s10880 + $0xb8] sm:$0xff]
        %v10905 = vld [vmem:[%s10880 + $0xc0] sm:$0xff]
        %v10906 = vld [vmem:[%s10880 + $0xc8] sm:$0xff]
        %v10907 = vld [vmem:[%s10880 + $0xd0] sm:$0xff]
        %v10908 = vld [vmem:[%s10880 + $0xd8] sm:$0xff]
        %v10909 = vld [vmem:[%s10880 + $0xe0] sm:$0xff]
        %v10910 = vld [vmem:[%s10880 + $0xe8] sm:$0xff]
        %v10911 = vld [vmem:[%s10880 + $0xf0] sm:$0xff]
        %v10912 = vld [vmem:[%s10880 + $0xf8] sm:$0xff]
        %v10945 = vunpack.c.l.b16 %v10881
        %v10946 = vunpack.c.h.b16 %v10881
        %v10947 = vunpack.c.l.b16 %v10882
        %v10948 = vunpack.c.h.b16 %v10882
        %v10949 = vunpack.c.l.b16 %v10883
        %v10950 = vunpack.c.h.b16 %v10883
        %v10951 = vunpack.c.l.b16 %v10884
        %v10952 = vunpack.c.h.b16 %v10884
        %v10953 = vunpack.c.l.b16 %v10885
        %v10954 = vunpack.c.h.b16 %v10885
        %v10955 = vunpack.c.l.b16 %v10886
        %v10956 = vunpack.c.h.b16 %v10886
        %v10957 = vunpack.c.l.b16 %v10887
        %v10958 = vunpack.c.h.b16 %v10887
        %v10959 = vunpack.c.l.b16 %v10888
        %v10960 = vunpack.c.h.b16 %v10888
        %v10961 = vunpack.c.l.b16 %v10889
        %v10962 = vunpack.c.h.b16 %v10889
        %v10963 = vunpack.c.l.b16 %v10890
        %v10964 = vunpack.c.h.b16 %v10890
        %v10965 = vunpack.c.l.b16 %v10891
        %v10966 = vunpack.c.h.b16 %v10891
        %v10967 = vunpack.c.l.b16 %v10892
        %v10968 = vunpack.c.h.b16 %v10892
        %v10969 = vunpack.c.l.b16 %v10893
        %v10970 = vunpack.c.h.b16 %v10893
        %v10971 = vunpack.c.l.b16 %v10894
        %v10972 = vunpack.c.h.b16 %v10894
        %v10973 = vunpack.c.l.b16 %v10895
        %v10974 = vunpack.c.h.b16 %v10895
        %v10975 = vunpack.c.l.b16 %v10896
        %v10976 = vunpack.c.h.b16 %v10896
        %v10977 = vunpack.c.l.b16 %v10897
        %v10978 = vunpack.c.h.b16 %v10897
        %v10979 = vunpack.c.l.b16 %v10898
        %v10980 = vunpack.c.h.b16 %v10898
        %v10981 = vunpack.c.l.b16 %v10899
        %v10982 = vunpack.c.h.b16 %v10899
        %v10983 = vunpack.c.l.b16 %v10900
        %v10984 = vunpack.c.h.b16 %v10900
        %v10985 = vunpack.c.l.b16 %v10901
        %v10986 = vunpack.c.h.b16 %v10901
        %v10987 = vunpack.c.l.b16 %v10902
        %v10988 = vunpack.c.h.b16 %v10902
        %v10989 = vunpack.c.l.b16 %v10903
        %v10990 = vunpack.c.h.b16 %v10903
        %v10991 = vunpack.c.l.b16 %v10904
        %v10992 = vunpack.c.h.b16 %v10904
        %v10993 = vunpack.c.l.b16 %v10905
        %v10994 = vunpack.c.h.b16 %v10905
        %v10995 = vunpack.c.l.b16 %v10906
        %v10996 = vunpack.c.h.b16 %v10906
        %v10997 = vunpack.c.l.b16 %v10907
        %v10998 = vunpack.c.h.b16 %v10907
        %v10999 = vunpack.c.l.b16 %v10908
        %v11000 = vunpack.c.h.b16 %v10908
        %v11001 = vunpack.c.l.b16 %v10909
        %v11002 = vunpack.c.h.b16 %v10909
        %v11003 = vunpack.c.l.b16 %v10910
        %v11004 = vunpack.c.h.b16 %v10910
        %v11005 = vunpack.c.l.b16 %v10911
        %v11006 = vunpack.c.h.b16 %v10911
        %v11007 = vunpack.c.l.b16 %v10912
        %v11008 = vunpack.c.h.b16 %v10912
        %v11009 = vpack.c.b16 %v10947, %v10945
        %v11010 = vpack.c.b16 %v10948, %v10946
        %v11011 = vpack.c.b16 %v10951, %v10949
        %v11012 = vpack.c.b16 %v10952, %v10950
        %v11013 = vpack.c.b16 %v10955, %v10953
        %v11014 = vpack.c.b16 %v10956, %v10954
        %v11015 = vpack.c.b16 %v10959, %v10957
        %v11016 = vpack.c.b16 %v10960, %v10958
        %v11017 = vpack.c.b16 %v10963, %v10961
        %v11018 = vpack.c.b16 %v10964, %v10962
        %v11019 = vpack.c.b16 %v10967, %v10965
        %v11020 = vpack.c.b16 %v10968, %v10966
        %v11021 = vpack.c.b16 %v10971, %v10969
        %v11022 = vpack.c.b16 %v10972, %v10970
        %v11023 = vpack.c.b16 %v10975, %v10973
        %v11024 = vpack.c.b16 %v10976, %v10974
        %v11025 = vpack.c.b16 %v10979, %v10977
        %v11026 = vpack.c.b16 %v10980, %v10978
        %v11027 = vpack.c.b16 %v10983, %v10981
        %v11028 = vpack.c.b16 %v10984, %v10982
        %v11029 = vpack.c.b16 %v10987, %v10985
        %v11030 = vpack.c.b16 %v10988, %v10986
        %v11031 = vpack.c.b16 %v10991, %v10989
        %v11032 = vpack.c.b16 %v10992, %v10990
        %v11033 = vpack.c.b16 %v10995, %v10993
        %v11034 = vpack.c.b16 %v10996, %v10994
        %v11035 = vpack.c.b16 %v10999, %v10997
        %v11036 = vpack.c.b16 %v11000, %v10998
        %v11037 = vpack.c.b16 %v11003, %v11001
        %v11038 = vpack.c.b16 %v11004, %v11002
        %v11039 = vpack.c.b16 %v11007, %v11005
        %v11040 = vpack.c.b16 %v11008, %v11006
        %11073 = vmatprep.subr.bf16.mxu0 %v11024
        %11074 = vmatpush1.bf16.msra.mxu0 %v11023
        %11075 = vmatprep.subr.bf16.mxu0 %v11022
        %11076 = vmatpush1.bf16.msra.mxu0 %v11021
        %11077 = vmatprep.subr.bf16.mxu0 %v11020
        %11078 = vmatpush1.bf16.msra.mxu0 %v11019
        %11079 = vmatprep.subr.bf16.mxu0 %v11018
        %11080 = vmatpush1.bf16.msra.mxu0 %v11017
        %11081 = vmatprep.subr.bf16.mxu0 %v11016
        %11082 = vmatpush1.bf16.msra.mxu0 %v11015
        %11083 = vmatprep.subr.bf16.mxu0 %v11014
        %11084 = vmatpush1.bf16.msra.mxu0 %v11013
        %11085 = vmatprep.subr.bf16.mxu0 %v11012
        %11086 = vmatpush1.bf16.msra.mxu0 %v11011
        %11087 = vmatprep.subr.bf16.mxu0 %v11010
        %11088 = vmatpush1.bf16.msra.mxu0 %v11009
        %11089 = vmatprep.subr.bf16.mxu0 %v11040
        %11090 = vmatpush2.bf16.msra.mxu0 %v11039
        %11091 = vmatprep.subr.bf16.mxu0 %v11038
        %11092 = vmatpush2.bf16.msra.mxu0 %v11037
        %11093 = vmatprep.subr.bf16.mxu0 %v11036
        %11094 = vmatpush2.bf16.msra.mxu0 %v11035
        %11095 = vmatprep.subr.bf16.mxu0 %v11034
        %11096 = vmatpush2.bf16.msra.mxu0 %v11033
        %11097 = vmatprep.subr.bf16.mxu0 %v11032
        %11098 = vmatpush2.bf16.msra.mxu0 %v11031
        %11099 = vmatprep.subr.bf16.mxu0 %v11030
        %11100 = vmatpush2.bf16.msra.mxu0 %v11029
        %11101 = vmatprep.subr.bf16.mxu0 %v11028
        %11102 = vmatpush2.bf16.msra.mxu0 %v11027
        %11103 = vmatprep.subr.bf16.mxu0 %v11026
        %11104 = vmatpush2.bf16.msra.mxu0 %v11025
        %11105 = vmatprep.mubr.bf16.mxu0 %v10849
        %11106 = vmatmul.mubr.bf16.gmra.mxu0 %v10848
        %v11107 = vpop.f32.mrf.mxu0
        %v11108 = vadd.f32 0.0, %v11107
        %v11109 = vpop.f32.mrf.mxu0
        %v11110 = vadd.f32 0.0, %v11109
        %v11111 = vpop.f32.mrf.mxu0
        %v11112 = vadd.f32 0.0, %v11111
        %v11113 = vpop.f32.mrf.mxu0
        %v11114 = vadd.f32 0.0, %v11113
        %11115 = vmatprep.mubr.bf16.mxu0 %v10851
        %11116 = vmatmul.mubr.bf16.gmra.mxu0 %v10850
        %v11117 = vpop.f32.mrf.mxu0
        %v11118 = vadd.f32 0.0, %v11117
        %v11119 = vpop.f32.mrf.mxu0
        %v11120 = vadd.f32 0.0, %v11119
        %v11121 = vpop.f32.mrf.mxu0
        %v11122 = vadd.f32 0.0, %v11121
        %v11123 = vpop.f32.mrf.mxu0
        %v11124 = vadd.f32 0.0, %v11123
        %11125 = vmatprep.mubr.bf16.mxu0 %v10853
        %11126 = vmatmul.mubr.bf16.gmra.mxu0 %v10852
        %v11127 = vpop.f32.mrf.mxu0
        %v11128 = vadd.f32 0.0, %v11127
        %v11129 = vpop.f32.mrf.mxu0
        %v11130 = vadd.f32 0.0, %v11129
        %v11131 = vpop.f32.mrf.mxu0
        %v11132 = vadd.f32 0.0, %v11131
        %v11133 = vpop.f32.mrf.mxu0
        %v11134 = vadd.f32 0.0, %v11133
        %11135 = vmatprep.mubr.bf16.mxu0 %v10855
        %11136 = vmatmul.mubr.bf16.gmra.mxu0 %v10854
        %v11137 = vpop.f32.mrf.mxu0
        %v11138 = vadd.f32 0.0, %v11137
        %v11139 = vpop.f32.mrf.mxu0
        %v11140 = vadd.f32 0.0, %v11139
        %v11141 = vpop.f32.mrf.mxu0
        %v11142 = vadd.f32 0.0, %v11141
        %v11143 = vpop.f32.mrf.mxu0
        %v11144 = vadd.f32 0.0, %v11143
        %11145 = vmatprep.mubr.bf16.mxu0 %v10857
        %11146 = vmatmul.mubr.bf16.gmra.mxu0 %v10856
        %v11147 = vpop.f32.mrf.mxu0
        %v11148 = vadd.f32 0.0, %v11147
        %v11149 = vpop.f32.mrf.mxu0
        %v11150 = vadd.f32 0.0, %v11149
        %v11151 = vpop.f32.mrf.mxu0
        %v11152 = vadd.f32 0.0, %v11151
        %v11153 = vpop.f32.mrf.mxu0
        %v11154 = vadd.f32 0.0, %v11153
        %11155 = vmatprep.mubr.bf16.mxu0 %v10859
        %11156 = vmatmul.mubr.bf16.gmra.mxu0 %v10858
        %v11157 = vpop.f32.mrf.mxu0
        %v11158 = vadd.f32 0.0, %v11157
        %v11159 = vpop.f32.mrf.mxu0
        %v11160 = vadd.f32 0.0, %v11159
        %v11161 = vpop.f32.mrf.mxu0
        %v11162 = vadd.f32 0.0, %v11161
        %v11163 = vpop.f32.mrf.mxu0
        %v11164 = vadd.f32 0.0, %v11163
        %11165 = vmatprep.mubr.bf16.mxu0 %v10861
        %11166 = vmatmul.mubr.bf16.gmra.mxu0 %v10860
        %v11167 = vpop.f32.mrf.mxu0
        %v11168 = vadd.f32 0.0, %v11167
        %v11169 = vpop.f32.mrf.mxu0
        %v11170 = vadd.f32 0.0, %v11169
        %v11171 = vpop.f32.mrf.mxu0
        %v11172 = vadd.f32 0.0, %v11171
        %v11173 = vpop.f32.mrf.mxu0
        %v11174 = vadd.f32 0.0, %v11173
        %11175 = vmatprep.mubr.bf16.mxu0 %v10863
        %11176 = vmatmul.mubr.bf16.gmra.mxu0 %v10862
        %v11177 = vpop.f32.mrf.mxu0
        %v11178 = vadd.f32 0.0, %v11177
        %v11179 = vpop.f32.mrf.mxu0
        %v11180 = vadd.f32 0.0, %v11179
        %v11181 = vpop.f32.mrf.mxu0
        %v11182 = vadd.f32 0.0, %v11181
        %v11183 = vpop.f32.mrf.mxu0
        %v11184 = vadd.f32 0.0, %v11183
        %11185 = vmatprep.mubr.bf16.mxu0 %v10865
        %11186 = vmatmul.mubr.bf16.gmra.mxu0 %v10864
        %v11187 = vpop.f32.mrf.mxu0
        %v11188 = vadd.f32 0.0, %v11187
        %v11189 = vpop.f32.mrf.mxu0
        %v11190 = vadd.f32 0.0, %v11189
        %v11191 = vpop.f32.mrf.mxu0
        %v11192 = vadd.f32 0.0, %v11191
        %v11193 = vpop.f32.mrf.mxu0
        %v11194 = vadd.f32 0.0, %v11193
        %11195 = vmatprep.mubr.bf16.mxu0 %v10867
        %11196 = vmatmul.mubr.bf16.gmra.mxu0 %v10866
        %v11197 = vpop.f32.mrf.mxu0
        %v11198 = vadd.f32 0.0, %v11197
        %v11199 = vpop.f32.mrf.mxu0
        %v11200 = vadd.f32 0.0, %v11199
        %v11201 = vpop.f32.mrf.mxu0
        %v11202 = vadd.f32 0.0, %v11201
        %v11203 = vpop.f32.mrf.mxu0
        %v11204 = vadd.f32 0.0, %v11203
        %11205 = vmatprep.mubr.bf16.mxu0 %v10869
        %11206 = vmatmul.mubr.bf16.gmra.mxu0 %v10868
        %v11207 = vpop.f32.mrf.mxu0
        %v11208 = vadd.f32 0.0, %v11207
        %v11209 = vpop.f32.mrf.mxu0
        %v11210 = vadd.f32 0.0, %v11209
        %v11211 = vpop.f32.mrf.mxu0
        %v11212 = vadd.f32 0.0, %v11211
        %v11213 = vpop.f32.mrf.mxu0
        %v11214 = vadd.f32 0.0, %v11213
        %11215 = vmatprep.mubr.bf16.mxu0 %v10871
        %11216 = vmatmul.mubr.bf16.gmra.mxu0 %v10870
        %v11217 = vpop.f32.mrf.mxu0
        %v11218 = vadd.f32 0.0, %v11217
        %v11219 = vpop.f32.mrf.mxu0
        %v11220 = vadd.f32 0.0, %v11219
        %v11221 = vpop.f32.mrf.mxu0
        %v11222 = vadd.f32 0.0, %v11221
        %v11223 = vpop.f32.mrf.mxu0
        %v11224 = vadd.f32 0.0, %v11223
        %11225 = vmatprep.mubr.bf16.mxu0 %v10873
        %11226 = vmatmul.mubr.bf16.gmra.mxu0 %v10872
        %v11227 = vpop.f32.mrf.mxu0
        %v11228 = vadd.f32 0.0, %v11227
        %v11229 = vpop.f32.mrf.mxu0
        %v11230 = vadd.f32 0.0, %v11229
        %v11231 = vpop.f32.mrf.mxu0
        %v11232 = vadd.f32 0.0, %v11231
        %v11233 = vpop.f32.mrf.mxu0
        %v11234 = vadd.f32 0.0, %v11233
        %11235 = vmatprep.mubr.bf16.mxu0 %v10875
        %11236 = vmatmul.mubr.bf16.gmra.mxu0 %v10874
        %v11237 = vpop.f32.mrf.mxu0
        %v11238 = vadd.f32 0.0, %v11237
        %v11239 = vpop.f32.mrf.mxu0
        %v11240 = vadd.f32 0.0, %v11239
        %v11241 = vpop.f32.mrf.mxu0
        %v11242 = vadd.f32 0.0, %v11241
        %v11243 = vpop.f32.mrf.mxu0
        %v11244 = vadd.f32 0.0, %v11243
        %11245 = vmatprep.mubr.bf16.mxu0 %v10877
        %11246 = vmatmul.mubr.bf16.gmra.mxu0 %v10876
        %v11247 = vpop.f32.mrf.mxu0
        %v11248 = vadd.f32 0.0, %v11247
        %v11249 = vpop.f32.mrf.mxu0
        %v11250 = vadd.f32 0.0, %v11249
        %v11251 = vpop.f32.mrf.mxu0
        %v11252 = vadd.f32 0.0, %v11251
        %v11253 = vpop.f32.mrf.mxu0
        %v11254 = vadd.f32 0.0, %v11253
        %11255 = vmatprep.mubr.bf16.mxu0 %v10879
        %11256 = vmatmul.mubr.bf16.gmra.mxu0 %v10878
        %v11257 = vpop.f32.mrf.mxu0
        %v11258 = vadd.f32 0.0, %v11257
        %v11259 = vpop.f32.mrf.mxu0
        %v11260 = vadd.f32 0.0, %v11259
        %v11261 = vpop.f32.mrf.mxu0
        %v11262 = vadd.f32 0.0, %v11261
        %v11263 = vpop.f32.mrf.mxu0
        %v11264 = vadd.f32 0.0, %v11263
        %11265 = vdwg.mxu0
        %v11266 = vadd.f32 %v10432, %v11108
        %v11267 = vadd.f32 %v10433, %v11110
        %v11268 = vadd.f32 %v10434, %v11112
        %v11269 = vadd.f32 %v10435, %v11114
        %v11270 = vadd.f32 %v10436, %v11118
        %v11271 = vadd.f32 %v10437, %v11120
        %v11272 = vadd.f32 %v10438, %v11122
        %v11273 = vadd.f32 %v10439, %v11124
        %v11274 = vadd.f32 %v10440, %v11128
        %v11275 = vadd.f32 %v10441, %v11130
        %v11276 = vadd.f32 %v10442, %v11132
        %v11277 = vadd.f32 %v10443, %v11134
        %v11278 = vadd.f32 %v10444, %v11138
        %v11279 = vadd.f32 %v10445, %v11140
        %v11280 = vadd.f32 %v10446, %v11142
        %v11281 = vadd.f32 %v10447, %v11144
        %v11282 = vadd.f32 %v10448, %v11148
        %v11283 = vadd.f32 %v10449, %v11150
        %v11284 = vadd.f32 %v10450, %v11152
        %v11285 = vadd.f32 %v10451, %v11154
        %v11286 = vadd.f32 %v10452, %v11158
        %v11287 = vadd.f32 %v10453, %v11160
        %v11288 = vadd.f32 %v10454, %v11162
        %v11289 = vadd.f32 %v10455, %v11164
        %v11290 = vadd.f32 %v10456, %v11168
        %v11291 = vadd.f32 %v10457, %v11170
        %v11292 = vadd.f32 %v10458, %v11172
        %v11293 = vadd.f32 %v10459, %v11174
        %v11294 = vadd.f32 %v10460, %v11178
        %v11295 = vadd.f32 %v10461, %v11180
        %v11296 = vadd.f32 %v10462, %v11182
        %v11297 = vadd.f32 %v10463, %v11184
        %v11298 = vadd.f32 %v10464, %v11188
        %v11299 = vadd.f32 %v10465, %v11190
        %v11300 = vadd.f32 %v10466, %v11192
        %v11301 = vadd.f32 %v10467, %v11194
        %v11302 = vadd.f32 %v10468, %v11198
        %v11303 = vadd.f32 %v10469, %v11200
        %v11304 = vadd.f32 %v10470, %v11202
        %v11305 = vadd.f32 %v10471, %v11204
        %v11306 = vadd.f32 %v10472, %v11208
        %v11307 = vadd.f32 %v10473, %v11210
        %v11308 = vadd.f32 %v10474, %v11212
        %v11309 = vadd.f32 %v10475, %v11214
        %v11310 = vadd.f32 %v10476, %v11218
        %v11311 = vadd.f32 %v10477, %v11220
        %v11312 = vadd.f32 %v10478, %v11222
        %v11313 = vadd.f32 %v10479, %v11224
        %v11314 = vadd.f32 %v10480, %v11228
        %v11315 = vadd.f32 %v10481, %v11230
        %v11316 = vadd.f32 %v10482, %v11232
        %v11317 = vadd.f32 %v10483, %v11234
        %v11318 = vadd.f32 %v10484, %v11238
        %v11319 = vadd.f32 %v10485, %v11240
        %v11320 = vadd.f32 %v10486, %v11242
        %v11321 = vadd.f32 %v10487, %v11244
        %v11322 = vadd.f32 %v10488, %v11248
        %v11323 = vadd.f32 %v10489, %v11250
        %v11324 = vadd.f32 %v10490, %v11252
        %v11325 = vadd.f32 %v10491, %v11254
        %v11326 = vadd.f32 %v10492, %v11258
        %v11327 = vadd.f32 %v10493, %v11260
        %v11328 = vadd.f32 %v10494, %v11262
        %v11329 = vadd.f32 %v10495, %v11264
        %v11330 = vadd.f32 %v11266, %v11268
        %v11331 = vadd.f32 %v11330, %v11270
        %v11332 = vadd.f32 %v11331, %v11272
        %v11333 = vadd.f32 %v11332, %v11274
        %v11334 = vadd.f32 %v11333, %v11276
        %v11335 = vadd.f32 %v11334, %v11278
        %v11336 = vadd.f32 %v11335, %v11280
        %v11337 = vadd.f32 %v11336, %v11282
        %v11338 = vadd.f32 %v11337, %v11284
        %v11339 = vadd.f32 %v11338, %v11286
        %v11340 = vadd.f32 %v11339, %v11288
        %v11341 = vadd.f32 %v11340, %v11290
        %v11342 = vadd.f32 %v11341, %v11292
        %v11343 = vadd.f32 %v11342, %v11294
        %v11344 = vadd.f32 %v11343, %v11296
        %v11345 = vadd.f32 %v11344, %v11298
        %v11346 = vadd.f32 %v11345, %v11300
        %v11347 = vadd.f32 %v11346, %v11302
        %v11348 = vadd.f32 %v11347, %v11304
        %v11349 = vadd.f32 %v11348, %v11306
        %v11350 = vadd.f32 %v11349, %v11308
        %v11351 = vadd.f32 %v11350, %v11310
        %v11352 = vadd.f32 %v11351, %v11312
        %v11353 = vadd.f32 %v11352, %v11314
        %v11354 = vadd.f32 %v11353, %v11316
        %v11355 = vadd.f32 %v11354, %v11318
        %v11356 = vadd.f32 %v11355, %v11320
        %v11357 = vadd.f32 %v11356, %v11322
        %v11358 = vadd.f32 %v11357, %v11324
        %v11359 = vadd.f32 %v11358, %v11326
        %v11360 = vadd.f32 %v11359, %v11328
        %v11361 = vrot.slane %v11360, 4
        %v11362 = vadd.f32 %v11360, %v11361
        %v11363 = vrot.slane %v11362, 2
        %v11364 = vadd.f32 %v11362, %v11363
        %v11365 = vrot.slane %v11364, 1
        %v11366 = vadd.f32 %v11364, %v11365
        %v11367 = vadd.f32 %v11267, %v11269
        %v11368 = vadd.f32 %v11367, %v11271
        %v11369 = vadd.f32 %v11368, %v11273
        %v11370 = vadd.f32 %v11369, %v11275
        %v11371 = vadd.f32 %v11370, %v11277
        %v11372 = vadd.f32 %v11371, %v11279
        %v11373 = vadd.f32 %v11372, %v11281
        %v11374 = vadd.f32 %v11373, %v11283
        %v11375 = vadd.f32 %v11374, %v11285
        %v11376 = vadd.f32 %v11375, %v11287
        %v11377 = vadd.f32 %v11376, %v11289
        %v11378 = vadd.f32 %v11377, %v11291
        %v11379 = vadd.f32 %v11378, %v11293
        %v11380 = vadd.f32 %v11379, %v11295
        %v11381 = vadd.f32 %v11380, %v11297
        %v11382 = vadd.f32 %v11381, %v11299
        %v11383 = vadd.f32 %v11382, %v11301
        %v11384 = vadd.f32 %v11383, %v11303
        %v11385 = vadd.f32 %v11384, %v11305
        %v11386 = vadd.f32 %v11385, %v11307
        %v11387 = vadd.f32 %v11386, %v11309
        %v11388 = vadd.f32 %v11387, %v11311
        %v11389 = vadd.f32 %v11388, %v11313
        %v11390 = vadd.f32 %v11389, %v11315
        %v11391 = vadd.f32 %v11390, %v11317
        %v11392 = vadd.f32 %v11391, %v11319
        %v11393 = vadd.f32 %v11392, %v11321
        %v11394 = vadd.f32 %v11393, %v11323
        %v11395 = vadd.f32 %v11394, %v11325
        %v11396 = vadd.f32 %v11395, %v11327
        %v11397 = vadd.f32 %v11396, %v11329
        %v11398 = vrot.slane %v11397, 4
        %v11399 = vadd.f32 %v11397, %v11398
        %v11400 = vrot.slane %v11399, 2
        %v11401 = vadd.f32 %v11399, %v11400
        %v11402 = vrot.slane %v11401, 1
        %v11403 = vadd.f32 %v11401, %v11402
        %v11404 = vmul.f32 %v11366, %v3853
        %v11405 = vmul.f32 %v11403, %v3853
        %v11406 = vsub.f32 %v11266, %v11404
        %v11407 = vsub.f32 %v11267, %v11405
        %v11408 = vsub.f32 %v11268, %v11404
        %v11409 = vsub.f32 %v11269, %v11405
        %v11410 = vsub.f32 %v11270, %v11404
        %v11411 = vsub.f32 %v11271, %v11405
        %v11412 = vsub.f32 %v11272, %v11404
        %v11413 = vsub.f32 %v11273, %v11405
        %v11414 = vsub.f32 %v11274, %v11404
        %v11415 = vsub.f32 %v11275, %v11405
        %v11416 = vsub.f32 %v11276, %v11404
        %v11417 = vsub.f32 %v11277, %v11405
        %v11418 = vsub.f32 %v11278, %v11404
        %v11419 = vsub.f32 %v11279, %v11405
        %v11420 = vsub.f32 %v11280, %v11404
        %v11421 = vsub.f32 %v11281, %v11405
        %v11422 = vsub.f32 %v11282, %v11404
        %v11423 = vsub.f32 %v11283, %v11405
        %v11424 = vsub.f32 %v11284, %v11404
        %v11425 = vsub.f32 %v11285, %v11405
        %v11426 = vsub.f32 %v11286, %v11404
        %v11427 = vsub.f32 %v11287, %v11405
        %v11428 = vsub.f32 %v11288, %v11404
        %v11429 = vsub.f32 %v11289, %v11405
        %v11430 = vsub.f32 %v11290, %v11404
        %v11431 = vsub.f32 %v11291, %v11405
        %v11432 = vsub.f32 %v11292, %v11404
        %v11433 = vsub.f32 %v11293, %v11405
        %v11434 = vsub.f32 %v11294, %v11404
        %v11435 = vsub.f32 %v11295, %v11405
        %v11436 = vsub.f32 %v11296, %v11404
        %v11437 = vsub.f32 %v11297, %v11405
        %v11438 = vsub.f32 %v11298, %v11404
        %v11439 = vsub.f32 %v11299, %v11405
        %v11440 = vsub.f32 %v11300, %v11404
        %v11441 = vsub.f32 %v11301, %v11405
        %v11442 = vsub.f32 %v11302, %v11404
        %v11443 = vsub.f32 %v11303, %v11405
        %v11444 = vsub.f32 %v11304, %v11404
        %v11445 = vsub.f32 %v11305, %v11405
        %v11446 = vsub.f32 %v11306, %v11404
        %v11447 = vsub.f32 %v11307, %v11405
        %v11448 = vsub.f32 %v11308, %v11404
        %v11449 = vsub.f32 %v11309, %v11405
        %v11450 = vsub.f32 %v11310, %v11404
        %v11451 = vsub.f32 %v11311, %v11405
        %v11452 = vsub.f32 %v11312, %v11404
        %v11453 = vsub.f32 %v11313, %v11405
        %v11454 = vsub.f32 %v11314, %v11404
        %v11455 = vsub.f32 %v11315, %v11405
        %v11456 = vsub.f32 %v11316, %v11404
        %v11457 = vsub.f32 %v11317, %v11405
        %v11458 = vsub.f32 %v11318, %v11404
        %v11459 = vsub.f32 %v11319, %v11405
        %v11460 = vsub.f32 %v11320, %v11404
        %v11461 = vsub.f32 %v11321, %v11405
        %v11462 = vsub.f32 %v11322, %v11404
        %v11463 = vsub.f32 %v11323, %v11405
        %v11464 = vsub.f32 %v11324, %v11404
        %v11465 = vsub.f32 %v11325, %v11405
        %v11466 = vsub.f32 %v11326, %v11404
        %v11467 = vsub.f32 %v11327, %v11405
        %v11468 = vsub.f32 %v11328, %v11404
        %v11469 = vsub.f32 %v11329, %v11405
        %v11470 = vmul.f32 %v11406, %v11406
        %v11471 = vmul.f32 %v11407, %v11407
        %v11472 = vmul.f32 %v11408, %v11408
        %v11473 = vmul.f32 %v11409, %v11409
        %v11474 = vmul.f32 %v11410, %v11410
        %v11475 = vmul.f32 %v11411, %v11411
        %v11476 = vmul.f32 %v11412, %v11412
        %v11477 = vmul.f32 %v11413, %v11413
        %v11478 = vmul.f32 %v11414, %v11414
        %v11479 = vmul.f32 %v11415, %v11415
        %v11480 = vmul.f32 %v11416, %v11416
        %v11481 = vmul.f32 %v11417, %v11417
        %v11482 = vmul.f32 %v11418, %v11418
        %v11483 = vmul.f32 %v11419, %v11419
        %v11484 = vmul.f32 %v11420, %v11420
        %v11485 = vmul.f32 %v11421, %v11421
        %v11486 = vmul.f32 %v11422, %v11422
        %v11487 = vmul.f32 %v11423, %v11423
        %v11488 = vmul.f32 %v11424, %v11424
        %v11489 = vmul.f32 %v11425, %v11425
        %v11490 = vmul.f32 %v11426, %v11426
        %v11491 = vmul.f32 %v11427, %v11427
        %v11492 = vmul.f32 %v11428, %v11428
        %v11493 = vmul.f32 %v11429, %v11429
        %v11494 = vmul.f32 %v11430, %v11430
        %v11495 = vmul.f32 %v11431, %v11431
        %v11496 = vmul.f32 %v11432, %v11432
        %v11497 = vmul.f32 %v11433, %v11433
        %v11498 = vmul.f32 %v11434, %v11434
        %v11499 = vmul.f32 %v11435, %v11435
        %v11500 = vmul.f32 %v11436, %v11436
        %v11501 = vmul.f32 %v11437, %v11437
        %v11502 = vmul.f32 %v11438, %v11438
        %v11503 = vmul.f32 %v11439, %v11439
        %v11504 = vmul.f32 %v11440, %v11440
        %v11505 = vmul.f32 %v11441, %v11441
        %v11506 = vmul.f32 %v11442, %v11442
        %v11507 = vmul.f32 %v11443, %v11443
        %v11508 = vmul.f32 %v11444, %v11444
        %v11509 = vmul.f32 %v11445, %v11445
        %v11510 = vmul.f32 %v11446, %v11446
        %v11511 = vmul.f32 %v11447, %v11447
        %v11512 = vmul.f32 %v11448, %v11448
        %v11513 = vmul.f32 %v11449, %v11449
        %v11514 = vmul.f32 %v11450, %v11450
        %v11515 = vmul.f32 %v11451, %v11451
        %v11516 = vmul.f32 %v11452, %v11452
        %v11517 = vmul.f32 %v11453, %v11453
        %v11518 = vmul.f32 %v11454, %v11454
        %v11519 = vmul.f32 %v11455, %v11455
        %v11520 = vmul.f32 %v11456, %v11456
        %v11521 = vmul.f32 %v11457, %v11457
        %v11522 = vmul.f32 %v11458, %v11458
        %v11523 = vmul.f32 %v11459, %v11459
        %v11524 = vmul.f32 %v11460, %v11460
        %v11525 = vmul.f32 %v11461, %v11461
        %v11526 = vmul.f32 %v11462, %v11462
        %v11527 = vmul.f32 %v11463, %v11463
        %v11528 = vmul.f32 %v11464, %v11464
        %v11529 = vmul.f32 %v11465, %v11465
        %v11530 = vmul.f32 %v11466, %v11466
        %v11531 = vmul.f32 %v11467, %v11467
        %v11532 = vmul.f32 %v11468, %v11468
        %v11533 = vmul.f32 %v11469, %v11469
        %v11534 = vadd.f32 %v11470, %v11472
        %v11535 = vadd.f32 %v11534, %v11474
        %v11536 = vadd.f32 %v11535, %v11476
        %v11537 = vadd.f32 %v11536, %v11478
        %v11538 = vadd.f32 %v11537, %v11480
        %v11539 = vadd.f32 %v11538, %v11482
        %v11540 = vadd.f32 %v11539, %v11484
        %v11541 = vadd.f32 %v11540, %v11486
        %v11542 = vadd.f32 %v11541, %v11488
        %v11543 = vadd.f32 %v11542, %v11490
        %v11544 = vadd.f32 %v11543, %v11492
        %v11545 = vadd.f32 %v11544, %v11494
        %v11546 = vadd.f32 %v11545, %v11496
        %v11547 = vadd.f32 %v11546, %v11498
        %v11548 = vadd.f32 %v11547, %v11500
        %v11549 = vadd.f32 %v11548, %v11502
        %v11550 = vadd.f32 %v11549, %v11504
        %v11551 = vadd.f32 %v11550, %v11506
        %v11552 = vadd.f32 %v11551, %v11508
        %v11553 = vadd.f32 %v11552, %v11510
        %v11554 = vadd.f32 %v11553, %v11512
        %v11555 = vadd.f32 %v11554, %v11514
        %v11556 = vadd.f32 %v11555, %v11516
        %v11557 = vadd.f32 %v11556, %v11518
        %v11558 = vadd.f32 %v11557, %v11520
        %v11559 = vadd.f32 %v11558, %v11522
        %v11560 = vadd.f32 %v11559, %v11524
        %v11561 = vadd.f32 %v11560, %v11526
        %v11562 = vadd.f32 %v11561, %v11528
        %v11563 = vadd.f32 %v11562, %v11530
        %v11564 = vadd.f32 %v11563, %v11532
        %v11565 = vrot.slane %v11564, 4
        %v11566 = vadd.f32 %v11564, %v11565
        %v11567 = vrot.slane %v11566, 2
        %v11568 = vadd.f32 %v11566, %v11567
        %v11569 = vrot.slane %v11568, 1
        %v11570 = vadd.f32 %v11568, %v11569
        %v11571 = vadd.f32 %v11471, %v11473
        %v11572 = vadd.f32 %v11571, %v11475
        %v11573 = vadd.f32 %v11572, %v11477
        %v11574 = vadd.f32 %v11573, %v11479
        %v11575 = vadd.f32 %v11574, %v11481
        %v11576 = vadd.f32 %v11575, %v11483
        %v11577 = vadd.f32 %v11576, %v11485
        %v11578 = vadd.f32 %v11577, %v11487
        %v11579 = vadd.f32 %v11578, %v11489
        %v11580 = vadd.f32 %v11579, %v11491
        %v11581 = vadd.f32 %v11580, %v11493
        %v11582 = vadd.f32 %v11581, %v11495
        %v11583 = vadd.f32 %v11582, %v11497
        %v11584 = vadd.f32 %v11583, %v11499
        %v11585 = vadd.f32 %v11584, %v11501
        %v11586 = vadd.f32 %v11585, %v11503
        %v11587 = vadd.f32 %v11586, %v11505
        %v11588 = vadd.f32 %v11587, %v11507
        %v11589 = vadd.f32 %v11588, %v11509
        %v11590 = vadd.f32 %v11589, %v11511
        %v11591 = vadd.f32 %v11590, %v11513
        %v11592 = vadd.f32 %v11591, %v11515
        %v11593 = vadd.f32 %v11592, %v11517
        %v11594 = vadd.f32 %v11593, %v11519
        %v11595 = vadd.f32 %v11594, %v11521
        %v11596 = vadd.f32 %v11595, %v11523
        %v11597 = vadd.f32 %v11596, %v11525
        %v11598 = vadd.f32 %v11597, %v11527
        %v11599 = vadd.f32 %v11598, %v11529
        %v11600 = vadd.f32 %v11599, %v11531
        %v11601 = vadd.f32 %v11600, %v11533
        %v11602 = vrot.slane %v11601, 4
        %v11603 = vadd.f32 %v11601, %v11602
        %v11604 = vrot.slane %v11603, 2
        %v11605 = vadd.f32 %v11603, %v11604
        %v11606 = vrot.slane %v11605, 1
        %v11607 = vadd.f32 %v11605, %v11606
        %v11608 = vmul.f32 %v11570, %v3853
        %v11609 = vmul.f32 %v11607, %v3853
        %v11610 = vadd.f32 %v11608, 1e-05
        %v11611 = vadd.f32 %v11609, 1e-05
        %v11612 = vrsqrt.pop %v11610
        %v11613 = vrsqrt.pop %v11611
        %v11614 = vmul.f32 %v11406, %v11612
        %v11615 = vmul.f32 %v11407, %v11613
        %v11616 = vmul.f32 %v11408, %v11612
        %v11617 = vmul.f32 %v11409, %v11613
        %v11618 = vmul.f32 %v11410, %v11612
        %v11619 = vmul.f32 %v11411, %v11613
        %v11620 = vmul.f32 %v11412, %v11612
        %v11621 = vmul.f32 %v11413, %v11613
        %v11622 = vmul.f32 %v11414, %v11612
        %v11623 = vmul.f32 %v11415, %v11613
        %v11624 = vmul.f32 %v11416, %v11612
        %v11625 = vmul.f32 %v11417, %v11613
        %v11626 = vmul.f32 %v11418, %v11612
        %v11627 = vmul.f32 %v11419, %v11613
        %v11628 = vmul.f32 %v11420, %v11612
        %v11629 = vmul.f32 %v11421, %v11613
        %v11630 = vmul.f32 %v11422, %v11612
        %v11631 = vmul.f32 %v11423, %v11613
        %v11632 = vmul.f32 %v11424, %v11612
        %v11633 = vmul.f32 %v11425, %v11613
        %v11634 = vmul.f32 %v11426, %v11612
        %v11635 = vmul.f32 %v11427, %v11613
        %v11636 = vmul.f32 %v11428, %v11612
        %v11637 = vmul.f32 %v11429, %v11613
        %v11638 = vmul.f32 %v11430, %v11612
        %v11639 = vmul.f32 %v11431, %v11613
        %v11640 = vmul.f32 %v11432, %v11612
        %v11641 = vmul.f32 %v11433, %v11613
        %v11642 = vmul.f32 %v11434, %v11612
        %v11643 = vmul.f32 %v11435, %v11613
        %v11644 = vmul.f32 %v11436, %v11612
        %v11645 = vmul.f32 %v11437, %v11613
        %v11646 = vmul.f32 %v11438, %v11612
        %v11647 = vmul.f32 %v11439, %v11613
        %v11648 = vmul.f32 %v11440, %v11612
        %v11649 = vmul.f32 %v11441, %v11613
        %v11650 = vmul.f32 %v11442, %v11612
        %v11651 = vmul.f32 %v11443, %v11613
        %v11652 = vmul.f32 %v11444, %v11612
        %v11653 = vmul.f32 %v11445, %v11613
        %v11654 = vmul.f32 %v11446, %v11612
        %v11655 = vmul.f32 %v11447, %v11613
        %v11656 = vmul.f32 %v11448, %v11612
        %v11657 = vmul.f32 %v11449, %v11613
        %v11658 = vmul.f32 %v11450, %v11612
        %v11659 = vmul.f32 %v11451, %v11613
        %v11660 = vmul.f32 %v11452, %v11612
        %v11661 = vmul.f32 %v11453, %v11613
        %v11662 = vmul.f32 %v11454, %v11612
        %v11663 = vmul.f32 %v11455, %v11613
        %v11664 = vmul.f32 %v11456, %v11612
        %v11665 = vmul.f32 %v11457, %v11613
        %v11666 = vmul.f32 %v11458, %v11612
        %v11667 = vmul.f32 %v11459, %v11613
        %v11668 = vmul.f32 %v11460, %v11612
        %v11669 = vmul.f32 %v11461, %v11613
        %v11670 = vmul.f32 %v11462, %v11612
        %v11671 = vmul.f32 %v11463, %v11613
        %v11672 = vmul.f32 %v11464, %v11612
        %v11673 = vmul.f32 %v11465, %v11613
        %v11674 = vmul.f32 %v11466, %v11612
        %v11675 = vmul.f32 %v11467, %v11613
        %v11676 = vmul.f32 %v11468, %v11612
        %v11677 = vmul.f32 %v11469, %v11613
        %11678 = vst [vmem:[%s163] sm:$0xff] %v170
        %11679 = vst [vmem:[%s163 + $0x18] sm:$0xff] %v171
        %11680 = vst [vmem:[%s163 + $0x30] sm:$0xff] %v172
        %11681 = vst [vmem:[%s163 + $0x48] sm:$0xff] %v173
        %11682 = vst [vmem:[%s163 + $0x60] sm:$0xff] %v174
        %11683 = vst [vmem:[%s163 + $0x78] sm:$0xff] %v175
        %11684 = vst [vmem:[%s163 + $0x90] sm:$0xff] %v176
        %11685 = vst [vmem:[%s163 + $0xa8] sm:$0xff] %v177
        %11686 = vst [vmem:[%s163 + $0xc0] sm:$0xff] %v178
        %11687 = vst [vmem:[%s163 + $0xd8] sm:$0xff] %v179
        %11688 = vst [vmem:[%s163 + $0xf0] sm:$0xff] %v180
        %11689 = vst [vmem:[%s163 + $0x108] sm:$0xff] %v181
        %11690 = vst [vmem:[%s163 + $0x120] sm:$0xff] %v182
        %11691 = vst [vmem:[%s163 + $0x138] sm:$0xff] %v183
        %11692 = vst [vmem:[%s163 + $0x150] sm:$0xff] %v184
        %11693 = vst [vmem:[%s163 + $0x168] sm:$0xff] %v185
        %11694 = vst [vmem:[%s163 + $0x180] sm:$0xff] %v186
        %11695 = vst [vmem:[%s163 + $0x198] sm:$0xff] %v187
        %11696 = vst [vmem:[%s163 + $0x1b0] sm:$0xff] %v188
        %11697 = vst [vmem:[%s163 + $0x1c8] sm:$0xff] %v189
        %11698 = vst [vmem:[%s163 + $0x1e0] sm:$0xff] %v190
        %11699 = vst [vmem:[%s163 + $0x1f8] sm:$0xff] %v191
        %11700 = vst [vmem:[%s163 + $0x210] sm:$0xff] %v192
        %11701 = vst [vmem:[%s163 + $0x228] sm:$0xff] %v193
        %11702 = vst [vmem:[%s163 + $0x240] sm:$0xff] %v194
        %11703 = vst [vmem:[%s163 + $0x258] sm:$0xff] %v195
        %11704 = vst [vmem:[%s163 + $0x270] sm:$0xff] %v196
        %11705 = vst [vmem:[%s163 + $0x288] sm:$0xff] %v197
        %11706 = vst [vmem:[%s163 + $0x2a0] sm:$0xff] %v198
        %11707 = vst [vmem:[%s163 + $0x2b8] sm:$0xff] %v199
        %11708 = vst [vmem:[%s163 + $0x2d0] sm:$0xff] %v200
        %11709 = vst [vmem:[%s163 + $0x2e8] sm:$0xff] %v201
        %11710 = vst [vmem:[%s163 + $0x8] sm:$0xff] %v11614
        %11711 = vst [vmem:[%s163 + $0x10] sm:$0xff] %v11615
        %11712 = vst [vmem:[%s163 + $0x20] sm:$0xff] %v11616
        %11713 = vst [vmem:[%s163 + $0x28] sm:$0xff] %v11617
        %11714 = vst [vmem:[%s163 + $0x38] sm:$0xff] %v11618
        %11715 = vst [vmem:[%s163 + $0x40] sm:$0xff] %v11619
        %11716 = vst [vmem:[%s163 + $0x50] sm:$0xff] %v11620
        %11717 = vst [vmem:[%s163 + $0x58] sm:$0xff] %v11621
        %11718 = vst [vmem:[%s163 + $0x68] sm:$0xff] %v11622
        %11719 = vst [vmem:[%s163 + $0x70] sm:$0xff] %v11623
        %11720 = vst [vmem:[%s163 + $0x80] sm:$0xff] %v11624
        %11721 = vst [vmem:[%s163 + $0x88] sm:$0xff] %v11625
        %11722 = vst [vmem:[%s163 + $0x98] sm:$0xff] %v11626
        %11723 = vst [vmem:[%s163 + $0xa0] sm:$0xff] %v11627
        %11724 = vst [vmem:[%s163 + $0xb0] sm:$0xff] %v11628
        %11725 = vst [vmem:[%s163 + $0xb8] sm:$0xff] %v11629
        %11726 = vst [vmem:[%s163 + $0xc8] sm:$0xff] %v11630
        %11727 = vst [vmem:[%s163 + $0xd0] sm:$0xff] %v11631
        %11728 = vst [vmem:[%s163 + $0xe0] sm:$0xff] %v11632
        %11729 = vst [vmem:[%s163 + $0xe8] sm:$0xff] %v11633
        %11730 = vst [vmem:[%s163 + $0xf8] sm:$0xff] %v11634
        %11731 = vst [vmem:[%s163 + $0x100] sm:$0xff] %v11635
        %11732 = vst [vmem:[%s163 + $0x110] sm:$0xff] %v11636
        %11733 = vst [vmem:[%s163 + $0x118] sm:$0xff] %v11637
        %11734 = vst [vmem:[%s163 + $0x128] sm:$0xff] %v11638
        %11735 = vst [vmem:[%s163 + $0x130] sm:$0xff] %v11639
        %11736 = vst [vmem:[%s163 + $0x140] sm:$0xff] %v11640
        %11737 = vst [vmem:[%s163 + $0x148] sm:$0xff] %v11641
        %11738 = vst [vmem:[%s163 + $0x158] sm:$0xff] %v11642
        %11739 = vst [vmem:[%s163 + $0x160] sm:$0xff] %v11643
        %11740 = vst [vmem:[%s163 + $0x170] sm:$0xff] %v11644
        %11741 = vst [vmem:[%s163 + $0x178] sm:$0xff] %v11645
        %11742 = vst [vmem:[%s163 + $0x188] sm:$0xff] %v11646
        %11743 = vst [vmem:[%s163 + $0x190] sm:$0xff] %v11647
        %11744 = vst [vmem:[%s163 + $0x1a0] sm:$0xff] %v11648
        %11745 = vst [vmem:[%s163 + $0x1a8] sm:$0xff] %v11649
        %11746 = vst [vmem:[%s163 + $0x1b8] sm:$0xff] %v11650
        %11747 = vst [vmem:[%s163 + $0x1c0] sm:$0xff] %v11651
        %11748 = vst [vmem:[%s163 + $0x1d0] sm:$0xff] %v11652
        %11749 = vst [vmem:[%s163 + $0x1d8] sm:$0xff] %v11653
        %11750 = vst [vmem:[%s163 + $0x1e8] sm:$0xff] %v11654
        %11751 = vst [vmem:[%s163 + $0x1f0] sm:$0xff] %v11655
        %11752 = vst [vmem:[%s163 + $0x200] sm:$0xff] %v11656
        %11753 = vst [vmem:[%s163 + $0x208] sm:$0xff] %v11657
        %11754 = vst [vmem:[%s163 + $0x218] sm:$0xff] %v11658
        %11755 = vst [vmem:[%s163 + $0x220] sm:$0xff] %v11659
        %11756 = vst [vmem:[%s163 + $0x230] sm:$0xff] %v11660
        %11757 = vst [vmem:[%s163 + $0x238] sm:$0xff] %v11661
        %11758 = vst [vmem:[%s163 + $0x248] sm:$0xff] %v11662
        %11759 = vst [vmem:[%s163 + $0x250] sm:$0xff] %v11663
        %11760 = vst [vmem:[%s163 + $0x260] sm:$0xff] %v11664
        %11761 = vst [vmem:[%s163 + $0x268] sm:$0xff] %v11665
        %11762 = vst [vmem:[%s163 + $0x278] sm:$0xff] %v11666
        %11763 = vst [vmem:[%s163 + $0x280] sm:$0xff] %v11667
        %11764 = vst [vmem:[%s163 + $0x290] sm:$0xff] %v11668
        %11765 = vst [vmem:[%s163 + $0x298] sm:$0xff] %v11669
        %11766 = vst [vmem:[%s163 + $0x2a8] sm:$0xff] %v11670
        %11767 = vst [vmem:[%s163 + $0x2b0] sm:$0xff] %v11671
        %11768 = vst [vmem:[%s163 + $0x2c0] sm:$0xff] %v11672
        %11769 = vst [vmem:[%s163 + $0x2c8] sm:$0xff] %v11673
        %11770 = vst [vmem:[%s163 + $0x2d8] sm:$0xff] %v11674
        %11771 = vst [vmem:[%s163 + $0x2e0] sm:$0xff] %v11675
        %11772 = vst [vmem:[%s163 + $0x2f0] sm:$0xff] %v11676
        %11773 = vst [vmem:[%s163 + $0x2f8] sm:$0xff] %v11677
        %s11774 = sand.u32 %s93, 1
        %s11775 = scalar_lea.sflag [#allocation5], %s11774
        %s11776 = sand.u32 %s93, 1
        %s11777 = smul.addr %s11776, 768
        %s11778 = scalar_lea.vmem [#allocation4], %s11777
        // Predicated region
        $region33: #{dense_block.1} parent=31 // pred_check
          %p11779 = pneg %p103
        $region34: #{dense_block.1} parent=31 // pred_check_branch
          %11781 = sbr.rel (%p11779) target = $region36
        $region35: #{dense_block.1} parent=31 // pred_region
          %s11783 = ssub.s32 12288, 12288
          %11784 = vsyncadd %s11775, %s11783
          %s11785 = smul.addr %s17, 96
          %s11786 = smul.addr %s11785, 128
          %s11787 = scalar_lea.hbm %s3, %s11786
          %s11788 = sshll.u32 %s11778, 4
          %s11789 = int_to_ptr.vmem [resolvable:$true] %s11788
          %11794 = dma.vmem_to_hbm [thread:$0]  %s11789, 12288, %s11787, %s11775, 384, 384, 24
        $region36: #{dense_block.1} parent=31 // pred_fallthru
          _
      $region32: #{dense_block.1} parent=5 // pred_fallthru
        _
      %p11795 = scmp.le.s32.totalorder 2, %s12
      // Predicated region
      $region37: #{dense_block.1} parent=5 // pred_check
        %p11796 = pneg %p11795
      $region38: #{dense_block.1} parent=5 // pred_check_branch
        %11798 = sbr.rel (%p11796) target = $region40
      $region39: #{dense_block.1} parent=5 // pred_region
        %s11799 = ssub.s32 %s12, 2
        // Predicated region
        $region41: #{dense_block.1} parent=39 // pred_check
          %p11800 = pneg %p109
        $region42: #{dense_block.1} parent=39 // pred_check_branch
          %11802 = sbr.rel (%p11800) target = $region44
        $region43: #{dense_block.1} parent=39 // pred_region
          %s11803 = sand.u32 %s94, 1
          %s11804 = scalar_lea.sflag [#allocation5], %s11803
          %s11805 = sand.u32 %s94, 1
          %s11806 = smul.addr %s11805, 768
          %s11807 = scalar_lea.vmem [#allocation4], %s11806
          %11808 = dma.done %s11804, 12288
        $region44: #{dense_block.1} parent=39 // pred_fallthru
          _
      $region40: #{dense_block.1} parent=5 // pred_fallthru
        _
    $region6: #{dense_block.1} parent=1 // loop_footer
      %s16 = sadd.s32 1, %s12
    $region7: #{dense_block.1} parent=1 // loop_footer_branch
      %11 = sbr.rel target = $region3
    $region8: #{dense_block.1} parent=1 // loop_exit
      _
    %11809 = vsyncpa [#allocation5], 1
    %s11810 = scalar_lea.sflag [#allocation5], 1
    %11811 = vsyncpa %s11810, 1

</llo_original>
